<compile_context>
chip_gen: v6e
topology: v6e:2x2x1
jax: 0.10.0
libtpu: 0.0.40
codegen_flags: <defaults>
</compile_context>

<pallas_src>
import math

import jax
import jax.numpy as jnp
from jax.experimental import pallas as pl
from jax.experimental.pallas import tpu as pltpu

# ----------------------------- configuration --------------------------------
MUL = 8                           # multiplicity of each irrep block
EDGE_ATTR_DIM = 20
EDGE_ATTR_PAD = 24                # padded to a sublane multiple
HIDDEN_MLP = 128
NUM_SCALAR = MUL                  # irreps_in[0].mul
NUM_IRREPS = 2 * MUL              # MUL scalars + MUL vectors
S0_DIM = NUM_SCALAR + NUM_IRREPS  # 8 + 16 = 24
TP_WEIGHT_NUMEL = 4 * MUL         # 32 (4 'uuu' paths, one weight per channel)
TP_SCALAR = 2 * MUL               # tp_out 0e channels (0e*0e and 1o*1o paths)
TP_VECTOR = 2 * MUL               # tp_out 1o channels (0e*1o and 1o*0e paths)
FEAT_DIM = 4 * MUL                # 32, both for irreps_in and irreps_hidden
MLP_IN_FUSED = S0_DIM + EDGE_ATTR_PAD       # 48
MLP_HID_FUSED = 2 * HIDDEN_MLP              # 256
MLP_OUT_FUSED = 2 * TP_WEIGHT_NUMEL         # 64
EPS = 1e-6
TE = 1024                         # edge tile in lanes (multiple of 128)

INV_SQRT3 = 1.0 / math.sqrt(3.0)
INV_SQRT_MUL = 1.0 / math.sqrt(MUL)
INV_SQRT_TP = 1.0 / math.sqrt(TP_SCALAR)

# TODO(synk): exact e3nn path/weight normalization constants and the internals of
# xequinet's Gate(refine=True) are approximated (norm-gated SiLU with a learnable
# per-channel affine); all shapes, dataflow and axis conventions match the module.
# TODO(synk): the x[edge_index] gather stays in XLA; an in-kernel gather from a
# VMEM-resident node table (scalar-prefetched edge_index) could remove ~256 B/edge
# of HBM traffic but is left out here for robustness.


# ------------------------------- kernel -------------------------------------
def pair_layer_kernel(
    xi_ref, xj_ref, ea_ref, fin_ref,
    wpre_ref, bpre_ref, gpre_g_ref, gpre_b_ref,
    w1_ref, b1_ref, w2_ref, b2_ref,
    gpost_g_ref, gpost_b_ref, wpost_ref,
    o_ref,
):
    f32 = jnp.float32

    xi = xi_ref[...].astype(f32)                      # [32, TE]
    xj = xj_ref[...].astype(f32)
    te = xi.shape[1]

    xs_i, xs_j = xi[:MUL], xj[:MUL]                   # [8, TE]
    vxi, vyi, vzi = xi[MUL:2 * MUL], xi[2 * MUL:3 * MUL], xi[3 * MUL:]
    vxj, vyj, vzj = xj[MUL:2 * MUL], xj[2 * MUL:3 * MUL], xj[3 * MUL:]

    # ---- EquivariantDot (only the l=1 channels survive the [:, num_scalar:] slice)
    dot_v = (vxi * vxj + vyi * vyj + vzi * vzj) * INV_SQRT3       # [8, TE]

    # ---- both edge MLPs -> per-edge 'uuu' tensor-product weights
    #      (fused into one block-diagonal matmul per layer)
    ea = ea_ref[...].astype(f32)                                  # [24, TE] (zero-padded rows)
    mlp_in = jnp.concatenate([xs_i, xs_j, dot_v, ea], axis=0)     # [48, TE]
    h = jax.nn.silu(jnp.dot(w1_ref[...], mlp_in, preferred_element_type=f32)
                    + b1_ref[...])                                # [256, TE]
    w_both = jnp.dot(w2_ref[...], h, preferred_element_type=f32) + b2_ref[...]  # [64, TE]
    tp_w = w_both[:TP_WEIGHT_NUMEL] * w_both[TP_WEIGHT_NUMEL:]    # [32, TE]

    # ---- x_prime = gate_pre(linear_node_pre(x)) at both endpoints
    #      linear_node_pre fused into one block-diag [32,32] matmul (scale folded in)
    wpre = wpre_ref[...]
    bpre = jnp.broadcast_to(bpre_ref[...], (FEAT_DIM, te))        # hoisted (used twice)
    g_g = jnp.broadcast_to(gpre_g_ref[...], (MUL, te))
    g_b = jnp.broadcast_to(gpre_b_ref[...], (MUL, te))

    def node_pre(x_t):
        lin = jnp.dot(wpre, x_t, preferred_element_type=f32) + bpre   # [32, TE]
        s = lin[:MUL]
        vx, vy, vz = lin[MUL:2 * MUL], lin[2 * MUL:3 * MUL], lin[3 * MUL:]
        gate = jax.nn.silu(jnp.sqrt(vx * vx + vy * vy + vz * vz + EPS) * g_g + g_b)
        return jax.nn.silu(s), vx * gate, vy * gate, vz * gate

    ps_i, pvx_i, pvy_i, pvz_i = node_pre(xi)
    ps_j, pvx_j, pvy_j, pvz_j = node_pre(xj)

    # ---- pair_tp: 'uuu' tensor product with external per-edge weights
    w_ss = tp_w[0 * MUL:1 * MUL]   # 0e x 0e -> 0e
    w_sv = tp_w[1 * MUL:2 * MUL]   # 0e x 1o -> 1o
    w_vs = tp_w[2 * MUL:3 * MUL]   # 1o x 0e -> 1o
    w_vv = tp_w[3 * MUL:4 * MUL]   # 1o x 1o -> 0e

    tp_s = jnp.concatenate(
        [ps_i * ps_j * w_ss,
         (pvx_i * pvx_j + pvy_i * pvy_j + pvz_i * pvz_j) * INV_SQRT3 * w_vv],
        axis=0)                                                   # [16, TE]
    tp_vx = jnp.concatenate([ps_i * pvx_j * w_sv, pvx_i * ps_j * w_vs], axis=0)
    tp_vy = jnp.concatenate([ps_i * pvy_j * w_sv, pvy_i * ps_j * w_vs], axis=0)
    tp_vz = jnp.concatenate([ps_i * pvz_j * w_sv, pvz_i * ps_j * w_vs], axis=0)

    # ---- gate_post + fused linear_node_post (block-diag [32,64], scale folded in)
    gate2 = jax.nn.silu(
        jnp.sqrt(tp_vx * tp_vx + tp_vy * tp_vy + tp_vz * tp_vz + EPS)
        * gpost_g_ref[...] + gpost_b_ref[...])                    # [16, TE]
    g_slab = jnp.concatenate(
        [jax.nn.silu(tp_s), tp_vx * gate2, tp_vy * gate2, tp_vz * gate2],
        axis=0)                                                   # [64, TE]

    out = jnp.dot(wpost_ref[...], g_slab, preferred_element_type=f32)   # [32, TE]

    # residual add of fij_in (aliased with the output buffer in HBM)
    o_ref[...] = (out + fin_ref[...].astype(f32)).astype(o_ref.dtype)


# --------------------------- parameter fusion --------------------------------
def _block_diag(blocks):
    rows = sum(b.shape[0] for b in blocks)
    cols = sum(b.shape[1] for b in blocks)
    out = jnp.zeros((rows, cols), jnp.float32)
    r = c = 0
    for b in blocks:
        out = out.at[r:r + b.shape[0], c:c + b.shape[1]].set(b)
        r += b.shape[0]
        c += b.shape[1]
    return out


def fuse_params(p):
    """Build kernel-ready (transposed / block-diagonal / padded) weights."""
    # linear_node_pre as one [32,32] block-diag acting on [feat, E] slabs.
    wps_t = p["wps"].T * INV_SQRT_MUL
    wpv_t = p["wpv"].T * INV_SQRT_MUL
    wpre = _block_diag([wps_t, wpv_t, wpv_t, wpv_t])                 # [32, 32]
    bpre = jnp.concatenate(
        [p["bps"].reshape(MUL, 1), jnp.zeros((3 * MUL, 1), jnp.float32)], axis=0)

    # mlp_edge_scalar + mlp_edge_rbf fused layer-wise into block-diag matmuls.
    ws1_t = p["ws1"].T                                               # [128, 24]
    wr1_pad = jnp.zeros((EDGE_ATTR_PAD, HIDDEN_MLP), jnp.float32)
    wr1_pad = wr1_pad.at[:EDGE_ATTR_DIM].set(p["wr1"])
    wr1_t = wr1_pad.T                                                # [128, 24]
    w1 = _block_diag([ws1_t, wr1_t])                                 # [256, 48]
    b1 = jnp.concatenate(
        [p["bs1"].reshape(HIDDEN_MLP, 1), p["br1"].reshape(HIDDEN_MLP, 1)], axis=0)

    ws2_t = p["ws2"].T                                               # [32, 128]
    wr2_t = p["wr2"].T                                               # [32, 128]
    w2 = _block_diag([ws2_t, wr2_t])                                 # [64, 256]
    b2 = jnp.concatenate(
        [p["bs2"].reshape(TP_WEIGHT_NUMEL, 1), p["br2"].reshape(TP_WEIGHT_NUMEL, 1)],
        axis=0)

    gpre_g = p["gpre_g"].reshape(MUL, 1)
    gpre_b = p["gpre_b"].reshape(MUL, 1)
    gpost_g = p["gpost_g"].reshape(TP_SCALAR, 1)
    gpost_b = p["gpost_b"].reshape(TP_SCALAR, 1)

    # linear_node_post as one [32,64] block-diag producing the output layout directly.
    wos_t = p["wos"].T * INV_SQRT_TP                                 # [8, 16]
    wov_t = p["wov"].T * INV_SQRT_TP                                 # [8, 16]
    wpost = _block_diag([wos_t, wov_t, wov_t, wov_t])                # [32, 64]

    return [wpre, bpre, gpre_g, gpre_b,
            w1, b1, w2, b2,
            gpost_g, gpost_b, wpost]


# ------------------------------- wrapper -------------------------------------
@jax.jit
def pair_layer_forward(x, edge_attr, edge_index, fij_in, kweights):
    """x: [N, 32], edge_attr: [E, 20], edge_index: [2, E], fij_in: [E, 32] or None."""
    E = edge_index.shape[1]
    e_pad = pl.cdiv(E, TE) * TE
    dtype = x.dtype

    # --- glue (plain JAX): gather node features, pad the edge tail, transpose
    #     everything to the edges-on-lanes layout expected by the kernel.
    ei0 = jnp.zeros((e_pad,), jnp.int32).at[:E].set(edge_index[0])
    ei1 = jnp.zeros((e_pad,), jnp.int32).at[:E].set(edge_index[1])
    xi_t = x[ei0, :].T                                               # [32, e_pad]
    xj_t = x[ei1, :].T

    ea_t = jnp.zeros((EDGE_ATTR_PAD, e_pad), edge_attr.dtype)
    ea_t = ea_t.at[:EDGE_ATTR_DIM, :E].set(edge_attr.T)

    fin_t = jnp.zeros((FEAT_DIM, e_pad), dtype)
    if fij_in is not None:
        fin_t = fin_t.at[:, :E].set(fij_in.T.astype(dtype))

    edge_inputs = [xi_t, xj_t, ea_t, fin_t]

    def edge_spec(nrows):
        return pl.BlockSpec((nrows, TE), lambda e: (0, e))

    def const_spec(a):
        return pl.BlockSpec(a.shape, lambda e: (0, 0))

    in_specs = [edge_spec(a.shape[0]) for a in edge_inputs] \
        + [const_spec(w) for w in kweights]

    n_tiles = e_pad // TE

    mm_flops_per_edge = 2 * (
        MLP_IN_FUSED * MLP_HID_FUSED + MLP_HID_FUSED * MLP_OUT_FUSED  # fused edge MLPs
        + 2 * FEAT_DIM * FEAT_DIM                                     # node_pre at i and j
        + 4 * TP_SCALAR * FEAT_DIM)                                   # linear_node_post
    cost = pl.CostEstimate(
        flops=int(e_pad) * (mm_flops_per_edge + 400),
        transcendentals=int(e_pad) * 360,
        bytes_accessed=int(e_pad) * 4 * (3 * FEAT_DIM + EDGE_ATTR_PAD + FEAT_DIM),
    )

    out_t = pl.pallas_call(
        pair_layer_kernel,
        out_shape=jax.ShapeDtypeStruct((FEAT_DIM, e_pad), dtype),
        grid_spec=pltpu.PrefetchScalarGridSpec(
            num_scalar_prefetch=0,
            grid=(n_tiles,),
            in_specs=in_specs,
            out_specs=pl.BlockSpec((FEAT_DIM, TE), lambda e: (0, e)),
        ),
        compiler_params=pltpu.CompilerParams(
            dimension_semantics=("parallel",)),
        input_output_aliases={3: 0},        # fij_in slab aliased to the output slab
        cost_estimate=cost,
    )(*edge_inputs, *kweights)

    return out_t[:, :E].T                                            # [E, 32]


# ------------------------- pure-JAX reference ---------------------------------
def pair_layer_reference(x, edge_attr, edge_index, fij_in, p):
    xi = x[edge_index[0]]
    xj = x[edge_index[1]]
    xs_i, xs_j = xi[:, :MUL], xj[:, :MUL]
    vi = [xi[:, MUL * (m + 1):MUL * (m + 2)] for m in range(3)]
    vj = [xj[:, MUL * (m + 1):MUL * (m + 2)] for m in range(3)]

    dot_v = (vi[0] * vj[0] + vi[1] * vj[1] + vi[2] * vj[2]) * INV_SQRT3
    s0 = jnp.concatenate([xs_i, xs_j, dot_v], axis=-1)
    w_sc = jax.nn.silu(s0 @ p["ws1"] + p["bs1"]) @ p["ws2"] + p["bs2"]
    w_rbf = jax.nn.silu(edge_attr @ p["wr1"] + p["br1"]) @ p["wr2"] + p["br2"]
    tp_w = w_sc * w_rbf

    def node_pre(s, v):
        s_lin = s @ p["wps"] * INV_SQRT_MUL + p["bps"]
        v_lin = [vm @ p["wpv"] * INV_SQRT_MUL for vm in v]
        nrm = jnp.sqrt(v_lin[0] ** 2 + v_lin[1] ** 2 + v_lin[2] ** 2 + EPS)
        gate = jax.nn.silu(nrm * p["gpre_g"] + p["gpre_b"])
        return jax.nn.silu(s_lin), [vm * gate for vm in v_lin]

    ps_i, pv_i = node_pre(xs_i, vi)
    ps_j, pv_j = node_pre(xs_j, vj)

    w_ss, w_sv, w_vs, w_vv = [tp_w[:, k * MUL:(k + 1) * MUL] for k in range(4)]
    tp_s = jnp.concatenate(
        [ps_i * ps_j * w_ss,
         (pv_i[0] * pv_j[0] + pv_i[1] * pv_j[1] + pv_i[2] * pv_j[2]) * INV_SQRT3 * w_vv],
        axis=-1)
    tp_v = [jnp.concatenate([ps_i * pv_j[m] * w_sv, pv_i[m] * ps_j * w_vs], axis=-1)
            for m in range(3)]

    s_gated = jax.nn.silu(tp_s)
    nrm2 = jnp.sqrt(tp_v[0] ** 2 + tp_v[1] ** 2 + tp_v[2] ** 2 + EPS)
    gate2 = jax.nn.silu(nrm2 * p["gpost_g"] + p["gpost_b"])
    v_gated = [vm * gate2 for vm in tp_v]

    out_s = s_gated @ p["wos"] * INV_SQRT_TP
    out_v = [v_gated[m] @ p["wov"] * INV_SQRT_TP for m in range(3)]
    out = jnp.concatenate([out_s] + out_v, axis=-1)
    return out + (0.0 if fij_in is None else fij_in)


# -------------------------- deterministic params -----------------------------
def init_params(key):
    ks = jax.random.split(key, 17)

    def dense(k, shape):
        return jax.random.normal(k, shape, jnp.float32) / math.sqrt(shape[0])

    def small(k, shape):
        return 0.1 * jax.random.normal(k, shape, jnp.float32)

    return {
        # o3.Linear(irreps_in, irreps_in, biases=True): bias only on the 0e block
        "wps": dense(ks[0], (MUL, MUL)),
        "bps": small(ks[1], (1, MUL)),
        "wpv": dense(ks[2], (MUL, MUL)),
        # Gate(irreps_in, refine=True) affine on the vector-norm gate
        "gpre_g": 1.0 + small(ks[3], (1, MUL)),
        "gpre_b": small(ks[4], (1, MUL)),
        # mlp_edge_scalar: 24 -> 128 -> weight_numel
        "ws1": dense(ks[5], (S0_DIM, HIDDEN_MLP)),
        "bs1": small(ks[6], (1, HIDDEN_MLP)),
        "ws2": dense(ks[7], (HIDDEN_MLP, TP_WEIGHT_NUMEL)),
        "bs2": small(ks[8], (1, TP_WEIGHT_NUMEL)),
        # mlp_edge_rbf: 20 -> 128 -> weight_numel
        "wr1": dense(ks[9], (EDGE_ATTR_DIM, HIDDEN_MLP)),
        "br1": small(ks[10], (1, HIDDEN_MLP)),
        "wr2": dense(ks[11], (HIDDEN_MLP, TP_WEIGHT_NUMEL)),
        "br2": small(ks[12], (1, TP_WEIGHT_NUMEL)),
        # Gate(irreps_tp_out, refine=True)
        "gpost_g": 1.0 + small(ks[13], (1, TP_SCALAR)),
        "gpost_b": small(ks[14], (1, TP_SCALAR)),
        # linear_node_post: o3.Linear(irreps_tp_out, irreps_hidden, biases=False)
        "wos": dense(ks[15], (TP_SCALAR, MUL)),
        "wov": dense(ks[16], (TP_VECTOR, MUL)),
    }


# ---------------------------------- main -------------------------------------
if __name__ == "__main__":
    key = jax.random.PRNGKey(0)
    k1, k2, k3, k4, k5 = jax.random.split(key, 5)

    N, E = 64, 1000                       # E is NOT a multiple of TE -> exercises padding
    x = jax.random.normal(k1, (N, FEAT_DIM), jnp.float32)             # [64, 32]
    edge_attr = jax.random.normal(k2, (E, EDGE_ATTR_DIM), jnp.float32)  # [1000, 20]
    edge_index = jax.random.randint(k3, (2, E), 0, N, jnp.int32)      # [2, 1000]
    fij_in = jax.random.normal(k4, (E, FEAT_DIM), jnp.float32)        # [1000, 32]
    params = init_params(k5)

    kweights = fuse_params(params)
    fij = pair_layer_forward(x, edge_attr, edge_index, fij_in, kweights)
    jax.block_until_ready(fij)

    assert fij.shape == (E, FEAT_DIM) and fij.dtype == jnp.float32
    assert bool(jnp.all(jnp.isfinite(fij)))

    ref = pair_layer_reference(x, edge_attr, edge_index, fij_in, params)
    err = float(jnp.max(jnp.abs(fij - ref)))
    assert err < 5e-2, f"kernel/reference mismatch: max abs err = {err}"

    print("KERNEL_OK")
</pallas_src>

<mosaic_0001>
module attributes {stable_mosaic.version = 11 : i64} {
  func.func @pair_layer_kernel(%arg0: i32, %arg1: memref<32x1024xf32, #tpu.memory_space<vmem>>, %arg2: memref<32x1024xf32, #tpu.memory_space<vmem>>, %arg3: memref<24x1024xf32, #tpu.memory_space<vmem>>, %arg4: memref<32x1024xf32, #tpu.memory_space<vmem>>, %arg5: memref<32x32xf32, #tpu.memory_space<vmem>>, %arg6: memref<32x1xf32, #tpu.memory_space<vmem>>, %arg7: memref<8x1xf32, #tpu.memory_space<vmem>>, %arg8: memref<8x1xf32, #tpu.memory_space<vmem>>, %arg9: memref<256x48xf32, #tpu.memory_space<vmem>>, %arg10: memref<256x1xf32, #tpu.memory_space<vmem>>, %arg11: memref<64x256xf32, #tpu.memory_space<vmem>>, %arg12: memref<64x1xf32, #tpu.memory_space<vmem>>, %arg13: memref<16x1xf32, #tpu.memory_space<vmem>>, %arg14: memref<16x1xf32, #tpu.memory_space<vmem>>, %arg15: memref<32x64xf32, #tpu.memory_space<vmem>>, %arg16: memref<32x1024xf32, #tpu.memory_space<vmem>>) attributes {dimension_semantics = [#tpu.dimension_semantics<parallel>], iteration_bounds = array<i64: 1>, scalar_prefetch = 0 : i64, scratch_operands = 0 : i64, tpu.core_type = #tpu.core_type<tc>, window_params = [{transform_indices = @transform_0, window_bounds = array<i64: 32, 1024>}, {transform_indices = @transform_1, window_bounds = array<i64: 32, 1024>}, {transform_indices = @transform_2, window_bounds = array<i64: 24, 1024>}, {transform_indices = @transform_3, window_bounds = array<i64: 32, 1024>}, {pipeline_mode = #tpu.pipeline_mode<synchronous>, transform_indices = @transform_4, window_bounds = array<i64: 32, 32>}, {pipeline_mode = #tpu.pipeline_mode<synchronous>, transform_indices = @transform_5, window_bounds = array<i64: 32, 1>}, {pipeline_mode = #tpu.pipeline_mode<synchronous>, transform_indices = @transform_6, window_bounds = array<i64: 8, 1>}, {pipeline_mode = #tpu.pipeline_mode<synchronous>, transform_indices = @transform_7, window_bounds = array<i64: 8, 1>}, {pipeline_mode = #tpu.pipeline_mode<synchronous>, transform_indices = @transform_8, window_bounds = array<i64: 256, 48>}, {pipeline_mode = #tpu.pipeline_mode<synchronous>, transform_indices = @transform_9, window_bounds = array<i64: 256, 1>}, {pipeline_mode = #tpu.pipeline_mode<synchronous>, transform_indices = @transform_10, window_bounds = array<i64: 64, 256>}, {pipeline_mode = #tpu.pipeline_mode<synchronous>, transform_indices = @transform_11, window_bounds = array<i64: 64, 1>}, {pipeline_mode = #tpu.pipeline_mode<synchronous>, transform_indices = @transform_12, window_bounds = array<i64: 16, 1>}, {pipeline_mode = #tpu.pipeline_mode<synchronous>, transform_indices = @transform_13, window_bounds = array<i64: 16, 1>}, {pipeline_mode = #tpu.pipeline_mode<synchronous>, transform_indices = @transform_14, window_bounds = array<i64: 32, 64>}, {transform_indices = @transform_15, window_bounds = array<i64: 32, 1024>}]} {
    %c0 = arith.constant 0 : index
    %c0_0 = arith.constant 0 : index
    %0 = vector.load %arg1[%c0, %c0_0] : memref<32x1024xf32, #tpu.memory_space<vmem>>, vector<32x1024xf32>
    %c0_1 = arith.constant 0 : index
    %c0_2 = arith.constant 0 : index
    %1 = vector.load %arg2[%c0_1, %c0_2] : memref<32x1024xf32, #tpu.memory_space<vmem>>, vector<32x1024xf32>
    %2 = vector.extract_strided_slice %0 {offsets = [0, 0], sizes = [8, 1024], strides = [1, 1]} : vector<32x1024xf32> to vector<8x1024xf32>
    %3 = vector.extract_strided_slice %1 {offsets = [0, 0], sizes = [8, 1024], strides = [1, 1]} : vector<32x1024xf32> to vector<8x1024xf32>
    %4 = vector.extract_strided_slice %0 {offsets = [8, 0], sizes = [8, 1024], strides = [1, 1]} : vector<32x1024xf32> to vector<8x1024xf32>
    %5 = vector.extract_strided_slice %0 {offsets = [16, 0], sizes = [8, 1024], strides = [1, 1]} : vector<32x1024xf32> to vector<8x1024xf32>
    %6 = vector.extract_strided_slice %0 {offsets = [24, 0], sizes = [8, 1024], strides = [1, 1]} : vector<32x1024xf32> to vector<8x1024xf32>
    %7 = vector.extract_strided_slice %1 {offsets = [8, 0], sizes = [8, 1024], strides = [1, 1]} : vector<32x1024xf32> to vector<8x1024xf32>
    %8 = vector.extract_strided_slice %1 {offsets = [16, 0], sizes = [8, 1024], strides = [1, 1]} : vector<32x1024xf32> to vector<8x1024xf32>
    %9 = vector.extract_strided_slice %1 {offsets = [24, 0], sizes = [8, 1024], strides = [1, 1]} : vector<32x1024xf32> to vector<8x1024xf32>
    %10 = arith.mulf %4, %7 : vector<8x1024xf32>
    %11 = arith.mulf %5, %8 : vector<8x1024xf32>
    %12 = arith.addf %10, %11 : vector<8x1024xf32>
    %13 = arith.mulf %6, %9 : vector<8x1024xf32>
    %14 = arith.addf %12, %13 : vector<8x1024xf32>
    %cst = arith.constant 0.577350259 : f32
    %15 = vector.broadcast %cst : f32 to vector<8x1024xf32>
    %16 = arith.mulf %14, %15 : vector<8x1024xf32>
    %c0_3 = arith.constant 0 : index
    %c0_4 = arith.constant 0 : index
    %17 = vector.load %arg3[%c0_3, %c0_4] : memref<24x1024xf32, #tpu.memory_space<vmem>>, vector<24x1024xf32>
    %18 = tpu.concatenate %2, %3, %16, %17 in 0 : vector<8x1024xf32>, vector<8x1024xf32>, vector<8x1024xf32>, vector<24x1024xf32> -> vector<48x1024xf32>
    %c0_5 = arith.constant 0 : index
    %c0_6 = arith.constant 0 : index
    %19 = vector.load %arg9[%c0_5, %c0_6] : memref<256x48xf32, #tpu.memory_space<vmem>>, vector<256x48xf32>
    %cst_7 = arith.constant dense<0.000000e+00> : vector<256x1024xf32>
    %20 = tpu.matmul %19, %18, %cst_7 {dimension_numbers = #tpu.dot_dimension_numbers<[1], [0], [0], [1], [0, 0, 1, 1], [], []>} : vector<256x48xf32>, vector<48x1024xf32>, vector<256x1024xf32> -> vector<256x1024xf32>
    %c0_8 = arith.constant 0 : index
    %c0_9 = arith.constant 0 : index
    %21 = vector.load %arg10[%c0_8, %c0_9] : memref<256x1xf32, #tpu.memory_space<vmem>>, vector<256x1xf32>
    %22 = vector.broadcast %21 : vector<256x1xf32> to vector<256x1024xf32>
    %23 = arith.addf %20, %22 : vector<256x1024xf32>
    %24 = arith.negf %23 : vector<256x1024xf32>
    %25 = math.exp %24 : vector<256x1024xf32>
    %cst_10 = arith.constant 1.000000e+00 : f32
    %26 = vector.broadcast %cst_10 : f32 to vector<256x1024xf32>
    %27 = arith.addf %26, %25 : vector<256x1024xf32>
    %28 = arith.divf %26, %27 : vector<256x1024xf32>
    %29 = arith.mulf %23, %28 : vector<256x1024xf32>
    %c0_11 = arith.constant 0 : index
    %c0_12 = arith.constant 0 : index
    %30 = vector.load %arg11[%c0_11, %c0_12] : memref<64x256xf32, #tpu.memory_space<vmem>>, vector<64x256xf32>
    %cst_13 = arith.constant dense<0.000000e+00> : vector<64x1024xf32>
    %31 = tpu.matmul %30, %29, %cst_13 {dimension_numbers = #tpu.dot_dimension_numbers<[1], [0], [0], [1], [0, 0, 1, 1], [], []>} : vector<64x256xf32>, vector<256x1024xf32>, vector<64x1024xf32> -> vector<64x1024xf32>
    %c0_14 = arith.constant 0 : index
    %c0_15 = arith.constant 0 : index
    %32 = vector.load %arg12[%c0_14, %c0_15] : memref<64x1xf32, #tpu.memory_space<vmem>>, vector<64x1xf32>
    %33 = vector.broadcast %32 : vector<64x1xf32> to vector<64x1024xf32>
    %34 = arith.addf %31, %33 : vector<64x1024xf32>
    %35 = vector.extract_strided_slice %34 {offsets = [0, 0], sizes = [32, 1024], strides = [1, 1]} : vector<64x1024xf32> to vector<32x1024xf32>
    %36 = vector.extract_strided_slice %34 {offsets = [32, 0], sizes = [32, 1024], strides = [1, 1]} : vector<64x1024xf32> to vector<32x1024xf32>
    %37 = arith.mulf %35, %36 : vector<32x1024xf32>
    %c0_16 = arith.constant 0 : index
    %c0_17 = arith.constant 0 : index
    %38 = vector.load %arg5[%c0_16, %c0_17] : memref<32x32xf32, #tpu.memory_space<vmem>>, vector<32x32xf32>
    %c0_18 = arith.constant 0 : index
    %c0_19 = arith.constant 0 : index
    %39 = vector.load %arg6[%c0_18, %c0_19] : memref<32x1xf32, #tpu.memory_space<vmem>>, vector<32x1xf32>
    %40 = vector.shape_cast %39 : vector<32x1xf32> to vector<32x1xf32>
    %41 = vector.broadcast %40 : vector<32x1xf32> to vector<32x1024xf32>
    %c0_20 = arith.constant 0 : index
    %c0_21 = arith.constant 0 : index
    %42 = vector.load %arg7[%c0_20, %c0_21] : memref<8x1xf32, #tpu.memory_space<vmem>>, vector<8x1xf32>
    %43 = vector.shape_cast %42 : vector<8x1xf32> to vector<8x1xf32>
    %44 = vector.broadcast %43 : vector<8x1xf32> to vector<8x1024xf32>
    %c0_22 = arith.constant 0 : index
    %c0_23 = arith.constant 0 : index
    %45 = vector.load %arg8[%c0_22, %c0_23] : memref<8x1xf32, #tpu.memory_space<vmem>>, vector<8x1xf32>
    %46 = vector.shape_cast %45 : vector<8x1xf32> to vector<8x1xf32>
    %47 = vector.broadcast %46 : vector<8x1xf32> to vector<8x1024xf32>
    %cst_24 = arith.constant dense<0.000000e+00> : vector<32x1024xf32>
    %48 = tpu.matmul %38, %0, %cst_24 {dimension_numbers = #tpu.dot_dimension_numbers<[1], [0], [0], [1], [0, 0, 1, 1], [], []>} : vector<32x32xf32>, vector<32x1024xf32>, vector<32x1024xf32> -> vector<32x1024xf32>
    %49 = arith.addf %48, %41 : vector<32x1024xf32>
    %50 = vector.extract_strided_slice %49 {offsets = [0, 0], sizes = [8, 1024], strides = [1, 1]} : vector<32x1024xf32> to vector<8x1024xf32>
    %51 = vector.extract_strided_slice %49 {offsets = [8, 0], sizes = [8, 1024], strides = [1, 1]} : vector<32x1024xf32> to vector<8x1024xf32>
    %52 = vector.extract_strided_slice %49 {offsets = [16, 0], sizes = [8, 1024], strides = [1, 1]} : vector<32x1024xf32> to vector<8x1024xf32>
    %53 = vector.extract_strided_slice %49 {offsets = [24, 0], sizes = [8, 1024], strides = [1, 1]} : vector<32x1024xf32> to vector<8x1024xf32>
    %54 = arith.mulf %51, %51 : vector<8x1024xf32>
    %55 = arith.mulf %52, %52 : vector<8x1024xf32>
    %56 = arith.addf %54, %55 : vector<8x1024xf32>
    %57 = arith.mulf %53, %53 : vector<8x1024xf32>
    %58 = arith.addf %56, %57 : vector<8x1024xf32>
    %cst_25 = arith.constant 9.99999997E-7 : f32
    %59 = vector.broadcast %cst_25 : f32 to vector<8x1024xf32>
    %60 = arith.addf %58, %59 : vector<8x1024xf32>
    %61 = math.sqrt %60 : vector<8x1024xf32>
    %62 = arith.mulf %61, %44 : vector<8x1024xf32>
    %63 = arith.addf %62, %47 : vector<8x1024xf32>
    %64 = arith.negf %63 : vector<8x1024xf32>
    %65 = math.exp %64 : vector<8x1024xf32>
    %cst_26 = arith.constant 1.000000e+00 : f32
    %66 = vector.broadcast %cst_26 : f32 to vector<8x1024xf32>
    %67 = arith.addf %66, %65 : vector<8x1024xf32>
    %68 = arith.divf %66, %67 : vector<8x1024xf32>
    %69 = arith.mulf %63, %68 : vector<8x1024xf32>
    %70 = arith.negf %50 : vector<8x1024xf32>
    %71 = math.exp %70 : vector<8x1024xf32>
    %cst_27 = arith.constant 1.000000e+00 : f32
    %72 = vector.broadcast %cst_27 : f32 to vector<8x1024xf32>
    %73 = arith.addf %72, %71 : vector<8x1024xf32>
    %74 = arith.divf %72, %73 : vector<8x1024xf32>
    %75 = arith.mulf %50, %74 : vector<8x1024xf32>
    %76 = arith.mulf %51, %69 : vector<8x1024xf32>
    %77 = arith.mulf %52, %69 : vector<8x1024xf32>
    %78 = arith.mulf %53, %69 : vector<8x1024xf32>
    %cst_28 = arith.constant dense<0.000000e+00> : vector<32x1024xf32>
    %79 = tpu.matmul %38, %1, %cst_28 {dimension_numbers = #tpu.dot_dimension_numbers<[1], [0], [0], [1], [0, 0, 1, 1], [], []>} : vector<32x32xf32>, vector<32x1024xf32>, vector<32x1024xf32> -> vector<32x1024xf32>
    %80 = arith.addf %79, %41 : vector<32x1024xf32>
    %81 = vector.extract_strided_slice %80 {offsets = [0, 0], sizes = [8, 1024], strides = [1, 1]} : vector<32x1024xf32> to vector<8x1024xf32>
    %82 = vector.extract_strided_slice %80 {offsets = [8, 0], sizes = [8, 1024], strides = [1, 1]} : vector<32x1024xf32> to vector<8x1024xf32>
    %83 = vector.extract_strided_slice %80 {offsets = [16, 0], sizes = [8, 1024], strides = [1, 1]} : vector<32x1024xf32> to vector<8x1024xf32>
    %84 = vector.extract_strided_slice %80 {offsets = [24, 0], sizes = [8, 1024], strides = [1, 1]} : vector<32x1024xf32> to vector<8x1024xf32>
    %85 = arith.mulf %82, %82 : vector<8x1024xf32>
    %86 = arith.mulf %83, %83 : vector<8x1024xf32>
    %87 = arith.addf %85, %86 : vector<8x1024xf32>
    %88 = arith.mulf %84, %84 : vector<8x1024xf32>
    %89 = arith.addf %87, %88 : vector<8x1024xf32>
    %cst_29 = arith.constant 9.99999997E-7 : f32
    %90 = vector.broadcast %cst_29 : f32 to vector<8x1024xf32>
    %91 = arith.addf %89, %90 : vector<8x1024xf32>
    %92 = math.sqrt %91 : vector<8x1024xf32>
    %93 = arith.mulf %92, %44 : vector<8x1024xf32>
    %94 = arith.addf %93, %47 : vector<8x1024xf32>
    %95 = arith.negf %94 : vector<8x1024xf32>
    %96 = math.exp %95 : vector<8x1024xf32>
    %cst_30 = arith.constant 1.000000e+00 : f32
    %97 = vector.broadcast %cst_30 : f32 to vector<8x1024xf32>
    %98 = arith.addf %97, %96 : vector<8x1024xf32>
    %99 = arith.divf %97, %98 : vector<8x1024xf32>
    %100 = arith.mulf %94, %99 : vector<8x1024xf32>
    %101 = arith.negf %81 : vector<8x1024xf32>
    %102 = math.exp %101 : vector<8x1024xf32>
    %cst_31 = arith.constant 1.000000e+00 : f32
    %103 = vector.broadcast %cst_31 : f32 to vector<8x1024xf32>
    %104 = arith.addf %103, %102 : vector<8x1024xf32>
    %105 = arith.divf %103, %104 : vector<8x1024xf32>
    %106 = arith.mulf %81, %105 : vector<8x1024xf32>
    %107 = arith.mulf %82, %100 : vector<8x1024xf32>
    %108 = arith.mulf %83, %100 : vector<8x1024xf32>
    %109 = arith.mulf %84, %100 : vector<8x1024xf32>
    %110 = vector.extract_strided_slice %37 {offsets = [0, 0], sizes = [8, 1024], strides = [1, 1]} : vector<32x1024xf32> to vector<8x1024xf32>
    %111 = vector.extract_strided_slice %37 {offsets = [8, 0], sizes = [8, 1024], strides = [1, 1]} : vector<32x1024xf32> to vector<8x1024xf32>
    %112 = vector.extract_strided_slice %37 {offsets = [16, 0], sizes = [8, 1024], strides = [1, 1]} : vector<32x1024xf32> to vector<8x1024xf32>
    %113 = vector.extract_strided_slice %37 {offsets = [24, 0], sizes = [8, 1024], strides = [1, 1]} : vector<32x1024xf32> to vector<8x1024xf32>
    %114 = arith.mulf %75, %106 : vector<8x1024xf32>
    %115 = arith.mulf %114, %110 : vector<8x1024xf32>
    %116 = arith.mulf %76, %107 : vector<8x1024xf32>
    %117 = arith.mulf %77, %108 : vector<8x1024xf32>
    %118 = arith.addf %116, %117 : vector<8x1024xf32>
    %119 = arith.mulf %78, %109 : vector<8x1024xf32>
    %120 = arith.addf %118, %119 : vector<8x1024xf32>
    %cst_32 = arith.constant 0.577350259 : f32
    %121 = vector.broadcast %cst_32 : f32 to vector<8x1024xf32>
    %122 = arith.mulf %120, %121 : vector<8x1024xf32>
    %123 = arith.mulf %122, %113 : vector<8x1024xf32>
    %124 = tpu.concatenate %115, %123 in 0 : vector<8x1024xf32>, vector<8x1024xf32> -> vector<16x1024xf32>
    %125 = arith.mulf %75, %107 : vector<8x1024xf32>
    %126 = arith.mulf %125, %111 : vector<8x1024xf32>
    %127 = arith.mulf %76, %106 : vector<8x1024xf32>
    %128 = arith.mulf %127, %112 : vector<8x1024xf32>
    %129 = tpu.concatenate %126, %128 in 0 : vector<8x1024xf32>, vector<8x1024xf32> -> vector<16x1024xf32>
    %130 = arith.mulf %75, %108 : vector<8x1024xf32>
    %131 = arith.mulf %130, %111 : vector<8x1024xf32>
    %132 = arith.mulf %77, %106 : vector<8x1024xf32>
    %133 = arith.mulf %132, %112 : vector<8x1024xf32>
    %134 = tpu.concatenate %131, %133 in 0 : vector<8x1024xf32>, vector<8x1024xf32> -> vector<16x1024xf32>
    %135 = arith.mulf %75, %109 : vector<8x1024xf32>
    %136 = arith.mulf %135, %111 : vector<8x1024xf32>
    %137 = arith.mulf %78, %106 : vector<8x1024xf32>
    %138 = arith.mulf %137, %112 : vector<8x1024xf32>
    %139 = tpu.concatenate %136, %138 in 0 : vector<8x1024xf32>, vector<8x1024xf32> -> vector<16x1024xf32>
    %140 = arith.mulf %129, %129 : vector<16x1024xf32>
    %141 = arith.mulf %134, %134 : vector<16x1024xf32>
    %142 = arith.addf %140, %141 : vector<16x1024xf32>
    %143 = arith.mulf %139, %139 : vector<16x1024xf32>
    %144 = arith.addf %142, %143 : vector<16x1024xf32>
    %cst_33 = arith.constant 9.99999997E-7 : f32
    %145 = vector.broadcast %cst_33 : f32 to vector<16x1024xf32>
    %146 = arith.addf %144, %145 : vector<16x1024xf32>
    %147 = math.sqrt %146 : vector<16x1024xf32>
    %c0_34 = arith.constant 0 : index
    %c0_35 = arith.constant 0 : index
    %148 = vector.load %arg13[%c0_34, %c0_35] : memref<16x1xf32, #tpu.memory_space<vmem>>, vector<16x1xf32>
    %149 = vector.broadcast %148 : vector<16x1xf32> to vector<16x1024xf32>
    %150 = arith.mulf %147, %149 : vector<16x1024xf32>
    %c0_36 = arith.constant 0 : index
    %c0_37 = arith.constant 0 : index
    %151 = vector.load %arg14[%c0_36, %c0_37] : memref<16x1xf32, #tpu.memory_space<vmem>>, vector<16x1xf32>
    %152 = vector.broadcast %151 : vector<16x1xf32> to vector<16x1024xf32>
    %153 = arith.addf %150, %152 : vector<16x1024xf32>
    %154 = arith.negf %153 : vector<16x1024xf32>
    %155 = math.exp %154 : vector<16x1024xf32>
    %cst_38 = arith.constant 1.000000e+00 : f32
    %156 = vector.broadcast %cst_38 : f32 to vector<16x1024xf32>
    %157 = arith.addf %156, %155 : vector<16x1024xf32>
    %158 = arith.divf %156, %157 : vector<16x1024xf32>
    %159 = arith.mulf %153, %158 : vector<16x1024xf32>
    %160 = arith.negf %124 : vector<16x1024xf32>
    %161 = math.exp %160 : vector<16x1024xf32>
    %cst_39 = arith.constant 1.000000e+00 : f32
    %162 = vector.broadcast %cst_39 : f32 to vector<16x1024xf32>
    %163 = arith.addf %162, %161 : vector<16x1024xf32>
    %164 = arith.divf %162, %163 : vector<16x1024xf32>
    %165 = arith.mulf %124, %164 : vector<16x1024xf32>
    %166 = arith.mulf %129, %159 : vector<16x1024xf32>
    %167 = arith.mulf %134, %159 : vector<16x1024xf32>
    %168 = arith.mulf %139, %159 : vector<16x1024xf32>
    %169 = tpu.concatenate %165, %166, %167, %168 in 0 : vector<16x1024xf32>, vector<16x1024xf32>, vector<16x1024xf32>, vector<16x1024xf32> -> vector<64x1024xf32>
    %c0_40 = arith.constant 0 : index
    %c0_41 = arith.constant 0 : index
    %170 = vector.load %arg15[%c0_40, %c0_41] : memref<32x64xf32, #tpu.memory_space<vmem>>, vector<32x64xf32>
    %cst_42 = arith.constant dense<0.000000e+00> : vector<32x1024xf32>
    %171 = tpu.matmul %170, %169, %cst_42 {dimension_numbers = #tpu.dot_dimension_numbers<[1], [0], [0], [1], [0, 0, 1, 1], [], []>} : vector<32x64xf32>, vector<64x1024xf32>, vector<32x1024xf32> -> vector<32x1024xf32>
    %c0_43 = arith.constant 0 : index
    %c0_44 = arith.constant 0 : index
    %172 = vector.load %arg4[%c0_43, %c0_44] : memref<32x1024xf32, #tpu.memory_space<vmem>>, vector<32x1024xf32>
    %173 = arith.addf %171, %172 : vector<32x1024xf32>
    %c0_45 = arith.constant 0 : index
    %c0_46 = arith.constant 0 : index
    %174 = vector.load %arg16[%c0_45, %c0_46] : memref<32x1024xf32, #tpu.memory_space<vmem>>, vector<32x1024xf32>
    tpu.vector_store %arg16[%c0_45, %c0_46], %173 {strides = array<i32>} : memref<32x1024xf32, #tpu.memory_space<vmem>>, vector<32x1024xf32>,
    return
  }
  func.func @transform_0(%arg0: i32) -> (i32, i32) {
    %c0_i32 = arith.constant 0 : i32
    %c0_i32_0 = arith.constant 0 : i32
    return %c0_i32, %arg0 : i32, i32
  }
  func.func @transform_1(%arg0: i32) -> (i32, i32) {
    %c0_i32 = arith.constant 0 : i32
    %c0_i32_0 = arith.constant 0 : i32
    return %c0_i32, %arg0 : i32, i32
  }
  func.func @transform_2(%arg0: i32) -> (i32, i32) {
    %c0_i32 = arith.constant 0 : i32
    %c0_i32_0 = arith.constant 0 : i32
    return %c0_i32, %arg0 : i32, i32
  }
  func.func @transform_3(%arg0: i32) -> (i32, i32) {
    %c0_i32 = arith.constant 0 : i32
    %c0_i32_0 = arith.constant 0 : i32
    return %c0_i32, %arg0 : i32, i32
  }
  func.func @transform_4(%arg0: i32) -> (i32, i32) {
    %c0_i32 = arith.constant 0 : i32
    %c0_i32_0 = arith.constant 0 : i32
    %c0_i32_1 = arith.constant 0 : i32
    return %c0_i32, %c0_i32_0 : i32, i32
  }
  func.func @transform_5(%arg0: i32) -> (i32, i32) {
    %c0_i32 = arith.constant 0 : i32
    %c0_i32_0 = arith.constant 0 : i32
    %c0_i32_1 = arith.constant 0 : i32
    return %c0_i32, %c0_i32_0 : i32, i32
  }
  func.func @transform_6(%arg0: i32) -> (i32, i32) {
    %c0_i32 = arith.constant 0 : i32
    %c0_i32_0 = arith.constant 0 : i32
    %c0_i32_1 = arith.constant 0 : i32
    return %c0_i32, %c0_i32_0 : i32, i32
  }
  func.func @transform_7(%arg0: i32) -> (i32, i32) {
    %c0_i32 = arith.constant 0 : i32
    %c0_i32_0 = arith.constant 0 : i32
    %c0_i32_1 = arith.constant 0 : i32
    return %c0_i32, %c0_i32_0 : i32, i32
  }
  func.func @transform_8(%arg0: i32) -> (i32, i32) {
    %c0_i32 = arith.constant 0 : i32
    %c0_i32_0 = arith.constant 0 : i32
    %c0_i32_1 = arith.constant 0 : i32
    return %c0_i32, %c0_i32_0 : i32, i32
  }
  func.func @transform_9(%arg0: i32) -> (i32, i32) {
    %c0_i32 = arith.constant 0 : i32
    %c0_i32_0 = arith.constant 0 : i32
    %c0_i32_1 = arith.constant 0 : i32
    return %c0_i32, %c0_i32_0 : i32, i32
  }
  func.func @transform_10(%arg0: i32) -> (i32, i32) {
    %c0_i32 = arith.constant 0 : i32
    %c0_i32_0 = arith.constant 0 : i32
    %c0_i32_1 = arith.constant 0 : i32
    return %c0_i32, %c0_i32_0 : i32, i32
  }
  func.func @transform_11(%arg0: i32) -> (i32, i32) {
    %c0_i32 = arith.constant 0 : i32
    %c0_i32_0 = arith.constant 0 : i32
    %c0_i32_1 = arith.constant 0 : i32
    return %c0_i32, %c0_i32_0 : i32, i32
  }
  func.func @transform_12(%arg0: i32) -> (i32, i32) {
    %c0_i32 = arith.constant 0 : i32
    %c0_i32_0 = arith.constant 0 : i32
    %c0_i32_1 = arith.constant 0 : i32
    return %c0_i32, %c0_i32_0 : i32, i32
  }
  func.func @transform_13(%arg0: i32) -> (i32, i32) {
    %c0_i32 = arith.constant 0 : i32
    %c0_i32_0 = arith.constant 0 : i32
    %c0_i32_1 = arith.constant 0 : i32
    return %c0_i32, %c0_i32_0 : i32, i32
  }
  func.func @transform_14(%arg0: i32) -> (i32, i32) {
    %c0_i32 = arith.constant 0 : i32
    %c0_i32_0 = arith.constant 0 : i32
    %c0_i32_1 = arith.constant 0 : i32
    return %c0_i32, %c0_i32_0 : i32, i32
  }
  func.func @transform_15(%arg0: i32) -> (i32, i32) {
    %c0_i32 = arith.constant 0 : i32
    %c0_i32_0 = arith.constant 0 : i32
    return %c0_i32, %arg0 : i32, i32
  }
}

</mosaic_0001>

<llo_original>
// kernel: pair_layer_forward.1
$region0: #{pair_layer_forward.1}
  #allocation0 [shape = 'u32[]', space=smem, size = 0x4, offset = 0x4, fixed_abs, tag = 'smem constant byte address 0x4 - core index']
  #allocation1 [shape = 'u32[144,128]{1,0:T(1,128)}', space=vmem, size = 0x12000, scoped, tag = 'internal scratch']
  %s0 = inlined_call_operand.vmem [shape: f32[32,1024], index: 0, kind: input, shape index: {}]
  %s1 = inlined_call_operand.vmem [shape: f32[32,1024], index: 1, kind: input, shape index: {}]
  %s2 = inlined_call_operand.vmem [shape: f32[24,1024], index: 2, kind: input, shape index: {}]
  %s3 = inlined_call_operand.vmem [shape: f32[32,1024], index: 3, kind: input, shape index: {}, may-alias: {3,15}]
  %s4 = inlined_call_operand.vmem [shape: f32[32,32], index: 4, kind: input, shape index: {}]
  %s5 = inlined_call_operand.vmem [shape: f32[32,1], index: 5, kind: input, shape index: {}]
  %s6 = inlined_call_operand.vmem [shape: f32[8,1], index: 6, kind: input, shape index: {}]
  %s7 = inlined_call_operand.vmem [shape: f32[8,1], index: 7, kind: input, shape index: {}]
  %s8 = inlined_call_operand.vmem [shape: f32[256,48], index: 8, kind: input, shape index: {}]
  %s9 = inlined_call_operand.vmem [shape: f32[256,1], index: 9, kind: input, shape index: {}]
  %s10 = inlined_call_operand.vmem [shape: f32[64,256], index: 10, kind: input, shape index: {}]
  %s11 = inlined_call_operand.vmem [shape: f32[64,1], index: 11, kind: input, shape index: {}]
  %s12 = inlined_call_operand.vmem [shape: f32[16,1], index: 12, kind: input, shape index: {}]
  %s13 = inlined_call_operand.vmem [shape: f32[16,1], index: 13, kind: input, shape index: {}]
  %s14 = inlined_call_operand.vmem [shape: f32[32,64], index: 14, kind: input, shape index: {}]
  %s15 = inlined_call_operand.vmem [shape: f32[32,1024], index: 15, kind: output, shape index: {}, may-alias: {3,15}]
  %s16 = sld [smem:[#allocation0]]
  $region70: #{pair_layer_forward.1} parent=0
    _
  %s18 = ssub.s32 1, %s16
  %s19 = scalar_select 0, %s18, %s16
  // Predicated region
  $region2: #{pair_layer_forward.1} parent=0 // pred_check
    _
  $region3: #{pair_layer_forward.1} parent=0 // pred_check_branch
    %21 = sbr.rel (0) target = $region5
  $region4: #{pair_layer_forward.1} parent=0 // pred_region
    _
  $region5: #{pair_layer_forward.1} parent=0 // pred_fallthru
    _
  // Predicated region
  $region6: #{pair_layer_forward.1} parent=0 // pred_check
    _
  $region7: #{pair_layer_forward.1} parent=0 // pred_check_branch
    %23 = sbr.rel (0) target = $region9
  $region8: #{pair_layer_forward.1} parent=0 // pred_region
    _
  $region9: #{pair_layer_forward.1} parent=0 // pred_fallthru
    _
  // Predicated region
  $region10: #{pair_layer_forward.1} parent=0 // pred_check
    _
  $region11: #{pair_layer_forward.1} parent=0 // pred_check_branch
    %25 = sbr.rel (0) target = $region13
  $region12: #{pair_layer_forward.1} parent=0 // pred_region
    _
  $region13: #{pair_layer_forward.1} parent=0 // pred_fallthru
    _
  // Predicated region
  $region14: #{pair_layer_forward.1} parent=0 // pred_check
    _
  $region15: #{pair_layer_forward.1} parent=0 // pred_check_branch
    %27 = sbr.rel (0) target = $region17
  $region16: #{pair_layer_forward.1} parent=0 // pred_region
    _
  $region17: #{pair_layer_forward.1} parent=0 // pred_fallthru
    _
  // Predicated region
  $region18: #{pair_layer_forward.1} parent=0 // pred_check
    _
  $region19: #{pair_layer_forward.1} parent=0 // pred_check_branch
    %29 = sbr.rel (0) target = $region21
  $region20: #{pair_layer_forward.1} parent=0 // pred_region
    _
  $region21: #{pair_layer_forward.1} parent=0 // pred_fallthru
    _
  // Predicated region
  $region22: #{pair_layer_forward.1} parent=0 // pred_check
    _
  $region23: #{pair_layer_forward.1} parent=0 // pred_check_branch
    %31 = sbr.rel (0) target = $region25
  $region24: #{pair_layer_forward.1} parent=0 // pred_region
    _
  $region25: #{pair_layer_forward.1} parent=0 // pred_fallthru
    _
  // Predicated region
  $region26: #{pair_layer_forward.1} parent=0 // pred_check
    _
  $region27: #{pair_layer_forward.1} parent=0 // pred_check_branch
    %33 = sbr.rel (0) target = $region29
  $region28: #{pair_layer_forward.1} parent=0 // pred_region
    _
  $region29: #{pair_layer_forward.1} parent=0 // pred_fallthru
    _
  // Predicated region
  $region30: #{pair_layer_forward.1} parent=0 // pred_check
    _
  $region31: #{pair_layer_forward.1} parent=0 // pred_check_branch
    %35 = sbr.rel (0) target = $region33
  $region32: #{pair_layer_forward.1} parent=0 // pred_region
    _
  $region33: #{pair_layer_forward.1} parent=0 // pred_fallthru
    _
  // Predicated region
  $region34: #{pair_layer_forward.1} parent=0 // pred_check
    _
  $region35: #{pair_layer_forward.1} parent=0 // pred_check_branch
    %37 = sbr.rel (0) target = $region37
  $region36: #{pair_layer_forward.1} parent=0 // pred_region
    _
  $region37: #{pair_layer_forward.1} parent=0 // pred_fallthru
    _
  // Predicated region
  $region38: #{pair_layer_forward.1} parent=0 // pred_check
    _
  $region39: #{pair_layer_forward.1} parent=0 // pred_check_branch
    %39 = sbr.rel (0) target = $region41
  $region40: #{pair_layer_forward.1} parent=0 // pred_region
    _
  $region41: #{pair_layer_forward.1} parent=0 // pred_fallthru
    _
  // Predicated region
  $region42: #{pair_layer_forward.1} parent=0 // pred_check
    _
  $region43: #{pair_layer_forward.1} parent=0 // pred_check_branch
    %41 = sbr.rel (0) target = $region45
  $region44: #{pair_layer_forward.1} parent=0 // pred_region
    _
  $region45: #{pair_layer_forward.1} parent=0 // pred_fallthru
    _
  // Predicated region
  $region46: #{pair_layer_forward.1} parent=0 // pred_check
    _
  $region47: #{pair_layer_forward.1} parent=0 // pred_check_branch
    %43 = sbr.rel (0) target = $region49
  $region48: #{pair_layer_forward.1} parent=0 // pred_region
    _
  $region49: #{pair_layer_forward.1} parent=0 // pred_fallthru
    _
  // Predicated region
  $region50: #{pair_layer_forward.1} parent=0 // pred_check
    _
  $region51: #{pair_layer_forward.1} parent=0 // pred_check_branch
    %45 = sbr.rel (0) target = $region53
  $region52: #{pair_layer_forward.1} parent=0 // pred_region
    _
  $region53: #{pair_layer_forward.1} parent=0 // pred_fallthru
    _
  // Predicated region
  $region54: #{pair_layer_forward.1} parent=0 // pred_check
    _
  $region55: #{pair_layer_forward.1} parent=0 // pred_check_branch
    %47 = sbr.rel (0) target = $region57
  $region56: #{pair_layer_forward.1} parent=0 // pred_region
    _
  $region57: #{pair_layer_forward.1} parent=0 // pred_fallthru
    _
  // Predicated region
  $region58: #{pair_layer_forward.1} parent=0 // pred_check
    _
  $region59: #{pair_layer_forward.1} parent=0 // pred_check_branch
    %49 = sbr.rel (0) target = $region61
  $region60: #{pair_layer_forward.1} parent=0 // pred_region
    _
  $region61: #{pair_layer_forward.1} parent=0 // pred_fallthru
    _
  %v50 = vld [vmem:[%s0] sm:$0xff]
  %v51 = vld [vmem:[%s0 + $0x8] sm:$0xff]
  %v52 = vld [vmem:[%s0 + $0x10] sm:$0xff]
  %v53 = vld [vmem:[%s0 + $0x18] sm:$0xff]
  %v54 = vld [vmem:[%s0 + $0x20] sm:$0xff]
  %v55 = vld [vmem:[%s0 + $0x28] sm:$0xff]
  %v56 = vld [vmem:[%s0 + $0x30] sm:$0xff]
  %v57 = vld [vmem:[%s0 + $0x38] sm:$0xff]
  %v58 = vld [vmem:[%s0 + $0x40] sm:$0xff]
  %v59 = vld [vmem:[%s0 + $0x48] sm:$0xff]
  %v60 = vld [vmem:[%s0 + $0x50] sm:$0xff]
  %v61 = vld [vmem:[%s0 + $0x58] sm:$0xff]
  %v62 = vld [vmem:[%s0 + $0x60] sm:$0xff]
  %v63 = vld [vmem:[%s0 + $0x68] sm:$0xff]
  %v64 = vld [vmem:[%s0 + $0x70] sm:$0xff]
  %v65 = vld [vmem:[%s0 + $0x78] sm:$0xff]
  %v66 = vld [vmem:[%s0 + $0x80] sm:$0xff]
  %v67 = vld [vmem:[%s0 + $0x88] sm:$0xff]
  %v68 = vld [vmem:[%s0 + $0x90] sm:$0xff]
  %v69 = vld [vmem:[%s0 + $0x98] sm:$0xff]
  %v70 = vld [vmem:[%s0 + $0xa0] sm:$0xff]
  %v71 = vld [vmem:[%s0 + $0xa8] sm:$0xff]
  %v72 = vld [vmem:[%s0 + $0xb0] sm:$0xff]
  %v73 = vld [vmem:[%s0 + $0xb8] sm:$0xff]
  %v74 = vld [vmem:[%s0 + $0xc0] sm:$0xff]
  %v75 = vld [vmem:[%s0 + $0xc8] sm:$0xff]
  %v76 = vld [vmem:[%s0 + $0xd0] sm:$0xff]
  %v77 = vld [vmem:[%s0 + $0xd8] sm:$0xff]
  %v78 = vld [vmem:[%s0 + $0xe0] sm:$0xff]
  %v79 = vld [vmem:[%s0 + $0xe8] sm:$0xff]
  %v80 = vld [vmem:[%s0 + $0xf0] sm:$0xff]
  %v81 = vld [vmem:[%s0 + $0xf8] sm:$0xff]
  %v82 = vld [vmem:[%s1] sm:$0xff]
  %v83 = vld [vmem:[%s1 + $0x8] sm:$0xff]
  %v84 = vld [vmem:[%s1 + $0x10] sm:$0xff]
  %v85 = vld [vmem:[%s1 + $0x18] sm:$0xff]
  %v86 = vld [vmem:[%s1 + $0x20] sm:$0xff]
  %v87 = vld [vmem:[%s1 + $0x28] sm:$0xff]
  %v88 = vld [vmem:[%s1 + $0x30] sm:$0xff]
  %v89 = vld [vmem:[%s1 + $0x38] sm:$0xff]
  %v90 = vld [vmem:[%s1 + $0x40] sm:$0xff]
  %v91 = vld [vmem:[%s1 + $0x48] sm:$0xff]
  %v92 = vld [vmem:[%s1 + $0x50] sm:$0xff]
  %v93 = vld [vmem:[%s1 + $0x58] sm:$0xff]
  %v94 = vld [vmem:[%s1 + $0x60] sm:$0xff]
  %v95 = vld [vmem:[%s1 + $0x68] sm:$0xff]
  %v96 = vld [vmem:[%s1 + $0x70] sm:$0xff]
  %v97 = vld [vmem:[%s1 + $0x78] sm:$0xff]
  %v98 = vld [vmem:[%s1 + $0x80] sm:$0xff]
  %v99 = vld [vmem:[%s1 + $0x88] sm:$0xff]
  %v100 = vld [vmem:[%s1 + $0x90] sm:$0xff]
  %v101 = vld [vmem:[%s1 + $0x98] sm:$0xff]
  %v102 = vld [vmem:[%s1 + $0xa0] sm:$0xff]
  %v103 = vld [vmem:[%s1 + $0xa8] sm:$0xff]
  %v104 = vld [vmem:[%s1 + $0xb0] sm:$0xff]
  %v105 = vld [vmem:[%s1 + $0xb8] sm:$0xff]
  %v106 = vld [vmem:[%s1 + $0xc0] sm:$0xff]
  %v107 = vld [vmem:[%s1 + $0xc8] sm:$0xff]
  %v108 = vld [vmem:[%s1 + $0xd0] sm:$0xff]
  %v109 = vld [vmem:[%s1 + $0xd8] sm:$0xff]
  %v110 = vld [vmem:[%s1 + $0xe0] sm:$0xff]
  %v111 = vld [vmem:[%s1 + $0xe8] sm:$0xff]
  %v112 = vld [vmem:[%s1 + $0xf0] sm:$0xff]
  %v113 = vld [vmem:[%s1 + $0xf8] sm:$0xff]
  %v114 = vmul.f32 %v58, %v90
  %v115 = vmul.f32 %v59, %v91
  %v116 = vmul.f32 %v60, %v92
  %v117 = vmul.f32 %v61, %v93
  %v118 = vmul.f32 %v62, %v94
  %v119 = vmul.f32 %v63, %v95
  %v120 = vmul.f32 %v64, %v96
  %v121 = vmul.f32 %v65, %v97
  %v122 = vmul.f32 %v66, %v98
  %v123 = vmul.f32 %v67, %v99
  %v124 = vmul.f32 %v68, %v100
  %v125 = vmul.f32 %v69, %v101
  %v126 = vmul.f32 %v70, %v102
  %v127 = vmul.f32 %v71, %v103
  %v128 = vmul.f32 %v72, %v104
  %v129 = vmul.f32 %v73, %v105
  %v130 = vadd.f32 %v114, %v122
  %v131 = vadd.f32 %v115, %v123
  %v132 = vadd.f32 %v116, %v124
  %v133 = vadd.f32 %v117, %v125
  %v134 = vadd.f32 %v118, %v126
  %v135 = vadd.f32 %v119, %v127
  %v136 = vadd.f32 %v120, %v128
  %v137 = vadd.f32 %v121, %v129
  %v138 = vmul.f32 %v74, %v106
  %v139 = vmul.f32 %v75, %v107
  %v140 = vmul.f32 %v76, %v108
  %v141 = vmul.f32 %v77, %v109
  %v142 = vmul.f32 %v78, %v110
  %v143 = vmul.f32 %v79, %v111
  %v144 = vmul.f32 %v80, %v112
  %v145 = vmul.f32 %v81, %v113
  %v146 = vadd.f32 %v130, %v138
  %v147 = vadd.f32 %v131, %v139
  %v148 = vadd.f32 %v132, %v140
  %v149 = vadd.f32 %v133, %v141
  %v150 = vadd.f32 %v134, %v142
  %v151 = vadd.f32 %v135, %v143
  %v152 = vadd.f32 %v136, %v144
  %v153 = vadd.f32 %v137, %v145
  %v154 = vmul.f32 %v146, 0.57735026
  %v155 = vmul.f32 %v147, 0.57735026
  %v156 = vmul.f32 %v148, 0.57735026
  %v157 = vmul.f32 %v149, 0.57735026
  %v158 = vmul.f32 %v150, 0.57735026
  %v159 = vmul.f32 %v151, 0.57735026
  %v160 = vmul.f32 %v152, 0.57735026
  %v161 = vmul.f32 %v153, 0.57735026
  %v162 = vld [vmem:[%s2] sm:$0xff]
  %v163 = vld [vmem:[%s2 + $0x8] sm:$0xff]
  %v164 = vld [vmem:[%s2 + $0x10] sm:$0xff]
  %v165 = vld [vmem:[%s2 + $0x18] sm:$0xff]
  %v166 = vld [vmem:[%s2 + $0x20] sm:$0xff]
  %v167 = vld [vmem:[%s2 + $0x28] sm:$0xff]
  %v168 = vld [vmem:[%s2 + $0x30] sm:$0xff]
  %v169 = vld [vmem:[%s2 + $0x38] sm:$0xff]
  %v170 = vld [vmem:[%s2 + $0x40] sm:$0xff]
  %v171 = vld [vmem:[%s2 + $0x48] sm:$0xff]
  %v172 = vld [vmem:[%s2 + $0x50] sm:$0xff]
  %v173 = vld [vmem:[%s2 + $0x58] sm:$0xff]
  %v174 = vld [vmem:[%s2 + $0x60] sm:$0xff]
  %v175 = vld [vmem:[%s2 + $0x68] sm:$0xff]
  %v176 = vld [vmem:[%s2 + $0x70] sm:$0xff]
  %v177 = vld [vmem:[%s2 + $0x78] sm:$0xff]
  %v178 = vld [vmem:[%s2 + $0x80] sm:$0xff]
  %v179 = vld [vmem:[%s2 + $0x88] sm:$0xff]
  %v180 = vld [vmem:[%s2 + $0x90] sm:$0xff]
  %v181 = vld [vmem:[%s2 + $0x98] sm:$0xff]
  %v182 = vld [vmem:[%s2 + $0xa0] sm:$0xff]
  %v183 = vld [vmem:[%s2 + $0xa8] sm:$0xff]
  %v184 = vld [vmem:[%s2 + $0xb0] sm:$0xff]
  %v185 = vld [vmem:[%s2 + $0xb8] sm:$0xff]
  %v186 = vld [vmem:[%s8] sm:$0xff]
  %v187 = vld [vmem:[%s8 + $0x8] sm:$0xff]
  %v188 = vld [vmem:[%s8 + $0x10] sm:$0xff]
  %v189 = vld [vmem:[%s8 + $0x18] sm:$0xff]
  %v190 = vld [vmem:[%s8 + $0x20] sm:$0xff]
  %v191 = vld [vmem:[%s8 + $0x28] sm:$0xff]
  %v192 = vld [vmem:[%s8 + $0x30] sm:$0xff]
  %v193 = vld [vmem:[%s8 + $0x38] sm:$0xff]
  %v194 = vld [vmem:[%s8 + $0x40] sm:$0xff]
  %v195 = vld [vmem:[%s8 + $0x48] sm:$0xff]
  %v196 = vld [vmem:[%s8 + $0x50] sm:$0xff]
  %v197 = vld [vmem:[%s8 + $0x58] sm:$0xff]
  %v198 = vld [vmem:[%s8 + $0x60] sm:$0xff]
  %v199 = vld [vmem:[%s8 + $0x68] sm:$0xff]
  %v200 = vld [vmem:[%s8 + $0x70] sm:$0xff]
  %v201 = vld [vmem:[%s8 + $0x78] sm:$0xff]
  %v202 = vld [vmem:[%s8 + $0x80] sm:$0xff]
  %v203 = vld [vmem:[%s8 + $0x88] sm:$0xff]
  %v204 = vld [vmem:[%s8 + $0x90] sm:$0xff]
  %v205 = vld [vmem:[%s8 + $0x98] sm:$0xff]
  %v206 = vld [vmem:[%s8 + $0xa0] sm:$0xff]
  %v207 = vld [vmem:[%s8 + $0xa8] sm:$0xff]
  %v208 = vld [vmem:[%s8 + $0xb0] sm:$0xff]
  %v209 = vld [vmem:[%s8 + $0xb8] sm:$0xff]
  %v210 = vld [vmem:[%s8 + $0xc0] sm:$0xff]
  %v211 = vld [vmem:[%s8 + $0xc8] sm:$0xff]
  %v212 = vld [vmem:[%s8 + $0xd0] sm:$0xff]
  %v213 = vld [vmem:[%s8 + $0xd8] sm:$0xff]
  %v214 = vld [vmem:[%s8 + $0xe0] sm:$0xff]
  %v215 = vld [vmem:[%s8 + $0xe8] sm:$0xff]
  %v216 = vld [vmem:[%s8 + $0xf0] sm:$0xff]
  %v217 = vld [vmem:[%s8 + $0xf8] sm:$0xff]
  %v218 = vld [vmem:[%s9] sm:$0xff]
  %v219 = vld [vmem:[%s9 + $0x8] sm:$0xff]
  %v220 = vld [vmem:[%s9 + $0x10] sm:$0xff]
  %v221 = vld [vmem:[%s9 + $0x18] sm:$0xff]
  %v222 = vld [vmem:[%s9 + $0x20] sm:$0xff]
  %v223 = vld [vmem:[%s9 + $0x28] sm:$0xff]
  %v224 = vld [vmem:[%s9 + $0x30] sm:$0xff]
  %v225 = vld [vmem:[%s9 + $0x38] sm:$0xff]
  %v226 = vld [vmem:[%s9 + $0x40] sm:$0xff]
  %v227 = vld [vmem:[%s9 + $0x48] sm:$0xff]
  %v228 = vld [vmem:[%s9 + $0x50] sm:$0xff]
  %v229 = vld [vmem:[%s9 + $0x58] sm:$0xff]
  %v230 = vld [vmem:[%s9 + $0x60] sm:$0xff]
  %v231 = vld [vmem:[%s9 + $0x68] sm:$0xff]
  %v232 = vld [vmem:[%s9 + $0x70] sm:$0xff]
  %v233 = vld [vmem:[%s9 + $0x78] sm:$0xff]
  %v234 = vld [vmem:[%s9 + $0x80] sm:$0xff]
  %v235 = vld [vmem:[%s9 + $0x88] sm:$0xff]
  %v236 = vld [vmem:[%s9 + $0x90] sm:$0xff]
  %v237 = vld [vmem:[%s9 + $0x98] sm:$0xff]
  %v238 = vld [vmem:[%s9 + $0xa0] sm:$0xff]
  %v239 = vld [vmem:[%s9 + $0xa8] sm:$0xff]
  %v240 = vld [vmem:[%s9 + $0xb0] sm:$0xff]
  %v241 = vld [vmem:[%s9 + $0xb8] sm:$0xff]
  %v242 = vld [vmem:[%s9 + $0xc0] sm:$0xff]
  %v243 = vld [vmem:[%s9 + $0xc8] sm:$0xff]
  %v244 = vld [vmem:[%s9 + $0xd0] sm:$0xff]
  %v245 = vld [vmem:[%s9 + $0xd8] sm:$0xff]
  %v246 = vld [vmem:[%s9 + $0xe0] sm:$0xff]
  %v247 = vld [vmem:[%s9 + $0xe8] sm:$0xff]
  %v248 = vld [vmem:[%s9 + $0xf0] sm:$0xff]
  %v249 = vld [vmem:[%s9 + $0xf8] sm:$0xff]
  %251 = vset.pattern.permute.xlu0 0
  %252 = vperm.xlu0 %251, %v218
  %v253 = vpop.permute.xlu0 %252
  %256 = vset.pattern.permute.xlu0 0
  %257 = vperm.xlu0 %256, %v219
  %v258 = vpop.permute.xlu0 %257
  %261 = vset.pattern.permute.xlu0 0
  %262 = vperm.xlu0 %261, %v220
  %v263 = vpop.permute.xlu0 %262
  %266 = vset.pattern.permute.xlu0 0
  %267 = vperm.xlu0 %266, %v221
  %v268 = vpop.permute.xlu0 %267
  %271 = vset.pattern.permute.xlu0 0
  %272 = vperm.xlu0 %271, %v222
  %v273 = vpop.permute.xlu0 %272
  %276 = vset.pattern.permute.xlu0 0
  %277 = vperm.xlu0 %276, %v223
  %v278 = vpop.permute.xlu0 %277
  %281 = vset.pattern.permute.xlu0 0
  %282 = vperm.xlu0 %281, %v224
  %v283 = vpop.permute.xlu0 %282
  %286 = vset.pattern.permute.xlu0 0
  %287 = vperm.xlu0 %286, %v225
  %v288 = vpop.permute.xlu0 %287
  %291 = vset.pattern.permute.xlu0 0
  %292 = vperm.xlu0 %291, %v226
  %v293 = vpop.permute.xlu0 %292
  %296 = vset.pattern.permute.xlu0 0
  %297 = vperm.xlu0 %296, %v227
  %v298 = vpop.permute.xlu0 %297
  %301 = vset.pattern.permute.xlu0 0
  %302 = vperm.xlu0 %301, %v228
  %v303 = vpop.permute.xlu0 %302
  %306 = vset.pattern.permute.xlu0 0
  %307 = vperm.xlu0 %306, %v229
  %v308 = vpop.permute.xlu0 %307
  %311 = vset.pattern.permute.xlu0 0
  %312 = vperm.xlu0 %311, %v230
  %v313 = vpop.permute.xlu0 %312
  %316 = vset.pattern.permute.xlu0 0
  %317 = vperm.xlu0 %316, %v231
  %v318 = vpop.permute.xlu0 %317
  %321 = vset.pattern.permute.xlu0 0
  %322 = vperm.xlu0 %321, %v232
  %v323 = vpop.permute.xlu0 %322
  %326 = vset.pattern.permute.xlu0 0
  %327 = vperm.xlu0 %326, %v233
  %v328 = vpop.permute.xlu0 %327
  %331 = vset.pattern.permute.xlu0 0
  %332 = vperm.xlu0 %331, %v234
  %v333 = vpop.permute.xlu0 %332
  %336 = vset.pattern.permute.xlu0 0
  %337 = vperm.xlu0 %336, %v235
  %v338 = vpop.permute.xlu0 %337
  %341 = vset.pattern.permute.xlu0 0
  %342 = vperm.xlu0 %341, %v236
  %v343 = vpop.permute.xlu0 %342
  %346 = vset.pattern.permute.xlu0 0
  %347 = vperm.xlu0 %346, %v237
  %v348 = vpop.permute.xlu0 %347
  %351 = vset.pattern.permute.xlu0 0
  %352 = vperm.xlu0 %351, %v238
  %v353 = vpop.permute.xlu0 %352
  %356 = vset.pattern.permute.xlu0 0
  %357 = vperm.xlu0 %356, %v239
  %v358 = vpop.permute.xlu0 %357
  %361 = vset.pattern.permute.xlu0 0
  %362 = vperm.xlu0 %361, %v240
  %v363 = vpop.permute.xlu0 %362
  %366 = vset.pattern.permute.xlu0 0
  %367 = vperm.xlu0 %366, %v241
  %v368 = vpop.permute.xlu0 %367
  %371 = vset.pattern.permute.xlu0 0
  %372 = vperm.xlu0 %371, %v242
  %v373 = vpop.permute.xlu0 %372
  %376 = vset.pattern.permute.xlu0 0
  %377 = vperm.xlu0 %376, %v243
  %v378 = vpop.permute.xlu0 %377
  %381 = vset.pattern.permute.xlu0 0
  %382 = vperm.xlu0 %381, %v244
  %v383 = vpop.permute.xlu0 %382
  %386 = vset.pattern.permute.xlu0 0
  %387 = vperm.xlu0 %386, %v245
  %v388 = vpop.permute.xlu0 %387
  %391 = vset.pattern.permute.xlu0 0
  %392 = vperm.xlu0 %391, %v246
  %v393 = vpop.permute.xlu0 %392
  %396 = vset.pattern.permute.xlu0 0
  %397 = vperm.xlu0 %396, %v247
  %v398 = vpop.permute.xlu0 %397
  %401 = vset.pattern.permute.xlu0 0
  %402 = vperm.xlu0 %401, %v248
  %v403 = vpop.permute.xlu0 %402
  %406 = vset.pattern.permute.xlu0 0
  %407 = vperm.xlu0 %406, %v249
  %v408 = vpop.permute.xlu0 %407
  %vm410 = vcmask 392192
  %v412 = vsel %vm410, %v186, 0
  %v415 = vsel %vm410, %v187, 0
  %v418 = vsel %vm410, %v188, 0
  %v421 = vsel %vm410, %v189, 0
  %v424 = vsel %vm410, %v190, 0
  %v427 = vsel %vm410, %v191, 0
  %v430 = vsel %vm410, %v192, 0
  %v433 = vsel %vm410, %v193, 0
  %v436 = vsel %vm410, %v194, 0
  %v439 = vsel %vm410, %v195, 0
  %v442 = vsel %vm410, %v196, 0
  %v445 = vsel %vm410, %v197, 0
  %v448 = vsel %vm410, %v198, 0
  %v451 = vsel %vm410, %v199, 0
  %v454 = vsel %vm410, %v200, 0
  %v457 = vsel %vm410, %v201, 0
  %v460 = vsel %vm410, %v202, 0
  %v463 = vsel %vm410, %v203, 0
  %v466 = vsel %vm410, %v204, 0
  %v469 = vsel %vm410, %v205, 0
  %v472 = vsel %vm410, %v206, 0
  %v475 = vsel %vm410, %v207, 0
  %v478 = vsel %vm410, %v208, 0
  %v481 = vsel %vm410, %v209, 0
  %v484 = vsel %vm410, %v210, 0
  %v487 = vsel %vm410, %v211, 0
  %v490 = vsel %vm410, %v212, 0
  %v493 = vsel %vm410, %v213, 0
  %v496 = vsel %vm410, %v214, 0
  %v499 = vsel %vm410, %v215, 0
  %v502 = vsel %vm410, %v216, 0
  %v505 = vsel %vm410, %v217, 0
  %507 = vmatprep.subr.mxu0 0.0
  %508 = vmatpush1.msra.mxu0 0.0
  %509 = vmatprep.subr.mxu0 0.0
  %510 = vmatpush1.msra.mxu0 0.0
  %511 = vmatprep.subr.mxu0 0.0
  %512 = vmatpush1.msra.mxu0 0.0
  %513 = vmatprep.subr.mxu0 0.0
  %514 = vmatpush1.msra.mxu0 0.0
  %515 = vmatprep.subr.mxu0 0.0
  %516 = vmatpush1.msra.mxu0 0.0
  %517 = vmatprep.subr.mxu0 0.0
  %518 = vmatpush1.msra.mxu0 0.0
  %519 = vmatprep.subr.mxu0 0.0
  %520 = vmatpush1.msra.mxu0 0.0
  %521 = vmatprep.subr.mxu0 0.0
  %522 = vmatpush1.msra.mxu0 0.0
  %523 = vmatprep.subr.mxu0 0.0
  %524 = vmatpush1.msra.mxu0 0.0
  %525 = vmatprep.subr.mxu0 0.0
  %526 = vmatpush1.msra.mxu0 0.0
  %527 = vmatprep.subr.mxu0 %v179
  %528 = vmatpush1.msra.mxu0 %v178
  %529 = vmatprep.subr.mxu0 %v171
  %530 = vmatpush1.msra.mxu0 %v170
  %531 = vmatprep.subr.mxu0 %v163
  %532 = vmatpush1.msra.mxu0 %v162
  %533 = vmatprep.subr.mxu0 %v155
  %534 = vmatpush1.msra.mxu0 %v154
  %535 = vmatprep.subr.mxu0 %v83
  %536 = vmatpush1.msra.mxu0 %v82
  %537 = vmatprep.subr.mxu0 %v51
  %538 = vmatpush1.msra.mxu0 %v50
  %539 = vmatprep.subr.mxu0 0.0
  %540 = vmatpush2.msra.mxu0 0.0
  %541 = vmatprep.subr.mxu0 0.0
  %542 = vmatpush2.msra.mxu0 0.0
  %543 = vmatprep.subr.mxu0 0.0
  %544 = vmatpush2.msra.mxu0 0.0
  %545 = vmatprep.subr.mxu0 0.0
  %546 = vmatpush2.msra.mxu0 0.0
  %547 = vmatprep.subr.mxu0 0.0
  %548 = vmatpush2.msra.mxu0 0.0
  %549 = vmatprep.subr.mxu0 0.0
  %550 = vmatpush2.msra.mxu0 0.0
  %551 = vmatprep.subr.mxu0 0.0
  %552 = vmatpush2.msra.mxu0 0.0
  %553 = vmatprep.subr.mxu0 0.0
  %554 = vmatpush2.msra.mxu0 0.0
  %555 = vmatprep.subr.mxu0 0.0
  %556 = vmatpush2.msra.mxu0 0.0
  %557 = vmatprep.subr.mxu0 0.0
  %558 = vmatpush2.msra.mxu0 0.0
  %559 = vmatprep.subr.mxu0 0.0
  %560 = vmatpush2.msra.mxu0 0.0
  %561 = vmatprep.subr.mxu0 0.0
  %562 = vmatpush2.msra.mxu0 0.0
  %563 = vmatprep.subr.mxu0 0.0
  %564 = vmatpush2.msra.mxu0 0.0
  %565 = vmatprep.subr.mxu0 0.0
  %566 = vmatpush2.msra.mxu0 0.0
  %567 = vmatprep.subr.mxu0 0.0
  %568 = vmatpush2.msra.mxu0 0.0
  %569 = vmatprep.subr.mxu0 0.0
  %570 = vmatpush2.msra.mxu0 0.0
  %571 = vmatprep.mubr.f32.mxu0 0.0
  %572 = vmatmul.mubr.f32.gmra.mxu0 %v412
  %v573 = vpop.f32.mrf.mxu0
  %v574 = vadd.f32 %v253, %v573
  %v575 = vpop.f32.mrf.mxu0
  %v576 = vadd.f32 %v253, %v575
  %577 = vmatprep.mubr.f32.mxu0 0.0
  %578 = vmatmul.mubr.f32.gmra.mxu0 %v415
  %v579 = vpop.f32.mrf.mxu0
  %v580 = vadd.f32 %v258, %v579
  %v581 = vpop.f32.mrf.mxu0
  %v582 = vadd.f32 %v258, %v581
  %583 = vmatprep.mubr.f32.mxu0 0.0
  %584 = vmatmul.mubr.f32.gmra.mxu0 %v418
  %v585 = vpop.f32.mrf.mxu0
  %v586 = vadd.f32 %v263, %v585
  %v587 = vpop.f32.mrf.mxu0
  %v588 = vadd.f32 %v263, %v587
  %589 = vmatprep.mubr.f32.mxu0 0.0
  %590 = vmatmul.mubr.f32.gmra.mxu0 %v421
  %v591 = vpop.f32.mrf.mxu0
  %v592 = vadd.f32 %v268, %v591
  %v593 = vpop.f32.mrf.mxu0
  %v594 = vadd.f32 %v268, %v593
  %595 = vmatprep.mubr.f32.mxu0 0.0
  %596 = vmatmul.mubr.f32.gmra.mxu0 %v424
  %v597 = vpop.f32.mrf.mxu0
  %v598 = vadd.f32 %v273, %v597
  %v599 = vpop.f32.mrf.mxu0
  %v600 = vadd.f32 %v273, %v599
  %601 = vmatprep.mubr.f32.mxu0 0.0
  %602 = vmatmul.mubr.f32.gmra.mxu0 %v427
  %v603 = vpop.f32.mrf.mxu0
  %v604 = vadd.f32 %v278, %v603
  %v605 = vpop.f32.mrf.mxu0
  %v606 = vadd.f32 %v278, %v605
  %607 = vmatprep.mubr.f32.mxu0 0.0
  %608 = vmatmul.mubr.f32.gmra.mxu0 %v430
  %v609 = vpop.f32.mrf.mxu0
  %v610 = vadd.f32 %v283, %v609
  %v611 = vpop.f32.mrf.mxu0
  %v612 = vadd.f32 %v283, %v611
  %613 = vmatprep.mubr.f32.mxu0 0.0
  %614 = vmatmul.mubr.f32.gmra.mxu0 %v433
  %v615 = vpop.f32.mrf.mxu0
  %v616 = vadd.f32 %v288, %v615
  %v617 = vpop.f32.mrf.mxu0
  %v618 = vadd.f32 %v288, %v617
  %619 = vmatprep.mubr.f32.mxu0 0.0
  %620 = vmatmul.mubr.f32.gmra.mxu0 %v436
  %v621 = vpop.f32.mrf.mxu0
  %v622 = vadd.f32 %v293, %v621
  %v623 = vpop.f32.mrf.mxu0
  %v624 = vadd.f32 %v293, %v623
  %625 = vmatprep.mubr.f32.mxu0 0.0
  %626 = vmatmul.mubr.f32.gmra.mxu0 %v439
  %v627 = vpop.f32.mrf.mxu0
  %v628 = vadd.f32 %v298, %v627
  %v629 = vpop.f32.mrf.mxu0
  %v630 = vadd.f32 %v298, %v629
  %631 = vmatprep.mubr.f32.mxu0 0.0
  %632 = vmatmul.mubr.f32.gmra.mxu0 %v442
  %v633 = vpop.f32.mrf.mxu0
  %v634 = vadd.f32 %v303, %v633
  %v635 = vpop.f32.mrf.mxu0
  %v636 = vadd.f32 %v303, %v635
  %637 = vmatprep.mubr.f32.mxu0 0.0
  %638 = vmatmul.mubr.f32.gmra.mxu0 %v445
  %v639 = vpop.f32.mrf.mxu0
  %v640 = vadd.f32 %v308, %v639
  %v641 = vpop.f32.mrf.mxu0
  %v642 = vadd.f32 %v308, %v641
  %643 = vmatprep.mubr.f32.mxu0 0.0
  %644 = vmatmul.mubr.f32.gmra.mxu0 %v448
  %v645 = vpop.f32.mrf.mxu0
  %v646 = vadd.f32 %v313, %v645
  %v647 = vpop.f32.mrf.mxu0
  %v648 = vadd.f32 %v313, %v647
  %649 = vmatprep.mubr.f32.mxu0 0.0
  %650 = vmatmul.mubr.f32.gmra.mxu0 %v451
  %v651 = vpop.f32.mrf.mxu0
  %v652 = vadd.f32 %v318, %v651
  %v653 = vpop.f32.mrf.mxu0
  %v654 = vadd.f32 %v318, %v653
  %655 = vmatprep.mubr.f32.mxu0 0.0
  %656 = vmatmul.mubr.f32.gmra.mxu0 %v454
  %v657 = vpop.f32.mrf.mxu0
  %v658 = vadd.f32 %v323, %v657
  %v659 = vpop.f32.mrf.mxu0
  %v660 = vadd.f32 %v323, %v659
  %661 = vmatprep.mubr.f32.mxu0 0.0
  %662 = vmatmul.mubr.f32.gmra.mxu0 %v457
  %v663 = vpop.f32.mrf.mxu0
  %v664 = vadd.f32 %v328, %v663
  %v665 = vpop.f32.mrf.mxu0
  %v666 = vadd.f32 %v328, %v665
  %667 = vmatprep.mubr.f32.mxu0 0.0
  %668 = vmatmul.mubr.f32.gmra.mxu0 %v460
  %v669 = vpop.f32.mrf.mxu0
  %v670 = vadd.f32 %v333, %v669
  %v671 = vpop.f32.mrf.mxu0
  %v672 = vadd.f32 %v333, %v671
  %673 = vmatprep.mubr.f32.mxu0 0.0
  %674 = vmatmul.mubr.f32.gmra.mxu0 %v463
  %v675 = vpop.f32.mrf.mxu0
  %v676 = vadd.f32 %v338, %v675
  %v677 = vpop.f32.mrf.mxu0
  %v678 = vadd.f32 %v338, %v677
  %679 = vmatprep.mubr.f32.mxu0 0.0
  %680 = vmatmul.mubr.f32.gmra.mxu0 %v466
  %v681 = vpop.f32.mrf.mxu0
  %v682 = vadd.f32 %v343, %v681
  %v683 = vpop.f32.mrf.mxu0
  %v684 = vadd.f32 %v343, %v683
  %685 = vmatprep.mubr.f32.mxu0 0.0
  %686 = vmatmul.mubr.f32.gmra.mxu0 %v469
  %v687 = vpop.f32.mrf.mxu0
  %v688 = vadd.f32 %v348, %v687
  %v689 = vpop.f32.mrf.mxu0
  %v690 = vadd.f32 %v348, %v689
  %691 = vmatprep.mubr.f32.mxu0 0.0
  %692 = vmatmul.mubr.f32.gmra.mxu0 %v472
  %v693 = vpop.f32.mrf.mxu0
  %v694 = vadd.f32 %v353, %v693
  %v695 = vpop.f32.mrf.mxu0
  %v696 = vadd.f32 %v353, %v695
  %697 = vmatprep.mubr.f32.mxu0 0.0
  %698 = vmatmul.mubr.f32.gmra.mxu0 %v475
  %v699 = vpop.f32.mrf.mxu0
  %v700 = vadd.f32 %v358, %v699
  %v701 = vpop.f32.mrf.mxu0
  %v702 = vadd.f32 %v358, %v701
  %703 = vmatprep.mubr.f32.mxu0 0.0
  %704 = vmatmul.mubr.f32.gmra.mxu0 %v478
  %v705 = vpop.f32.mrf.mxu0
  %v706 = vadd.f32 %v363, %v705
  %v707 = vpop.f32.mrf.mxu0
  %v708 = vadd.f32 %v363, %v707
  %709 = vmatprep.mubr.f32.mxu0 0.0
  %710 = vmatmul.mubr.f32.gmra.mxu0 %v481
  %v711 = vpop.f32.mrf.mxu0
  %v712 = vadd.f32 %v368, %v711
  %v713 = vpop.f32.mrf.mxu0
  %v714 = vadd.f32 %v368, %v713
  %715 = vmatprep.mubr.f32.mxu0 0.0
  %716 = vmatmul.mubr.f32.gmra.mxu0 %v484
  %v717 = vpop.f32.mrf.mxu0
  %v718 = vadd.f32 %v373, %v717
  %v719 = vpop.f32.mrf.mxu0
  %v720 = vadd.f32 %v373, %v719
  %721 = vmatprep.mubr.f32.mxu0 0.0
  %722 = vmatmul.mubr.f32.gmra.mxu0 %v487
  %v723 = vpop.f32.mrf.mxu0
  %v724 = vadd.f32 %v378, %v723
  %v725 = vpop.f32.mrf.mxu0
  %v726 = vadd.f32 %v378, %v725
  %727 = vmatprep.mubr.f32.mxu0 0.0
  %728 = vmatmul.mubr.f32.gmra.mxu0 %v490
  %v729 = vpop.f32.mrf.mxu0
  %v730 = vadd.f32 %v383, %v729
  %v731 = vpop.f32.mrf.mxu0
  %v732 = vadd.f32 %v383, %v731
  %733 = vmatprep.mubr.f32.mxu0 0.0
  %734 = vmatmul.mubr.f32.gmra.mxu0 %v493
  %v735 = vpop.f32.mrf.mxu0
  %v736 = vadd.f32 %v388, %v735
  %v737 = vpop.f32.mrf.mxu0
  %v738 = vadd.f32 %v388, %v737
  %739 = vmatprep.mubr.f32.mxu0 0.0
  %740 = vmatmul.mubr.f32.gmra.mxu0 %v496
  %v741 = vpop.f32.mrf.mxu0
  %v742 = vadd.f32 %v393, %v741
  %v743 = vpop.f32.mrf.mxu0
  %v744 = vadd.f32 %v393, %v743
  %745 = vmatprep.mubr.f32.mxu0 0.0
  %746 = vmatmul.mubr.f32.gmra.mxu0 %v499
  %v747 = vpop.f32.mrf.mxu0
  %v748 = vadd.f32 %v398, %v747
  %v749 = vpop.f32.mrf.mxu0
  %v750 = vadd.f32 %v398, %v749
  %751 = vmatprep.mubr.f32.mxu0 0.0
  %752 = vmatmul.mubr.f32.gmra.mxu0 %v502
  %v753 = vpop.f32.mrf.mxu0
  %v754 = vadd.f32 %v403, %v753
  %v755 = vpop.f32.mrf.mxu0
  %v756 = vadd.f32 %v403, %v755
  %757 = vmatprep.mubr.f32.mxu0 0.0
  %758 = vmatmul.mubr.f32.gmra.mxu0 %v505
  %v759 = vpop.f32.mrf.mxu0
  %v760 = vadd.f32 %v408, %v759
  %v761 = vpop.f32.mrf.mxu0
  %v762 = vadd.f32 %v408, %v761
  %763 = vdwg.mxu0
  %764 = vmatprep.subr.mxu0 0.0
  %765 = vmatpush1.msra.mxu0 0.0
  %766 = vmatprep.subr.mxu0 0.0
  %767 = vmatpush1.msra.mxu0 0.0
  %768 = vmatprep.subr.mxu0 0.0
  %769 = vmatpush1.msra.mxu0 0.0
  %770 = vmatprep.subr.mxu0 0.0
  %771 = vmatpush1.msra.mxu0 0.0
  %772 = vmatprep.subr.mxu0 0.0
  %773 = vmatpush1.msra.mxu0 0.0
  %774 = vmatprep.subr.mxu0 0.0
  %775 = vmatpush1.msra.mxu0 0.0
  %776 = vmatprep.subr.mxu0 0.0
  %777 = vmatpush1.msra.mxu0 0.0
  %778 = vmatprep.subr.mxu0 0.0
  %779 = vmatpush1.msra.mxu0 0.0
  %780 = vmatprep.subr.mxu0 0.0
  %781 = vmatpush1.msra.mxu0 0.0
  %782 = vmatprep.subr.mxu0 0.0
  %783 = vmatpush1.msra.mxu0 0.0
  %784 = vmatprep.subr.mxu0 %v181
  %785 = vmatpush1.msra.mxu0 %v180
  %786 = vmatprep.subr.mxu0 %v173
  %787 = vmatpush1.msra.mxu0 %v172
  %788 = vmatprep.subr.mxu0 %v165
  %789 = vmatpush1.msra.mxu0 %v164
  %790 = vmatprep.subr.mxu0 %v157
  %791 = vmatpush1.msra.mxu0 %v156
  %792 = vmatprep.subr.mxu0 %v85
  %793 = vmatpush1.msra.mxu0 %v84
  %794 = vmatprep.subr.mxu0 %v53
  %795 = vmatpush1.msra.mxu0 %v52
  %796 = vmatprep.subr.mxu0 0.0
  %797 = vmatpush2.msra.mxu0 0.0
  %798 = vmatprep.subr.mxu0 0.0
  %799 = vmatpush2.msra.mxu0 0.0
  %800 = vmatprep.subr.mxu0 0.0
  %801 = vmatpush2.msra.mxu0 0.0
  %802 = vmatprep.subr.mxu0 0.0
  %803 = vmatpush2.msra.mxu0 0.0
  %804 = vmatprep.subr.mxu0 0.0
  %805 = vmatpush2.msra.mxu0 0.0
  %806 = vmatprep.subr.mxu0 0.0
  %807 = vmatpush2.msra.mxu0 0.0
  %808 = vmatprep.subr.mxu0 0.0
  %809 = vmatpush2.msra.mxu0 0.0
  %810 = vmatprep.subr.mxu0 0.0
  %811 = vmatpush2.msra.mxu0 0.0
  %812 = vmatprep.subr.mxu0 0.0
  %813 = vmatpush2.msra.mxu0 0.0
  %814 = vmatprep.subr.mxu0 0.0
  %815 = vmatpush2.msra.mxu0 0.0
  %816 = vmatprep.subr.mxu0 0.0
  %817 = vmatpush2.msra.mxu0 0.0
  %818 = vmatprep.subr.mxu0 0.0
  %819 = vmatpush2.msra.mxu0 0.0
  %820 = vmatprep.subr.mxu0 0.0
  %821 = vmatpush2.msra.mxu0 0.0
  %822 = vmatprep.subr.mxu0 0.0
  %823 = vmatpush2.msra.mxu0 0.0
  %824 = vmatprep.subr.mxu0 0.0
  %825 = vmatpush2.msra.mxu0 0.0
  %826 = vmatprep.subr.mxu0 0.0
  %827 = vmatpush2.msra.mxu0 0.0
  %828 = vmatprep.mubr.f32.mxu0 0.0
  %829 = vmatmul.mubr.f32.gmra.mxu0 %v412
  %v830 = vpop.f32.mrf.mxu0
  %v831 = vadd.f32 %v253, %v830
  %v832 = vpop.f32.mrf.mxu0
  %v833 = vadd.f32 %v253, %v832
  %834 = vmatprep.mubr.f32.mxu0 0.0
  %835 = vmatmul.mubr.f32.gmra.mxu0 %v415
  %v836 = vpop.f32.mrf.mxu0
  %v837 = vadd.f32 %v258, %v836
  %v838 = vpop.f32.mrf.mxu0
  %v839 = vadd.f32 %v258, %v838
  %840 = vmatprep.mubr.f32.mxu0 0.0
  %841 = vmatmul.mubr.f32.gmra.mxu0 %v418
  %v842 = vpop.f32.mrf.mxu0
  %v843 = vadd.f32 %v263, %v842
  %v844 = vpop.f32.mrf.mxu0
  %v845 = vadd.f32 %v263, %v844
  %846 = vmatprep.mubr.f32.mxu0 0.0
  %847 = vmatmul.mubr.f32.gmra.mxu0 %v421
  %v848 = vpop.f32.mrf.mxu0
  %v849 = vadd.f32 %v268, %v848
  %v850 = vpop.f32.mrf.mxu0
  %v851 = vadd.f32 %v268, %v850
  %852 = vmatprep.mubr.f32.mxu0 0.0
  %853 = vmatmul.mubr.f32.gmra.mxu0 %v424
  %v854 = vpop.f32.mrf.mxu0
  %v855 = vadd.f32 %v273, %v854
  %v856 = vpop.f32.mrf.mxu0
  %v857 = vadd.f32 %v273, %v856
  %858 = vmatprep.mubr.f32.mxu0 0.0
  %859 = vmatmul.mubr.f32.gmra.mxu0 %v427
  %v860 = vpop.f32.mrf.mxu0
  %v861 = vadd.f32 %v278, %v860
  %v862 = vpop.f32.mrf.mxu0
  %v863 = vadd.f32 %v278, %v862
  %864 = vmatprep.mubr.f32.mxu0 0.0
  %865 = vmatmul.mubr.f32.gmra.mxu0 %v430
  %v866 = vpop.f32.mrf.mxu0
  %v867 = vadd.f32 %v283, %v866
  %v868 = vpop.f32.mrf.mxu0
  %v869 = vadd.f32 %v283, %v868
  %870 = vmatprep.mubr.f32.mxu0 0.0
  %871 = vmatmul.mubr.f32.gmra.mxu0 %v433
  %v872 = vpop.f32.mrf.mxu0
  %v873 = vadd.f32 %v288, %v872
  %v874 = vpop.f32.mrf.mxu0
  %v875 = vadd.f32 %v288, %v874
  %876 = vmatprep.mubr.f32.mxu0 0.0
  %877 = vmatmul.mubr.f32.gmra.mxu0 %v436
  %v878 = vpop.f32.mrf.mxu0
  %v879 = vadd.f32 %v293, %v878
  %v880 = vpop.f32.mrf.mxu0
  %v881 = vadd.f32 %v293, %v880
  %882 = vmatprep.mubr.f32.mxu0 0.0
  %883 = vmatmul.mubr.f32.gmra.mxu0 %v439
  %v884 = vpop.f32.mrf.mxu0
  %v885 = vadd.f32 %v298, %v884
  %v886 = vpop.f32.mrf.mxu0
  %v887 = vadd.f32 %v298, %v886
  %888 = vmatprep.mubr.f32.mxu0 0.0
  %889 = vmatmul.mubr.f32.gmra.mxu0 %v442
  %v890 = vpop.f32.mrf.mxu0
  %v891 = vadd.f32 %v303, %v890
  %v892 = vpop.f32.mrf.mxu0
  %v893 = vadd.f32 %v303, %v892
  %894 = vmatprep.mubr.f32.mxu0 0.0
  %895 = vmatmul.mubr.f32.gmra.mxu0 %v445
  %v896 = vpop.f32.mrf.mxu0
  %v897 = vadd.f32 %v308, %v896
  %v898 = vpop.f32.mrf.mxu0
  %v899 = vadd.f32 %v308, %v898
  %900 = vmatprep.mubr.f32.mxu0 0.0
  %901 = vmatmul.mubr.f32.gmra.mxu0 %v448
  %v902 = vpop.f32.mrf.mxu0
  %v903 = vadd.f32 %v313, %v902
  %v904 = vpop.f32.mrf.mxu0
  %v905 = vadd.f32 %v313, %v904
  %906 = vmatprep.mubr.f32.mxu0 0.0
  %907 = vmatmul.mubr.f32.gmra.mxu0 %v451
  %v908 = vpop.f32.mrf.mxu0
  %v909 = vadd.f32 %v318, %v908
  %v910 = vpop.f32.mrf.mxu0
  %v911 = vadd.f32 %v318, %v910
  %912 = vmatprep.mubr.f32.mxu0 0.0
  %913 = vmatmul.mubr.f32.gmra.mxu0 %v454
  %v914 = vpop.f32.mrf.mxu0
  %v915 = vadd.f32 %v323, %v914
  %v916 = vpop.f32.mrf.mxu0
  %v917 = vadd.f32 %v323, %v916
  %918 = vmatprep.mubr.f32.mxu0 0.0
  %919 = vmatmul.mubr.f32.gmra.mxu0 %v457
  %v920 = vpop.f32.mrf.mxu0
  %v921 = vadd.f32 %v328, %v920
  %v922 = vpop.f32.mrf.mxu0
  %v923 = vadd.f32 %v328, %v922
  %924 = vmatprep.mubr.f32.mxu0 0.0
  %925 = vmatmul.mubr.f32.gmra.mxu0 %v460
  %v926 = vpop.f32.mrf.mxu0
  %v927 = vadd.f32 %v333, %v926
  %v928 = vpop.f32.mrf.mxu0
  %v929 = vadd.f32 %v333, %v928
  %930 = vmatprep.mubr.f32.mxu0 0.0
  %931 = vmatmul.mubr.f32.gmra.mxu0 %v463
  %v932 = vpop.f32.mrf.mxu0
  %v933 = vadd.f32 %v338, %v932
  %v934 = vpop.f32.mrf.mxu0
  %v935 = vadd.f32 %v338, %v934
  %936 = vmatprep.mubr.f32.mxu0 0.0
  %937 = vmatmul.mubr.f32.gmra.mxu0 %v466
  %v938 = vpop.f32.mrf.mxu0
  %v939 = vadd.f32 %v343, %v938
  %v940 = vpop.f32.mrf.mxu0
  %v941 = vadd.f32 %v343, %v940
  %942 = vmatprep.mubr.f32.mxu0 0.0
  %943 = vmatmul.mubr.f32.gmra.mxu0 %v469
  %v944 = vpop.f32.mrf.mxu0
  %v945 = vadd.f32 %v348, %v944
  %v946 = vpop.f32.mrf.mxu0
  %v947 = vadd.f32 %v348, %v946
  %948 = vmatprep.mubr.f32.mxu0 0.0
  %949 = vmatmul.mubr.f32.gmra.mxu0 %v472
  %v950 = vpop.f32.mrf.mxu0
  %v951 = vadd.f32 %v353, %v950
  %v952 = vpop.f32.mrf.mxu0
  %v953 = vadd.f32 %v353, %v952
  %954 = vmatprep.mubr.f32.mxu0 0.0
  %955 = vmatmul.mubr.f32.gmra.mxu0 %v475
  %v956 = vpop.f32.mrf.mxu0
  %v957 = vadd.f32 %v358, %v956
  %v958 = vpop.f32.mrf.mxu0
  %v959 = vadd.f32 %v358, %v958
  %960 = vmatprep.mubr.f32.mxu0 0.0
  %961 = vmatmul.mubr.f32.gmra.mxu0 %v478
  %v962 = vpop.f32.mrf.mxu0
  %v963 = vadd.f32 %v363, %v962
  %v964 = vpop.f32.mrf.mxu0
  %v965 = vadd.f32 %v363, %v964
  %966 = vmatprep.mubr.f32.mxu0 0.0
  %967 = vmatmul.mubr.f32.gmra.mxu0 %v481
  %v968 = vpop.f32.mrf.mxu0
  %v969 = vadd.f32 %v368, %v968
  %v970 = vpop.f32.mrf.mxu0
  %v971 = vadd.f32 %v368, %v970
  %972 = vmatprep.mubr.f32.mxu0 0.0
  %973 = vmatmul.mubr.f32.gmra.mxu0 %v484
  %v974 = vpop.f32.mrf.mxu0
  %v975 = vadd.f32 %v373, %v974
  %v976 = vpop.f32.mrf.mxu0
  %v977 = vadd.f32 %v373, %v976
  %978 = vmatprep.mubr.f32.mxu0 0.0
  %979 = vmatmul.mubr.f32.gmra.mxu0 %v487
  %v980 = vpop.f32.mrf.mxu0
  %v981 = vadd.f32 %v378, %v980
  %v982 = vpop.f32.mrf.mxu0
  %v983 = vadd.f32 %v378, %v982
  %984 = vmatprep.mubr.f32.mxu0 0.0
  %985 = vmatmul.mubr.f32.gmra.mxu0 %v490
  %v986 = vpop.f32.mrf.mxu0
  %v987 = vadd.f32 %v383, %v986
  %v988 = vpop.f32.mrf.mxu0
  %v989 = vadd.f32 %v383, %v988
  %990 = vmatprep.mubr.f32.mxu0 0.0
  %991 = vmatmul.mubr.f32.gmra.mxu0 %v493
  %v992 = vpop.f32.mrf.mxu0
  %v993 = vadd.f32 %v388, %v992
  %v994 = vpop.f32.mrf.mxu0
  %v995 = vadd.f32 %v388, %v994
  %996 = vmatprep.mubr.f32.mxu0 0.0
  %997 = vmatmul.mubr.f32.gmra.mxu0 %v496
  %v998 = vpop.f32.mrf.mxu0
  %v999 = vadd.f32 %v393, %v998
  %v1000 = vpop.f32.mrf.mxu0
  %v1001 = vadd.f32 %v393, %v1000
  %1002 = vmatprep.mubr.f32.mxu0 0.0
  %1003 = vmatmul.mubr.f32.gmra.mxu0 %v499
  %v1004 = vpop.f32.mrf.mxu0
  %v1005 = vadd.f32 %v398, %v1004
  %v1006 = vpop.f32.mrf.mxu0
  %v1007 = vadd.f32 %v398, %v1006
  %1008 = vmatprep.mubr.f32.mxu0 0.0
  %1009 = vmatmul.mubr.f32.gmra.mxu0 %v502
  %v1010 = vpop.f32.mrf.mxu0
  %v1011 = vadd.f32 %v403, %v1010
  %v1012 = vpop.f32.mrf.mxu0
  %v1013 = vadd.f32 %v403, %v1012
  %1014 = vmatprep.mubr.f32.mxu0 0.0
  %1015 = vmatmul.mubr.f32.gmra.mxu0 %v505
  %v1016 = vpop.f32.mrf.mxu0
  %v1017 = vadd.f32 %v408, %v1016
  %v1018 = vpop.f32.mrf.mxu0
  %v1019 = vadd.f32 %v408, %v1018
  %1020 = vdwg.mxu0
  %1021 = vmatprep.subr.mxu0 0.0
  %1022 = vmatpush1.msra.mxu0 0.0
  %1023 = vmatprep.subr.mxu0 0.0
  %1024 = vmatpush1.msra.mxu0 0.0
  %1025 = vmatprep.subr.mxu0 0.0
  %1026 = vmatpush1.msra.mxu0 0.0
  %1027 = vmatprep.subr.mxu0 0.0
  %1028 = vmatpush1.msra.mxu0 0.0
  %1029 = vmatprep.subr.mxu0 0.0
  %1030 = vmatpush1.msra.mxu0 0.0
  %1031 = vmatprep.subr.mxu0 0.0
  %1032 = vmatpush1.msra.mxu0 0.0
  %1033 = vmatprep.subr.mxu0 0.0
  %1034 = vmatpush1.msra.mxu0 0.0
  %1035 = vmatprep.subr.mxu0 0.0
  %1036 = vmatpush1.msra.mxu0 0.0
  %1037 = vmatprep.subr.mxu0 0.0
  %1038 = vmatpush1.msra.mxu0 0.0
  %1039 = vmatprep.subr.mxu0 0.0
  %1040 = vmatpush1.msra.mxu0 0.0
  %1041 = vmatprep.subr.mxu0 %v183
  %1042 = vmatpush1.msra.mxu0 %v182
  %1043 = vmatprep.subr.mxu0 %v175
  %1044 = vmatpush1.msra.mxu0 %v174
  %1045 = vmatprep.subr.mxu0 %v167
  %1046 = vmatpush1.msra.mxu0 %v166
  %1047 = vmatprep.subr.mxu0 %v159
  %1048 = vmatpush1.msra.mxu0 %v158
  %1049 = vmatprep.subr.mxu0 %v87
  %1050 = vmatpush1.msra.mxu0 %v86
  %1051 = vmatprep.subr.mxu0 %v55
  %1052 = vmatpush1.msra.mxu0 %v54
  %1053 = vmatprep.subr.mxu0 0.0
  %1054 = vmatpush2.msra.mxu0 0.0
  %1055 = vmatprep.subr.mxu0 0.0
  %1056 = vmatpush2.msra.mxu0 0.0
  %1057 = vmatprep.subr.mxu0 0.0
  %1058 = vmatpush2.msra.mxu0 0.0
  %1059 = vmatprep.subr.mxu0 0.0
  %1060 = vmatpush2.msra.mxu0 0.0
  %1061 = vmatprep.subr.mxu0 0.0
  %1062 = vmatpush2.msra.mxu0 0.0
  %1063 = vmatprep.subr.mxu0 0.0
  %1064 = vmatpush2.msra.mxu0 0.0
  %1065 = vmatprep.subr.mxu0 0.0
  %1066 = vmatpush2.msra.mxu0 0.0
  %1067 = vmatprep.subr.mxu0 0.0
  %1068 = vmatpush2.msra.mxu0 0.0
  %1069 = vmatprep.subr.mxu0 0.0
  %1070 = vmatpush2.msra.mxu0 0.0
  %1071 = vmatprep.subr.mxu0 0.0
  %1072 = vmatpush2.msra.mxu0 0.0
  %1073 = vmatprep.subr.mxu0 0.0
  %1074 = vmatpush2.msra.mxu0 0.0
  %1075 = vmatprep.subr.mxu0 0.0
  %1076 = vmatpush2.msra.mxu0 0.0
  %1077 = vmatprep.subr.mxu0 0.0
  %1078 = vmatpush2.msra.mxu0 0.0
  %1079 = vmatprep.subr.mxu0 0.0
  %1080 = vmatpush2.msra.mxu0 0.0
  %1081 = vmatprep.subr.mxu0 0.0
  %1082 = vmatpush2.msra.mxu0 0.0
  %1083 = vmatprep.subr.mxu0 0.0
  %1084 = vmatpush2.msra.mxu0 0.0
  %1085 = vmatprep.mubr.f32.mxu0 0.0
  %1086 = vmatmul.mubr.f32.gmra.mxu0 %v412
  %v1087 = vpop.f32.mrf.mxu0
  %v1088 = vadd.f32 %v253, %v1087
  %v1089 = vpop.f32.mrf.mxu0
  %v1090 = vadd.f32 %v253, %v1089
  %1091 = vmatprep.mubr.f32.mxu0 0.0
  %1092 = vmatmul.mubr.f32.gmra.mxu0 %v415
  %v1093 = vpop.f32.mrf.mxu0
  %v1094 = vadd.f32 %v258, %v1093
  %v1095 = vpop.f32.mrf.mxu0
  %v1096 = vadd.f32 %v258, %v1095
  %1097 = vmatprep.mubr.f32.mxu0 0.0
  %1098 = vmatmul.mubr.f32.gmra.mxu0 %v418
  %v1099 = vpop.f32.mrf.mxu0
  %v1100 = vadd.f32 %v263, %v1099
  %v1101 = vpop.f32.mrf.mxu0
  %v1102 = vadd.f32 %v263, %v1101
  %1103 = vmatprep.mubr.f32.mxu0 0.0
  %1104 = vmatmul.mubr.f32.gmra.mxu0 %v421
  %v1105 = vpop.f32.mrf.mxu0
  %v1106 = vadd.f32 %v268, %v1105
  %v1107 = vpop.f32.mrf.mxu0
  %v1108 = vadd.f32 %v268, %v1107
  %1109 = vmatprep.mubr.f32.mxu0 0.0
  %1110 = vmatmul.mubr.f32.gmra.mxu0 %v424
  %v1111 = vpop.f32.mrf.mxu0
  %v1112 = vadd.f32 %v273, %v1111
  %v1113 = vpop.f32.mrf.mxu0
  %v1114 = vadd.f32 %v273, %v1113
  %1115 = vmatprep.mubr.f32.mxu0 0.0
  %1116 = vmatmul.mubr.f32.gmra.mxu0 %v427
  %v1117 = vpop.f32.mrf.mxu0
  %v1118 = vadd.f32 %v278, %v1117
  %v1119 = vpop.f32.mrf.mxu0
  %v1120 = vadd.f32 %v278, %v1119
  %1121 = vmatprep.mubr.f32.mxu0 0.0
  %1122 = vmatmul.mubr.f32.gmra.mxu0 %v430
  %v1123 = vpop.f32.mrf.mxu0
  %v1124 = vadd.f32 %v283, %v1123
  %v1125 = vpop.f32.mrf.mxu0
  %v1126 = vadd.f32 %v283, %v1125
  %1127 = vmatprep.mubr.f32.mxu0 0.0
  %1128 = vmatmul.mubr.f32.gmra.mxu0 %v433
  %v1129 = vpop.f32.mrf.mxu0
  %v1130 = vadd.f32 %v288, %v1129
  %v1131 = vpop.f32.mrf.mxu0
  %v1132 = vadd.f32 %v288, %v1131
  %1133 = vmatprep.mubr.f32.mxu0 0.0
  %1134 = vmatmul.mubr.f32.gmra.mxu0 %v436
  %v1135 = vpop.f32.mrf.mxu0
  %v1136 = vadd.f32 %v293, %v1135
  %v1137 = vpop.f32.mrf.mxu0
  %v1138 = vadd.f32 %v293, %v1137
  %1139 = vmatprep.mubr.f32.mxu0 0.0
  %1140 = vmatmul.mubr.f32.gmra.mxu0 %v439
  %v1141 = vpop.f32.mrf.mxu0
  %v1142 = vadd.f32 %v298, %v1141
  %v1143 = vpop.f32.mrf.mxu0
  %v1144 = vadd.f32 %v298, %v1143
  %1145 = vmatprep.mubr.f32.mxu0 0.0
  %1146 = vmatmul.mubr.f32.gmra.mxu0 %v442
  %v1147 = vpop.f32.mrf.mxu0
  %v1148 = vadd.f32 %v303, %v1147
  %v1149 = vpop.f32.mrf.mxu0
  %v1150 = vadd.f32 %v303, %v1149
  %1151 = vmatprep.mubr.f32.mxu0 0.0
  %1152 = vmatmul.mubr.f32.gmra.mxu0 %v445
  %v1153 = vpop.f32.mrf.mxu0
  %v1154 = vadd.f32 %v308, %v1153
  %v1155 = vpop.f32.mrf.mxu0
  %v1156 = vadd.f32 %v308, %v1155
  %1157 = vmatprep.mubr.f32.mxu0 0.0
  %1158 = vmatmul.mubr.f32.gmra.mxu0 %v448
  %v1159 = vpop.f32.mrf.mxu0
  %v1160 = vadd.f32 %v313, %v1159
  %v1161 = vpop.f32.mrf.mxu0
  %v1162 = vadd.f32 %v313, %v1161
  %1163 = vmatprep.mubr.f32.mxu0 0.0
  %1164 = vmatmul.mubr.f32.gmra.mxu0 %v451
  %v1165 = vpop.f32.mrf.mxu0
  %v1166 = vadd.f32 %v318, %v1165
  %v1167 = vpop.f32.mrf.mxu0
  %v1168 = vadd.f32 %v318, %v1167
  %1169 = vmatprep.mubr.f32.mxu0 0.0
  %1170 = vmatmul.mubr.f32.gmra.mxu0 %v454
  %v1171 = vpop.f32.mrf.mxu0
  %v1172 = vadd.f32 %v323, %v1171
  %v1173 = vpop.f32.mrf.mxu0
  %v1174 = vadd.f32 %v323, %v1173
  %1175 = vmatprep.mubr.f32.mxu0 0.0
  %1176 = vmatmul.mubr.f32.gmra.mxu0 %v457
  %v1177 = vpop.f32.mrf.mxu0
  %v1178 = vadd.f32 %v328, %v1177
  %v1179 = vpop.f32.mrf.mxu0
  %v1180 = vadd.f32 %v328, %v1179
  %1181 = vmatprep.mubr.f32.mxu0 0.0
  %1182 = vmatmul.mubr.f32.gmra.mxu0 %v460
  %v1183 = vpop.f32.mrf.mxu0
  %v1184 = vadd.f32 %v333, %v1183
  %v1185 = vpop.f32.mrf.mxu0
  %v1186 = vadd.f32 %v333, %v1185
  %1187 = vmatprep.mubr.f32.mxu0 0.0
  %1188 = vmatmul.mubr.f32.gmra.mxu0 %v463
  %v1189 = vpop.f32.mrf.mxu0
  %v1190 = vadd.f32 %v338, %v1189
  %v1191 = vpop.f32.mrf.mxu0
  %v1192 = vadd.f32 %v338, %v1191
  %1193 = vmatprep.mubr.f32.mxu0 0.0
  %1194 = vmatmul.mubr.f32.gmra.mxu0 %v466
  %v1195 = vpop.f32.mrf.mxu0
  %v1196 = vadd.f32 %v343, %v1195
  %v1197 = vpop.f32.mrf.mxu0
  %v1198 = vadd.f32 %v343, %v1197
  %1199 = vmatprep.mubr.f32.mxu0 0.0
  %1200 = vmatmul.mubr.f32.gmra.mxu0 %v469
  %v1201 = vpop.f32.mrf.mxu0
  %v1202 = vadd.f32 %v348, %v1201
  %v1203 = vpop.f32.mrf.mxu0
  %v1204 = vadd.f32 %v348, %v1203
  %1205 = vmatprep.mubr.f32.mxu0 0.0
  %1206 = vmatmul.mubr.f32.gmra.mxu0 %v472
  %v1207 = vpop.f32.mrf.mxu0
  %v1208 = vadd.f32 %v353, %v1207
  %v1209 = vpop.f32.mrf.mxu0
  %v1210 = vadd.f32 %v353, %v1209
  %1211 = vmatprep.mubr.f32.mxu0 0.0
  %1212 = vmatmul.mubr.f32.gmra.mxu0 %v475
  %v1213 = vpop.f32.mrf.mxu0
  %v1214 = vadd.f32 %v358, %v1213
  %v1215 = vpop.f32.mrf.mxu0
  %v1216 = vadd.f32 %v358, %v1215
  %1217 = vmatprep.mubr.f32.mxu0 0.0
  %1218 = vmatmul.mubr.f32.gmra.mxu0 %v478
  %v1219 = vpop.f32.mrf.mxu0
  %v1220 = vadd.f32 %v363, %v1219
  %v1221 = vpop.f32.mrf.mxu0
  %v1222 = vadd.f32 %v363, %v1221
  %1223 = vmatprep.mubr.f32.mxu0 0.0
  %1224 = vmatmul.mubr.f32.gmra.mxu0 %v481
  %v1225 = vpop.f32.mrf.mxu0
  %v1226 = vadd.f32 %v368, %v1225
  %v1227 = vpop.f32.mrf.mxu0
  %v1228 = vadd.f32 %v368, %v1227
  %1229 = vmatprep.mubr.f32.mxu0 0.0
  %1230 = vmatmul.mubr.f32.gmra.mxu0 %v484
  %v1231 = vpop.f32.mrf.mxu0
  %v1232 = vadd.f32 %v373, %v1231
  %v1233 = vpop.f32.mrf.mxu0
  %v1234 = vadd.f32 %v373, %v1233
  %1235 = vmatprep.mubr.f32.mxu0 0.0
  %1236 = vmatmul.mubr.f32.gmra.mxu0 %v487
  %v1237 = vpop.f32.mrf.mxu0
  %v1238 = vadd.f32 %v378, %v1237
  %v1239 = vpop.f32.mrf.mxu0
  %v1240 = vadd.f32 %v378, %v1239
  %1241 = vmatprep.mubr.f32.mxu0 0.0
  %1242 = vmatmul.mubr.f32.gmra.mxu0 %v490
  %v1243 = vpop.f32.mrf.mxu0
  %v1244 = vadd.f32 %v383, %v1243
  %v1245 = vpop.f32.mrf.mxu0
  %v1246 = vadd.f32 %v383, %v1245
  %1247 = vmatprep.mubr.f32.mxu0 0.0
  %1248 = vmatmul.mubr.f32.gmra.mxu0 %v493
  %v1249 = vpop.f32.mrf.mxu0
  %v1250 = vadd.f32 %v388, %v1249
  %v1251 = vpop.f32.mrf.mxu0
  %v1252 = vadd.f32 %v388, %v1251
  %1253 = vmatprep.mubr.f32.mxu0 0.0
  %1254 = vmatmul.mubr.f32.gmra.mxu0 %v496
  %v1255 = vpop.f32.mrf.mxu0
  %v1256 = vadd.f32 %v393, %v1255
  %v1257 = vpop.f32.mrf.mxu0
  %v1258 = vadd.f32 %v393, %v1257
  %1259 = vmatprep.mubr.f32.mxu0 0.0
  %1260 = vmatmul.mubr.f32.gmra.mxu0 %v499
  %v1261 = vpop.f32.mrf.mxu0
  %v1262 = vadd.f32 %v398, %v1261
  %v1263 = vpop.f32.mrf.mxu0
  %v1264 = vadd.f32 %v398, %v1263
  %1265 = vmatprep.mubr.f32.mxu0 0.0
  %1266 = vmatmul.mubr.f32.gmra.mxu0 %v502
  %v1267 = vpop.f32.mrf.mxu0
  %v1268 = vadd.f32 %v403, %v1267
  %v1269 = vpop.f32.mrf.mxu0
  %v1270 = vadd.f32 %v403, %v1269
  %1271 = vmatprep.mubr.f32.mxu0 0.0
  %1272 = vmatmul.mubr.f32.gmra.mxu0 %v505
  %v1273 = vpop.f32.mrf.mxu0
  %v1274 = vadd.f32 %v408, %v1273
  %v1275 = vpop.f32.mrf.mxu0
  %v1276 = vadd.f32 %v408, %v1275
  %1277 = vdwg.mxu0
  %1278 = vmatprep.subr.mxu0 0.0
  %1279 = vmatpush1.msra.mxu0 0.0
  %1280 = vmatprep.subr.mxu0 0.0
  %1281 = vmatpush1.msra.mxu0 0.0
  %1282 = vmatprep.subr.mxu0 0.0
  %1283 = vmatpush1.msra.mxu0 0.0
  %1284 = vmatprep.subr.mxu0 0.0
  %1285 = vmatpush1.msra.mxu0 0.0
  %1286 = vmatprep.subr.mxu0 0.0
  %1287 = vmatpush1.msra.mxu0 0.0
  %1288 = vmatprep.subr.mxu0 0.0
  %1289 = vmatpush1.msra.mxu0 0.0
  %1290 = vmatprep.subr.mxu0 0.0
  %1291 = vmatpush1.msra.mxu0 0.0
  %1292 = vmatprep.subr.mxu0 0.0
  %1293 = vmatpush1.msra.mxu0 0.0
  %1294 = vmatprep.subr.mxu0 0.0
  %1295 = vmatpush1.msra.mxu0 0.0
  %1296 = vmatprep.subr.mxu0 0.0
  %1297 = vmatpush1.msra.mxu0 0.0
  %1298 = vmatprep.subr.mxu0 %v185
  %1299 = vmatpush1.msra.mxu0 %v184
  %1300 = vmatprep.subr.mxu0 %v177
  %1301 = vmatpush1.msra.mxu0 %v176
  %1302 = vmatprep.subr.mxu0 %v169
  %1303 = vmatpush1.msra.mxu0 %v168
  %1304 = vmatprep.subr.mxu0 %v161
  %1305 = vmatpush1.msra.mxu0 %v160
  %1306 = vmatprep.subr.mxu0 %v89
  %1307 = vmatpush1.msra.mxu0 %v88
  %1308 = vmatprep.subr.mxu0 %v57
  %1309 = vmatpush1.msra.mxu0 %v56
  %1310 = vmatprep.subr.mxu0 0.0
  %1311 = vmatpush2.msra.mxu0 0.0
  %1312 = vmatprep.subr.mxu0 0.0
  %1313 = vmatpush2.msra.mxu0 0.0
  %1314 = vmatprep.subr.mxu0 0.0
  %1315 = vmatpush2.msra.mxu0 0.0
  %1316 = vmatprep.subr.mxu0 0.0
  %1317 = vmatpush2.msra.mxu0 0.0
  %1318 = vmatprep.subr.mxu0 0.0
  %1319 = vmatpush2.msra.mxu0 0.0
  %1320 = vmatprep.subr.mxu0 0.0
  %1321 = vmatpush2.msra.mxu0 0.0
  %1322 = vmatprep.subr.mxu0 0.0
  %1323 = vmatpush2.msra.mxu0 0.0
  %1324 = vmatprep.subr.mxu0 0.0
  %1325 = vmatpush2.msra.mxu0 0.0
  %1326 = vmatprep.subr.mxu0 0.0
  %1327 = vmatpush2.msra.mxu0 0.0
  %1328 = vmatprep.subr.mxu0 0.0
  %1329 = vmatpush2.msra.mxu0 0.0
  %1330 = vmatprep.subr.mxu0 0.0
  %1331 = vmatpush2.msra.mxu0 0.0
  %1332 = vmatprep.subr.mxu0 0.0
  %1333 = vmatpush2.msra.mxu0 0.0
  %1334 = vmatprep.subr.mxu0 0.0
  %1335 = vmatpush2.msra.mxu0 0.0
  %1336 = vmatprep.subr.mxu0 0.0
  %1337 = vmatpush2.msra.mxu0 0.0
  %1338 = vmatprep.subr.mxu0 0.0
  %1339 = vmatpush2.msra.mxu0 0.0
  %1340 = vmatprep.subr.mxu0 0.0
  %1341 = vmatpush2.msra.mxu0 0.0
  %1342 = vmatprep.mubr.f32.mxu0 0.0
  %1343 = vmatmul.mubr.f32.gmra.mxu0 %v412
  %v1344 = vpop.f32.mrf.mxu0
  %v1345 = vadd.f32 %v253, %v1344
  %v1346 = vpop.f32.mrf.mxu0
  %v1347 = vadd.f32 %v253, %v1346
  %1348 = vmatprep.mubr.f32.mxu0 0.0
  %1349 = vmatmul.mubr.f32.gmra.mxu0 %v415
  %v1350 = vpop.f32.mrf.mxu0
  %v1351 = vadd.f32 %v258, %v1350
  %v1352 = vpop.f32.mrf.mxu0
  %v1353 = vadd.f32 %v258, %v1352
  %1354 = vmatprep.mubr.f32.mxu0 0.0
  %1355 = vmatmul.mubr.f32.gmra.mxu0 %v418
  %v1356 = vpop.f32.mrf.mxu0
  %v1357 = vadd.f32 %v263, %v1356
  %v1358 = vpop.f32.mrf.mxu0
  %v1359 = vadd.f32 %v263, %v1358
  %1360 = vmatprep.mubr.f32.mxu0 0.0
  %1361 = vmatmul.mubr.f32.gmra.mxu0 %v421
  %v1362 = vpop.f32.mrf.mxu0
  %v1363 = vadd.f32 %v268, %v1362
  %v1364 = vpop.f32.mrf.mxu0
  %v1365 = vadd.f32 %v268, %v1364
  %1366 = vmatprep.mubr.f32.mxu0 0.0
  %1367 = vmatmul.mubr.f32.gmra.mxu0 %v424
  %v1368 = vpop.f32.mrf.mxu0
  %v1369 = vadd.f32 %v273, %v1368
  %v1370 = vpop.f32.mrf.mxu0
  %v1371 = vadd.f32 %v273, %v1370
  %1372 = vmatprep.mubr.f32.mxu0 0.0
  %1373 = vmatmul.mubr.f32.gmra.mxu0 %v427
  %v1374 = vpop.f32.mrf.mxu0
  %v1375 = vadd.f32 %v278, %v1374
  %v1376 = vpop.f32.mrf.mxu0
  %v1377 = vadd.f32 %v278, %v1376
  %1378 = vmatprep.mubr.f32.mxu0 0.0
  %1379 = vmatmul.mubr.f32.gmra.mxu0 %v430
  %v1380 = vpop.f32.mrf.mxu0
  %v1381 = vadd.f32 %v283, %v1380
  %v1382 = vpop.f32.mrf.mxu0
  %v1383 = vadd.f32 %v283, %v1382
  %1384 = vmatprep.mubr.f32.mxu0 0.0
  %1385 = vmatmul.mubr.f32.gmra.mxu0 %v433
  %v1386 = vpop.f32.mrf.mxu0
  %v1387 = vadd.f32 %v288, %v1386
  %v1388 = vpop.f32.mrf.mxu0
  %v1389 = vadd.f32 %v288, %v1388
  %1390 = vmatprep.mubr.f32.mxu0 0.0
  %1391 = vmatmul.mubr.f32.gmra.mxu0 %v436
  %v1392 = vpop.f32.mrf.mxu0
  %v1393 = vadd.f32 %v293, %v1392
  %v1394 = vpop.f32.mrf.mxu0
  %v1395 = vadd.f32 %v293, %v1394
  %1396 = vmatprep.mubr.f32.mxu0 0.0
  %1397 = vmatmul.mubr.f32.gmra.mxu0 %v439
  %v1398 = vpop.f32.mrf.mxu0
  %v1399 = vadd.f32 %v298, %v1398
  %v1400 = vpop.f32.mrf.mxu0
  %v1401 = vadd.f32 %v298, %v1400
  %1402 = vmatprep.mubr.f32.mxu0 0.0
  %1403 = vmatmul.mubr.f32.gmra.mxu0 %v442
  %v1404 = vpop.f32.mrf.mxu0
  %v1405 = vadd.f32 %v303, %v1404
  %v1406 = vpop.f32.mrf.mxu0
  %v1407 = vadd.f32 %v303, %v1406
  %1408 = vmatprep.mubr.f32.mxu0 0.0
  %1409 = vmatmul.mubr.f32.gmra.mxu0 %v445
  %v1410 = vpop.f32.mrf.mxu0
  %v1411 = vadd.f32 %v308, %v1410
  %v1412 = vpop.f32.mrf.mxu0
  %v1413 = vadd.f32 %v308, %v1412
  %1414 = vmatprep.mubr.f32.mxu0 0.0
  %1415 = vmatmul.mubr.f32.gmra.mxu0 %v448
  %v1416 = vpop.f32.mrf.mxu0
  %v1417 = vadd.f32 %v313, %v1416
  %v1418 = vpop.f32.mrf.mxu0
  %v1419 = vadd.f32 %v313, %v1418
  %1420 = vmatprep.mubr.f32.mxu0 0.0
  %1421 = vmatmul.mubr.f32.gmra.mxu0 %v451
  %v1422 = vpop.f32.mrf.mxu0
  %v1423 = vadd.f32 %v318, %v1422
  %v1424 = vpop.f32.mrf.mxu0
  %v1425 = vadd.f32 %v318, %v1424
  %1426 = vmatprep.mubr.f32.mxu0 0.0
  %1427 = vmatmul.mubr.f32.gmra.mxu0 %v454
  %v1428 = vpop.f32.mrf.mxu0
  %v1429 = vadd.f32 %v323, %v1428
  %v1430 = vpop.f32.mrf.mxu0
  %v1431 = vadd.f32 %v323, %v1430
  %1432 = vmatprep.mubr.f32.mxu0 0.0
  %1433 = vmatmul.mubr.f32.gmra.mxu0 %v457
  %v1434 = vpop.f32.mrf.mxu0
  %v1435 = vadd.f32 %v328, %v1434
  %v1436 = vpop.f32.mrf.mxu0
  %v1437 = vadd.f32 %v328, %v1436
  %1438 = vmatprep.mubr.f32.mxu0 0.0
  %1439 = vmatmul.mubr.f32.gmra.mxu0 %v460
  %v1440 = vpop.f32.mrf.mxu0
  %v1441 = vadd.f32 %v333, %v1440
  %v1442 = vpop.f32.mrf.mxu0
  %v1443 = vadd.f32 %v333, %v1442
  %1444 = vmatprep.mubr.f32.mxu0 0.0
  %1445 = vmatmul.mubr.f32.gmra.mxu0 %v463
  %v1446 = vpop.f32.mrf.mxu0
  %v1447 = vadd.f32 %v338, %v1446
  %v1448 = vpop.f32.mrf.mxu0
  %v1449 = vadd.f32 %v338, %v1448
  %1450 = vmatprep.mubr.f32.mxu0 0.0
  %1451 = vmatmul.mubr.f32.gmra.mxu0 %v466
  %v1452 = vpop.f32.mrf.mxu0
  %v1453 = vadd.f32 %v343, %v1452
  %v1454 = vpop.f32.mrf.mxu0
  %v1455 = vadd.f32 %v343, %v1454
  %1456 = vmatprep.mubr.f32.mxu0 0.0
  %1457 = vmatmul.mubr.f32.gmra.mxu0 %v469
  %v1458 = vpop.f32.mrf.mxu0
  %v1459 = vadd.f32 %v348, %v1458
  %v1460 = vpop.f32.mrf.mxu0
  %v1461 = vadd.f32 %v348, %v1460
  %1462 = vmatprep.mubr.f32.mxu0 0.0
  %1463 = vmatmul.mubr.f32.gmra.mxu0 %v472
  %v1464 = vpop.f32.mrf.mxu0
  %v1465 = vadd.f32 %v353, %v1464
  %v1466 = vpop.f32.mrf.mxu0
  %v1467 = vadd.f32 %v353, %v1466
  %1468 = vmatprep.mubr.f32.mxu0 0.0
  %1469 = vmatmul.mubr.f32.gmra.mxu0 %v475
  %v1470 = vpop.f32.mrf.mxu0
  %v1471 = vadd.f32 %v358, %v1470
  %v1472 = vpop.f32.mrf.mxu0
  %v1473 = vadd.f32 %v358, %v1472
  %1474 = vmatprep.mubr.f32.mxu0 0.0
  %1475 = vmatmul.mubr.f32.gmra.mxu0 %v478
  %v1476 = vpop.f32.mrf.mxu0
  %v1477 = vadd.f32 %v363, %v1476
  %v1478 = vpop.f32.mrf.mxu0
  %v1479 = vadd.f32 %v363, %v1478
  %1480 = vmatprep.mubr.f32.mxu0 0.0
  %1481 = vmatmul.mubr.f32.gmra.mxu0 %v481
  %v1482 = vpop.f32.mrf.mxu0
  %v1483 = vadd.f32 %v368, %v1482
  %v1484 = vpop.f32.mrf.mxu0
  %v1485 = vadd.f32 %v368, %v1484
  %1486 = vmatprep.mubr.f32.mxu0 0.0
  %1487 = vmatmul.mubr.f32.gmra.mxu0 %v484
  %v1488 = vpop.f32.mrf.mxu0
  %v1489 = vadd.f32 %v373, %v1488
  %v1490 = vpop.f32.mrf.mxu0
  %v1491 = vadd.f32 %v373, %v1490
  %1492 = vmatprep.mubr.f32.mxu0 0.0
  %1493 = vmatmul.mubr.f32.gmra.mxu0 %v487
  %v1494 = vpop.f32.mrf.mxu0
  %v1495 = vadd.f32 %v378, %v1494
  %v1496 = vpop.f32.mrf.mxu0
  %v1497 = vadd.f32 %v378, %v1496
  %1498 = vmatprep.mubr.f32.mxu0 0.0
  %1499 = vmatmul.mubr.f32.gmra.mxu0 %v490
  %v1500 = vpop.f32.mrf.mxu0
  %v1501 = vadd.f32 %v383, %v1500
  %v1502 = vpop.f32.mrf.mxu0
  %v1503 = vadd.f32 %v383, %v1502
  %1504 = vmatprep.mubr.f32.mxu0 0.0
  %1505 = vmatmul.mubr.f32.gmra.mxu0 %v493
  %v1506 = vpop.f32.mrf.mxu0
  %v1507 = vadd.f32 %v388, %v1506
  %v1508 = vpop.f32.mrf.mxu0
  %v1509 = vadd.f32 %v388, %v1508
  %1510 = vmatprep.mubr.f32.mxu0 0.0
  %1511 = vmatmul.mubr.f32.gmra.mxu0 %v496
  %v1512 = vpop.f32.mrf.mxu0
  %v1513 = vadd.f32 %v393, %v1512
  %v1514 = vpop.f32.mrf.mxu0
  %v1515 = vadd.f32 %v393, %v1514
  %1516 = vmatprep.mubr.f32.mxu0 0.0
  %1517 = vmatmul.mubr.f32.gmra.mxu0 %v499
  %v1518 = vpop.f32.mrf.mxu0
  %v1519 = vadd.f32 %v398, %v1518
  %v1520 = vpop.f32.mrf.mxu0
  %v1521 = vadd.f32 %v398, %v1520
  %1522 = vmatprep.mubr.f32.mxu0 0.0
  %1523 = vmatmul.mubr.f32.gmra.mxu0 %v502
  %v1524 = vpop.f32.mrf.mxu0
  %v1525 = vadd.f32 %v403, %v1524
  %v1526 = vpop.f32.mrf.mxu0
  %v1527 = vadd.f32 %v403, %v1526
  %1528 = vmatprep.mubr.f32.mxu0 0.0
  %1529 = vmatmul.mubr.f32.gmra.mxu0 %v505
  %v1530 = vpop.f32.mrf.mxu0
  %v1531 = vadd.f32 %v408, %v1530
  %v1532 = vpop.f32.mrf.mxu0
  %v1533 = vadd.f32 %v408, %v1532
  %1534 = vdwg.mxu0
  %v1535 = vxor.u32 %v574, 2147483648
  %v1536 = vxor.u32 %v576, 2147483648
  %v1537 = vxor.u32 %v831, 2147483648
  %v1538 = vxor.u32 %v833, 2147483648
  %v1539 = vxor.u32 %v1088, 2147483648
  %v1540 = vxor.u32 %v1090, 2147483648
  %v1541 = vxor.u32 %v1345, 2147483648
  %v1542 = vxor.u32 %v1347, 2147483648
  %v1543 = vxor.u32 %v580, 2147483648
  %v1544 = vxor.u32 %v582, 2147483648
  %v1545 = vxor.u32 %v837, 2147483648
  %v1546 = vxor.u32 %v839, 2147483648
  %v1547 = vxor.u32 %v1094, 2147483648
  %v1548 = vxor.u32 %v1096, 2147483648
  %v1549 = vxor.u32 %v1351, 2147483648
  %v1550 = vxor.u32 %v1353, 2147483648
  %v1551 = vxor.u32 %v586, 2147483648
  %v1552 = vxor.u32 %v588, 2147483648
  %v1553 = vxor.u32 %v843, 2147483648
  %v1554 = vxor.u32 %v845, 2147483648
  %v1555 = vxor.u32 %v1100, 2147483648
  %v1556 = vxor.u32 %v1102, 2147483648
  %v1557 = vxor.u32 %v1357, 2147483648
  %v1558 = vxor.u32 %v1359, 2147483648
  %v1559 = vxor.u32 %v592, 2147483648
  %v1560 = vxor.u32 %v594, 2147483648
  %v1561 = vxor.u32 %v849, 2147483648
  %v1562 = vxor.u32 %v851, 2147483648
  %v1563 = vxor.u32 %v1106, 2147483648
  %v1564 = vxor.u32 %v1108, 2147483648
  %v1565 = vxor.u32 %v1363, 2147483648
  %v1566 = vxor.u32 %v1365, 2147483648
  %v1567 = vxor.u32 %v598, 2147483648
  %v1568 = vxor.u32 %v600, 2147483648
  %v1569 = vxor.u32 %v855, 2147483648
  %v1570 = vxor.u32 %v857, 2147483648
  %v1571 = vxor.u32 %v1112, 2147483648
  %v1572 = vxor.u32 %v1114, 2147483648
  %v1573 = vxor.u32 %v1369, 2147483648
  %v1574 = vxor.u32 %v1371, 2147483648
  %v1575 = vxor.u32 %v604, 2147483648
  %v1576 = vxor.u32 %v606, 2147483648
  %v1577 = vxor.u32 %v861, 2147483648
  %v1578 = vxor.u32 %v863, 2147483648
  %v1579 = vxor.u32 %v1118, 2147483648
  %v1580 = vxor.u32 %v1120, 2147483648
  %v1581 = vxor.u32 %v1375, 2147483648
  %v1582 = vxor.u32 %v1377, 2147483648
  %v1583 = vxor.u32 %v610, 2147483648
  %v1584 = vxor.u32 %v612, 2147483648
  %v1585 = vxor.u32 %v867, 2147483648
  %v1586 = vxor.u32 %v869, 2147483648
  %v1587 = vxor.u32 %v1124, 2147483648
  %v1588 = vxor.u32 %v1126, 2147483648
  %v1589 = vxor.u32 %v1381, 2147483648
  %v1590 = vxor.u32 %v1383, 2147483648
  %v1591 = vxor.u32 %v616, 2147483648
  %v1592 = vxor.u32 %v618, 2147483648
  %v1593 = vxor.u32 %v873, 2147483648
  %v1594 = vxor.u32 %v875, 2147483648
  %v1595 = vxor.u32 %v1130, 2147483648
  %v1596 = vxor.u32 %v1132, 2147483648
  %v1597 = vxor.u32 %v1387, 2147483648
  %v1598 = vxor.u32 %v1389, 2147483648
  %v1599 = vxor.u32 %v622, 2147483648
  %v1600 = vxor.u32 %v624, 2147483648
  %v1601 = vxor.u32 %v879, 2147483648
  %v1602 = vxor.u32 %v881, 2147483648
  %v1603 = vxor.u32 %v1136, 2147483648
  %v1604 = vxor.u32 %v1138, 2147483648
  %v1605 = vxor.u32 %v1393, 2147483648
  %v1606 = vxor.u32 %v1395, 2147483648
  %v1607 = vxor.u32 %v628, 2147483648
  %v1608 = vxor.u32 %v630, 2147483648
  %v1609 = vxor.u32 %v885, 2147483648
  %v1610 = vxor.u32 %v887, 2147483648
  %v1611 = vxor.u32 %v1142, 2147483648
  %v1612 = vxor.u32 %v1144, 2147483648
  %v1613 = vxor.u32 %v1399, 2147483648
  %v1614 = vxor.u32 %v1401, 2147483648
  %v1615 = vxor.u32 %v634, 2147483648
  %v1616 = vxor.u32 %v636, 2147483648
  %v1617 = vxor.u32 %v891, 2147483648
  %v1618 = vxor.u32 %v893, 2147483648
  %v1619 = vxor.u32 %v1148, 2147483648
  %v1620 = vxor.u32 %v1150, 2147483648
  %v1621 = vxor.u32 %v1405, 2147483648
  %v1622 = vxor.u32 %v1407, 2147483648
  %v1623 = vxor.u32 %v640, 2147483648
  %v1624 = vxor.u32 %v642, 2147483648
  %v1625 = vxor.u32 %v897, 2147483648
  %v1626 = vxor.u32 %v899, 2147483648
  %v1627 = vxor.u32 %v1154, 2147483648
  %v1628 = vxor.u32 %v1156, 2147483648
  %v1629 = vxor.u32 %v1411, 2147483648
  %v1630 = vxor.u32 %v1413, 2147483648
  %v1631 = vxor.u32 %v646, 2147483648
  %v1632 = vxor.u32 %v648, 2147483648
  %v1633 = vxor.u32 %v903, 2147483648
  %v1634 = vxor.u32 %v905, 2147483648
  %v1635 = vxor.u32 %v1160, 2147483648
  %v1636 = vxor.u32 %v1162, 2147483648
  %v1637 = vxor.u32 %v1417, 2147483648
  %v1638 = vxor.u32 %v1419, 2147483648
  %v1639 = vxor.u32 %v652, 2147483648
  %v1640 = vxor.u32 %v654, 2147483648
  %v1641 = vxor.u32 %v909, 2147483648
  %v1642 = vxor.u32 %v911, 2147483648
  %v1643 = vxor.u32 %v1166, 2147483648
  %v1644 = vxor.u32 %v1168, 2147483648
  %v1645 = vxor.u32 %v1423, 2147483648
  %v1646 = vxor.u32 %v1425, 2147483648
  %v1647 = vxor.u32 %v658, 2147483648
  %v1648 = vxor.u32 %v660, 2147483648
  %v1649 = vxor.u32 %v915, 2147483648
  %v1650 = vxor.u32 %v917, 2147483648
  %v1651 = vxor.u32 %v1172, 2147483648
  %v1652 = vxor.u32 %v1174, 2147483648
  %v1653 = vxor.u32 %v1429, 2147483648
  %v1654 = vxor.u32 %v1431, 2147483648
  %v1655 = vxor.u32 %v664, 2147483648
  %v1656 = vxor.u32 %v666, 2147483648
  %v1657 = vxor.u32 %v921, 2147483648
  %v1658 = vxor.u32 %v923, 2147483648
  %v1659 = vxor.u32 %v1178, 2147483648
  %v1660 = vxor.u32 %v1180, 2147483648
  %v1661 = vxor.u32 %v1435, 2147483648
  %v1662 = vxor.u32 %v1437, 2147483648
  %v1663 = vxor.u32 %v670, 2147483648
  %v1664 = vxor.u32 %v672, 2147483648
  %v1665 = vxor.u32 %v927, 2147483648
  %v1666 = vxor.u32 %v929, 2147483648
  %v1667 = vxor.u32 %v1184, 2147483648
  %v1668 = vxor.u32 %v1186, 2147483648
  %v1669 = vxor.u32 %v1441, 2147483648
  %v1670 = vxor.u32 %v1443, 2147483648
  %v1671 = vxor.u32 %v676, 2147483648
  %v1672 = vxor.u32 %v678, 2147483648
  %v1673 = vxor.u32 %v933, 2147483648
  %v1674 = vxor.u32 %v935, 2147483648
  %v1675 = vxor.u32 %v1190, 2147483648
  %v1676 = vxor.u32 %v1192, 2147483648
  %v1677 = vxor.u32 %v1447, 2147483648
  %v1678 = vxor.u32 %v1449, 2147483648
  %v1679 = vxor.u32 %v682, 2147483648
  %v1680 = vxor.u32 %v684, 2147483648
  %v1681 = vxor.u32 %v939, 2147483648
  %v1682 = vxor.u32 %v941, 2147483648
  %v1683 = vxor.u32 %v1196, 2147483648
  %v1684 = vxor.u32 %v1198, 2147483648
  %v1685 = vxor.u32 %v1453, 2147483648
  %v1686 = vxor.u32 %v1455, 2147483648
  %v1687 = vxor.u32 %v688, 2147483648
  %v1688 = vxor.u32 %v690, 2147483648
  %v1689 = vxor.u32 %v945, 2147483648
  %v1690 = vxor.u32 %v947, 2147483648
  %v1691 = vxor.u32 %v1202, 2147483648
  %v1692 = vxor.u32 %v1204, 2147483648
  %v1693 = vxor.u32 %v1459, 2147483648
  %v1694 = vxor.u32 %v1461, 2147483648
  %v1695 = vxor.u32 %v694, 2147483648
  %v1696 = vxor.u32 %v696, 2147483648
  %v1697 = vxor.u32 %v951, 2147483648
  %v1698 = vxor.u32 %v953, 2147483648
  %v1699 = vxor.u32 %v1208, 2147483648
  %v1700 = vxor.u32 %v1210, 2147483648
  %v1701 = vxor.u32 %v1465, 2147483648
  %v1702 = vxor.u32 %v1467, 2147483648
  %v1703 = vxor.u32 %v700, 2147483648
  %v1704 = vxor.u32 %v702, 2147483648
  %v1705 = vxor.u32 %v957, 2147483648
  %v1706 = vxor.u32 %v959, 2147483648
  %v1707 = vxor.u32 %v1214, 2147483648
  %v1708 = vxor.u32 %v1216, 2147483648
  %v1709 = vxor.u32 %v1471, 2147483648
  %v1710 = vxor.u32 %v1473, 2147483648
  %v1711 = vxor.u32 %v706, 2147483648
  %v1712 = vxor.u32 %v708, 2147483648
  %v1713 = vxor.u32 %v963, 2147483648
  %v1714 = vxor.u32 %v965, 2147483648
  %v1715 = vxor.u32 %v1220, 2147483648
  %v1716 = vxor.u32 %v1222, 2147483648
  %v1717 = vxor.u32 %v1477, 2147483648
  %v1718 = vxor.u32 %v1479, 2147483648
  %v1719 = vxor.u32 %v712, 2147483648
  %v1720 = vxor.u32 %v714, 2147483648
  %v1721 = vxor.u32 %v969, 2147483648
  %v1722 = vxor.u32 %v971, 2147483648
  %v1723 = vxor.u32 %v1226, 2147483648
  %v1724 = vxor.u32 %v1228, 2147483648
  %v1725 = vxor.u32 %v1483, 2147483648
  %v1726 = vxor.u32 %v1485, 2147483648
  %v1727 = vxor.u32 %v718, 2147483648
  %v1728 = vxor.u32 %v720, 2147483648
  %v1729 = vxor.u32 %v975, 2147483648
  %v1730 = vxor.u32 %v977, 2147483648
  %v1731 = vxor.u32 %v1232, 2147483648
  %v1732 = vxor.u32 %v1234, 2147483648
  %v1733 = vxor.u32 %v1489, 2147483648
  %v1734 = vxor.u32 %v1491, 2147483648
  %v1735 = vxor.u32 %v724, 2147483648
  %v1736 = vxor.u32 %v726, 2147483648
  %v1737 = vxor.u32 %v981, 2147483648
  %v1738 = vxor.u32 %v983, 2147483648
  %v1739 = vxor.u32 %v1238, 2147483648
  %v1740 = vxor.u32 %v1240, 2147483648
  %v1741 = vxor.u32 %v1495, 2147483648
  %v1742 = vxor.u32 %v1497, 2147483648
  %v1743 = vxor.u32 %v730, 2147483648
  %v1744 = vxor.u32 %v732, 2147483648
  %v1745 = vxor.u32 %v987, 2147483648
  %v1746 = vxor.u32 %v989, 2147483648
  %v1747 = vxor.u32 %v1244, 2147483648
  %v1748 = vxor.u32 %v1246, 2147483648
  %v1749 = vxor.u32 %v1501, 2147483648
  %v1750 = vxor.u32 %v1503, 2147483648
  %v1751 = vxor.u32 %v736, 2147483648
  %v1752 = vxor.u32 %v738, 2147483648
  %v1753 = vxor.u32 %v993, 2147483648
  %v1754 = vxor.u32 %v995, 2147483648
  %v1755 = vxor.u32 %v1250, 2147483648
  %v1756 = vxor.u32 %v1252, 2147483648
  %v1757 = vxor.u32 %v1507, 2147483648
  %v1758 = vxor.u32 %v1509, 2147483648
  %v1759 = vxor.u32 %v742, 2147483648
  %v1760 = vxor.u32 %v744, 2147483648
  %v1761 = vxor.u32 %v999, 2147483648
  %v1762 = vxor.u32 %v1001, 2147483648
  %v1763 = vxor.u32 %v1256, 2147483648
  %v1764 = vxor.u32 %v1258, 2147483648
  %v1765 = vxor.u32 %v1513, 2147483648
  %v1766 = vxor.u32 %v1515, 2147483648
  %v1767 = vxor.u32 %v748, 2147483648
  %v1768 = vxor.u32 %v750, 2147483648
  %v1769 = vxor.u32 %v1005, 2147483648
  %v1770 = vxor.u32 %v1007, 2147483648
  %v1771 = vxor.u32 %v1262, 2147483648
  %v1772 = vxor.u32 %v1264, 2147483648
  %v1773 = vxor.u32 %v1519, 2147483648
  %v1774 = vxor.u32 %v1521, 2147483648
  %v1775 = vxor.u32 %v754, 2147483648
  %v1776 = vxor.u32 %v756, 2147483648
  %v1777 = vxor.u32 %v1011, 2147483648
  %v1778 = vxor.u32 %v1013, 2147483648
  %v1779 = vxor.u32 %v1268, 2147483648
  %v1780 = vxor.u32 %v1270, 2147483648
  %v1781 = vxor.u32 %v1525, 2147483648
  %v1782 = vxor.u32 %v1527, 2147483648
  %v1783 = vxor.u32 %v760, 2147483648
  %v1784 = vxor.u32 %v762, 2147483648
  %v1785 = vxor.u32 %v1017, 2147483648
  %v1786 = vxor.u32 %v1019, 2147483648
  %v1787 = vxor.u32 %v1274, 2147483648
  %v1788 = vxor.u32 %v1276, 2147483648
  %v1789 = vxor.u32 %v1531, 2147483648
  %v1790 = vxor.u32 %v1533, 2147483648
  %v1791 = vmul.f32 %v1535, 1.442695
  %v1792 = vpow.pop %v1791
  %v1793 = vmul.f32 %v1536, 1.442695
  %v1794 = vpow.pop %v1793
  %v1795 = vmul.f32 %v1537, 1.442695
  %v1796 = vpow.pop %v1795
  %v1797 = vmul.f32 %v1538, 1.442695
  %v1798 = vpow.pop %v1797
  %v1799 = vmul.f32 %v1539, 1.442695
  %v1800 = vpow.pop %v1799
  %v1801 = vmul.f32 %v1540, 1.442695
  %v1802 = vpow.pop %v1801
  %v1803 = vmul.f32 %v1541, 1.442695
  %v1804 = vpow.pop %v1803
  %v1805 = vmul.f32 %v1542, 1.442695
  %v1806 = vpow.pop %v1805
  %v1807 = vmul.f32 %v1543, 1.442695
  %v1808 = vpow.pop %v1807
  %v1809 = vmul.f32 %v1544, 1.442695
  %v1810 = vpow.pop %v1809
  %v1811 = vmul.f32 %v1545, 1.442695
  %v1812 = vpow.pop %v1811
  %v1813 = vmul.f32 %v1546, 1.442695
  %v1814 = vpow.pop %v1813
  %v1815 = vmul.f32 %v1547, 1.442695
  %v1816 = vpow.pop %v1815
  %v1817 = vmul.f32 %v1548, 1.442695
  %v1818 = vpow.pop %v1817
  %v1819 = vmul.f32 %v1549, 1.442695
  %v1820 = vpow.pop %v1819
  %v1821 = vmul.f32 %v1550, 1.442695
  %v1822 = vpow.pop %v1821
  %v1823 = vmul.f32 %v1551, 1.442695
  %v1824 = vpow.pop %v1823
  %v1825 = vmul.f32 %v1552, 1.442695
  %v1826 = vpow.pop %v1825
  %v1827 = vmul.f32 %v1553, 1.442695
  %v1828 = vpow.pop %v1827
  %v1829 = vmul.f32 %v1554, 1.442695
  %v1830 = vpow.pop %v1829
  %v1831 = vmul.f32 %v1555, 1.442695
  %v1832 = vpow.pop %v1831
  %v1833 = vmul.f32 %v1556, 1.442695
  %v1834 = vpow.pop %v1833
  %v1835 = vmul.f32 %v1557, 1.442695
  %v1836 = vpow.pop %v1835
  %v1837 = vmul.f32 %v1558, 1.442695
  %v1838 = vpow.pop %v1837
  %v1839 = vmul.f32 %v1559, 1.442695
  %v1840 = vpow.pop %v1839
  %v1841 = vmul.f32 %v1560, 1.442695
  %v1842 = vpow.pop %v1841
  %v1843 = vmul.f32 %v1561, 1.442695
  %v1844 = vpow.pop %v1843
  %v1845 = vmul.f32 %v1562, 1.442695
  %v1846 = vpow.pop %v1845
  %v1847 = vmul.f32 %v1563, 1.442695
  %v1848 = vpow.pop %v1847
  %v1849 = vmul.f32 %v1564, 1.442695
  %v1850 = vpow.pop %v1849
  %v1851 = vmul.f32 %v1565, 1.442695
  %v1852 = vpow.pop %v1851
  %v1853 = vmul.f32 %v1566, 1.442695
  %v1854 = vpow.pop %v1853
  %v1855 = vmul.f32 %v1567, 1.442695
  %v1856 = vpow.pop %v1855
  %v1857 = vmul.f32 %v1568, 1.442695
  %v1858 = vpow.pop %v1857
  %v1859 = vmul.f32 %v1569, 1.442695
  %v1860 = vpow.pop %v1859
  %v1861 = vmul.f32 %v1570, 1.442695
  %v1862 = vpow.pop %v1861
  %v1863 = vmul.f32 %v1571, 1.442695
  %v1864 = vpow.pop %v1863
  %v1865 = vmul.f32 %v1572, 1.442695
  %v1866 = vpow.pop %v1865
  %v1867 = vmul.f32 %v1573, 1.442695
  %v1868 = vpow.pop %v1867
  %v1869 = vmul.f32 %v1574, 1.442695
  %v1870 = vpow.pop %v1869
  %v1871 = vmul.f32 %v1575, 1.442695
  %v1872 = vpow.pop %v1871
  %v1873 = vmul.f32 %v1576, 1.442695
  %v1874 = vpow.pop %v1873
  %v1875 = vmul.f32 %v1577, 1.442695
  %v1876 = vpow.pop %v1875
  %v1877 = vmul.f32 %v1578, 1.442695
  %v1878 = vpow.pop %v1877
  %v1879 = vmul.f32 %v1579, 1.442695
  %v1880 = vpow.pop %v1879
  %v1881 = vmul.f32 %v1580, 1.442695
  %v1882 = vpow.pop %v1881
  %v1883 = vmul.f32 %v1581, 1.442695
  %v1884 = vpow.pop %v1883
  %v1885 = vmul.f32 %v1582, 1.442695
  %v1886 = vpow.pop %v1885
  %v1887 = vmul.f32 %v1583, 1.442695
  %v1888 = vpow.pop %v1887
  %v1889 = vmul.f32 %v1584, 1.442695
  %v1890 = vpow.pop %v1889
  %v1891 = vmul.f32 %v1585, 1.442695
  %v1892 = vpow.pop %v1891
  %v1893 = vmul.f32 %v1586, 1.442695
  %v1894 = vpow.pop %v1893
  %v1895 = vmul.f32 %v1587, 1.442695
  %v1896 = vpow.pop %v1895
  %v1897 = vmul.f32 %v1588, 1.442695
  %v1898 = vpow.pop %v1897
  %v1899 = vmul.f32 %v1589, 1.442695
  %v1900 = vpow.pop %v1899
  %v1901 = vmul.f32 %v1590, 1.442695
  %v1902 = vpow.pop %v1901
  %v1903 = vmul.f32 %v1591, 1.442695
  %v1904 = vpow.pop %v1903
  %v1905 = vmul.f32 %v1592, 1.442695
  %v1906 = vpow.pop %v1905
  %v1907 = vmul.f32 %v1593, 1.442695
  %v1908 = vpow.pop %v1907
  %v1909 = vmul.f32 %v1594, 1.442695
  %v1910 = vpow.pop %v1909
  %v1911 = vmul.f32 %v1595, 1.442695
  %v1912 = vpow.pop %v1911
  %v1913 = vmul.f32 %v1596, 1.442695
  %v1914 = vpow.pop %v1913
  %v1915 = vmul.f32 %v1597, 1.442695
  %v1916 = vpow.pop %v1915
  %v1917 = vmul.f32 %v1598, 1.442695
  %v1918 = vpow.pop %v1917
  %v1919 = vmul.f32 %v1599, 1.442695
  %v1920 = vpow.pop %v1919
  %v1921 = vmul.f32 %v1600, 1.442695
  %v1922 = vpow.pop %v1921
  %v1923 = vmul.f32 %v1601, 1.442695
  %v1924 = vpow.pop %v1923
  %v1925 = vmul.f32 %v1602, 1.442695
  %v1926 = vpow.pop %v1925
  %v1927 = vmul.f32 %v1603, 1.442695
  %v1928 = vpow.pop %v1927
  %v1929 = vmul.f32 %v1604, 1.442695
  %v1930 = vpow.pop %v1929
  %v1931 = vmul.f32 %v1605, 1.442695
  %v1932 = vpow.pop %v1931
  %v1933 = vmul.f32 %v1606, 1.442695
  %v1934 = vpow.pop %v1933
  %v1935 = vmul.f32 %v1607, 1.442695
  %v1936 = vpow.pop %v1935
  %v1937 = vmul.f32 %v1608, 1.442695
  %v1938 = vpow.pop %v1937
  %v1939 = vmul.f32 %v1609, 1.442695
  %v1940 = vpow.pop %v1939
  %v1941 = vmul.f32 %v1610, 1.442695
  %v1942 = vpow.pop %v1941
  %v1943 = vmul.f32 %v1611, 1.442695
  %v1944 = vpow.pop %v1943
  %v1945 = vmul.f32 %v1612, 1.442695
  %v1946 = vpow.pop %v1945
  %v1947 = vmul.f32 %v1613, 1.442695
  %v1948 = vpow.pop %v1947
  %v1949 = vmul.f32 %v1614, 1.442695
  %v1950 = vpow.pop %v1949
  %v1951 = vmul.f32 %v1615, 1.442695
  %v1952 = vpow.pop %v1951
  %v1953 = vmul.f32 %v1616, 1.442695
  %v1954 = vpow.pop %v1953
  %v1955 = vmul.f32 %v1617, 1.442695
  %v1956 = vpow.pop %v1955
  %v1957 = vmul.f32 %v1618, 1.442695
  %v1958 = vpow.pop %v1957
  %v1959 = vmul.f32 %v1619, 1.442695
  %v1960 = vpow.pop %v1959
  %v1961 = vmul.f32 %v1620, 1.442695
  %v1962 = vpow.pop %v1961
  %v1963 = vmul.f32 %v1621, 1.442695
  %v1964 = vpow.pop %v1963
  %v1965 = vmul.f32 %v1622, 1.442695
  %v1966 = vpow.pop %v1965
  %v1967 = vmul.f32 %v1623, 1.442695
  %v1968 = vpow.pop %v1967
  %v1969 = vmul.f32 %v1624, 1.442695
  %v1970 = vpow.pop %v1969
  %v1971 = vmul.f32 %v1625, 1.442695
  %v1972 = vpow.pop %v1971
  %v1973 = vmul.f32 %v1626, 1.442695
  %v1974 = vpow.pop %v1973
  %v1975 = vmul.f32 %v1627, 1.442695
  %v1976 = vpow.pop %v1975
  %v1977 = vmul.f32 %v1628, 1.442695
  %v1978 = vpow.pop %v1977
  %v1979 = vmul.f32 %v1629, 1.442695
  %v1980 = vpow.pop %v1979
  %v1981 = vmul.f32 %v1630, 1.442695
  %v1982 = vpow.pop %v1981
  %v1983 = vmul.f32 %v1631, 1.442695
  %v1984 = vpow.pop %v1983
  %v1985 = vmul.f32 %v1632, 1.442695
  %v1986 = vpow.pop %v1985
  %v1987 = vmul.f32 %v1633, 1.442695
  %v1988 = vpow.pop %v1987
  %v1989 = vmul.f32 %v1634, 1.442695
  %v1990 = vpow.pop %v1989
  %v1991 = vmul.f32 %v1635, 1.442695
  %v1992 = vpow.pop %v1991
  %v1993 = vmul.f32 %v1636, 1.442695
  %v1994 = vpow.pop %v1993
  %v1995 = vmul.f32 %v1637, 1.442695
  %v1996 = vpow.pop %v1995
  %v1997 = vmul.f32 %v1638, 1.442695
  %v1998 = vpow.pop %v1997
  %v1999 = vmul.f32 %v1639, 1.442695
  %v2000 = vpow.pop %v1999
  %v2001 = vmul.f32 %v1640, 1.442695
  %v2002 = vpow.pop %v2001
  %v2003 = vmul.f32 %v1641, 1.442695
  %v2004 = vpow.pop %v2003
  %v2005 = vmul.f32 %v1642, 1.442695
  %v2006 = vpow.pop %v2005
  %v2007 = vmul.f32 %v1643, 1.442695
  %v2008 = vpow.pop %v2007
  %v2009 = vmul.f32 %v1644, 1.442695
  %v2010 = vpow.pop %v2009
  %v2011 = vmul.f32 %v1645, 1.442695
  %v2012 = vpow.pop %v2011
  %v2013 = vmul.f32 %v1646, 1.442695
  %v2014 = vpow.pop %v2013
  %v2015 = vmul.f32 %v1647, 1.442695
  %v2016 = vpow.pop %v2015
  %v2017 = vmul.f32 %v1648, 1.442695
  %v2018 = vpow.pop %v2017
  %v2019 = vmul.f32 %v1649, 1.442695
  %v2020 = vpow.pop %v2019
  %v2021 = vmul.f32 %v1650, 1.442695
  %v2022 = vpow.pop %v2021
  %v2023 = vmul.f32 %v1651, 1.442695
  %v2024 = vpow.pop %v2023
  %v2025 = vmul.f32 %v1652, 1.442695
  %v2026 = vpow.pop %v2025
  %v2027 = vmul.f32 %v1653, 1.442695
  %v2028 = vpow.pop %v2027
  %v2029 = vmul.f32 %v1654, 1.442695
  %v2030 = vpow.pop %v2029
  %v2031 = vmul.f32 %v1655, 1.442695
  %v2032 = vpow.pop %v2031
  %v2033 = vmul.f32 %v1656, 1.442695
  %v2034 = vpow.pop %v2033
  %v2035 = vmul.f32 %v1657, 1.442695
  %v2036 = vpow.pop %v2035
  %v2037 = vmul.f32 %v1658, 1.442695
  %v2038 = vpow.pop %v2037
  %v2039 = vmul.f32 %v1659, 1.442695
  %v2040 = vpow.pop %v2039
  %v2041 = vmul.f32 %v1660, 1.442695
  %v2042 = vpow.pop %v2041
  %v2043 = vmul.f32 %v1661, 1.442695
  %v2044 = vpow.pop %v2043
  %v2045 = vmul.f32 %v1662, 1.442695
  %v2046 = vpow.pop %v2045
  %v2047 = vmul.f32 %v1663, 1.442695
  %v2048 = vpow.pop %v2047
  %v2049 = vmul.f32 %v1664, 1.442695
  %v2050 = vpow.pop %v2049
  %v2051 = vmul.f32 %v1665, 1.442695
  %v2052 = vpow.pop %v2051
  %v2053 = vmul.f32 %v1666, 1.442695
  %v2054 = vpow.pop %v2053
  %v2055 = vmul.f32 %v1667, 1.442695
  %v2056 = vpow.pop %v2055
  %v2057 = vmul.f32 %v1668, 1.442695
  %v2058 = vpow.pop %v2057
  %v2059 = vmul.f32 %v1669, 1.442695
  %v2060 = vpow.pop %v2059
  %v2061 = vmul.f32 %v1670, 1.442695
  %v2062 = vpow.pop %v2061
  %v2063 = vmul.f32 %v1671, 1.442695
  %v2064 = vpow.pop %v2063
  %v2065 = vmul.f32 %v1672, 1.442695
  %v2066 = vpow.pop %v2065
  %v2067 = vmul.f32 %v1673, 1.442695
  %v2068 = vpow.pop %v2067
  %v2069 = vmul.f32 %v1674, 1.442695
  %v2070 = vpow.pop %v2069
  %v2071 = vmul.f32 %v1675, 1.442695
  %v2072 = vpow.pop %v2071
  %v2073 = vmul.f32 %v1676, 1.442695
  %v2074 = vpow.pop %v2073
  %v2075 = vmul.f32 %v1677, 1.442695
  %v2076 = vpow.pop %v2075
  %v2077 = vmul.f32 %v1678, 1.442695
  %v2078 = vpow.pop %v2077
  %v2079 = vmul.f32 %v1679, 1.442695
  %v2080 = vpow.pop %v2079
  %v2081 = vmul.f32 %v1680, 1.442695
  %v2082 = vpow.pop %v2081
  %v2083 = vmul.f32 %v1681, 1.442695
  %v2084 = vpow.pop %v2083
  %v2085 = vmul.f32 %v1682, 1.442695
  %v2086 = vpow.pop %v2085
  %v2087 = vmul.f32 %v1683, 1.442695
  %v2088 = vpow.pop %v2087
  %v2089 = vmul.f32 %v1684, 1.442695
  %v2090 = vpow.pop %v2089
  %v2091 = vmul.f32 %v1685, 1.442695
  %v2092 = vpow.pop %v2091
  %v2093 = vmul.f32 %v1686, 1.442695
  %v2094 = vpow.pop %v2093
  %v2095 = vmul.f32 %v1687, 1.442695
  %v2096 = vpow.pop %v2095
  %v2097 = vmul.f32 %v1688, 1.442695
  %v2098 = vpow.pop %v2097
  %v2099 = vmul.f32 %v1689, 1.442695
  %v2100 = vpow.pop %v2099
  %v2101 = vmul.f32 %v1690, 1.442695
  %v2102 = vpow.pop %v2101
  %v2103 = vmul.f32 %v1691, 1.442695
  %v2104 = vpow.pop %v2103
  %v2105 = vmul.f32 %v1692, 1.442695
  %v2106 = vpow.pop %v2105
  %v2107 = vmul.f32 %v1693, 1.442695
  %v2108 = vpow.pop %v2107
  %v2109 = vmul.f32 %v1694, 1.442695
  %v2110 = vpow.pop %v2109
  %v2111 = vmul.f32 %v1695, 1.442695
  %v2112 = vpow.pop %v2111
  %v2113 = vmul.f32 %v1696, 1.442695
  %v2114 = vpow.pop %v2113
  %v2115 = vmul.f32 %v1697, 1.442695
  %v2116 = vpow.pop %v2115
  %v2117 = vmul.f32 %v1698, 1.442695
  %v2118 = vpow.pop %v2117
  %v2119 = vmul.f32 %v1699, 1.442695
  %v2120 = vpow.pop %v2119
  %v2121 = vmul.f32 %v1700, 1.442695
  %v2122 = vpow.pop %v2121
  %v2123 = vmul.f32 %v1701, 1.442695
  %v2124 = vpow.pop %v2123
  %v2125 = vmul.f32 %v1702, 1.442695
  %v2126 = vpow.pop %v2125
  %v2127 = vmul.f32 %v1703, 1.442695
  %v2128 = vpow.pop %v2127
  %v2129 = vmul.f32 %v1704, 1.442695
  %v2130 = vpow.pop %v2129
  %v2131 = vmul.f32 %v1705, 1.442695
  %v2132 = vpow.pop %v2131
  %v2133 = vmul.f32 %v1706, 1.442695
  %v2134 = vpow.pop %v2133
  %v2135 = vmul.f32 %v1707, 1.442695
  %v2136 = vpow.pop %v2135
  %v2137 = vmul.f32 %v1708, 1.442695
  %v2138 = vpow.pop %v2137
  %v2139 = vmul.f32 %v1709, 1.442695
  %v2140 = vpow.pop %v2139
  %v2141 = vmul.f32 %v1710, 1.442695
  %v2142 = vpow.pop %v2141
  %v2143 = vmul.f32 %v1711, 1.442695
  %v2144 = vpow.pop %v2143
  %v2145 = vmul.f32 %v1712, 1.442695
  %v2146 = vpow.pop %v2145
  %v2147 = vmul.f32 %v1713, 1.442695
  %v2148 = vpow.pop %v2147
  %v2149 = vmul.f32 %v1714, 1.442695
  %v2150 = vpow.pop %v2149
  %v2151 = vmul.f32 %v1715, 1.442695
  %v2152 = vpow.pop %v2151
  %v2153 = vmul.f32 %v1716, 1.442695
  %v2154 = vpow.pop %v2153
  %v2155 = vmul.f32 %v1717, 1.442695
  %v2156 = vpow.pop %v2155
  %v2157 = vmul.f32 %v1718, 1.442695
  %v2158 = vpow.pop %v2157
  %v2159 = vmul.f32 %v1719, 1.442695
  %v2160 = vpow.pop %v2159
  %v2161 = vmul.f32 %v1720, 1.442695
  %v2162 = vpow.pop %v2161
  %v2163 = vmul.f32 %v1721, 1.442695
  %v2164 = vpow.pop %v2163
  %v2165 = vmul.f32 %v1722, 1.442695
  %v2166 = vpow.pop %v2165
  %v2167 = vmul.f32 %v1723, 1.442695
  %v2168 = vpow.pop %v2167
  %v2169 = vmul.f32 %v1724, 1.442695
  %v2170 = vpow.pop %v2169
  %v2171 = vmul.f32 %v1725, 1.442695
  %v2172 = vpow.pop %v2171
  %v2173 = vmul.f32 %v1726, 1.442695
  %v2174 = vpow.pop %v2173
  %v2175 = vmul.f32 %v1727, 1.442695
  %v2176 = vpow.pop %v2175
  %v2177 = vmul.f32 %v1728, 1.442695
  %v2178 = vpow.pop %v2177
  %v2179 = vmul.f32 %v1729, 1.442695
  %v2180 = vpow.pop %v2179
  %v2181 = vmul.f32 %v1730, 1.442695
  %v2182 = vpow.pop %v2181
  %v2183 = vmul.f32 %v1731, 1.442695
  %v2184 = vpow.pop %v2183
  %v2185 = vmul.f32 %v1732, 1.442695
  %v2186 = vpow.pop %v2185
  %v2187 = vmul.f32 %v1733, 1.442695
  %v2188 = vpow.pop %v2187
  %v2189 = vmul.f32 %v1734, 1.442695
  %v2190 = vpow.pop %v2189
  %v2191 = vmul.f32 %v1735, 1.442695
  %v2192 = vpow.pop %v2191
  %v2193 = vmul.f32 %v1736, 1.442695
  %v2194 = vpow.pop %v2193
  %v2195 = vmul.f32 %v1737, 1.442695
  %v2196 = vpow.pop %v2195
  %v2197 = vmul.f32 %v1738, 1.442695
  %v2198 = vpow.pop %v2197
  %v2199 = vmul.f32 %v1739, 1.442695
  %v2200 = vpow.pop %v2199
  %v2201 = vmul.f32 %v1740, 1.442695
  %v2202 = vpow.pop %v2201
  %v2203 = vmul.f32 %v1741, 1.442695
  %v2204 = vpow.pop %v2203
  %v2205 = vmul.f32 %v1742, 1.442695
  %v2206 = vpow.pop %v2205
  %v2207 = vmul.f32 %v1743, 1.442695
  %v2208 = vpow.pop %v2207
  %v2209 = vmul.f32 %v1744, 1.442695
  %v2210 = vpow.pop %v2209
  %v2211 = vmul.f32 %v1745, 1.442695
  %v2212 = vpow.pop %v2211
  %v2213 = vmul.f32 %v1746, 1.442695
  %v2214 = vpow.pop %v2213
  %v2215 = vmul.f32 %v1747, 1.442695
  %v2216 = vpow.pop %v2215
  %v2217 = vmul.f32 %v1748, 1.442695
  %v2218 = vpow.pop %v2217
  %v2219 = vmul.f32 %v1749, 1.442695
  %v2220 = vpow.pop %v2219
  %v2221 = vmul.f32 %v1750, 1.442695
  %v2222 = vpow.pop %v2221
  %v2223 = vmul.f32 %v1751, 1.442695
  %v2224 = vpow.pop %v2223
  %v2225 = vmul.f32 %v1752, 1.442695
  %v2226 = vpow.pop %v2225
  %v2227 = vmul.f32 %v1753, 1.442695
  %v2228 = vpow.pop %v2227
  %v2229 = vmul.f32 %v1754, 1.442695
  %v2230 = vpow.pop %v2229
  %v2231 = vmul.f32 %v1755, 1.442695
  %v2232 = vpow.pop %v2231
  %v2233 = vmul.f32 %v1756, 1.442695
  %v2234 = vpow.pop %v2233
  %v2235 = vmul.f32 %v1757, 1.442695
  %v2236 = vpow.pop %v2235
  %v2237 = vmul.f32 %v1758, 1.442695
  %v2238 = vpow.pop %v2237
  %v2239 = vmul.f32 %v1759, 1.442695
  %v2240 = vpow.pop %v2239
  %v2241 = vmul.f32 %v1760, 1.442695
  %v2242 = vpow.pop %v2241
  %v2243 = vmul.f32 %v1761, 1.442695
  %v2244 = vpow.pop %v2243
  %v2245 = vmul.f32 %v1762, 1.442695
  %v2246 = vpow.pop %v2245
  %v2247 = vmul.f32 %v1763, 1.442695
  %v2248 = vpow.pop %v2247
  %v2249 = vmul.f32 %v1764, 1.442695
  %v2250 = vpow.pop %v2249
  %v2251 = vmul.f32 %v1765, 1.442695
  %v2252 = vpow.pop %v2251
  %v2253 = vmul.f32 %v1766, 1.442695
  %v2254 = vpow.pop %v2253
  %v2255 = vmul.f32 %v1767, 1.442695
  %v2256 = vpow.pop %v2255
  %v2257 = vmul.f32 %v1768, 1.442695
  %v2258 = vpow.pop %v2257
  %v2259 = vmul.f32 %v1769, 1.442695
  %v2260 = vpow.pop %v2259
  %v2261 = vmul.f32 %v1770, 1.442695
  %v2262 = vpow.pop %v2261
  %v2263 = vmul.f32 %v1771, 1.442695
  %v2264 = vpow.pop %v2263
  %v2265 = vmul.f32 %v1772, 1.442695
  %v2266 = vpow.pop %v2265
  %v2267 = vmul.f32 %v1773, 1.442695
  %v2268 = vpow.pop %v2267
  %v2269 = vmul.f32 %v1774, 1.442695
  %v2270 = vpow.pop %v2269
  %v2271 = vmul.f32 %v1775, 1.442695
  %v2272 = vpow.pop %v2271
  %v2273 = vmul.f32 %v1776, 1.442695
  %v2274 = vpow.pop %v2273
  %v2275 = vmul.f32 %v1777, 1.442695
  %v2276 = vpow.pop %v2275
  %v2277 = vmul.f32 %v1778, 1.442695
  %v2278 = vpow.pop %v2277
  %v2279 = vmul.f32 %v1779, 1.442695
  %v2280 = vpow.pop %v2279
  %v2281 = vmul.f32 %v1780, 1.442695
  %v2282 = vpow.pop %v2281
  %v2283 = vmul.f32 %v1781, 1.442695
  %v2284 = vpow.pop %v2283
  %v2285 = vmul.f32 %v1782, 1.442695
  %v2286 = vpow.pop %v2285
  %v2287 = vmul.f32 %v1783, 1.442695
  %v2288 = vpow.pop %v2287
  %v2289 = vmul.f32 %v1784, 1.442695
  %v2290 = vpow.pop %v2289
  %v2291 = vmul.f32 %v1785, 1.442695
  %v2292 = vpow.pop %v2291
  %v2293 = vmul.f32 %v1786, 1.442695
  %v2294 = vpow.pop %v2293
  %v2295 = vmul.f32 %v1787, 1.442695
  %v2296 = vpow.pop %v2295
  %v2297 = vmul.f32 %v1788, 1.442695
  %v2298 = vpow.pop %v2297
  %v2299 = vmul.f32 %v1789, 1.442695
  %v2300 = vpow.pop %v2299
  %v2301 = vmul.f32 %v1790, 1.442695
  %v2302 = vpow.pop %v2301
  %v2303 = vadd.f32 %v1792, 1.0
  %v2304 = vadd.f32 %v1794, 1.0
  %v2305 = vadd.f32 %v1796, 1.0
  %v2306 = vadd.f32 %v1798, 1.0
  %v2307 = vadd.f32 %v1800, 1.0
  %v2308 = vadd.f32 %v1802, 1.0
  %v2309 = vadd.f32 %v1804, 1.0
  %v2310 = vadd.f32 %v1806, 1.0
  %v2311 = vadd.f32 %v1808, 1.0
  %v2312 = vadd.f32 %v1810, 1.0
  %v2313 = vadd.f32 %v1812, 1.0
  %v2314 = vadd.f32 %v1814, 1.0
  %v2315 = vadd.f32 %v1816, 1.0
  %v2316 = vadd.f32 %v1818, 1.0
  %v2317 = vadd.f32 %v1820, 1.0
  %v2318 = vadd.f32 %v1822, 1.0
  %v2319 = vadd.f32 %v1824, 1.0
  %v2320 = vadd.f32 %v1826, 1.0
  %v2321 = vadd.f32 %v1828, 1.0
  %v2322 = vadd.f32 %v1830, 1.0
  %v2323 = vadd.f32 %v1832, 1.0
  %v2324 = vadd.f32 %v1834, 1.0
  %v2325 = vadd.f32 %v1836, 1.0
  %v2326 = vadd.f32 %v1838, 1.0
  %v2327 = vadd.f32 %v1840, 1.0
  %v2328 = vadd.f32 %v1842, 1.0
  %v2329 = vadd.f32 %v1844, 1.0
  %v2330 = vadd.f32 %v1846, 1.0
  %v2331 = vadd.f32 %v1848, 1.0
  %v2332 = vadd.f32 %v1850, 1.0
  %v2333 = vadd.f32 %v1852, 1.0
  %v2334 = vadd.f32 %v1854, 1.0
  %v2335 = vadd.f32 %v1856, 1.0
  %v2336 = vadd.f32 %v1858, 1.0
  %v2337 = vadd.f32 %v1860, 1.0
  %v2338 = vadd.f32 %v1862, 1.0
  %v2339 = vadd.f32 %v1864, 1.0
  %v2340 = vadd.f32 %v1866, 1.0
  %v2341 = vadd.f32 %v1868, 1.0
  %v2342 = vadd.f32 %v1870, 1.0
  %v2343 = vadd.f32 %v1872, 1.0
  %v2344 = vadd.f32 %v1874, 1.0
  %v2345 = vadd.f32 %v1876, 1.0
  %v2346 = vadd.f32 %v1878, 1.0
  %v2347 = vadd.f32 %v1880, 1.0
  %v2348 = vadd.f32 %v1882, 1.0
  %v2349 = vadd.f32 %v1884, 1.0
  %v2350 = vadd.f32 %v1886, 1.0
  %v2351 = vadd.f32 %v1888, 1.0
  %v2352 = vadd.f32 %v1890, 1.0
  %v2353 = vadd.f32 %v1892, 1.0
  %v2354 = vadd.f32 %v1894, 1.0
  %v2355 = vadd.f32 %v1896, 1.0
  %v2356 = vadd.f32 %v1898, 1.0
  %v2357 = vadd.f32 %v1900, 1.0
  %v2358 = vadd.f32 %v1902, 1.0
  %v2359 = vadd.f32 %v1904, 1.0
  %v2360 = vadd.f32 %v1906, 1.0
  %v2361 = vadd.f32 %v1908, 1.0
  %v2362 = vadd.f32 %v1910, 1.0
  %v2363 = vadd.f32 %v1912, 1.0
  %v2364 = vadd.f32 %v1914, 1.0
  %v2365 = vadd.f32 %v1916, 1.0
  %v2366 = vadd.f32 %v1918, 1.0
  %v2367 = vadd.f32 %v1920, 1.0
  %v2368 = vadd.f32 %v1922, 1.0
  %v2369 = vadd.f32 %v1924, 1.0
  %v2370 = vadd.f32 %v1926, 1.0
  %v2371 = vadd.f32 %v1928, 1.0
  %v2372 = vadd.f32 %v1930, 1.0
  %v2373 = vadd.f32 %v1932, 1.0
  %v2374 = vadd.f32 %v1934, 1.0
  %v2375 = vadd.f32 %v1936, 1.0
  %v2376 = vadd.f32 %v1938, 1.0
  %v2377 = vadd.f32 %v1940, 1.0
  %v2378 = vadd.f32 %v1942, 1.0
  %v2379 = vadd.f32 %v1944, 1.0
  %v2380 = vadd.f32 %v1946, 1.0
  %v2381 = vadd.f32 %v1948, 1.0
  %v2382 = vadd.f32 %v1950, 1.0
  %v2383 = vadd.f32 %v1952, 1.0
  %v2384 = vadd.f32 %v1954, 1.0
  %v2385 = vadd.f32 %v1956, 1.0
  %v2386 = vadd.f32 %v1958, 1.0
  %v2387 = vadd.f32 %v1960, 1.0
  %v2388 = vadd.f32 %v1962, 1.0
  %v2389 = vadd.f32 %v1964, 1.0
  %v2390 = vadd.f32 %v1966, 1.0
  %v2391 = vadd.f32 %v1968, 1.0
  %v2392 = vadd.f32 %v1970, 1.0
  %v2393 = vadd.f32 %v1972, 1.0
  %v2394 = vadd.f32 %v1974, 1.0
  %v2395 = vadd.f32 %v1976, 1.0
  %v2396 = vadd.f32 %v1978, 1.0
  %v2397 = vadd.f32 %v1980, 1.0
  %v2398 = vadd.f32 %v1982, 1.0
  %v2399 = vadd.f32 %v1984, 1.0
  %v2400 = vadd.f32 %v1986, 1.0
  %v2401 = vadd.f32 %v1988, 1.0
  %v2402 = vadd.f32 %v1990, 1.0
  %v2403 = vadd.f32 %v1992, 1.0
  %v2404 = vadd.f32 %v1994, 1.0
  %v2405 = vadd.f32 %v1996, 1.0
  %v2406 = vadd.f32 %v1998, 1.0
  %v2407 = vadd.f32 %v2000, 1.0
  %v2408 = vadd.f32 %v2002, 1.0
  %v2409 = vadd.f32 %v2004, 1.0
  %v2410 = vadd.f32 %v2006, 1.0
  %v2411 = vadd.f32 %v2008, 1.0
  %v2412 = vadd.f32 %v2010, 1.0
  %v2413 = vadd.f32 %v2012, 1.0
  %v2414 = vadd.f32 %v2014, 1.0
  %v2415 = vadd.f32 %v2016, 1.0
  %v2416 = vadd.f32 %v2018, 1.0
  %v2417 = vadd.f32 %v2020, 1.0
  %v2418 = vadd.f32 %v2022, 1.0
  %v2419 = vadd.f32 %v2024, 1.0
  %v2420 = vadd.f32 %v2026, 1.0
  %v2421 = vadd.f32 %v2028, 1.0
  %v2422 = vadd.f32 %v2030, 1.0
  %v2423 = vadd.f32 %v2032, 1.0
  %v2424 = vadd.f32 %v2034, 1.0
  %v2425 = vadd.f32 %v2036, 1.0
  %v2426 = vadd.f32 %v2038, 1.0
  %v2427 = vadd.f32 %v2040, 1.0
  %v2428 = vadd.f32 %v2042, 1.0
  %v2429 = vadd.f32 %v2044, 1.0
  %v2430 = vadd.f32 %v2046, 1.0
  %v2431 = vadd.f32 %v2048, 1.0
  %v2432 = vadd.f32 %v2050, 1.0
  %v2433 = vadd.f32 %v2052, 1.0
  %v2434 = vadd.f32 %v2054, 1.0
  %v2435 = vadd.f32 %v2056, 1.0
  %v2436 = vadd.f32 %v2058, 1.0
  %v2437 = vadd.f32 %v2060, 1.0
  %v2438 = vadd.f32 %v2062, 1.0
  %v2439 = vadd.f32 %v2064, 1.0
  %v2440 = vadd.f32 %v2066, 1.0
  %v2441 = vadd.f32 %v2068, 1.0
  %v2442 = vadd.f32 %v2070, 1.0
  %v2443 = vadd.f32 %v2072, 1.0
  %v2444 = vadd.f32 %v2074, 1.0
  %v2445 = vadd.f32 %v2076, 1.0
  %v2446 = vadd.f32 %v2078, 1.0
  %v2447 = vadd.f32 %v2080, 1.0
  %v2448 = vadd.f32 %v2082, 1.0
  %v2449 = vadd.f32 %v2084, 1.0
  %v2450 = vadd.f32 %v2086, 1.0
  %v2451 = vadd.f32 %v2088, 1.0
  %v2452 = vadd.f32 %v2090, 1.0
  %v2453 = vadd.f32 %v2092, 1.0
  %v2454 = vadd.f32 %v2094, 1.0
  %v2455 = vadd.f32 %v2096, 1.0
  %v2456 = vadd.f32 %v2098, 1.0
  %v2457 = vadd.f32 %v2100, 1.0
  %v2458 = vadd.f32 %v2102, 1.0
  %v2459 = vadd.f32 %v2104, 1.0
  %v2460 = vadd.f32 %v2106, 1.0
  %v2461 = vadd.f32 %v2108, 1.0
  %v2462 = vadd.f32 %v2110, 1.0
  %v2463 = vadd.f32 %v2112, 1.0
  %v2464 = vadd.f32 %v2114, 1.0
  %v2465 = vadd.f32 %v2116, 1.0
  %v2466 = vadd.f32 %v2118, 1.0
  %v2467 = vadd.f32 %v2120, 1.0
  %v2468 = vadd.f32 %v2122, 1.0
  %v2469 = vadd.f32 %v2124, 1.0
  %v2470 = vadd.f32 %v2126, 1.0
  %v2471 = vadd.f32 %v2128, 1.0
  %v2472 = vadd.f32 %v2130, 1.0
  %v2473 = vadd.f32 %v2132, 1.0
  %v2474 = vadd.f32 %v2134, 1.0
  %v2475 = vadd.f32 %v2136, 1.0
  %v2476 = vadd.f32 %v2138, 1.0
  %v2477 = vadd.f32 %v2140, 1.0
  %v2478 = vadd.f32 %v2142, 1.0
  %v2479 = vadd.f32 %v2144, 1.0
  %v2480 = vadd.f32 %v2146, 1.0
  %v2481 = vadd.f32 %v2148, 1.0
  %v2482 = vadd.f32 %v2150, 1.0
  %v2483 = vadd.f32 %v2152, 1.0
  %v2484 = vadd.f32 %v2154, 1.0
  %v2485 = vadd.f32 %v2156, 1.0
  %v2486 = vadd.f32 %v2158, 1.0
  %v2487 = vadd.f32 %v2160, 1.0
  %v2488 = vadd.f32 %v2162, 1.0
  %v2489 = vadd.f32 %v2164, 1.0
  %v2490 = vadd.f32 %v2166, 1.0
  %v2491 = vadd.f32 %v2168, 1.0
  %v2492 = vadd.f32 %v2170, 1.0
  %v2493 = vadd.f32 %v2172, 1.0
  %v2494 = vadd.f32 %v2174, 1.0
  %v2495 = vadd.f32 %v2176, 1.0
  %v2496 = vadd.f32 %v2178, 1.0
  %v2497 = vadd.f32 %v2180, 1.0
  %v2498 = vadd.f32 %v2182, 1.0
  %v2499 = vadd.f32 %v2184, 1.0
  %v2500 = vadd.f32 %v2186, 1.0
  %v2501 = vadd.f32 %v2188, 1.0
  %v2502 = vadd.f32 %v2190, 1.0
  %v2503 = vadd.f32 %v2192, 1.0
  %v2504 = vadd.f32 %v2194, 1.0
  %v2505 = vadd.f32 %v2196, 1.0
  %v2506 = vadd.f32 %v2198, 1.0
  %v2507 = vadd.f32 %v2200, 1.0
  %v2508 = vadd.f32 %v2202, 1.0
  %v2509 = vadd.f32 %v2204, 1.0
  %v2510 = vadd.f32 %v2206, 1.0
  %v2511 = vadd.f32 %v2208, 1.0
  %v2512 = vadd.f32 %v2210, 1.0
  %v2513 = vadd.f32 %v2212, 1.0
  %v2514 = vadd.f32 %v2214, 1.0
  %v2515 = vadd.f32 %v2216, 1.0
  %v2516 = vadd.f32 %v2218, 1.0
  %v2517 = vadd.f32 %v2220, 1.0
  %v2518 = vadd.f32 %v2222, 1.0
  %v2519 = vadd.f32 %v2224, 1.0
  %v2520 = vadd.f32 %v2226, 1.0
  %v2521 = vadd.f32 %v2228, 1.0
  %v2522 = vadd.f32 %v2230, 1.0
  %v2523 = vadd.f32 %v2232, 1.0
  %v2524 = vadd.f32 %v2234, 1.0
  %v2525 = vadd.f32 %v2236, 1.0
  %v2526 = vadd.f32 %v2238, 1.0
  %v2527 = vadd.f32 %v2240, 1.0
  %v2528 = vadd.f32 %v2242, 1.0
  %v2529 = vadd.f32 %v2244, 1.0
  %v2530 = vadd.f32 %v2246, 1.0
  %v2531 = vadd.f32 %v2248, 1.0
  %v2532 = vadd.f32 %v2250, 1.0
  %v2533 = vadd.f32 %v2252, 1.0
  %v2534 = vadd.f32 %v2254, 1.0
  %v2535 = vadd.f32 %v2256, 1.0
  %v2536 = vadd.f32 %v2258, 1.0
  %v2537 = vadd.f32 %v2260, 1.0
  %v2538 = vadd.f32 %v2262, 1.0
  %v2539 = vadd.f32 %v2264, 1.0
  %v2540 = vadd.f32 %v2266, 1.0
  %v2541 = vadd.f32 %v2268, 1.0
  %v2542 = vadd.f32 %v2270, 1.0
  %v2543 = vadd.f32 %v2272, 1.0
  %v2544 = vadd.f32 %v2274, 1.0
  %v2545 = vadd.f32 %v2276, 1.0
  %v2546 = vadd.f32 %v2278, 1.0
  %v2547 = vadd.f32 %v2280, 1.0
  %v2548 = vadd.f32 %v2282, 1.0
  %v2549 = vadd.f32 %v2284, 1.0
  %v2550 = vadd.f32 %v2286, 1.0
  %v2551 = vadd.f32 %v2288, 1.0
  %v2552 = vadd.f32 %v2290, 1.0
  %v2553 = vadd.f32 %v2292, 1.0
  %v2554 = vadd.f32 %v2294, 1.0
  %v2555 = vadd.f32 %v2296, 1.0
  %v2556 = vadd.f32 %v2298, 1.0
  %v2557 = vadd.f32 %v2300, 1.0
  %v2558 = vadd.f32 %v2302, 1.0
  %v2559 = vrcp.pop %v2303
  %v2560 = vmul.f32 1.0, %v2559
  %v2561 = vrcp.pop %v2304
  %v2562 = vmul.f32 1.0, %v2561
  %v2563 = vrcp.pop %v2305
  %v2564 = vmul.f32 1.0, %v2563
  %v2565 = vrcp.pop %v2306
  %v2566 = vmul.f32 1.0, %v2565
  %v2567 = vrcp.pop %v2307
  %v2568 = vmul.f32 1.0, %v2567
  %v2569 = vrcp.pop %v2308
  %v2570 = vmul.f32 1.0, %v2569
  %v2571 = vrcp.pop %v2309
  %v2572 = vmul.f32 1.0, %v2571
  %v2573 = vrcp.pop %v2310
  %v2574 = vmul.f32 1.0, %v2573
  %v2575 = vrcp.pop %v2311
  %v2576 = vmul.f32 1.0, %v2575
  %v2577 = vrcp.pop %v2312
  %v2578 = vmul.f32 1.0, %v2577
  %v2579 = vrcp.pop %v2313
  %v2580 = vmul.f32 1.0, %v2579
  %v2581 = vrcp.pop %v2314
  %v2582 = vmul.f32 1.0, %v2581
  %v2583 = vrcp.pop %v2315
  %v2584 = vmul.f32 1.0, %v2583
  %v2585 = vrcp.pop %v2316
  %v2586 = vmul.f32 1.0, %v2585
  %v2587 = vrcp.pop %v2317
  %v2588 = vmul.f32 1.0, %v2587
  %v2589 = vrcp.pop %v2318
  %v2590 = vmul.f32 1.0, %v2589
  %v2591 = vrcp.pop %v2319
  %v2592 = vmul.f32 1.0, %v2591
  %v2593 = vrcp.pop %v2320
  %v2594 = vmul.f32 1.0, %v2593
  %v2595 = vrcp.pop %v2321
  %v2596 = vmul.f32 1.0, %v2595
  %v2597 = vrcp.pop %v2322
  %v2598 = vmul.f32 1.0, %v2597
  %v2599 = vrcp.pop %v2323
  %v2600 = vmul.f32 1.0, %v2599
  %v2601 = vrcp.pop %v2324
  %v2602 = vmul.f32 1.0, %v2601
  %v2603 = vrcp.pop %v2325
  %v2604 = vmul.f32 1.0, %v2603
  %v2605 = vrcp.pop %v2326
  %v2606 = vmul.f32 1.0, %v2605
  %v2607 = vrcp.pop %v2327
  %v2608 = vmul.f32 1.0, %v2607
  %v2609 = vrcp.pop %v2328
  %v2610 = vmul.f32 1.0, %v2609
  %v2611 = vrcp.pop %v2329
  %v2612 = vmul.f32 1.0, %v2611
  %v2613 = vrcp.pop %v2330
  %v2614 = vmul.f32 1.0, %v2613
  %v2615 = vrcp.pop %v2331
  %v2616 = vmul.f32 1.0, %v2615
  %v2617 = vrcp.pop %v2332
  %v2618 = vmul.f32 1.0, %v2617
  %v2619 = vrcp.pop %v2333
  %v2620 = vmul.f32 1.0, %v2619
  %v2621 = vrcp.pop %v2334
  %v2622 = vmul.f32 1.0, %v2621
  %v2623 = vrcp.pop %v2335
  %v2624 = vmul.f32 1.0, %v2623
  %v2625 = vrcp.pop %v2336
  %v2626 = vmul.f32 1.0, %v2625
  %v2627 = vrcp.pop %v2337
  %v2628 = vmul.f32 1.0, %v2627
  %v2629 = vrcp.pop %v2338
  %v2630 = vmul.f32 1.0, %v2629
  %v2631 = vrcp.pop %v2339
  %v2632 = vmul.f32 1.0, %v2631
  %v2633 = vrcp.pop %v2340
  %v2634 = vmul.f32 1.0, %v2633
  %v2635 = vrcp.pop %v2341
  %v2636 = vmul.f32 1.0, %v2635
  %v2637 = vrcp.pop %v2342
  %v2638 = vmul.f32 1.0, %v2637
  %v2639 = vrcp.pop %v2343
  %v2640 = vmul.f32 1.0, %v2639
  %v2641 = vrcp.pop %v2344
  %v2642 = vmul.f32 1.0, %v2641
  %v2643 = vrcp.pop %v2345
  %v2644 = vmul.f32 1.0, %v2643
  %v2645 = vrcp.pop %v2346
  %v2646 = vmul.f32 1.0, %v2645
  %v2647 = vrcp.pop %v2347
  %v2648 = vmul.f32 1.0, %v2647
  %v2649 = vrcp.pop %v2348
  %v2650 = vmul.f32 1.0, %v2649
  %v2651 = vrcp.pop %v2349
  %v2652 = vmul.f32 1.0, %v2651
  %v2653 = vrcp.pop %v2350
  %v2654 = vmul.f32 1.0, %v2653
  %v2655 = vrcp.pop %v2351
  %v2656 = vmul.f32 1.0, %v2655
  %v2657 = vrcp.pop %v2352
  %v2658 = vmul.f32 1.0, %v2657
  %v2659 = vrcp.pop %v2353
  %v2660 = vmul.f32 1.0, %v2659
  %v2661 = vrcp.pop %v2354
  %v2662 = vmul.f32 1.0, %v2661
  %v2663 = vrcp.pop %v2355
  %v2664 = vmul.f32 1.0, %v2663
  %v2665 = vrcp.pop %v2356
  %v2666 = vmul.f32 1.0, %v2665
  %v2667 = vrcp.pop %v2357
  %v2668 = vmul.f32 1.0, %v2667
  %v2669 = vrcp.pop %v2358
  %v2670 = vmul.f32 1.0, %v2669
  %v2671 = vrcp.pop %v2359
  %v2672 = vmul.f32 1.0, %v2671
  %v2673 = vrcp.pop %v2360
  %v2674 = vmul.f32 1.0, %v2673
  %v2675 = vrcp.pop %v2361
  %v2676 = vmul.f32 1.0, %v2675
  %v2677 = vrcp.pop %v2362
  %v2678 = vmul.f32 1.0, %v2677
  %v2679 = vrcp.pop %v2363
  %v2680 = vmul.f32 1.0, %v2679
  %v2681 = vrcp.pop %v2364
  %v2682 = vmul.f32 1.0, %v2681
  %v2683 = vrcp.pop %v2365
  %v2684 = vmul.f32 1.0, %v2683
  %v2685 = vrcp.pop %v2366
  %v2686 = vmul.f32 1.0, %v2685
  %v2687 = vrcp.pop %v2367
  %v2688 = vmul.f32 1.0, %v2687
  %v2689 = vrcp.pop %v2368
  %v2690 = vmul.f32 1.0, %v2689
  %v2691 = vrcp.pop %v2369
  %v2692 = vmul.f32 1.0, %v2691
  %v2693 = vrcp.pop %v2370
  %v2694 = vmul.f32 1.0, %v2693
  %v2695 = vrcp.pop %v2371
  %v2696 = vmul.f32 1.0, %v2695
  %v2697 = vrcp.pop %v2372
  %v2698 = vmul.f32 1.0, %v2697
  %v2699 = vrcp.pop %v2373
  %v2700 = vmul.f32 1.0, %v2699
  %v2701 = vrcp.pop %v2374
  %v2702 = vmul.f32 1.0, %v2701
  %v2703 = vrcp.pop %v2375
  %v2704 = vmul.f32 1.0, %v2703
  %v2705 = vrcp.pop %v2376
  %v2706 = vmul.f32 1.0, %v2705
  %v2707 = vrcp.pop %v2377
  %v2708 = vmul.f32 1.0, %v2707
  %v2709 = vrcp.pop %v2378
  %v2710 = vmul.f32 1.0, %v2709
  %v2711 = vrcp.pop %v2379
  %v2712 = vmul.f32 1.0, %v2711
  %v2713 = vrcp.pop %v2380
  %v2714 = vmul.f32 1.0, %v2713
  %v2715 = vrcp.pop %v2381
  %v2716 = vmul.f32 1.0, %v2715
  %v2717 = vrcp.pop %v2382
  %v2718 = vmul.f32 1.0, %v2717
  %v2719 = vrcp.pop %v2383
  %v2720 = vmul.f32 1.0, %v2719
  %v2721 = vrcp.pop %v2384
  %v2722 = vmul.f32 1.0, %v2721
  %v2723 = vrcp.pop %v2385
  %v2724 = vmul.f32 1.0, %v2723
  %v2725 = vrcp.pop %v2386
  %v2726 = vmul.f32 1.0, %v2725
  %v2727 = vrcp.pop %v2387
  %v2728 = vmul.f32 1.0, %v2727
  %v2729 = vrcp.pop %v2388
  %v2730 = vmul.f32 1.0, %v2729
  %v2731 = vrcp.pop %v2389
  %v2732 = vmul.f32 1.0, %v2731
  %v2733 = vrcp.pop %v2390
  %v2734 = vmul.f32 1.0, %v2733
  %v2735 = vrcp.pop %v2391
  %v2736 = vmul.f32 1.0, %v2735
  %v2737 = vrcp.pop %v2392
  %v2738 = vmul.f32 1.0, %v2737
  %v2739 = vrcp.pop %v2393
  %v2740 = vmul.f32 1.0, %v2739
  %v2741 = vrcp.pop %v2394
  %v2742 = vmul.f32 1.0, %v2741
  %v2743 = vrcp.pop %v2395
  %v2744 = vmul.f32 1.0, %v2743
  %v2745 = vrcp.pop %v2396
  %v2746 = vmul.f32 1.0, %v2745
  %v2747 = vrcp.pop %v2397
  %v2748 = vmul.f32 1.0, %v2747
  %v2749 = vrcp.pop %v2398
  %v2750 = vmul.f32 1.0, %v2749
  %v2751 = vrcp.pop %v2399
  %v2752 = vmul.f32 1.0, %v2751
  %v2753 = vrcp.pop %v2400
  %v2754 = vmul.f32 1.0, %v2753
  %v2755 = vrcp.pop %v2401
  %v2756 = vmul.f32 1.0, %v2755
  %v2757 = vrcp.pop %v2402
  %v2758 = vmul.f32 1.0, %v2757
  %v2759 = vrcp.pop %v2403
  %v2760 = vmul.f32 1.0, %v2759
  %v2761 = vrcp.pop %v2404
  %v2762 = vmul.f32 1.0, %v2761
  %v2763 = vrcp.pop %v2405
  %v2764 = vmul.f32 1.0, %v2763
  %v2765 = vrcp.pop %v2406
  %v2766 = vmul.f32 1.0, %v2765
  %v2767 = vrcp.pop %v2407
  %v2768 = vmul.f32 1.0, %v2767
  %v2769 = vrcp.pop %v2408
  %v2770 = vmul.f32 1.0, %v2769
  %v2771 = vrcp.pop %v2409
  %v2772 = vmul.f32 1.0, %v2771
  %v2773 = vrcp.pop %v2410
  %v2774 = vmul.f32 1.0, %v2773
  %v2775 = vrcp.pop %v2411
  %v2776 = vmul.f32 1.0, %v2775
  %v2777 = vrcp.pop %v2412
  %v2778 = vmul.f32 1.0, %v2777
  %v2779 = vrcp.pop %v2413
  %v2780 = vmul.f32 1.0, %v2779
  %v2781 = vrcp.pop %v2414
  %v2782 = vmul.f32 1.0, %v2781
  %v2783 = vrcp.pop %v2415
  %v2784 = vmul.f32 1.0, %v2783
  %v2785 = vrcp.pop %v2416
  %v2786 = vmul.f32 1.0, %v2785
  %v2787 = vrcp.pop %v2417
  %v2788 = vmul.f32 1.0, %v2787
  %v2789 = vrcp.pop %v2418
  %v2790 = vmul.f32 1.0, %v2789
  %v2791 = vrcp.pop %v2419
  %v2792 = vmul.f32 1.0, %v2791
  %v2793 = vrcp.pop %v2420
  %v2794 = vmul.f32 1.0, %v2793
  %v2795 = vrcp.pop %v2421
  %v2796 = vmul.f32 1.0, %v2795
  %v2797 = vrcp.pop %v2422
  %v2798 = vmul.f32 1.0, %v2797
  %v2799 = vrcp.pop %v2423
  %v2800 = vmul.f32 1.0, %v2799
  %v2801 = vrcp.pop %v2424
  %v2802 = vmul.f32 1.0, %v2801
  %v2803 = vrcp.pop %v2425
  %v2804 = vmul.f32 1.0, %v2803
  %v2805 = vrcp.pop %v2426
  %v2806 = vmul.f32 1.0, %v2805
  %v2807 = vrcp.pop %v2427
  %v2808 = vmul.f32 1.0, %v2807
  %v2809 = vrcp.pop %v2428
  %v2810 = vmul.f32 1.0, %v2809
  %v2811 = vrcp.pop %v2429
  %v2812 = vmul.f32 1.0, %v2811
  %v2813 = vrcp.pop %v2430
  %v2814 = vmul.f32 1.0, %v2813
  %v2815 = vrcp.pop %v2431
  %v2816 = vmul.f32 1.0, %v2815
  %v2817 = vrcp.pop %v2432
  %v2818 = vmul.f32 1.0, %v2817
  %v2819 = vrcp.pop %v2433
  %v2820 = vmul.f32 1.0, %v2819
  %v2821 = vrcp.pop %v2434
  %v2822 = vmul.f32 1.0, %v2821
  %v2823 = vrcp.pop %v2435
  %v2824 = vmul.f32 1.0, %v2823
  %v2825 = vrcp.pop %v2436
  %v2826 = vmul.f32 1.0, %v2825
  %v2827 = vrcp.pop %v2437
  %v2828 = vmul.f32 1.0, %v2827
  %v2829 = vrcp.pop %v2438
  %v2830 = vmul.f32 1.0, %v2829
  %v2831 = vrcp.pop %v2439
  %v2832 = vmul.f32 1.0, %v2831
  %v2833 = vrcp.pop %v2440
  %v2834 = vmul.f32 1.0, %v2833
  %v2835 = vrcp.pop %v2441
  %v2836 = vmul.f32 1.0, %v2835
  %v2837 = vrcp.pop %v2442
  %v2838 = vmul.f32 1.0, %v2837
  %v2839 = vrcp.pop %v2443
  %v2840 = vmul.f32 1.0, %v2839
  %v2841 = vrcp.pop %v2444
  %v2842 = vmul.f32 1.0, %v2841
  %v2843 = vrcp.pop %v2445
  %v2844 = vmul.f32 1.0, %v2843
  %v2845 = vrcp.pop %v2446
  %v2846 = vmul.f32 1.0, %v2845
  %v2847 = vrcp.pop %v2447
  %v2848 = vmul.f32 1.0, %v2847
  %v2849 = vrcp.pop %v2448
  %v2850 = vmul.f32 1.0, %v2849
  %v2851 = vrcp.pop %v2449
  %v2852 = vmul.f32 1.0, %v2851
  %v2853 = vrcp.pop %v2450
  %v2854 = vmul.f32 1.0, %v2853
  %v2855 = vrcp.pop %v2451
  %v2856 = vmul.f32 1.0, %v2855
  %v2857 = vrcp.pop %v2452
  %v2858 = vmul.f32 1.0, %v2857
  %v2859 = vrcp.pop %v2453
  %v2860 = vmul.f32 1.0, %v2859
  %v2861 = vrcp.pop %v2454
  %v2862 = vmul.f32 1.0, %v2861
  %v2863 = vrcp.pop %v2455
  %v2864 = vmul.f32 1.0, %v2863
  %v2865 = vrcp.pop %v2456
  %v2866 = vmul.f32 1.0, %v2865
  %v2867 = vrcp.pop %v2457
  %v2868 = vmul.f32 1.0, %v2867
  %v2869 = vrcp.pop %v2458
  %v2870 = vmul.f32 1.0, %v2869
  %v2871 = vrcp.pop %v2459
  %v2872 = vmul.f32 1.0, %v2871
  %v2873 = vrcp.pop %v2460
  %v2874 = vmul.f32 1.0, %v2873
  %v2875 = vrcp.pop %v2461
  %v2876 = vmul.f32 1.0, %v2875
  %v2877 = vrcp.pop %v2462
  %v2878 = vmul.f32 1.0, %v2877
  %v2879 = vrcp.pop %v2463
  %v2880 = vmul.f32 1.0, %v2879
  %v2881 = vrcp.pop %v2464
  %v2882 = vmul.f32 1.0, %v2881
  %v2883 = vrcp.pop %v2465
  %v2884 = vmul.f32 1.0, %v2883
  %v2885 = vrcp.pop %v2466
  %v2886 = vmul.f32 1.0, %v2885
  %v2887 = vrcp.pop %v2467
  %v2888 = vmul.f32 1.0, %v2887
  %v2889 = vrcp.pop %v2468
  %v2890 = vmul.f32 1.0, %v2889
  %v2891 = vrcp.pop %v2469
  %v2892 = vmul.f32 1.0, %v2891
  %v2893 = vrcp.pop %v2470
  %v2894 = vmul.f32 1.0, %v2893
  %v2895 = vrcp.pop %v2471
  %v2896 = vmul.f32 1.0, %v2895
  %v2897 = vrcp.pop %v2472
  %v2898 = vmul.f32 1.0, %v2897
  %v2899 = vrcp.pop %v2473
  %v2900 = vmul.f32 1.0, %v2899
  %v2901 = vrcp.pop %v2474
  %v2902 = vmul.f32 1.0, %v2901
  %v2903 = vrcp.pop %v2475
  %v2904 = vmul.f32 1.0, %v2903
  %v2905 = vrcp.pop %v2476
  %v2906 = vmul.f32 1.0, %v2905
  %v2907 = vrcp.pop %v2477
  %v2908 = vmul.f32 1.0, %v2907
  %v2909 = vrcp.pop %v2478
  %v2910 = vmul.f32 1.0, %v2909
  %v2911 = vrcp.pop %v2479
  %v2912 = vmul.f32 1.0, %v2911
  %v2913 = vrcp.pop %v2480
  %v2914 = vmul.f32 1.0, %v2913
  %v2915 = vrcp.pop %v2481
  %v2916 = vmul.f32 1.0, %v2915
  %v2917 = vrcp.pop %v2482
  %v2918 = vmul.f32 1.0, %v2917
  %v2919 = vrcp.pop %v2483
  %v2920 = vmul.f32 1.0, %v2919
  %v2921 = vrcp.pop %v2484
  %v2922 = vmul.f32 1.0, %v2921
  %v2923 = vrcp.pop %v2485
  %v2924 = vmul.f32 1.0, %v2923
  %v2925 = vrcp.pop %v2486
  %v2926 = vmul.f32 1.0, %v2925
  %v2927 = vrcp.pop %v2487
  %v2928 = vmul.f32 1.0, %v2927
  %v2929 = vrcp.pop %v2488
  %v2930 = vmul.f32 1.0, %v2929
  %v2931 = vrcp.pop %v2489
  %v2932 = vmul.f32 1.0, %v2931
  %v2933 = vrcp.pop %v2490
  %v2934 = vmul.f32 1.0, %v2933
  %v2935 = vrcp.pop %v2491
  %v2936 = vmul.f32 1.0, %v2935
  %v2937 = vrcp.pop %v2492
  %v2938 = vmul.f32 1.0, %v2937
  %v2939 = vrcp.pop %v2493
  %v2940 = vmul.f32 1.0, %v2939
  %v2941 = vrcp.pop %v2494
  %v2942 = vmul.f32 1.0, %v2941
  %v2943 = vrcp.pop %v2495
  %v2944 = vmul.f32 1.0, %v2943
  %v2945 = vrcp.pop %v2496
  %v2946 = vmul.f32 1.0, %v2945
  %v2947 = vrcp.pop %v2497
  %v2948 = vmul.f32 1.0, %v2947
  %v2949 = vrcp.pop %v2498
  %v2950 = vmul.f32 1.0, %v2949
  %v2951 = vrcp.pop %v2499
  %v2952 = vmul.f32 1.0, %v2951
  %v2953 = vrcp.pop %v2500
  %v2954 = vmul.f32 1.0, %v2953
  %v2955 = vrcp.pop %v2501
  %v2956 = vmul.f32 1.0, %v2955
  %v2957 = vrcp.pop %v2502
  %v2958 = vmul.f32 1.0, %v2957
  %v2959 = vrcp.pop %v2503
  %v2960 = vmul.f32 1.0, %v2959
  %v2961 = vrcp.pop %v2504
  %v2962 = vmul.f32 1.0, %v2961
  %v2963 = vrcp.pop %v2505
  %v2964 = vmul.f32 1.0, %v2963
  %v2965 = vrcp.pop %v2506
  %v2966 = vmul.f32 1.0, %v2965
  %v2967 = vrcp.pop %v2507
  %v2968 = vmul.f32 1.0, %v2967
  %v2969 = vrcp.pop %v2508
  %v2970 = vmul.f32 1.0, %v2969
  %v2971 = vrcp.pop %v2509
  %v2972 = vmul.f32 1.0, %v2971
  %v2973 = vrcp.pop %v2510
  %v2974 = vmul.f32 1.0, %v2973
  %v2975 = vrcp.pop %v2511
  %v2976 = vmul.f32 1.0, %v2975
  %v2977 = vrcp.pop %v2512
  %v2978 = vmul.f32 1.0, %v2977
  %v2979 = vrcp.pop %v2513
  %v2980 = vmul.f32 1.0, %v2979
  %v2981 = vrcp.pop %v2514
  %v2982 = vmul.f32 1.0, %v2981
  %v2983 = vrcp.pop %v2515
  %v2984 = vmul.f32 1.0, %v2983
  %v2985 = vrcp.pop %v2516
  %v2986 = vmul.f32 1.0, %v2985
  %v2987 = vrcp.pop %v2517
  %v2988 = vmul.f32 1.0, %v2987
  %v2989 = vrcp.pop %v2518
  %v2990 = vmul.f32 1.0, %v2989
  %v2991 = vrcp.pop %v2519
  %v2992 = vmul.f32 1.0, %v2991
  %v2993 = vrcp.pop %v2520
  %v2994 = vmul.f32 1.0, %v2993
  %v2995 = vrcp.pop %v2521
  %v2996 = vmul.f32 1.0, %v2995
  %v2997 = vrcp.pop %v2522
  %v2998 = vmul.f32 1.0, %v2997
  %v2999 = vrcp.pop %v2523
  %v3000 = vmul.f32 1.0, %v2999
  %v3001 = vrcp.pop %v2524
  %v3002 = vmul.f32 1.0, %v3001
  %v3003 = vrcp.pop %v2525
  %v3004 = vmul.f32 1.0, %v3003
  %v3005 = vrcp.pop %v2526
  %v3006 = vmul.f32 1.0, %v3005
  %v3007 = vrcp.pop %v2527
  %v3008 = vmul.f32 1.0, %v3007
  %v3009 = vrcp.pop %v2528
  %v3010 = vmul.f32 1.0, %v3009
  %v3011 = vrcp.pop %v2529
  %v3012 = vmul.f32 1.0, %v3011
  %v3013 = vrcp.pop %v2530
  %v3014 = vmul.f32 1.0, %v3013
  %v3015 = vrcp.pop %v2531
  %v3016 = vmul.f32 1.0, %v3015
  %v3017 = vrcp.pop %v2532
  %v3018 = vmul.f32 1.0, %v3017
  %v3019 = vrcp.pop %v2533
  %v3020 = vmul.f32 1.0, %v3019
  %v3021 = vrcp.pop %v2534
  %v3022 = vmul.f32 1.0, %v3021
  %v3023 = vrcp.pop %v2535
  %v3024 = vmul.f32 1.0, %v3023
  %v3025 = vrcp.pop %v2536
  %v3026 = vmul.f32 1.0, %v3025
  %v3027 = vrcp.pop %v2537
  %v3028 = vmul.f32 1.0, %v3027
  %v3029 = vrcp.pop %v2538
  %v3030 = vmul.f32 1.0, %v3029
  %v3031 = vrcp.pop %v2539
  %v3032 = vmul.f32 1.0, %v3031
  %v3033 = vrcp.pop %v2540
  %v3034 = vmul.f32 1.0, %v3033
  %v3035 = vrcp.pop %v2541
  %v3036 = vmul.f32 1.0, %v3035
  %v3037 = vrcp.pop %v2542
  %v3038 = vmul.f32 1.0, %v3037
  %v3039 = vrcp.pop %v2543
  %v3040 = vmul.f32 1.0, %v3039
  %v3041 = vrcp.pop %v2544
  %v3042 = vmul.f32 1.0, %v3041
  %v3043 = vrcp.pop %v2545
  %v3044 = vmul.f32 1.0, %v3043
  %v3045 = vrcp.pop %v2546
  %v3046 = vmul.f32 1.0, %v3045
  %v3047 = vrcp.pop %v2547
  %v3048 = vmul.f32 1.0, %v3047
  %v3049 = vrcp.pop %v2548
  %v3050 = vmul.f32 1.0, %v3049
  %v3051 = vrcp.pop %v2549
  %v3052 = vmul.f32 1.0, %v3051
  %v3053 = vrcp.pop %v2550
  %v3054 = vmul.f32 1.0, %v3053
  %v3055 = vrcp.pop %v2551
  %v3056 = vmul.f32 1.0, %v3055
  %v3057 = vrcp.pop %v2552
  %v3058 = vmul.f32 1.0, %v3057
  %v3059 = vrcp.pop %v2553
  %v3060 = vmul.f32 1.0, %v3059
  %v3061 = vrcp.pop %v2554
  %v3062 = vmul.f32 1.0, %v3061
  %v3063 = vrcp.pop %v2555
  %v3064 = vmul.f32 1.0, %v3063
  %v3065 = vrcp.pop %v2556
  %v3066 = vmul.f32 1.0, %v3065
  %v3067 = vrcp.pop %v2557
  %v3068 = vmul.f32 1.0, %v3067
  %v3069 = vrcp.pop %v2558
  %v3070 = vmul.f32 1.0, %v3069
  %v3071 = vmul.f32 %v574, %v2560
  %v3072 = vmul.f32 %v576, %v2562
  %v3073 = vmul.f32 %v831, %v2564
  %v3074 = vmul.f32 %v833, %v2566
  %v3075 = vmul.f32 %v1088, %v2568
  %v3076 = vmul.f32 %v1090, %v2570
  %v3077 = vmul.f32 %v1345, %v2572
  %v3078 = vmul.f32 %v1347, %v2574
  %v3079 = vmul.f32 %v580, %v2576
  %v3080 = vmul.f32 %v582, %v2578
  %v3081 = vmul.f32 %v837, %v2580
  %v3082 = vmul.f32 %v839, %v2582
  %v3083 = vmul.f32 %v1094, %v2584
  %v3084 = vmul.f32 %v1096, %v2586
  %v3085 = vmul.f32 %v1351, %v2588
  %v3086 = vmul.f32 %v1353, %v2590
  %v3087 = vmul.f32 %v586, %v2592
  %v3088 = vmul.f32 %v588, %v2594
  %v3089 = vmul.f32 %v843, %v2596
  %v3090 = vmul.f32 %v845, %v2598
  %v3091 = vmul.f32 %v1100, %v2600
  %v3092 = vmul.f32 %v1102, %v2602
  %v3093 = vmul.f32 %v1357, %v2604
  %v3094 = vmul.f32 %v1359, %v2606
  %v3095 = vmul.f32 %v592, %v2608
  %v3096 = vmul.f32 %v594, %v2610
  %v3097 = vmul.f32 %v849, %v2612
  %v3098 = vmul.f32 %v851, %v2614
  %v3099 = vmul.f32 %v1106, %v2616
  %v3100 = vmul.f32 %v1108, %v2618
  %v3101 = vmul.f32 %v1363, %v2620
  %v3102 = vmul.f32 %v1365, %v2622
  %v3103 = vmul.f32 %v598, %v2624
  %v3104 = vmul.f32 %v600, %v2626
  %v3105 = vmul.f32 %v855, %v2628
  %v3106 = vmul.f32 %v857, %v2630
  %v3107 = vmul.f32 %v1112, %v2632
  %v3108 = vmul.f32 %v1114, %v2634
  %v3109 = vmul.f32 %v1369, %v2636
  %v3110 = vmul.f32 %v1371, %v2638
  %v3111 = vmul.f32 %v604, %v2640
  %v3112 = vmul.f32 %v606, %v2642
  %v3113 = vmul.f32 %v861, %v2644
  %v3114 = vmul.f32 %v863, %v2646
  %v3115 = vmul.f32 %v1118, %v2648
  %v3116 = vmul.f32 %v1120, %v2650
  %v3117 = vmul.f32 %v1375, %v2652
  %v3118 = vmul.f32 %v1377, %v2654
  %v3119 = vmul.f32 %v610, %v2656
  %v3120 = vmul.f32 %v612, %v2658
  %v3121 = vmul.f32 %v867, %v2660
  %v3122 = vmul.f32 %v869, %v2662
  %v3123 = vmul.f32 %v1124, %v2664
  %v3124 = vmul.f32 %v1126, %v2666
  %v3125 = vmul.f32 %v1381, %v2668
  %v3126 = vmul.f32 %v1383, %v2670
  %v3127 = vmul.f32 %v616, %v2672
  %v3128 = vmul.f32 %v618, %v2674
  %v3129 = vmul.f32 %v873, %v2676
  %v3130 = vmul.f32 %v875, %v2678
  %v3131 = vmul.f32 %v1130, %v2680
  %v3132 = vmul.f32 %v1132, %v2682
  %v3133 = vmul.f32 %v1387, %v2684
  %v3134 = vmul.f32 %v1389, %v2686
  %v3135 = vmul.f32 %v622, %v2688
  %v3136 = vmul.f32 %v624, %v2690
  %v3137 = vmul.f32 %v879, %v2692
  %v3138 = vmul.f32 %v881, %v2694
  %v3139 = vmul.f32 %v1136, %v2696
  %v3140 = vmul.f32 %v1138, %v2698
  %v3141 = vmul.f32 %v1393, %v2700
  %v3142 = vmul.f32 %v1395, %v2702
  %v3143 = vmul.f32 %v628, %v2704
  %v3144 = vmul.f32 %v630, %v2706
  %v3145 = vmul.f32 %v885, %v2708
  %v3146 = vmul.f32 %v887, %v2710
  %v3147 = vmul.f32 %v1142, %v2712
  %v3148 = vmul.f32 %v1144, %v2714
  %v3149 = vmul.f32 %v1399, %v2716
  %v3150 = vmul.f32 %v1401, %v2718
  %v3151 = vmul.f32 %v634, %v2720
  %v3152 = vmul.f32 %v636, %v2722
  %v3153 = vmul.f32 %v891, %v2724
  %v3154 = vmul.f32 %v893, %v2726
  %v3155 = vmul.f32 %v1148, %v2728
  %v3156 = vmul.f32 %v1150, %v2730
  %v3157 = vmul.f32 %v1405, %v2732
  %v3158 = vmul.f32 %v1407, %v2734
  %v3159 = vmul.f32 %v640, %v2736
  %v3160 = vmul.f32 %v642, %v2738
  %v3161 = vmul.f32 %v897, %v2740
  %v3162 = vmul.f32 %v899, %v2742
  %v3163 = vmul.f32 %v1154, %v2744
  %v3164 = vmul.f32 %v1156, %v2746
  %v3165 = vmul.f32 %v1411, %v2748
  %v3166 = vmul.f32 %v1413, %v2750
  %v3167 = vmul.f32 %v646, %v2752
  %v3168 = vmul.f32 %v648, %v2754
  %v3169 = vmul.f32 %v903, %v2756
  %v3170 = vmul.f32 %v905, %v2758
  %v3171 = vmul.f32 %v1160, %v2760
  %v3172 = vmul.f32 %v1162, %v2762
  %v3173 = vmul.f32 %v1417, %v2764
  %v3174 = vmul.f32 %v1419, %v2766
  %v3175 = vmul.f32 %v652, %v2768
  %v3176 = vmul.f32 %v654, %v2770
  %v3177 = vmul.f32 %v909, %v2772
  %v3178 = vmul.f32 %v911, %v2774
  %v3179 = vmul.f32 %v1166, %v2776
  %v3180 = vmul.f32 %v1168, %v2778
  %v3181 = vmul.f32 %v1423, %v2780
  %v3182 = vmul.f32 %v1425, %v2782
  %v3183 = vmul.f32 %v658, %v2784
  %v3184 = vmul.f32 %v660, %v2786
  %v3185 = vmul.f32 %v915, %v2788
  %v3186 = vmul.f32 %v917, %v2790
  %v3187 = vmul.f32 %v1172, %v2792
  %v3188 = vmul.f32 %v1174, %v2794
  %v3189 = vmul.f32 %v1429, %v2796
  %v3190 = vmul.f32 %v1431, %v2798
  %v3191 = vmul.f32 %v664, %v2800
  %v3192 = vmul.f32 %v666, %v2802
  %v3193 = vmul.f32 %v921, %v2804
  %v3194 = vmul.f32 %v923, %v2806
  %v3195 = vmul.f32 %v1178, %v2808
  %v3196 = vmul.f32 %v1180, %v2810
  %v3197 = vmul.f32 %v1435, %v2812
  %v3198 = vmul.f32 %v1437, %v2814
  %v3199 = vmul.f32 %v670, %v2816
  %v3200 = vmul.f32 %v672, %v2818
  %v3201 = vmul.f32 %v927, %v2820
  %v3202 = vmul.f32 %v929, %v2822
  %v3203 = vmul.f32 %v1184, %v2824
  %v3204 = vmul.f32 %v1186, %v2826
  %v3205 = vmul.f32 %v1441, %v2828
  %v3206 = vmul.f32 %v1443, %v2830
  %v3207 = vmul.f32 %v676, %v2832
  %v3208 = vmul.f32 %v678, %v2834
  %v3209 = vmul.f32 %v933, %v2836
  %v3210 = vmul.f32 %v935, %v2838
  %v3211 = vmul.f32 %v1190, %v2840
  %v3212 = vmul.f32 %v1192, %v2842
  %v3213 = vmul.f32 %v1447, %v2844
  %v3214 = vmul.f32 %v1449, %v2846
  %v3215 = vmul.f32 %v682, %v2848
  %v3216 = vmul.f32 %v684, %v2850
  %v3217 = vmul.f32 %v939, %v2852
  %v3218 = vmul.f32 %v941, %v2854
  %v3219 = vmul.f32 %v1196, %v2856
  %v3220 = vmul.f32 %v1198, %v2858
  %v3221 = vmul.f32 %v1453, %v2860
  %v3222 = vmul.f32 %v1455, %v2862
  %v3223 = vmul.f32 %v688, %v2864
  %v3224 = vmul.f32 %v690, %v2866
  %v3225 = vmul.f32 %v945, %v2868
  %v3226 = vmul.f32 %v947, %v2870
  %v3227 = vmul.f32 %v1202, %v2872
  %v3228 = vmul.f32 %v1204, %v2874
  %v3229 = vmul.f32 %v1459, %v2876
  %v3230 = vmul.f32 %v1461, %v2878
  %v3231 = vmul.f32 %v694, %v2880
  %v3232 = vmul.f32 %v696, %v2882
  %v3233 = vmul.f32 %v951, %v2884
  %v3234 = vmul.f32 %v953, %v2886
  %v3235 = vmul.f32 %v1208, %v2888
  %v3236 = vmul.f32 %v1210, %v2890
  %v3237 = vmul.f32 %v1465, %v2892
  %v3238 = vmul.f32 %v1467, %v2894
  %v3239 = vmul.f32 %v700, %v2896
  %v3240 = vmul.f32 %v702, %v2898
  %v3241 = vmul.f32 %v957, %v2900
  %v3242 = vmul.f32 %v959, %v2902
  %v3243 = vmul.f32 %v1214, %v2904
  %v3244 = vmul.f32 %v1216, %v2906
  %v3245 = vmul.f32 %v1471, %v2908
  %v3246 = vmul.f32 %v1473, %v2910
  %v3247 = vmul.f32 %v706, %v2912
  %v3248 = vmul.f32 %v708, %v2914
  %v3249 = vmul.f32 %v963, %v2916
  %v3250 = vmul.f32 %v965, %v2918
  %v3251 = vmul.f32 %v1220, %v2920
  %v3252 = vmul.f32 %v1222, %v2922
  %v3253 = vmul.f32 %v1477, %v2924
  %v3254 = vmul.f32 %v1479, %v2926
  %v3255 = vmul.f32 %v712, %v2928
  %v3256 = vmul.f32 %v714, %v2930
  %v3257 = vmul.f32 %v969, %v2932
  %v3258 = vmul.f32 %v971, %v2934
  %v3259 = vmul.f32 %v1226, %v2936
  %v3260 = vmul.f32 %v1228, %v2938
  %v3261 = vmul.f32 %v1483, %v2940
  %v3262 = vmul.f32 %v1485, %v2942
  %v3263 = vmul.f32 %v718, %v2944
  %v3264 = vmul.f32 %v720, %v2946
  %v3265 = vmul.f32 %v975, %v2948
  %v3266 = vmul.f32 %v977, %v2950
  %v3267 = vmul.f32 %v1232, %v2952
  %v3268 = vmul.f32 %v1234, %v2954
  %v3269 = vmul.f32 %v1489, %v2956
  %v3270 = vmul.f32 %v1491, %v2958
  %v3271 = vmul.f32 %v724, %v2960
  %v3272 = vmul.f32 %v726, %v2962
  %v3273 = vmul.f32 %v981, %v2964
  %v3274 = vmul.f32 %v983, %v2966
  %v3275 = vmul.f32 %v1238, %v2968
  %v3276 = vmul.f32 %v1240, %v2970
  %v3277 = vmul.f32 %v1495, %v2972
  %v3278 = vmul.f32 %v1497, %v2974
  %v3279 = vmul.f32 %v730, %v2976
  %v3280 = vmul.f32 %v732, %v2978
  %v3281 = vmul.f32 %v987, %v2980
  %v3282 = vmul.f32 %v989, %v2982
  %v3283 = vmul.f32 %v1244, %v2984
  %v3284 = vmul.f32 %v1246, %v2986
  %v3285 = vmul.f32 %v1501, %v2988
  %v3286 = vmul.f32 %v1503, %v2990
  %v3287 = vmul.f32 %v736, %v2992
  %v3288 = vmul.f32 %v738, %v2994
  %v3289 = vmul.f32 %v993, %v2996
  %v3290 = vmul.f32 %v995, %v2998
  %v3291 = vmul.f32 %v1250, %v3000
  %v3292 = vmul.f32 %v1252, %v3002
  %v3293 = vmul.f32 %v1507, %v3004
  %v3294 = vmul.f32 %v1509, %v3006
  %v3295 = vmul.f32 %v742, %v3008
  %v3296 = vmul.f32 %v744, %v3010
  %v3297 = vmul.f32 %v999, %v3012
  %v3298 = vmul.f32 %v1001, %v3014
  %v3299 = vmul.f32 %v1256, %v3016
  %v3300 = vmul.f32 %v1258, %v3018
  %v3301 = vmul.f32 %v1513, %v3020
  %v3302 = vmul.f32 %v1515, %v3022
  %v3303 = vmul.f32 %v748, %v3024
  %v3304 = vmul.f32 %v750, %v3026
  %v3305 = vmul.f32 %v1005, %v3028
  %v3306 = vmul.f32 %v1007, %v3030
  %v3307 = vmul.f32 %v1262, %v3032
  %v3308 = vmul.f32 %v1264, %v3034
  %v3309 = vmul.f32 %v1519, %v3036
  %v3310 = vmul.f32 %v1521, %v3038
  %v3311 = vmul.f32 %v754, %v3040
  %v3312 = vmul.f32 %v756, %v3042
  %v3313 = vmul.f32 %v1011, %v3044
  %v3314 = vmul.f32 %v1013, %v3046
  %v3315 = vmul.f32 %v1268, %v3048
  %v3316 = vmul.f32 %v1270, %v3050
  %v3317 = vmul.f32 %v1525, %v3052
  %v3318 = vmul.f32 %v1527, %v3054
  %v3319 = vmul.f32 %v760, %v3056
  %v3320 = vmul.f32 %v762, %v3058
  %v3321 = vmul.f32 %v1017, %v3060
  %v3322 = vmul.f32 %v1019, %v3062
  %v3323 = vmul.f32 %v1274, %v3064
  %v3324 = vmul.f32 %v1276, %v3066
  %v3325 = vmul.f32 %v1531, %v3068
  %v3326 = vmul.f32 %v1533, %v3070
  %v3327 = vld [vmem:[%s10] sm:$0xff]
  %v3328 = vld [vmem:[%s10 + $0x8] sm:$0xff]
  %v3329 = vld [vmem:[%s10 + $0x10] sm:$0xff]
  %v3330 = vld [vmem:[%s10 + $0x18] sm:$0xff]
  %v3331 = vld [vmem:[%s10 + $0x20] sm:$0xff]
  %v3332 = vld [vmem:[%s10 + $0x28] sm:$0xff]
  %v3333 = vld [vmem:[%s10 + $0x30] sm:$0xff]
  %v3334 = vld [vmem:[%s10 + $0x38] sm:$0xff]
  %v3335 = vld [vmem:[%s10 + $0x40] sm:$0xff]
  %v3336 = vld [vmem:[%s10 + $0x48] sm:$0xff]
  %v3337 = vld [vmem:[%s10 + $0x50] sm:$0xff]
  %v3338 = vld [vmem:[%s10 + $0x58] sm:$0xff]
  %v3339 = vld [vmem:[%s10 + $0x60] sm:$0xff]
  %v3340 = vld [vmem:[%s10 + $0x68] sm:$0xff]
  %v3341 = vld [vmem:[%s10 + $0x70] sm:$0xff]
  %v3342 = vld [vmem:[%s10 + $0x78] sm:$0xff]
  %v3343 = vld [vmem:[%s11] sm:$0xff]
  %v3344 = vld [vmem:[%s11 + $0x8] sm:$0xff]
  %v3345 = vld [vmem:[%s11 + $0x10] sm:$0xff]
  %v3346 = vld [vmem:[%s11 + $0x18] sm:$0xff]
  %v3347 = vld [vmem:[%s11 + $0x20] sm:$0xff]
  %v3348 = vld [vmem:[%s11 + $0x28] sm:$0xff]
  %v3349 = vld [vmem:[%s11 + $0x30] sm:$0xff]
  %v3350 = vld [vmem:[%s11 + $0x38] sm:$0xff]
  %3352 = vset.pattern.permute.xlu0 0
  %3353 = vperm.xlu0 %3352, %v3343
  %v3354 = vpop.permute.xlu0 %3353
  %3357 = vset.pattern.permute.xlu0 0
  %3358 = vperm.xlu0 %3357, %v3344
  %v3359 = vpop.permute.xlu0 %3358
  %3362 = vset.pattern.permute.xlu0 0
  %3363 = vperm.xlu0 %3362, %v3345
  %v3364 = vpop.permute.xlu0 %3363
  %3367 = vset.pattern.permute.xlu0 0
  %3368 = vperm.xlu0 %3367, %v3346
  %v3369 = vpop.permute.xlu0 %3368
  %3372 = vset.pattern.permute.xlu0 0
  %3373 = vperm.xlu0 %3372, %v3347
  %v3374 = vpop.permute.xlu0 %3373
  %3377 = vset.pattern.permute.xlu0 0
  %3378 = vperm.xlu0 %3377, %v3348
  %v3379 = vpop.permute.xlu0 %3378
  %3382 = vset.pattern.permute.xlu0 0
  %3383 = vperm.xlu0 %3382, %v3349
  %v3384 = vpop.permute.xlu0 %3383
  %3387 = vset.pattern.permute.xlu0 0
  %3388 = vperm.xlu0 %3387, %v3350
  %v3389 = vpop.permute.xlu0 %3388
  %3391 = vmatprep.subr.mxu0 %v3192
  %3392 = vmatpush1.msra.mxu0 %v3191
  %3393 = vmatprep.subr.mxu0 %v3184
  %3394 = vmatpush1.msra.mxu0 %v3183
  %3395 = vmatprep.subr.mxu0 %v3176
  %3396 = vmatpush1.msra.mxu0 %v3175
  %3397 = vmatprep.subr.mxu0 %v3168
  %3398 = vmatpush1.msra.mxu0 %v3167
  %3399 = vmatprep.subr.mxu0 %v3160
  %3400 = vmatpush1.msra.mxu0 %v3159
  %3401 = vmatprep.subr.mxu0 %v3152
  %3402 = vmatpush1.msra.mxu0 %v3151
  %3403 = vmatprep.subr.mxu0 %v3144
  %3404 = vmatpush1.msra.mxu0 %v3143
  %3405 = vmatprep.subr.mxu0 %v3136
  %3406 = vmatpush1.msra.mxu0 %v3135
  %3407 = vmatprep.subr.mxu0 %v3128
  %3408 = vmatpush1.msra.mxu0 %v3127
  %3409 = vmatprep.subr.mxu0 %v3120
  %3410 = vmatpush1.msra.mxu0 %v3119
  %3411 = vmatprep.subr.mxu0 %v3112
  %3412 = vmatpush1.msra.mxu0 %v3111
  %3413 = vmatprep.subr.mxu0 %v3104
  %3414 = vmatpush1.msra.mxu0 %v3103
  %3415 = vmatprep.subr.mxu0 %v3096
  %3416 = vmatpush1.msra.mxu0 %v3095
  %3417 = vmatprep.subr.mxu0 %v3088
  %3418 = vmatpush1.msra.mxu0 %v3087
  %3419 = vmatprep.subr.mxu0 %v3080
  %3420 = vmatpush1.msra.mxu0 %v3079
  %3421 = vmatprep.subr.mxu0 %v3072
  %3422 = vmatpush1.msra.mxu0 %v3071
  %3423 = vmatprep.subr.mxu0 %v3320
  %3424 = vmatpush2.msra.mxu0 %v3319
  %3425 = vmatprep.subr.mxu0 %v3312
  %3426 = vmatpush2.msra.mxu0 %v3311
  %3427 = vmatprep.subr.mxu0 %v3304
  %3428 = vmatpush2.msra.mxu0 %v3303
  %3429 = vmatprep.subr.mxu0 %v3296
  %3430 = vmatpush2.msra.mxu0 %v3295
  %3431 = vmatprep.subr.mxu0 %v3288
  %3432 = vmatpush2.msra.mxu0 %v3287
  %3433 = vmatprep.subr.mxu0 %v3280
  %3434 = vmatpush2.msra.mxu0 %v3279
  %3435 = vmatprep.subr.mxu0 %v3272
  %3436 = vmatpush2.msra.mxu0 %v3271
  %3437 = vmatprep.subr.mxu0 %v3264
  %3438 = vmatpush2.msra.mxu0 %v3263
  %3439 = vmatprep.subr.mxu0 %v3256
  %3440 = vmatpush2.msra.mxu0 %v3255
  %3441 = vmatprep.subr.mxu0 %v3248
  %3442 = vmatpush2.msra.mxu0 %v3247
  %3443 = vmatprep.subr.mxu0 %v3240
  %3444 = vmatpush2.msra.mxu0 %v3239
  %3445 = vmatprep.subr.mxu0 %v3232
  %3446 = vmatpush2.msra.mxu0 %v3231
  %3447 = vmatprep.subr.mxu0 %v3224
  %3448 = vmatpush2.msra.mxu0 %v3223
  %3449 = vmatprep.subr.mxu0 %v3216
  %3450 = vmatpush2.msra.mxu0 %v3215
  %3451 = vmatprep.subr.mxu0 %v3208
  %3452 = vmatpush2.msra.mxu0 %v3207
  %3453 = vmatprep.subr.mxu0 %v3200
  %3454 = vmatpush2.msra.mxu0 %v3199
  %3455 = vmatprep.mubr.f32.mxu0 %v3328
  %3456 = vmatmul.mubr.f32.gmra.mxu0 %v3327
  %v3457 = vpop.f32.mrf.mxu0
  %v3458 = vadd.f32 %v3354, %v3457
  %v3459 = vpop.f32.mrf.mxu0
  %v3460 = vadd.f32 %v3354, %v3459
  %3461 = vmatprep.mubr.f32.mxu0 %v3330
  %3462 = vmatmul.mubr.f32.gmra.mxu0 %v3329
  %v3463 = vpop.f32.mrf.mxu0
  %v3464 = vadd.f32 %v3359, %v3463
  %v3465 = vpop.f32.mrf.mxu0
  %v3466 = vadd.f32 %v3359, %v3465
  %3467 = vmatprep.mubr.f32.mxu0 %v3332
  %3468 = vmatmul.mubr.f32.gmra.mxu0 %v3331
  %v3469 = vpop.f32.mrf.mxu0
  %v3470 = vadd.f32 %v3364, %v3469
  %v3471 = vpop.f32.mrf.mxu0
  %v3472 = vadd.f32 %v3364, %v3471
  %3473 = vmatprep.mubr.f32.mxu0 %v3334
  %3474 = vmatmul.mubr.f32.gmra.mxu0 %v3333
  %v3475 = vpop.f32.mrf.mxu0
  %v3476 = vadd.f32 %v3369, %v3475
  %v3477 = vpop.f32.mrf.mxu0
  %v3478 = vadd.f32 %v3369, %v3477
  %3479 = vmatprep.mubr.f32.mxu0 %v3336
  %3480 = vmatmul.mubr.f32.gmra.mxu0 %v3335
  %v3481 = vpop.f32.mrf.mxu0
  %v3482 = vadd.f32 %v3374, %v3481
  %v3483 = vpop.f32.mrf.mxu0
  %v3484 = vadd.f32 %v3374, %v3483
  %3485 = vmatprep.mubr.f32.mxu0 %v3338
  %3486 = vmatmul.mubr.f32.gmra.mxu0 %v3337
  %v3487 = vpop.f32.mrf.mxu0
  %v3488 = vadd.f32 %v3379, %v3487
  %v3489 = vpop.f32.mrf.mxu0
  %v3490 = vadd.f32 %v3379, %v3489
  %3491 = vmatprep.mubr.f32.mxu0 %v3340
  %3492 = vmatmul.mubr.f32.gmra.mxu0 %v3339
  %v3493 = vpop.f32.mrf.mxu0
  %v3494 = vadd.f32 %v3384, %v3493
  %v3495 = vpop.f32.mrf.mxu0
  %v3496 = vadd.f32 %v3384, %v3495
  %3497 = vmatprep.mubr.f32.mxu0 %v3342
  %3498 = vmatmul.mubr.f32.gmra.mxu0 %v3341
  %v3499 = vpop.f32.mrf.mxu0
  %v3500 = vadd.f32 %v3389, %v3499
  %v3501 = vpop.f32.mrf.mxu0
  %v3502 = vadd.f32 %v3389, %v3501
  %3503 = vdwg.mxu0
  %3504 = vmatprep.subr.mxu0 %v3194
  %3505 = vmatpush1.msra.mxu0 %v3193
  %3506 = vmatprep.subr.mxu0 %v3186
  %3507 = vmatpush1.msra.mxu0 %v3185
  %3508 = vmatprep.subr.mxu0 %v3178
  %3509 = vmatpush1.msra.mxu0 %v3177
  %3510 = vmatprep.subr.mxu0 %v3170
  %3511 = vmatpush1.msra.mxu0 %v3169
  %3512 = vmatprep.subr.mxu0 %v3162
  %3513 = vmatpush1.msra.mxu0 %v3161
  %3514 = vmatprep.subr.mxu0 %v3154
  %3515 = vmatpush1.msra.mxu0 %v3153
  %3516 = vmatprep.subr.mxu0 %v3146
  %3517 = vmatpush1.msra.mxu0 %v3145
  %3518 = vmatprep.subr.mxu0 %v3138
  %3519 = vmatpush1.msra.mxu0 %v3137
  %3520 = vmatprep.subr.mxu0 %v3130
  %3521 = vmatpush1.msra.mxu0 %v3129
  %3522 = vmatprep.subr.mxu0 %v3122
  %3523 = vmatpush1.msra.mxu0 %v3121
  %3524 = vmatprep.subr.mxu0 %v3114
  %3525 = vmatpush1.msra.mxu0 %v3113
  %3526 = vmatprep.subr.mxu0 %v3106
  %3527 = vmatpush1.msra.mxu0 %v3105
  %3528 = vmatprep.subr.mxu0 %v3098
  %3529 = vmatpush1.msra.mxu0 %v3097
  %3530 = vmatprep.subr.mxu0 %v3090
  %3531 = vmatpush1.msra.mxu0 %v3089
  %3532 = vmatprep.subr.mxu0 %v3082
  %3533 = vmatpush1.msra.mxu0 %v3081
  %3534 = vmatprep.subr.mxu0 %v3074
  %3535 = vmatpush1.msra.mxu0 %v3073
  %3536 = vmatprep.subr.mxu0 %v3322
  %3537 = vmatpush2.msra.mxu0 %v3321
  %3538 = vmatprep.subr.mxu0 %v3314
  %3539 = vmatpush2.msra.mxu0 %v3313
  %3540 = vmatprep.subr.mxu0 %v3306
  %3541 = vmatpush2.msra.mxu0 %v3305
  %3542 = vmatprep.subr.mxu0 %v3298
  %3543 = vmatpush2.msra.mxu0 %v3297
  %3544 = vmatprep.subr.mxu0 %v3290
  %3545 = vmatpush2.msra.mxu0 %v3289
  %3546 = vmatprep.subr.mxu0 %v3282
  %3547 = vmatpush2.msra.mxu0 %v3281
  %3548 = vmatprep.subr.mxu0 %v3274
  %3549 = vmatpush2.msra.mxu0 %v3273
  %3550 = vmatprep.subr.mxu0 %v3266
  %3551 = vmatpush2.msra.mxu0 %v3265
  %3552 = vmatprep.subr.mxu0 %v3258
  %3553 = vmatpush2.msra.mxu0 %v3257
  %3554 = vmatprep.subr.mxu0 %v3250
  %3555 = vmatpush2.msra.mxu0 %v3249
  %3556 = vmatprep.subr.mxu0 %v3242
  %3557 = vmatpush2.msra.mxu0 %v3241
  %3558 = vmatprep.subr.mxu0 %v3234
  %3559 = vmatpush2.msra.mxu0 %v3233
  %3560 = vmatprep.subr.mxu0 %v3226
  %3561 = vmatpush2.msra.mxu0 %v3225
  %3562 = vmatprep.subr.mxu0 %v3218
  %3563 = vmatpush2.msra.mxu0 %v3217
  %3564 = vmatprep.subr.mxu0 %v3210
  %3565 = vmatpush2.msra.mxu0 %v3209
  %3566 = vmatprep.subr.mxu0 %v3202
  %3567 = vmatpush2.msra.mxu0 %v3201
  %3568 = vmatprep.mubr.f32.mxu0 %v3328
  %3569 = vmatmul.mubr.f32.gmra.mxu0 %v3327
  %v3570 = vpop.f32.mrf.mxu0
  %v3571 = vadd.f32 %v3354, %v3570
  %v3572 = vpop.f32.mrf.mxu0
  %v3573 = vadd.f32 %v3354, %v3572
  %3574 = vmatprep.mubr.f32.mxu0 %v3330
  %3575 = vmatmul.mubr.f32.gmra.mxu0 %v3329
  %v3576 = vpop.f32.mrf.mxu0
  %v3577 = vadd.f32 %v3359, %v3576
  %v3578 = vpop.f32.mrf.mxu0
  %v3579 = vadd.f32 %v3359, %v3578
  %3580 = vmatprep.mubr.f32.mxu0 %v3332
  %3581 = vmatmul.mubr.f32.gmra.mxu0 %v3331
  %v3582 = vpop.f32.mrf.mxu0
  %v3583 = vadd.f32 %v3364, %v3582
  %v3584 = vpop.f32.mrf.mxu0
  %v3585 = vadd.f32 %v3364, %v3584
  %3586 = vmatprep.mubr.f32.mxu0 %v3334
  %3587 = vmatmul.mubr.f32.gmra.mxu0 %v3333
  %v3588 = vpop.f32.mrf.mxu0
  %v3589 = vadd.f32 %v3369, %v3588
  %v3590 = vpop.f32.mrf.mxu0
  %v3591 = vadd.f32 %v3369, %v3590
  %3592 = vmatprep.mubr.f32.mxu0 %v3336
  %3593 = vmatmul.mubr.f32.gmra.mxu0 %v3335
  %v3594 = vpop.f32.mrf.mxu0
  %v3595 = vadd.f32 %v3374, %v3594
  %v3596 = vpop.f32.mrf.mxu0
  %v3597 = vadd.f32 %v3374, %v3596
  %3598 = vmatprep.mubr.f32.mxu0 %v3338
  %3599 = vmatmul.mubr.f32.gmra.mxu0 %v3337
  %v3600 = vpop.f32.mrf.mxu0
  %v3601 = vadd.f32 %v3379, %v3600
  %v3602 = vpop.f32.mrf.mxu0
  %v3603 = vadd.f32 %v3379, %v3602
  %3604 = vmatprep.mubr.f32.mxu0 %v3340
  %3605 = vmatmul.mubr.f32.gmra.mxu0 %v3339
  %v3606 = vpop.f32.mrf.mxu0
  %v3607 = vadd.f32 %v3384, %v3606
  %v3608 = vpop.f32.mrf.mxu0
  %v3609 = vadd.f32 %v3384, %v3608
  %3610 = vmatprep.mubr.f32.mxu0 %v3342
  %3611 = vmatmul.mubr.f32.gmra.mxu0 %v3341
  %v3612 = vpop.f32.mrf.mxu0
  %v3613 = vadd.f32 %v3389, %v3612
  %v3614 = vpop.f32.mrf.mxu0
  %v3615 = vadd.f32 %v3389, %v3614
  %3616 = vdwg.mxu0
  %3617 = vmatprep.subr.mxu0 %v3196
  %3618 = vmatpush1.msra.mxu0 %v3195
  %3619 = vmatprep.subr.mxu0 %v3188
  %3620 = vmatpush1.msra.mxu0 %v3187
  %3621 = vmatprep.subr.mxu0 %v3180
  %3622 = vmatpush1.msra.mxu0 %v3179
  %3623 = vmatprep.subr.mxu0 %v3172
  %3624 = vmatpush1.msra.mxu0 %v3171
  %3625 = vmatprep.subr.mxu0 %v3164
  %3626 = vmatpush1.msra.mxu0 %v3163
  %3627 = vmatprep.subr.mxu0 %v3156
  %3628 = vmatpush1.msra.mxu0 %v3155
  %3629 = vmatprep.subr.mxu0 %v3148
  %3630 = vmatpush1.msra.mxu0 %v3147
  %3631 = vmatprep.subr.mxu0 %v3140
  %3632 = vmatpush1.msra.mxu0 %v3139
  %3633 = vmatprep.subr.mxu0 %v3132
  %3634 = vmatpush1.msra.mxu0 %v3131
  %3635 = vmatprep.subr.mxu0 %v3124
  %3636 = vmatpush1.msra.mxu0 %v3123
  %3637 = vmatprep.subr.mxu0 %v3116
  %3638 = vmatpush1.msra.mxu0 %v3115
  %3639 = vmatprep.subr.mxu0 %v3108
  %3640 = vmatpush1.msra.mxu0 %v3107
  %3641 = vmatprep.subr.mxu0 %v3100
  %3642 = vmatpush1.msra.mxu0 %v3099
  %3643 = vmatprep.subr.mxu0 %v3092
  %3644 = vmatpush1.msra.mxu0 %v3091
  %3645 = vmatprep.subr.mxu0 %v3084
  %3646 = vmatpush1.msra.mxu0 %v3083
  %3647 = vmatprep.subr.mxu0 %v3076
  %3648 = vmatpush1.msra.mxu0 %v3075
  %3649 = vmatprep.subr.mxu0 %v3324
  %3650 = vmatpush2.msra.mxu0 %v3323
  %3651 = vmatprep.subr.mxu0 %v3316
  %3652 = vmatpush2.msra.mxu0 %v3315
  %3653 = vmatprep.subr.mxu0 %v3308
  %3654 = vmatpush2.msra.mxu0 %v3307
  %3655 = vmatprep.subr.mxu0 %v3300
  %3656 = vmatpush2.msra.mxu0 %v3299
  %3657 = vmatprep.subr.mxu0 %v3292
  %3658 = vmatpush2.msra.mxu0 %v3291
  %3659 = vmatprep.subr.mxu0 %v3284
  %3660 = vmatpush2.msra.mxu0 %v3283
  %3661 = vmatprep.subr.mxu0 %v3276
  %3662 = vmatpush2.msra.mxu0 %v3275
  %3663 = vmatprep.subr.mxu0 %v3268
  %3664 = vmatpush2.msra.mxu0 %v3267
  %3665 = vmatprep.subr.mxu0 %v3260
  %3666 = vmatpush2.msra.mxu0 %v3259
  %3667 = vmatprep.subr.mxu0 %v3252
  %3668 = vmatpush2.msra.mxu0 %v3251
  %3669 = vmatprep.subr.mxu0 %v3244
  %3670 = vmatpush2.msra.mxu0 %v3243
  %3671 = vmatprep.subr.mxu0 %v3236
  %3672 = vmatpush2.msra.mxu0 %v3235
  %3673 = vmatprep.subr.mxu0 %v3228
  %3674 = vmatpush2.msra.mxu0 %v3227
  %3675 = vmatprep.subr.mxu0 %v3220
  %3676 = vmatpush2.msra.mxu0 %v3219
  %3677 = vmatprep.subr.mxu0 %v3212
  %3678 = vmatpush2.msra.mxu0 %v3211
  %3679 = vmatprep.subr.mxu0 %v3204
  %3680 = vmatpush2.msra.mxu0 %v3203
  %3681 = vmatprep.mubr.f32.mxu0 %v3328
  %3682 = vmatmul.mubr.f32.gmra.mxu0 %v3327
  %v3683 = vpop.f32.mrf.mxu0
  %v3684 = vadd.f32 %v3354, %v3683
  %v3685 = vpop.f32.mrf.mxu0
  %v3686 = vadd.f32 %v3354, %v3685
  %3687 = vmatprep.mubr.f32.mxu0 %v3330
  %3688 = vmatmul.mubr.f32.gmra.mxu0 %v3329
  %v3689 = vpop.f32.mrf.mxu0
  %v3690 = vadd.f32 %v3359, %v3689
  %v3691 = vpop.f32.mrf.mxu0
  %v3692 = vadd.f32 %v3359, %v3691
  %3693 = vmatprep.mubr.f32.mxu0 %v3332
  %3694 = vmatmul.mubr.f32.gmra.mxu0 %v3331
  %v3695 = vpop.f32.mrf.mxu0
  %v3696 = vadd.f32 %v3364, %v3695
  %v3697 = vpop.f32.mrf.mxu0
  %v3698 = vadd.f32 %v3364, %v3697
  %3699 = vmatprep.mubr.f32.mxu0 %v3334
  %3700 = vmatmul.mubr.f32.gmra.mxu0 %v3333
  %v3701 = vpop.f32.mrf.mxu0
  %v3702 = vadd.f32 %v3369, %v3701
  %v3703 = vpop.f32.mrf.mxu0
  %v3704 = vadd.f32 %v3369, %v3703
  %3705 = vmatprep.mubr.f32.mxu0 %v3336
  %3706 = vmatmul.mubr.f32.gmra.mxu0 %v3335
  %v3707 = vpop.f32.mrf.mxu0
  %v3708 = vadd.f32 %v3374, %v3707
  %v3709 = vpop.f32.mrf.mxu0
  %v3710 = vadd.f32 %v3374, %v3709
  %3711 = vmatprep.mubr.f32.mxu0 %v3338
  %3712 = vmatmul.mubr.f32.gmra.mxu0 %v3337
  %v3713 = vpop.f32.mrf.mxu0
  %v3714 = vadd.f32 %v3379, %v3713
  %v3715 = vpop.f32.mrf.mxu0
  %v3716 = vadd.f32 %v3379, %v3715
  %3717 = vmatprep.mubr.f32.mxu0 %v3340
  %3718 = vmatmul.mubr.f32.gmra.mxu0 %v3339
  %v3719 = vpop.f32.mrf.mxu0
  %v3720 = vadd.f32 %v3384, %v3719
  %v3721 = vpop.f32.mrf.mxu0
  %v3722 = vadd.f32 %v3384, %v3721
  %3723 = vmatprep.mubr.f32.mxu0 %v3342
  %3724 = vmatmul.mubr.f32.gmra.mxu0 %v3341
  %v3725 = vpop.f32.mrf.mxu0
  %v3726 = vadd.f32 %v3389, %v3725
  %v3727 = vpop.f32.mrf.mxu0
  %v3728 = vadd.f32 %v3389, %v3727
  %3729 = vdwg.mxu0
  %3730 = vmatprep.subr.mxu0 %v3198
  %3731 = vmatpush1.msra.mxu0 %v3197
  %3732 = vmatprep.subr.mxu0 %v3190
  %3733 = vmatpush1.msra.mxu0 %v3189
  %3734 = vmatprep.subr.mxu0 %v3182
  %3735 = vmatpush1.msra.mxu0 %v3181
  %3736 = vmatprep.subr.mxu0 %v3174
  %3737 = vmatpush1.msra.mxu0 %v3173
  %3738 = vmatprep.subr.mxu0 %v3166
  %3739 = vmatpush1.msra.mxu0 %v3165
  %3740 = vmatprep.subr.mxu0 %v3158
  %3741 = vmatpush1.msra.mxu0 %v3157
  %3742 = vmatprep.subr.mxu0 %v3150
  %3743 = vmatpush1.msra.mxu0 %v3149
  %3744 = vmatprep.subr.mxu0 %v3142
  %3745 = vmatpush1.msra.mxu0 %v3141
  %3746 = vmatprep.subr.mxu0 %v3134
  %3747 = vmatpush1.msra.mxu0 %v3133
  %3748 = vmatprep.subr.mxu0 %v3126
  %3749 = vmatpush1.msra.mxu0 %v3125
  %3750 = vmatprep.subr.mxu0 %v3118
  %3751 = vmatpush1.msra.mxu0 %v3117
  %3752 = vmatprep.subr.mxu0 %v3110
  %3753 = vmatpush1.msra.mxu0 %v3109
  %3754 = vmatprep.subr.mxu0 %v3102
  %3755 = vmatpush1.msra.mxu0 %v3101
  %3756 = vmatprep.subr.mxu0 %v3094
  %3757 = vmatpush1.msra.mxu0 %v3093
  %3758 = vmatprep.subr.mxu0 %v3086
  %3759 = vmatpush1.msra.mxu0 %v3085
  %3760 = vmatprep.subr.mxu0 %v3078
  %3761 = vmatpush1.msra.mxu0 %v3077
  %3762 = vmatprep.subr.mxu0 %v3326
  %3763 = vmatpush2.msra.mxu0 %v3325
  %3764 = vmatprep.subr.mxu0 %v3318
  %3765 = vmatpush2.msra.mxu0 %v3317
  %3766 = vmatprep.subr.mxu0 %v3310
  %3767 = vmatpush2.msra.mxu0 %v3309
  %3768 = vmatprep.subr.mxu0 %v3302
  %3769 = vmatpush2.msra.mxu0 %v3301
  %3770 = vmatprep.subr.mxu0 %v3294
  %3771 = vmatpush2.msra.mxu0 %v3293
  %3772 = vmatprep.subr.mxu0 %v3286
  %3773 = vmatpush2.msra.mxu0 %v3285
  %3774 = vmatprep.subr.mxu0 %v3278
  %3775 = vmatpush2.msra.mxu0 %v3277
  %3776 = vmatprep.subr.mxu0 %v3270
  %3777 = vmatpush2.msra.mxu0 %v3269
  %3778 = vmatprep.subr.mxu0 %v3262
  %3779 = vmatpush2.msra.mxu0 %v3261
  %3780 = vmatprep.subr.mxu0 %v3254
  %3781 = vmatpush2.msra.mxu0 %v3253
  %3782 = vmatprep.subr.mxu0 %v3246
  %3783 = vmatpush2.msra.mxu0 %v3245
  %3784 = vmatprep.subr.mxu0 %v3238
  %3785 = vmatpush2.msra.mxu0 %v3237
  %3786 = vmatprep.subr.mxu0 %v3230
  %3787 = vmatpush2.msra.mxu0 %v3229
  %3788 = vmatprep.subr.mxu0 %v3222
  %3789 = vmatpush2.msra.mxu0 %v3221
  %3790 = vmatprep.subr.mxu0 %v3214
  %3791 = vmatpush2.msra.mxu0 %v3213
  %3792 = vmatprep.subr.mxu0 %v3206
  %3793 = vmatpush2.msra.mxu0 %v3205
  %3794 = vmatprep.mubr.f32.mxu0 %v3328
  %3795 = vmatmul.mubr.f32.gmra.mxu0 %v3327
  %v3796 = vpop.f32.mrf.mxu0
  %v3797 = vadd.f32 %v3354, %v3796
  %v3798 = vpop.f32.mrf.mxu0
  %v3799 = vadd.f32 %v3354, %v3798
  %3800 = vmatprep.mubr.f32.mxu0 %v3330
  %3801 = vmatmul.mubr.f32.gmra.mxu0 %v3329
  %v3802 = vpop.f32.mrf.mxu0
  %v3803 = vadd.f32 %v3359, %v3802
  %v3804 = vpop.f32.mrf.mxu0
  %v3805 = vadd.f32 %v3359, %v3804
  %3806 = vmatprep.mubr.f32.mxu0 %v3332
  %3807 = vmatmul.mubr.f32.gmra.mxu0 %v3331
  %v3808 = vpop.f32.mrf.mxu0
  %v3809 = vadd.f32 %v3364, %v3808
  %v3810 = vpop.f32.mrf.mxu0
  %v3811 = vadd.f32 %v3364, %v3810
  %3812 = vmatprep.mubr.f32.mxu0 %v3334
  %3813 = vmatmul.mubr.f32.gmra.mxu0 %v3333
  %v3814 = vpop.f32.mrf.mxu0
  %v3815 = vadd.f32 %v3369, %v3814
  %v3816 = vpop.f32.mrf.mxu0
  %v3817 = vadd.f32 %v3369, %v3816
  %3818 = vmatprep.mubr.f32.mxu0 %v3336
  %3819 = vmatmul.mubr.f32.gmra.mxu0 %v3335
  %v3820 = vpop.f32.mrf.mxu0
  %v3821 = vadd.f32 %v3374, %v3820
  %v3822 = vpop.f32.mrf.mxu0
  %v3823 = vadd.f32 %v3374, %v3822
  %3824 = vmatprep.mubr.f32.mxu0 %v3338
  %3825 = vmatmul.mubr.f32.gmra.mxu0 %v3337
  %v3826 = vpop.f32.mrf.mxu0
  %v3827 = vadd.f32 %v3379, %v3826
  %v3828 = vpop.f32.mrf.mxu0
  %v3829 = vadd.f32 %v3379, %v3828
  %3830 = vmatprep.mubr.f32.mxu0 %v3340
  %3831 = vmatmul.mubr.f32.gmra.mxu0 %v3339
  %v3832 = vpop.f32.mrf.mxu0
  %v3833 = vadd.f32 %v3384, %v3832
  %v3834 = vpop.f32.mrf.mxu0
  %v3835 = vadd.f32 %v3384, %v3834
  %3836 = vmatprep.mubr.f32.mxu0 %v3342
  %3837 = vmatmul.mubr.f32.gmra.mxu0 %v3341
  %v3838 = vpop.f32.mrf.mxu0
  %v3839 = vadd.f32 %v3389, %v3838
  %v3840 = vpop.f32.mrf.mxu0
  %v3841 = vadd.f32 %v3389, %v3840
  %3842 = vdwg.mxu0
  %v3843 = vmul.f32 %v3458, %v3482
  %v3844 = vmul.f32 %v3460, %v3484
  %v3845 = vmul.f32 %v3571, %v3595
  %v3846 = vmul.f32 %v3573, %v3597
  %v3847 = vmul.f32 %v3684, %v3708
  %v3848 = vmul.f32 %v3686, %v3710
  %v3849 = vmul.f32 %v3797, %v3821
  %v3850 = vmul.f32 %v3799, %v3823
  %v3851 = vmul.f32 %v3464, %v3488
  %v3852 = vmul.f32 %v3466, %v3490
  %v3853 = vmul.f32 %v3577, %v3601
  %v3854 = vmul.f32 %v3579, %v3603
  %v3855 = vmul.f32 %v3690, %v3714
  %v3856 = vmul.f32 %v3692, %v3716
  %v3857 = vmul.f32 %v3803, %v3827
  %v3858 = vmul.f32 %v3805, %v3829
  %v3859 = vmul.f32 %v3470, %v3494
  %v3860 = vmul.f32 %v3472, %v3496
  %v3861 = vmul.f32 %v3583, %v3607
  %v3862 = vmul.f32 %v3585, %v3609
  %v3863 = vmul.f32 %v3696, %v3720
  %v3864 = vmul.f32 %v3698, %v3722
  %v3865 = vmul.f32 %v3809, %v3833
  %v3866 = vmul.f32 %v3811, %v3835
  %v3867 = vmul.f32 %v3476, %v3500
  %v3868 = vmul.f32 %v3478, %v3502
  %v3869 = vmul.f32 %v3589, %v3613
  %v3870 = vmul.f32 %v3591, %v3615
  %v3871 = vmul.f32 %v3702, %v3726
  %v3872 = vmul.f32 %v3704, %v3728
  %v3873 = vmul.f32 %v3815, %v3839
  %v3874 = vmul.f32 %v3817, %v3841
  %v3875 = vld [vmem:[%s4] sm:$0xff]
  %v3876 = vld [vmem:[%s4 + $0x8] sm:$0xff]
  %v3877 = vld [vmem:[%s4 + $0x10] sm:$0xff]
  %v3878 = vld [vmem:[%s4 + $0x18] sm:$0xff]
  %v3879 = vld [vmem:[%s5] sm:$0xff]
  %v3880 = vld [vmem:[%s5 + $0x8] sm:$0xff]
  %v3881 = vld [vmem:[%s5 + $0x10] sm:$0xff]
  %v3882 = vld [vmem:[%s5 + $0x18] sm:$0xff]
  %3884 = vset.pattern.permute.xlu0 0
  %3885 = vperm.xlu0 %3884, %v3879
  %v3886 = vpop.permute.xlu0 %3885
  %3889 = vset.pattern.permute.xlu0 0
  %3890 = vperm.xlu0 %3889, %v3880
  %v3891 = vpop.permute.xlu0 %3890
  %3894 = vset.pattern.permute.xlu0 0
  %3895 = vperm.xlu0 %3894, %v3881
  %v3896 = vpop.permute.xlu0 %3895
  %3899 = vset.pattern.permute.xlu0 0
  %3900 = vperm.xlu0 %3899, %v3882
  %v3901 = vpop.permute.xlu0 %3900
  %v3903 = vld [vmem:[%s6] sm:$0xff]
  %3905 = vset.pattern.permute.xlu0 0
  %3906 = vperm.xlu0 %3905, %v3903
  %v3907 = vpop.permute.xlu0 %3906
  %v3909 = vld [vmem:[%s7] sm:$0xff]
  %3911 = vset.pattern.permute.xlu0 0
  %3912 = vperm.xlu0 %3911, %v3909
  %v3913 = vpop.permute.xlu0 %3912
  %vm3915 = vcmask 261120
  %v3917 = vsel %vm3915, %v3875, 0
  %v3920 = vsel %vm3915, %v3876, 0
  %v3923 = vsel %vm3915, %v3877, 0
  %v3926 = vsel %vm3915, %v3878, 0
  %3928 = vmatprep.subr.mxu0 0.0
  %3929 = vmatpush1.msra.mxu0 0.0
  %3930 = vmatprep.subr.mxu0 0.0
  %3931 = vmatpush1.msra.mxu0 0.0
  %3932 = vmatprep.subr.mxu0 0.0
  %3933 = vmatpush1.msra.mxu0 0.0
  %3934 = vmatprep.subr.mxu0 0.0
  %3935 = vmatpush1.msra.mxu0 0.0
  %3936 = vmatprep.subr.mxu0 0.0
  %3937 = vmatpush1.msra.mxu0 0.0
  %3938 = vmatprep.subr.mxu0 0.0
  %3939 = vmatpush1.msra.mxu0 0.0
  %3940 = vmatprep.subr.mxu0 0.0
  %3941 = vmatpush1.msra.mxu0 0.0
  %3942 = vmatprep.subr.mxu0 0.0
  %3943 = vmatpush1.msra.mxu0 0.0
  %3944 = vmatprep.subr.mxu0 0.0
  %3945 = vmatpush1.msra.mxu0 0.0
  %3946 = vmatprep.subr.mxu0 0.0
  %3947 = vmatpush1.msra.mxu0 0.0
  %3948 = vmatprep.subr.mxu0 0.0
  %3949 = vmatpush1.msra.mxu0 0.0
  %3950 = vmatprep.subr.mxu0 0.0
  %3951 = vmatpush1.msra.mxu0 0.0
  %3952 = vmatprep.subr.mxu0 %v75
  %3953 = vmatpush1.msra.mxu0 %v74
  %3954 = vmatprep.subr.mxu0 %v67
  %3955 = vmatpush1.msra.mxu0 %v66
  %3956 = vmatprep.subr.mxu0 %v59
  %3957 = vmatpush1.msra.mxu0 %v58
  %3958 = vmatprep.subr.mxu0 %v51
  %3959 = vmatpush1.msra.mxu0 %v50
  %3960 = vmatprep.subr.mxu0 0.0
  %3961 = vmatpush2.msra.mxu0 0.0
  %3962 = vmatprep.subr.mxu0 0.0
  %3963 = vmatpush2.msra.mxu0 0.0
  %3964 = vmatprep.subr.mxu0 0.0
  %3965 = vmatpush2.msra.mxu0 0.0
  %3966 = vmatprep.subr.mxu0 0.0
  %3967 = vmatpush2.msra.mxu0 0.0
  %3968 = vmatprep.subr.mxu0 0.0
  %3969 = vmatpush2.msra.mxu0 0.0
  %3970 = vmatprep.subr.mxu0 0.0
  %3971 = vmatpush2.msra.mxu0 0.0
  %3972 = vmatprep.subr.mxu0 0.0
  %3973 = vmatpush2.msra.mxu0 0.0
  %3974 = vmatprep.subr.mxu0 0.0
  %3975 = vmatpush2.msra.mxu0 0.0
  %3976 = vmatprep.subr.mxu0 0.0
  %3977 = vmatpush2.msra.mxu0 0.0
  %3978 = vmatprep.subr.mxu0 0.0
  %3979 = vmatpush2.msra.mxu0 0.0
  %3980 = vmatprep.subr.mxu0 0.0
  %3981 = vmatpush2.msra.mxu0 0.0
  %3982 = vmatprep.subr.mxu0 0.0
  %3983 = vmatpush2.msra.mxu0 0.0
  %3984 = vmatprep.subr.mxu0 0.0
  %3985 = vmatpush2.msra.mxu0 0.0
  %3986 = vmatprep.subr.mxu0 0.0
  %3987 = vmatpush2.msra.mxu0 0.0
  %3988 = vmatprep.subr.mxu0 0.0
  %3989 = vmatpush2.msra.mxu0 0.0
  %3990 = vmatprep.subr.mxu0 0.0
  %3991 = vmatpush2.msra.mxu0 0.0
  %3992 = vmatprep.mubr.f32.mxu0 0.0
  %3993 = vmatmul.mubr.f32.gmra.mxu0 %v3917
  %v3994 = vpop.f32.mrf.mxu0
  %v3995 = vadd.f32 %v3886, %v3994
  %v3996 = vpop.f32.mrf.mxu0
  %v3997 = vadd.f32 %v3886, %v3996
  %3998 = vmatprep.mubr.f32.mxu0 0.0
  %3999 = vmatmul.mubr.f32.gmra.mxu0 %v3920
  %v4000 = vpop.f32.mrf.mxu0
  %v4001 = vadd.f32 %v3891, %v4000
  %v4002 = vpop.f32.mrf.mxu0
  %v4003 = vadd.f32 %v3891, %v4002
  %4004 = vmatprep.mubr.f32.mxu0 0.0
  %4005 = vmatmul.mubr.f32.gmra.mxu0 %v3923
  %v4006 = vpop.f32.mrf.mxu0
  %v4007 = vadd.f32 %v3896, %v4006
  %v4008 = vpop.f32.mrf.mxu0
  %v4009 = vadd.f32 %v3896, %v4008
  %4010 = vmatprep.mubr.f32.mxu0 0.0
  %4011 = vmatmul.mubr.f32.gmra.mxu0 %v3926
  %v4012 = vpop.f32.mrf.mxu0
  %v4013 = vadd.f32 %v3901, %v4012
  %v4014 = vpop.f32.mrf.mxu0
  %v4015 = vadd.f32 %v3901, %v4014
  %4016 = vdwg.mxu0
  %4017 = vmatprep.subr.mxu0 0.0
  %4018 = vmatpush1.msra.mxu0 0.0
  %4019 = vmatprep.subr.mxu0 0.0
  %4020 = vmatpush1.msra.mxu0 0.0
  %4021 = vmatprep.subr.mxu0 0.0
  %4022 = vmatpush1.msra.mxu0 0.0
  %4023 = vmatprep.subr.mxu0 0.0
  %4024 = vmatpush1.msra.mxu0 0.0
  %4025 = vmatprep.subr.mxu0 0.0
  %4026 = vmatpush1.msra.mxu0 0.0
  %4027 = vmatprep.subr.mxu0 0.0
  %4028 = vmatpush1.msra.mxu0 0.0
  %4029 = vmatprep.subr.mxu0 0.0
  %4030 = vmatpush1.msra.mxu0 0.0
  %4031 = vmatprep.subr.mxu0 0.0
  %4032 = vmatpush1.msra.mxu0 0.0
  %4033 = vmatprep.subr.mxu0 0.0
  %4034 = vmatpush1.msra.mxu0 0.0
  %4035 = vmatprep.subr.mxu0 0.0
  %4036 = vmatpush1.msra.mxu0 0.0
  %4037 = vmatprep.subr.mxu0 0.0
  %4038 = vmatpush1.msra.mxu0 0.0
  %4039 = vmatprep.subr.mxu0 0.0
  %4040 = vmatpush1.msra.mxu0 0.0
  %4041 = vmatprep.subr.mxu0 %v77
  %4042 = vmatpush1.msra.mxu0 %v76
  %4043 = vmatprep.subr.mxu0 %v69
  %4044 = vmatpush1.msra.mxu0 %v68
  %4045 = vmatprep.subr.mxu0 %v61
  %4046 = vmatpush1.msra.mxu0 %v60
  %4047 = vmatprep.subr.mxu0 %v53
  %4048 = vmatpush1.msra.mxu0 %v52
  %4049 = vmatprep.subr.mxu0 0.0
  %4050 = vmatpush2.msra.mxu0 0.0
  %4051 = vmatprep.subr.mxu0 0.0
  %4052 = vmatpush2.msra.mxu0 0.0
  %4053 = vmatprep.subr.mxu0 0.0
  %4054 = vmatpush2.msra.mxu0 0.0
  %4055 = vmatprep.subr.mxu0 0.0
  %4056 = vmatpush2.msra.mxu0 0.0
  %4057 = vmatprep.subr.mxu0 0.0
  %4058 = vmatpush2.msra.mxu0 0.0
  %4059 = vmatprep.subr.mxu0 0.0
  %4060 = vmatpush2.msra.mxu0 0.0
  %4061 = vmatprep.subr.mxu0 0.0
  %4062 = vmatpush2.msra.mxu0 0.0
  %4063 = vmatprep.subr.mxu0 0.0
  %4064 = vmatpush2.msra.mxu0 0.0
  %4065 = vmatprep.subr.mxu0 0.0
  %4066 = vmatpush2.msra.mxu0 0.0
  %4067 = vmatprep.subr.mxu0 0.0
  %4068 = vmatpush2.msra.mxu0 0.0
  %4069 = vmatprep.subr.mxu0 0.0
  %4070 = vmatpush2.msra.mxu0 0.0
  %4071 = vmatprep.subr.mxu0 0.0
  %4072 = vmatpush2.msra.mxu0 0.0
  %4073 = vmatprep.subr.mxu0 0.0
  %4074 = vmatpush2.msra.mxu0 0.0
  %4075 = vmatprep.subr.mxu0 0.0
  %4076 = vmatpush2.msra.mxu0 0.0
  %4077 = vmatprep.subr.mxu0 0.0
  %4078 = vmatpush2.msra.mxu0 0.0
  %4079 = vmatprep.subr.mxu0 0.0
  %4080 = vmatpush2.msra.mxu0 0.0
  %4081 = vmatprep.mubr.f32.mxu0 0.0
  %4082 = vmatmul.mubr.f32.gmra.mxu0 %v3917
  %v4083 = vpop.f32.mrf.mxu0
  %v4084 = vadd.f32 %v3886, %v4083
  %v4085 = vpop.f32.mrf.mxu0
  %v4086 = vadd.f32 %v3886, %v4085
  %4087 = vmatprep.mubr.f32.mxu0 0.0
  %4088 = vmatmul.mubr.f32.gmra.mxu0 %v3920
  %v4089 = vpop.f32.mrf.mxu0
  %v4090 = vadd.f32 %v3891, %v4089
  %v4091 = vpop.f32.mrf.mxu0
  %v4092 = vadd.f32 %v3891, %v4091
  %4093 = vmatprep.mubr.f32.mxu0 0.0
  %4094 = vmatmul.mubr.f32.gmra.mxu0 %v3923
  %v4095 = vpop.f32.mrf.mxu0
  %v4096 = vadd.f32 %v3896, %v4095
  %v4097 = vpop.f32.mrf.mxu0
  %v4098 = vadd.f32 %v3896, %v4097
  %4099 = vmatprep.mubr.f32.mxu0 0.0
  %4100 = vmatmul.mubr.f32.gmra.mxu0 %v3926
  %v4101 = vpop.f32.mrf.mxu0
  %v4102 = vadd.f32 %v3901, %v4101
  %v4103 = vpop.f32.mrf.mxu0
  %v4104 = vadd.f32 %v3901, %v4103
  %4105 = vdwg.mxu0
  %4106 = vmatprep.subr.mxu0 0.0
  %4107 = vmatpush1.msra.mxu0 0.0
  %4108 = vmatprep.subr.mxu0 0.0
  %4109 = vmatpush1.msra.mxu0 0.0
  %4110 = vmatprep.subr.mxu0 0.0
  %4111 = vmatpush1.msra.mxu0 0.0
  %4112 = vmatprep.subr.mxu0 0.0
  %4113 = vmatpush1.msra.mxu0 0.0
  %4114 = vmatprep.subr.mxu0 0.0
  %4115 = vmatpush1.msra.mxu0 0.0
  %4116 = vmatprep.subr.mxu0 0.0
  %4117 = vmatpush1.msra.mxu0 0.0
  %4118 = vmatprep.subr.mxu0 0.0
  %4119 = vmatpush1.msra.mxu0 0.0
  %4120 = vmatprep.subr.mxu0 0.0
  %4121 = vmatpush1.msra.mxu0 0.0
  %4122 = vmatprep.subr.mxu0 0.0
  %4123 = vmatpush1.msra.mxu0 0.0
  %4124 = vmatprep.subr.mxu0 0.0
  %4125 = vmatpush1.msra.mxu0 0.0
  %4126 = vmatprep.subr.mxu0 0.0
  %4127 = vmatpush1.msra.mxu0 0.0
  %4128 = vmatprep.subr.mxu0 0.0
  %4129 = vmatpush1.msra.mxu0 0.0
  %4130 = vmatprep.subr.mxu0 %v79
  %4131 = vmatpush1.msra.mxu0 %v78
  %4132 = vmatprep.subr.mxu0 %v71
  %4133 = vmatpush1.msra.mxu0 %v70
  %4134 = vmatprep.subr.mxu0 %v63
  %4135 = vmatpush1.msra.mxu0 %v62
  %4136 = vmatprep.subr.mxu0 %v55
  %4137 = vmatpush1.msra.mxu0 %v54
  %4138 = vmatprep.subr.mxu0 0.0
  %4139 = vmatpush2.msra.mxu0 0.0
  %4140 = vmatprep.subr.mxu0 0.0
  %4141 = vmatpush2.msra.mxu0 0.0
  %4142 = vmatprep.subr.mxu0 0.0
  %4143 = vmatpush2.msra.mxu0 0.0
  %4144 = vmatprep.subr.mxu0 0.0
  %4145 = vmatpush2.msra.mxu0 0.0
  %4146 = vmatprep.subr.mxu0 0.0
  %4147 = vmatpush2.msra.mxu0 0.0
  %4148 = vmatprep.subr.mxu0 0.0
  %4149 = vmatpush2.msra.mxu0 0.0
  %4150 = vmatprep.subr.mxu0 0.0
  %4151 = vmatpush2.msra.mxu0 0.0
  %4152 = vmatprep.subr.mxu0 0.0
  %4153 = vmatpush2.msra.mxu0 0.0
  %4154 = vmatprep.subr.mxu0 0.0
  %4155 = vmatpush2.msra.mxu0 0.0
  %4156 = vmatprep.subr.mxu0 0.0
  %4157 = vmatpush2.msra.mxu0 0.0
  %4158 = vmatprep.subr.mxu0 0.0
  %4159 = vmatpush2.msra.mxu0 0.0
  %4160 = vmatprep.subr.mxu0 0.0
  %4161 = vmatpush2.msra.mxu0 0.0
  %4162 = vmatprep.subr.mxu0 0.0
  %4163 = vmatpush2.msra.mxu0 0.0
  %4164 = vmatprep.subr.mxu0 0.0
  %4165 = vmatpush2.msra.mxu0 0.0
  %4166 = vmatprep.subr.mxu0 0.0
  %4167 = vmatpush2.msra.mxu0 0.0
  %4168 = vmatprep.subr.mxu0 0.0
  %4169 = vmatpush2.msra.mxu0 0.0
  %4170 = vmatprep.mubr.f32.mxu0 0.0
  %4171 = vmatmul.mubr.f32.gmra.mxu0 %v3917
  %v4172 = vpop.f32.mrf.mxu0
  %v4173 = vadd.f32 %v3886, %v4172
  %v4174 = vpop.f32.mrf.mxu0
  %v4175 = vadd.f32 %v3886, %v4174
  %4176 = vmatprep.mubr.f32.mxu0 0.0
  %4177 = vmatmul.mubr.f32.gmra.mxu0 %v3920
  %v4178 = vpop.f32.mrf.mxu0
  %v4179 = vadd.f32 %v3891, %v4178
  %v4180 = vpop.f32.mrf.mxu0
  %v4181 = vadd.f32 %v3891, %v4180
  %4182 = vmatprep.mubr.f32.mxu0 0.0
  %4183 = vmatmul.mubr.f32.gmra.mxu0 %v3923
  %v4184 = vpop.f32.mrf.mxu0
  %v4185 = vadd.f32 %v3896, %v4184
  %v4186 = vpop.f32.mrf.mxu0
  %v4187 = vadd.f32 %v3896, %v4186
  %4188 = vmatprep.mubr.f32.mxu0 0.0
  %4189 = vmatmul.mubr.f32.gmra.mxu0 %v3926
  %v4190 = vpop.f32.mrf.mxu0
  %v4191 = vadd.f32 %v3901, %v4190
  %v4192 = vpop.f32.mrf.mxu0
  %v4193 = vadd.f32 %v3901, %v4192
  %4194 = vdwg.mxu0
  %4195 = vmatprep.subr.mxu0 0.0
  %4196 = vmatpush1.msra.mxu0 0.0
  %4197 = vmatprep.subr.mxu0 0.0
  %4198 = vmatpush1.msra.mxu0 0.0
  %4199 = vmatprep.subr.mxu0 0.0
  %4200 = vmatpush1.msra.mxu0 0.0
  %4201 = vmatprep.subr.mxu0 0.0
  %4202 = vmatpush1.msra.mxu0 0.0
  %4203 = vmatprep.subr.mxu0 0.0
  %4204 = vmatpush1.msra.mxu0 0.0
  %4205 = vmatprep.subr.mxu0 0.0
  %4206 = vmatpush1.msra.mxu0 0.0
  %4207 = vmatprep.subr.mxu0 0.0
  %4208 = vmatpush1.msra.mxu0 0.0
  %4209 = vmatprep.subr.mxu0 0.0
  %4210 = vmatpush1.msra.mxu0 0.0
  %4211 = vmatprep.subr.mxu0 0.0
  %4212 = vmatpush1.msra.mxu0 0.0
  %4213 = vmatprep.subr.mxu0 0.0
  %4214 = vmatpush1.msra.mxu0 0.0
  %4215 = vmatprep.subr.mxu0 0.0
  %4216 = vmatpush1.msra.mxu0 0.0
  %4217 = vmatprep.subr.mxu0 0.0
  %4218 = vmatpush1.msra.mxu0 0.0
  %4219 = vmatprep.subr.mxu0 %v81
  %4220 = vmatpush1.msra.mxu0 %v80
  %4221 = vmatprep.subr.mxu0 %v73
  %4222 = vmatpush1.msra.mxu0 %v72
  %4223 = vmatprep.subr.mxu0 %v65
  %4224 = vmatpush1.msra.mxu0 %v64
  %4225 = vmatprep.subr.mxu0 %v57
  %4226 = vmatpush1.msra.mxu0 %v56
  %4227 = vmatprep.subr.mxu0 0.0
  %4228 = vmatpush2.msra.mxu0 0.0
  %4229 = vmatprep.subr.mxu0 0.0
  %4230 = vmatpush2.msra.mxu0 0.0
  %4231 = vmatprep.subr.mxu0 0.0
  %4232 = vmatpush2.msra.mxu0 0.0
  %4233 = vmatprep.subr.mxu0 0.0
  %4234 = vmatpush2.msra.mxu0 0.0
  %4235 = vmatprep.subr.mxu0 0.0
  %4236 = vmatpush2.msra.mxu0 0.0
  %4237 = vmatprep.subr.mxu0 0.0
  %4238 = vmatpush2.msra.mxu0 0.0
  %4239 = vmatprep.subr.mxu0 0.0
  %4240 = vmatpush2.msra.mxu0 0.0
  %4241 = vmatprep.subr.mxu0 0.0
  %4242 = vmatpush2.msra.mxu0 0.0
  %4243 = vmatprep.subr.mxu0 0.0
  %4244 = vmatpush2.msra.mxu0 0.0
  %4245 = vmatprep.subr.mxu0 0.0
  %4246 = vmatpush2.msra.mxu0 0.0
  %4247 = vmatprep.subr.mxu0 0.0
  %4248 = vmatpush2.msra.mxu0 0.0
  %4249 = vmatprep.subr.mxu0 0.0
  %4250 = vmatpush2.msra.mxu0 0.0
  %4251 = vmatprep.subr.mxu0 0.0
  %4252 = vmatpush2.msra.mxu0 0.0
  %4253 = vmatprep.subr.mxu0 0.0
  %4254 = vmatpush2.msra.mxu0 0.0
  %4255 = vmatprep.subr.mxu0 0.0
  %4256 = vmatpush2.msra.mxu0 0.0
  %4257 = vmatprep.subr.mxu0 0.0
  %4258 = vmatpush2.msra.mxu0 0.0
  %4259 = vmatprep.mubr.f32.mxu0 0.0
  %4260 = vmatmul.mubr.f32.gmra.mxu0 %v3917
  %v4261 = vpop.f32.mrf.mxu0
  %v4262 = vadd.f32 %v3886, %v4261
  %v4263 = vpop.f32.mrf.mxu0
  %v4264 = vadd.f32 %v3886, %v4263
  %4265 = vmatprep.mubr.f32.mxu0 0.0
  %4266 = vmatmul.mubr.f32.gmra.mxu0 %v3920
  %v4267 = vpop.f32.mrf.mxu0
  %v4268 = vadd.f32 %v3891, %v4267
  %v4269 = vpop.f32.mrf.mxu0
  %v4270 = vadd.f32 %v3891, %v4269
  %4271 = vmatprep.mubr.f32.mxu0 0.0
  %4272 = vmatmul.mubr.f32.gmra.mxu0 %v3923
  %v4273 = vpop.f32.mrf.mxu0
  %v4274 = vadd.f32 %v3896, %v4273
  %v4275 = vpop.f32.mrf.mxu0
  %v4276 = vadd.f32 %v3896, %v4275
  %4277 = vmatprep.mubr.f32.mxu0 0.0
  %4278 = vmatmul.mubr.f32.gmra.mxu0 %v3926
  %v4279 = vpop.f32.mrf.mxu0
  %v4280 = vadd.f32 %v3901, %v4279
  %v4281 = vpop.f32.mrf.mxu0
  %v4282 = vadd.f32 %v3901, %v4281
  %4283 = vdwg.mxu0
  %v4284 = vmul.f32 %v4001, %v4001
  %v4285 = vmul.f32 %v4003, %v4003
  %v4286 = vmul.f32 %v4090, %v4090
  %v4287 = vmul.f32 %v4092, %v4092
  %v4288 = vmul.f32 %v4179, %v4179
  %v4289 = vmul.f32 %v4181, %v4181
  %v4290 = vmul.f32 %v4268, %v4268
  %v4291 = vmul.f32 %v4270, %v4270
  %v4292 = vmul.f32 %v4007, %v4007
  %v4293 = vmul.f32 %v4009, %v4009
  %v4294 = vmul.f32 %v4096, %v4096
  %v4295 = vmul.f32 %v4098, %v4098
  %v4296 = vmul.f32 %v4185, %v4185
  %v4297 = vmul.f32 %v4187, %v4187
  %v4298 = vmul.f32 %v4274, %v4274
  %v4299 = vmul.f32 %v4276, %v4276
  %v4300 = vadd.f32 %v4284, %v4292
  %v4301 = vadd.f32 %v4285, %v4293
  %v4302 = vadd.f32 %v4286, %v4294
  %v4303 = vadd.f32 %v4287, %v4295
  %v4304 = vadd.f32 %v4288, %v4296
  %v4305 = vadd.f32 %v4289, %v4297
  %v4306 = vadd.f32 %v4290, %v4298
  %v4307 = vadd.f32 %v4291, %v4299
  %v4308 = vmul.f32 %v4013, %v4013
  %v4309 = vmul.f32 %v4015, %v4015
  %v4310 = vmul.f32 %v4102, %v4102
  %v4311 = vmul.f32 %v4104, %v4104
  %v4312 = vmul.f32 %v4191, %v4191
  %v4313 = vmul.f32 %v4193, %v4193
  %v4314 = vmul.f32 %v4280, %v4280
  %v4315 = vmul.f32 %v4282, %v4282
  %v4316 = vadd.f32 %v4300, %v4308
  %v4317 = vadd.f32 %v4301, %v4309
  %v4318 = vadd.f32 %v4302, %v4310
  %v4319 = vadd.f32 %v4303, %v4311
  %v4320 = vadd.f32 %v4304, %v4312
  %v4321 = vadd.f32 %v4305, %v4313
  %v4322 = vadd.f32 %v4306, %v4314
  %v4323 = vadd.f32 %v4307, %v4315
  %v4324 = vadd.f32 %v4316, 1e-06
  %v4325 = vadd.f32 %v4317, 1e-06
  %v4326 = vadd.f32 %v4318, 1e-06
  %v4327 = vadd.f32 %v4319, 1e-06
  %v4328 = vadd.f32 %v4320, 1e-06
  %v4329 = vadd.f32 %v4321, 1e-06
  %v4330 = vadd.f32 %v4322, 1e-06
  %v4331 = vadd.f32 %v4323, 1e-06
  %v4332 = vrsqrt.pop %v4324
  %v4333 = vmul.f32 %v4324, %v4332
  %vm4334 = vcmp.eq.f32.partialorder %v4324, inf
  %v4335 = vsel %vm4334, %v4324, %v4333
  %vm4336 = vcmp.eq.f32.partialorder %v4324, 0.0
  %v4337 = vand.u32 %v4324, 2147483648
  %v4338 = vsel %vm4336, %v4337, %v4335
  %v4339 = vrsqrt.pop %v4325
  %v4340 = vmul.f32 %v4325, %v4339
  %vm4341 = vcmp.eq.f32.partialorder %v4325, inf
  %v4342 = vsel %vm4341, %v4325, %v4340
  %vm4343 = vcmp.eq.f32.partialorder %v4325, 0.0
  %v4344 = vand.u32 %v4325, 2147483648
  %v4345 = vsel %vm4343, %v4344, %v4342
  %v4346 = vrsqrt.pop %v4326
  %v4347 = vmul.f32 %v4326, %v4346
  %vm4348 = vcmp.eq.f32.partialorder %v4326, inf
  %v4349 = vsel %vm4348, %v4326, %v4347
  %vm4350 = vcmp.eq.f32.partialorder %v4326, 0.0
  %v4351 = vand.u32 %v4326, 2147483648
  %v4352 = vsel %vm4350, %v4351, %v4349
  %v4353 = vrsqrt.pop %v4327
  %v4354 = vmul.f32 %v4327, %v4353
  %vm4355 = vcmp.eq.f32.partialorder %v4327, inf
  %v4356 = vsel %vm4355, %v4327, %v4354
  %vm4357 = vcmp.eq.f32.partialorder %v4327, 0.0
  %v4358 = vand.u32 %v4327, 2147483648
  %v4359 = vsel %vm4357, %v4358, %v4356
  %v4360 = vrsqrt.pop %v4328
  %v4361 = vmul.f32 %v4328, %v4360
  %vm4362 = vcmp.eq.f32.partialorder %v4328, inf
  %v4363 = vsel %vm4362, %v4328, %v4361
  %vm4364 = vcmp.eq.f32.partialorder %v4328, 0.0
  %v4365 = vand.u32 %v4328, 2147483648
  %v4366 = vsel %vm4364, %v4365, %v4363
  %v4367 = vrsqrt.pop %v4329
  %v4368 = vmul.f32 %v4329, %v4367
  %vm4369 = vcmp.eq.f32.partialorder %v4329, inf
  %v4370 = vsel %vm4369, %v4329, %v4368
  %vm4371 = vcmp.eq.f32.partialorder %v4329, 0.0
  %v4372 = vand.u32 %v4329, 2147483648
  %v4373 = vsel %vm4371, %v4372, %v4370
  %v4374 = vrsqrt.pop %v4330
  %v4375 = vmul.f32 %v4330, %v4374
  %vm4376 = vcmp.eq.f32.partialorder %v4330, inf
  %v4377 = vsel %vm4376, %v4330, %v4375
  %vm4378 = vcmp.eq.f32.partialorder %v4330, 0.0
  %v4379 = vand.u32 %v4330, 2147483648
  %v4380 = vsel %vm4378, %v4379, %v4377
  %v4381 = vrsqrt.pop %v4331
  %v4382 = vmul.f32 %v4331, %v4381
  %vm4383 = vcmp.eq.f32.partialorder %v4331, inf
  %v4384 = vsel %vm4383, %v4331, %v4382
  %vm4385 = vcmp.eq.f32.partialorder %v4331, 0.0
  %v4386 = vand.u32 %v4331, 2147483648
  %v4387 = vsel %vm4385, %v4386, %v4384
  %v4388 = vmul.f32 %v4338, %v3907
  %v4389 = vmul.f32 %v4345, %v3907
  %v4390 = vmul.f32 %v4352, %v3907
  %v4391 = vmul.f32 %v4359, %v3907
  %v4392 = vmul.f32 %v4366, %v3907
  %v4393 = vmul.f32 %v4373, %v3907
  %v4394 = vmul.f32 %v4380, %v3907
  %v4395 = vmul.f32 %v4387, %v3907
  %v4396 = vadd.f32 %v4388, %v3913
  %v4397 = vadd.f32 %v4389, %v3913
  %v4398 = vadd.f32 %v4390, %v3913
  %v4399 = vadd.f32 %v4391, %v3913
  %v4400 = vadd.f32 %v4392, %v3913
  %v4401 = vadd.f32 %v4393, %v3913
  %v4402 = vadd.f32 %v4394, %v3913
  %v4403 = vadd.f32 %v4395, %v3913
  %v4404 = vxor.u32 %v4396, 2147483648
  %v4405 = vxor.u32 %v4397, 2147483648
  %v4406 = vxor.u32 %v4398, 2147483648
  %v4407 = vxor.u32 %v4399, 2147483648
  %v4408 = vxor.u32 %v4400, 2147483648
  %v4409 = vxor.u32 %v4401, 2147483648
  %v4410 = vxor.u32 %v4402, 2147483648
  %v4411 = vxor.u32 %v4403, 2147483648
  %v4412 = vmul.f32 %v4404, 1.442695
  %v4413 = vpow.pop %v4412
  %v4414 = vmul.f32 %v4405, 1.442695
  %v4415 = vpow.pop %v4414
  %v4416 = vmul.f32 %v4406, 1.442695
  %v4417 = vpow.pop %v4416
  %v4418 = vmul.f32 %v4407, 1.442695
  %v4419 = vpow.pop %v4418
  %v4420 = vmul.f32 %v4408, 1.442695
  %v4421 = vpow.pop %v4420
  %v4422 = vmul.f32 %v4409, 1.442695
  %v4423 = vpow.pop %v4422
  %v4424 = vmul.f32 %v4410, 1.442695
  %v4425 = vpow.pop %v4424
  %v4426 = vmul.f32 %v4411, 1.442695
  %v4427 = vpow.pop %v4426
  %v4428 = vadd.f32 %v4413, 1.0
  %v4429 = vadd.f32 %v4415, 1.0
  %v4430 = vadd.f32 %v4417, 1.0
  %v4431 = vadd.f32 %v4419, 1.0
  %v4432 = vadd.f32 %v4421, 1.0
  %v4433 = vadd.f32 %v4423, 1.0
  %v4434 = vadd.f32 %v4425, 1.0
  %v4435 = vadd.f32 %v4427, 1.0
  %v4436 = vrcp.pop %v4428
  %v4437 = vmul.f32 1.0, %v4436
  %v4438 = vrcp.pop %v4429
  %v4439 = vmul.f32 1.0, %v4438
  %v4440 = vrcp.pop %v4430
  %v4441 = vmul.f32 1.0, %v4440
  %v4442 = vrcp.pop %v4431
  %v4443 = vmul.f32 1.0, %v4442
  %v4444 = vrcp.pop %v4432
  %v4445 = vmul.f32 1.0, %v4444
  %v4446 = vrcp.pop %v4433
  %v4447 = vmul.f32 1.0, %v4446
  %v4448 = vrcp.pop %v4434
  %v4449 = vmul.f32 1.0, %v4448
  %v4450 = vrcp.pop %v4435
  %v4451 = vmul.f32 1.0, %v4450
  %v4452 = vmul.f32 %v4396, %v4437
  %v4453 = vmul.f32 %v4397, %v4439
  %v4454 = vmul.f32 %v4398, %v4441
  %v4455 = vmul.f32 %v4399, %v4443
  %v4456 = vmul.f32 %v4400, %v4445
  %v4457 = vmul.f32 %v4401, %v4447
  %v4458 = vmul.f32 %v4402, %v4449
  %v4459 = vmul.f32 %v4403, %v4451
  %v4460 = vxor.u32 %v3995, 2147483648
  %v4461 = vxor.u32 %v3997, 2147483648
  %v4462 = vxor.u32 %v4084, 2147483648
  %v4463 = vxor.u32 %v4086, 2147483648
  %v4464 = vxor.u32 %v4173, 2147483648
  %v4465 = vxor.u32 %v4175, 2147483648
  %v4466 = vxor.u32 %v4262, 2147483648
  %v4467 = vxor.u32 %v4264, 2147483648
  %v4468 = vmul.f32 %v4460, 1.442695
  %v4469 = vpow.pop %v4468
  %v4470 = vmul.f32 %v4461, 1.442695
  %v4471 = vpow.pop %v4470
  %v4472 = vmul.f32 %v4462, 1.442695
  %v4473 = vpow.pop %v4472
  %v4474 = vmul.f32 %v4463, 1.442695
  %v4475 = vpow.pop %v4474
  %v4476 = vmul.f32 %v4464, 1.442695
  %v4477 = vpow.pop %v4476
  %v4478 = vmul.f32 %v4465, 1.442695
  %v4479 = vpow.pop %v4478
  %v4480 = vmul.f32 %v4466, 1.442695
  %v4481 = vpow.pop %v4480
  %v4482 = vmul.f32 %v4467, 1.442695
  %v4483 = vpow.pop %v4482
  %v4484 = vadd.f32 %v4469, 1.0
  %v4485 = vadd.f32 %v4471, 1.0
  %v4486 = vadd.f32 %v4473, 1.0
  %v4487 = vadd.f32 %v4475, 1.0
  %v4488 = vadd.f32 %v4477, 1.0
  %v4489 = vadd.f32 %v4479, 1.0
  %v4490 = vadd.f32 %v4481, 1.0
  %v4491 = vadd.f32 %v4483, 1.0
  %v4492 = vrcp.pop %v4484
  %v4493 = vmul.f32 1.0, %v4492
  %v4494 = vrcp.pop %v4485
  %v4495 = vmul.f32 1.0, %v4494
  %v4496 = vrcp.pop %v4486
  %v4497 = vmul.f32 1.0, %v4496
  %v4498 = vrcp.pop %v4487
  %v4499 = vmul.f32 1.0, %v4498
  %v4500 = vrcp.pop %v4488
  %v4501 = vmul.f32 1.0, %v4500
  %v4502 = vrcp.pop %v4489
  %v4503 = vmul.f32 1.0, %v4502
  %v4504 = vrcp.pop %v4490
  %v4505 = vmul.f32 1.0, %v4504
  %v4506 = vrcp.pop %v4491
  %v4507 = vmul.f32 1.0, %v4506
  %v4508 = vmul.f32 %v3995, %v4493
  %v4509 = vmul.f32 %v3997, %v4495
  %v4510 = vmul.f32 %v4084, %v4497
  %v4511 = vmul.f32 %v4086, %v4499
  %v4512 = vmul.f32 %v4173, %v4501
  %v4513 = vmul.f32 %v4175, %v4503
  %v4514 = vmul.f32 %v4262, %v4505
  %v4515 = vmul.f32 %v4264, %v4507
  %v4516 = vmul.f32 %v4001, %v4452
  %v4517 = vmul.f32 %v4003, %v4453
  %v4518 = vmul.f32 %v4090, %v4454
  %v4519 = vmul.f32 %v4092, %v4455
  %v4520 = vmul.f32 %v4179, %v4456
  %v4521 = vmul.f32 %v4181, %v4457
  %v4522 = vmul.f32 %v4268, %v4458
  %v4523 = vmul.f32 %v4270, %v4459
  %v4524 = vmul.f32 %v4007, %v4452
  %v4525 = vmul.f32 %v4009, %v4453
  %v4526 = vmul.f32 %v4096, %v4454
  %v4527 = vmul.f32 %v4098, %v4455
  %v4528 = vmul.f32 %v4185, %v4456
  %v4529 = vmul.f32 %v4187, %v4457
  %v4530 = vmul.f32 %v4274, %v4458
  %v4531 = vmul.f32 %v4276, %v4459
  %v4532 = vmul.f32 %v4013, %v4452
  %v4533 = vmul.f32 %v4015, %v4453
  %v4534 = vmul.f32 %v4102, %v4454
  %v4535 = vmul.f32 %v4104, %v4455
  %v4536 = vmul.f32 %v4191, %v4456
  %v4537 = vmul.f32 %v4193, %v4457
  %v4538 = vmul.f32 %v4280, %v4458
  %v4539 = vmul.f32 %v4282, %v4459
  %4540 = vmatprep.subr.mxu0 0.0
  %4541 = vmatpush1.msra.mxu0 0.0
  %4542 = vmatprep.subr.mxu0 0.0
  %4543 = vmatpush1.msra.mxu0 0.0
  %4544 = vmatprep.subr.mxu0 0.0
  %4545 = vmatpush1.msra.mxu0 0.0
  %4546 = vmatprep.subr.mxu0 0.0
  %4547 = vmatpush1.msra.mxu0 0.0
  %4548 = vmatprep.subr.mxu0 0.0
  %4549 = vmatpush1.msra.mxu0 0.0
  %4550 = vmatprep.subr.mxu0 0.0
  %4551 = vmatpush1.msra.mxu0 0.0
  %4552 = vmatprep.subr.mxu0 0.0
  %4553 = vmatpush1.msra.mxu0 0.0
  %4554 = vmatprep.subr.mxu0 0.0
  %4555 = vmatpush1.msra.mxu0 0.0
  %4556 = vmatprep.subr.mxu0 0.0
  %4557 = vmatpush1.msra.mxu0 0.0
  %4558 = vmatprep.subr.mxu0 0.0
  %4559 = vmatpush1.msra.mxu0 0.0
  %4560 = vmatprep.subr.mxu0 0.0
  %4561 = vmatpush1.msra.mxu0 0.0
  %4562 = vmatprep.subr.mxu0 0.0
  %4563 = vmatpush1.msra.mxu0 0.0
  %4564 = vmatprep.subr.mxu0 %v107
  %4565 = vmatpush1.msra.mxu0 %v106
  %4566 = vmatprep.subr.mxu0 %v99
  %4567 = vmatpush1.msra.mxu0 %v98
  %4568 = vmatprep.subr.mxu0 %v91
  %4569 = vmatpush1.msra.mxu0 %v90
  %4570 = vmatprep.subr.mxu0 %v83
  %4571 = vmatpush1.msra.mxu0 %v82
  %4572 = vmatprep.subr.mxu0 0.0
  %4573 = vmatpush2.msra.mxu0 0.0
  %4574 = vmatprep.subr.mxu0 0.0
  %4575 = vmatpush2.msra.mxu0 0.0
  %4576 = vmatprep.subr.mxu0 0.0
  %4577 = vmatpush2.msra.mxu0 0.0
  %4578 = vmatprep.subr.mxu0 0.0
  %4579 = vmatpush2.msra.mxu0 0.0
  %4580 = vmatprep.subr.mxu0 0.0
  %4581 = vmatpush2.msra.mxu0 0.0
  %4582 = vmatprep.subr.mxu0 0.0
  %4583 = vmatpush2.msra.mxu0 0.0
  %4584 = vmatprep.subr.mxu0 0.0
  %4585 = vmatpush2.msra.mxu0 0.0
  %4586 = vmatprep.subr.mxu0 0.0
  %4587 = vmatpush2.msra.mxu0 0.0
  %4588 = vmatprep.subr.mxu0 0.0
  %4589 = vmatpush2.msra.mxu0 0.0
  %4590 = vmatprep.subr.mxu0 0.0
  %4591 = vmatpush2.msra.mxu0 0.0
  %4592 = vmatprep.subr.mxu0 0.0
  %4593 = vmatpush2.msra.mxu0 0.0
  %4594 = vmatprep.subr.mxu0 0.0
  %4595 = vmatpush2.msra.mxu0 0.0
  %4596 = vmatprep.subr.mxu0 0.0
  %4597 = vmatpush2.msra.mxu0 0.0
  %4598 = vmatprep.subr.mxu0 0.0
  %4599 = vmatpush2.msra.mxu0 0.0
  %4600 = vmatprep.subr.mxu0 0.0
  %4601 = vmatpush2.msra.mxu0 0.0
  %4602 = vmatprep.subr.mxu0 0.0
  %4603 = vmatpush2.msra.mxu0 0.0
  %4604 = vmatprep.mubr.f32.mxu0 0.0
  %4605 = vmatmul.mubr.f32.gmra.mxu0 %v3917
  %v4606 = vpop.f32.mrf.mxu0
  %v4607 = vadd.f32 %v3886, %v4606
  %v4608 = vpop.f32.mrf.mxu0
  %v4609 = vadd.f32 %v3886, %v4608
  %4610 = vmatprep.mubr.f32.mxu0 0.0
  %4611 = vmatmul.mubr.f32.gmra.mxu0 %v3920
  %v4612 = vpop.f32.mrf.mxu0
  %v4613 = vadd.f32 %v3891, %v4612
  %v4614 = vpop.f32.mrf.mxu0
  %v4615 = vadd.f32 %v3891, %v4614
  %4616 = vmatprep.mubr.f32.mxu0 0.0
  %4617 = vmatmul.mubr.f32.gmra.mxu0 %v3923
  %v4618 = vpop.f32.mrf.mxu0
  %v4619 = vadd.f32 %v3896, %v4618
  %v4620 = vpop.f32.mrf.mxu0
  %v4621 = vadd.f32 %v3896, %v4620
  %4622 = vmatprep.mubr.f32.mxu0 0.0
  %4623 = vmatmul.mubr.f32.gmra.mxu0 %v3926
  %v4624 = vpop.f32.mrf.mxu0
  %v4625 = vadd.f32 %v3901, %v4624
  %v4626 = vpop.f32.mrf.mxu0
  %v4627 = vadd.f32 %v3901, %v4626
  %4628 = vdwg.mxu0
  %4629 = vmatprep.subr.mxu0 0.0
  %4630 = vmatpush1.msra.mxu0 0.0
  %4631 = vmatprep.subr.mxu0 0.0
  %4632 = vmatpush1.msra.mxu0 0.0
  %4633 = vmatprep.subr.mxu0 0.0
  %4634 = vmatpush1.msra.mxu0 0.0
  %4635 = vmatprep.subr.mxu0 0.0
  %4636 = vmatpush1.msra.mxu0 0.0
  %4637 = vmatprep.subr.mxu0 0.0
  %4638 = vmatpush1.msra.mxu0 0.0
  %4639 = vmatprep.subr.mxu0 0.0
  %4640 = vmatpush1.msra.mxu0 0.0
  %4641 = vmatprep.subr.mxu0 0.0
  %4642 = vmatpush1.msra.mxu0 0.0
  %4643 = vmatprep.subr.mxu0 0.0
  %4644 = vmatpush1.msra.mxu0 0.0
  %4645 = vmatprep.subr.mxu0 0.0
  %4646 = vmatpush1.msra.mxu0 0.0
  %4647 = vmatprep.subr.mxu0 0.0
  %4648 = vmatpush1.msra.mxu0 0.0
  %4649 = vmatprep.subr.mxu0 0.0
  %4650 = vmatpush1.msra.mxu0 0.0
  %4651 = vmatprep.subr.mxu0 0.0
  %4652 = vmatpush1.msra.mxu0 0.0
  %4653 = vmatprep.subr.mxu0 %v109
  %4654 = vmatpush1.msra.mxu0 %v108
  %4655 = vmatprep.subr.mxu0 %v101
  %4656 = vmatpush1.msra.mxu0 %v100
  %4657 = vmatprep.subr.mxu0 %v93
  %4658 = vmatpush1.msra.mxu0 %v92
  %4659 = vmatprep.subr.mxu0 %v85
  %4660 = vmatpush1.msra.mxu0 %v84
  %4661 = vmatprep.subr.mxu0 0.0
  %4662 = vmatpush2.msra.mxu0 0.0
  %4663 = vmatprep.subr.mxu0 0.0
  %4664 = vmatpush2.msra.mxu0 0.0
  %4665 = vmatprep.subr.mxu0 0.0
  %4666 = vmatpush2.msra.mxu0 0.0
  %4667 = vmatprep.subr.mxu0 0.0
  %4668 = vmatpush2.msra.mxu0 0.0
  %4669 = vmatprep.subr.mxu0 0.0
  %4670 = vmatpush2.msra.mxu0 0.0
  %4671 = vmatprep.subr.mxu0 0.0
  %4672 = vmatpush2.msra.mxu0 0.0
  %4673 = vmatprep.subr.mxu0 0.0
  %4674 = vmatpush2.msra.mxu0 0.0
  %4675 = vmatprep.subr.mxu0 0.0
  %4676 = vmatpush2.msra.mxu0 0.0
  %4677 = vmatprep.subr.mxu0 0.0
  %4678 = vmatpush2.msra.mxu0 0.0
  %4679 = vmatprep.subr.mxu0 0.0
  %4680 = vmatpush2.msra.mxu0 0.0
  %4681 = vmatprep.subr.mxu0 0.0
  %4682 = vmatpush2.msra.mxu0 0.0
  %4683 = vmatprep.subr.mxu0 0.0
  %4684 = vmatpush2.msra.mxu0 0.0
  %4685 = vmatprep.subr.mxu0 0.0
  %4686 = vmatpush2.msra.mxu0 0.0
  %4687 = vmatprep.subr.mxu0 0.0
  %4688 = vmatpush2.msra.mxu0 0.0
  %4689 = vmatprep.subr.mxu0 0.0
  %4690 = vmatpush2.msra.mxu0 0.0
  %4691 = vmatprep.subr.mxu0 0.0
  %4692 = vmatpush2.msra.mxu0 0.0
  %4693 = vmatprep.mubr.f32.mxu0 0.0
  %4694 = vmatmul.mubr.f32.gmra.mxu0 %v3917
  %v4695 = vpop.f32.mrf.mxu0
  %v4696 = vadd.f32 %v3886, %v4695
  %v4697 = vpop.f32.mrf.mxu0
  %v4698 = vadd.f32 %v3886, %v4697
  %4699 = vmatprep.mubr.f32.mxu0 0.0
  %4700 = vmatmul.mubr.f32.gmra.mxu0 %v3920
  %v4701 = vpop.f32.mrf.mxu0
  %v4702 = vadd.f32 %v3891, %v4701
  %v4703 = vpop.f32.mrf.mxu0
  %v4704 = vadd.f32 %v3891, %v4703
  %4705 = vmatprep.mubr.f32.mxu0 0.0
  %4706 = vmatmul.mubr.f32.gmra.mxu0 %v3923
  %v4707 = vpop.f32.mrf.mxu0
  %v4708 = vadd.f32 %v3896, %v4707
  %v4709 = vpop.f32.mrf.mxu0
  %v4710 = vadd.f32 %v3896, %v4709
  %4711 = vmatprep.mubr.f32.mxu0 0.0
  %4712 = vmatmul.mubr.f32.gmra.mxu0 %v3926
  %v4713 = vpop.f32.mrf.mxu0
  %v4714 = vadd.f32 %v3901, %v4713
  %v4715 = vpop.f32.mrf.mxu0
  %v4716 = vadd.f32 %v3901, %v4715
  %4717 = vdwg.mxu0
  %4718 = vmatprep.subr.mxu0 0.0
  %4719 = vmatpush1.msra.mxu0 0.0
  %4720 = vmatprep.subr.mxu0 0.0
  %4721 = vmatpush1.msra.mxu0 0.0
  %4722 = vmatprep.subr.mxu0 0.0
  %4723 = vmatpush1.msra.mxu0 0.0
  %4724 = vmatprep.subr.mxu0 0.0
  %4725 = vmatpush1.msra.mxu0 0.0
  %4726 = vmatprep.subr.mxu0 0.0
  %4727 = vmatpush1.msra.mxu0 0.0
  %4728 = vmatprep.subr.mxu0 0.0
  %4729 = vmatpush1.msra.mxu0 0.0
  %4730 = vmatprep.subr.mxu0 0.0
  %4731 = vmatpush1.msra.mxu0 0.0
  %4732 = vmatprep.subr.mxu0 0.0
  %4733 = vmatpush1.msra.mxu0 0.0
  %4734 = vmatprep.subr.mxu0 0.0
  %4735 = vmatpush1.msra.mxu0 0.0
  %4736 = vmatprep.subr.mxu0 0.0
  %4737 = vmatpush1.msra.mxu0 0.0
  %4738 = vmatprep.subr.mxu0 0.0
  %4739 = vmatpush1.msra.mxu0 0.0
  %4740 = vmatprep.subr.mxu0 0.0
  %4741 = vmatpush1.msra.mxu0 0.0
  %4742 = vmatprep.subr.mxu0 %v111
  %4743 = vmatpush1.msra.mxu0 %v110
  %4744 = vmatprep.subr.mxu0 %v103
  %4745 = vmatpush1.msra.mxu0 %v102
  %4746 = vmatprep.subr.mxu0 %v95
  %4747 = vmatpush1.msra.mxu0 %v94
  %4748 = vmatprep.subr.mxu0 %v87
  %4749 = vmatpush1.msra.mxu0 %v86
  %4750 = vmatprep.subr.mxu0 0.0
  %4751 = vmatpush2.msra.mxu0 0.0
  %4752 = vmatprep.subr.mxu0 0.0
  %4753 = vmatpush2.msra.mxu0 0.0
  %4754 = vmatprep.subr.mxu0 0.0
  %4755 = vmatpush2.msra.mxu0 0.0
  %4756 = vmatprep.subr.mxu0 0.0
  %4757 = vmatpush2.msra.mxu0 0.0
  %4758 = vmatprep.subr.mxu0 0.0
  %4759 = vmatpush2.msra.mxu0 0.0
  %4760 = vmatprep.subr.mxu0 0.0
  %4761 = vmatpush2.msra.mxu0 0.0
  %4762 = vmatprep.subr.mxu0 0.0
  %4763 = vmatpush2.msra.mxu0 0.0
  %4764 = vmatprep.subr.mxu0 0.0
  %4765 = vmatpush2.msra.mxu0 0.0
  %4766 = vmatprep.subr.mxu0 0.0
  %4767 = vmatpush2.msra.mxu0 0.0
  %4768 = vmatprep.subr.mxu0 0.0
  %4769 = vmatpush2.msra.mxu0 0.0
  %4770 = vmatprep.subr.mxu0 0.0
  %4771 = vmatpush2.msra.mxu0 0.0
  %4772 = vmatprep.subr.mxu0 0.0
  %4773 = vmatpush2.msra.mxu0 0.0
  %4774 = vmatprep.subr.mxu0 0.0
  %4775 = vmatpush2.msra.mxu0 0.0
  %4776 = vmatprep.subr.mxu0 0.0
  %4777 = vmatpush2.msra.mxu0 0.0
  %4778 = vmatprep.subr.mxu0 0.0
  %4779 = vmatpush2.msra.mxu0 0.0
  %4780 = vmatprep.subr.mxu0 0.0
  %4781 = vmatpush2.msra.mxu0 0.0
  %4782 = vmatprep.mubr.f32.mxu0 0.0
  %4783 = vmatmul.mubr.f32.gmra.mxu0 %v3917
  %v4784 = vpop.f32.mrf.mxu0
  %v4785 = vadd.f32 %v3886, %v4784
  %v4786 = vpop.f32.mrf.mxu0
  %v4787 = vadd.f32 %v3886, %v4786
  %4788 = vmatprep.mubr.f32.mxu0 0.0
  %4789 = vmatmul.mubr.f32.gmra.mxu0 %v3920
  %v4790 = vpop.f32.mrf.mxu0
  %v4791 = vadd.f32 %v3891, %v4790
  %v4792 = vpop.f32.mrf.mxu0
  %v4793 = vadd.f32 %v3891, %v4792
  %4794 = vmatprep.mubr.f32.mxu0 0.0
  %4795 = vmatmul.mubr.f32.gmra.mxu0 %v3923
  %v4796 = vpop.f32.mrf.mxu0
  %v4797 = vadd.f32 %v3896, %v4796
  %v4798 = vpop.f32.mrf.mxu0
  %v4799 = vadd.f32 %v3896, %v4798
  %4800 = vmatprep.mubr.f32.mxu0 0.0
  %4801 = vmatmul.mubr.f32.gmra.mxu0 %v3926
  %v4802 = vpop.f32.mrf.mxu0
  %v4803 = vadd.f32 %v3901, %v4802
  %v4804 = vpop.f32.mrf.mxu0
  %v4805 = vadd.f32 %v3901, %v4804
  %4806 = vdwg.mxu0
  %4807 = vmatprep.subr.mxu0 0.0
  %4808 = vmatpush1.msra.mxu0 0.0
  %4809 = vmatprep.subr.mxu0 0.0
  %4810 = vmatpush1.msra.mxu0 0.0
  %4811 = vmatprep.subr.mxu0 0.0
  %4812 = vmatpush1.msra.mxu0 0.0
  %4813 = vmatprep.subr.mxu0 0.0
  %4814 = vmatpush1.msra.mxu0 0.0
  %4815 = vmatprep.subr.mxu0 0.0
  %4816 = vmatpush1.msra.mxu0 0.0
  %4817 = vmatprep.subr.mxu0 0.0
  %4818 = vmatpush1.msra.mxu0 0.0
  %4819 = vmatprep.subr.mxu0 0.0
  %4820 = vmatpush1.msra.mxu0 0.0
  %4821 = vmatprep.subr.mxu0 0.0
  %4822 = vmatpush1.msra.mxu0 0.0
  %4823 = vmatprep.subr.mxu0 0.0
  %4824 = vmatpush1.msra.mxu0 0.0
  %4825 = vmatprep.subr.mxu0 0.0
  %4826 = vmatpush1.msra.mxu0 0.0
  %4827 = vmatprep.subr.mxu0 0.0
  %4828 = vmatpush1.msra.mxu0 0.0
  %4829 = vmatprep.subr.mxu0 0.0
  %4830 = vmatpush1.msra.mxu0 0.0
  %4831 = vmatprep.subr.mxu0 %v113
  %4832 = vmatpush1.msra.mxu0 %v112
  %4833 = vmatprep.subr.mxu0 %v105
  %4834 = vmatpush1.msra.mxu0 %v104
  %4835 = vmatprep.subr.mxu0 %v97
  %4836 = vmatpush1.msra.mxu0 %v96
  %4837 = vmatprep.subr.mxu0 %v89
  %4838 = vmatpush1.msra.mxu0 %v88
  %4839 = vmatprep.subr.mxu0 0.0
  %4840 = vmatpush2.msra.mxu0 0.0
  %4841 = vmatprep.subr.mxu0 0.0
  %4842 = vmatpush2.msra.mxu0 0.0
  %4843 = vmatprep.subr.mxu0 0.0
  %4844 = vmatpush2.msra.mxu0 0.0
  %4845 = vmatprep.subr.mxu0 0.0
  %4846 = vmatpush2.msra.mxu0 0.0
  %4847 = vmatprep.subr.mxu0 0.0
  %4848 = vmatpush2.msra.mxu0 0.0
  %4849 = vmatprep.subr.mxu0 0.0
  %4850 = vmatpush2.msra.mxu0 0.0
  %4851 = vmatprep.subr.mxu0 0.0
  %4852 = vmatpush2.msra.mxu0 0.0
  %4853 = vmatprep.subr.mxu0 0.0
  %4854 = vmatpush2.msra.mxu0 0.0
  %4855 = vmatprep.subr.mxu0 0.0
  %4856 = vmatpush2.msra.mxu0 0.0
  %4857 = vmatprep.subr.mxu0 0.0
  %4858 = vmatpush2.msra.mxu0 0.0
  %4859 = vmatprep.subr.mxu0 0.0
  %4860 = vmatpush2.msra.mxu0 0.0
  %4861 = vmatprep.subr.mxu0 0.0
  %4862 = vmatpush2.msra.mxu0 0.0
  %4863 = vmatprep.subr.mxu0 0.0
  %4864 = vmatpush2.msra.mxu0 0.0
  %4865 = vmatprep.subr.mxu0 0.0
  %4866 = vmatpush2.msra.mxu0 0.0
  %4867 = vmatprep.subr.mxu0 0.0
  %4868 = vmatpush2.msra.mxu0 0.0
  %4869 = vmatprep.subr.mxu0 0.0
  %4870 = vmatpush2.msra.mxu0 0.0
  %4871 = vmatprep.mubr.f32.mxu0 0.0
  %4872 = vmatmul.mubr.f32.gmra.mxu0 %v3917
  %v4873 = vpop.f32.mrf.mxu0
  %v4874 = vadd.f32 %v3886, %v4873
  %v4875 = vpop.f32.mrf.mxu0
  %v4876 = vadd.f32 %v3886, %v4875
  %4877 = vmatprep.mubr.f32.mxu0 0.0
  %4878 = vmatmul.mubr.f32.gmra.mxu0 %v3920
  %v4879 = vpop.f32.mrf.mxu0
  %v4880 = vadd.f32 %v3891, %v4879
  %v4881 = vpop.f32.mrf.mxu0
  %v4882 = vadd.f32 %v3891, %v4881
  %4883 = vmatprep.mubr.f32.mxu0 0.0
  %4884 = vmatmul.mubr.f32.gmra.mxu0 %v3923
  %v4885 = vpop.f32.mrf.mxu0
  %v4886 = vadd.f32 %v3896, %v4885
  %v4887 = vpop.f32.mrf.mxu0
  %v4888 = vadd.f32 %v3896, %v4887
  %4889 = vmatprep.mubr.f32.mxu0 0.0
  %4890 = vmatmul.mubr.f32.gmra.mxu0 %v3926
  %v4891 = vpop.f32.mrf.mxu0
  %v4892 = vadd.f32 %v3901, %v4891
  %v4893 = vpop.f32.mrf.mxu0
  %v4894 = vadd.f32 %v3901, %v4893
  %4895 = vdwg.mxu0
  %v4896 = vmul.f32 %v4613, %v4613
  %v4897 = vmul.f32 %v4615, %v4615
  %v4898 = vmul.f32 %v4702, %v4702
  %v4899 = vmul.f32 %v4704, %v4704
  %v4900 = vmul.f32 %v4791, %v4791
  %v4901 = vmul.f32 %v4793, %v4793
  %v4902 = vmul.f32 %v4880, %v4880
  %v4903 = vmul.f32 %v4882, %v4882
  %v4904 = vmul.f32 %v4619, %v4619
  %v4905 = vmul.f32 %v4621, %v4621
  %v4906 = vmul.f32 %v4708, %v4708
  %v4907 = vmul.f32 %v4710, %v4710
  %v4908 = vmul.f32 %v4797, %v4797
  %v4909 = vmul.f32 %v4799, %v4799
  %v4910 = vmul.f32 %v4886, %v4886
  %v4911 = vmul.f32 %v4888, %v4888
  %v4912 = vadd.f32 %v4896, %v4904
  %v4913 = vadd.f32 %v4897, %v4905
  %v4914 = vadd.f32 %v4898, %v4906
  %v4915 = vadd.f32 %v4899, %v4907
  %v4916 = vadd.f32 %v4900, %v4908
  %v4917 = vadd.f32 %v4901, %v4909
  %v4918 = vadd.f32 %v4902, %v4910
  %v4919 = vadd.f32 %v4903, %v4911
  %v4920 = vmul.f32 %v4625, %v4625
  %v4921 = vmul.f32 %v4627, %v4627
  %v4922 = vmul.f32 %v4714, %v4714
  %v4923 = vmul.f32 %v4716, %v4716
  %v4924 = vmul.f32 %v4803, %v4803
  %v4925 = vmul.f32 %v4805, %v4805
  %v4926 = vmul.f32 %v4892, %v4892
  %v4927 = vmul.f32 %v4894, %v4894
  %v4928 = vadd.f32 %v4912, %v4920
  %v4929 = vadd.f32 %v4913, %v4921
  %v4930 = vadd.f32 %v4914, %v4922
  %v4931 = vadd.f32 %v4915, %v4923
  %v4932 = vadd.f32 %v4916, %v4924
  %v4933 = vadd.f32 %v4917, %v4925
  %v4934 = vadd.f32 %v4918, %v4926
  %v4935 = vadd.f32 %v4919, %v4927
  %v4936 = vadd.f32 %v4928, 1e-06
  %v4937 = vadd.f32 %v4929, 1e-06
  %v4938 = vadd.f32 %v4930, 1e-06
  %v4939 = vadd.f32 %v4931, 1e-06
  %v4940 = vadd.f32 %v4932, 1e-06
  %v4941 = vadd.f32 %v4933, 1e-06
  %v4942 = vadd.f32 %v4934, 1e-06
  %v4943 = vadd.f32 %v4935, 1e-06
  %v4944 = vrsqrt.pop %v4936
  %v4945 = vmul.f32 %v4936, %v4944
  %vm4946 = vcmp.eq.f32.partialorder %v4936, inf
  %v4947 = vsel %vm4946, %v4936, %v4945
  %vm4948 = vcmp.eq.f32.partialorder %v4936, 0.0
  %v4949 = vand.u32 %v4936, 2147483648
  %v4950 = vsel %vm4948, %v4949, %v4947
  %v4951 = vrsqrt.pop %v4937
  %v4952 = vmul.f32 %v4937, %v4951
  %vm4953 = vcmp.eq.f32.partialorder %v4937, inf
  %v4954 = vsel %vm4953, %v4937, %v4952
  %vm4955 = vcmp.eq.f32.partialorder %v4937, 0.0
  %v4956 = vand.u32 %v4937, 2147483648
  %v4957 = vsel %vm4955, %v4956, %v4954
  %v4958 = vrsqrt.pop %v4938
  %v4959 = vmul.f32 %v4938, %v4958
  %vm4960 = vcmp.eq.f32.partialorder %v4938, inf
  %v4961 = vsel %vm4960, %v4938, %v4959
  %vm4962 = vcmp.eq.f32.partialorder %v4938, 0.0
  %v4963 = vand.u32 %v4938, 2147483648
  %v4964 = vsel %vm4962, %v4963, %v4961
  %v4965 = vrsqrt.pop %v4939
  %v4966 = vmul.f32 %v4939, %v4965
  %vm4967 = vcmp.eq.f32.partialorder %v4939, inf
  %v4968 = vsel %vm4967, %v4939, %v4966
  %vm4969 = vcmp.eq.f32.partialorder %v4939, 0.0
  %v4970 = vand.u32 %v4939, 2147483648
  %v4971 = vsel %vm4969, %v4970, %v4968
  %v4972 = vrsqrt.pop %v4940
  %v4973 = vmul.f32 %v4940, %v4972
  %vm4974 = vcmp.eq.f32.partialorder %v4940, inf
  %v4975 = vsel %vm4974, %v4940, %v4973
  %vm4976 = vcmp.eq.f32.partialorder %v4940, 0.0
  %v4977 = vand.u32 %v4940, 2147483648
  %v4978 = vsel %vm4976, %v4977, %v4975
  %v4979 = vrsqrt.pop %v4941
  %v4980 = vmul.f32 %v4941, %v4979
  %vm4981 = vcmp.eq.f32.partialorder %v4941, inf
  %v4982 = vsel %vm4981, %v4941, %v4980
  %vm4983 = vcmp.eq.f32.partialorder %v4941, 0.0
  %v4984 = vand.u32 %v4941, 2147483648
  %v4985 = vsel %vm4983, %v4984, %v4982
  %v4986 = vrsqrt.pop %v4942
  %v4987 = vmul.f32 %v4942, %v4986
  %vm4988 = vcmp.eq.f32.partialorder %v4942, inf
  %v4989 = vsel %vm4988, %v4942, %v4987
  %vm4990 = vcmp.eq.f32.partialorder %v4942, 0.0
  %v4991 = vand.u32 %v4942, 2147483648
  %v4992 = vsel %vm4990, %v4991, %v4989
  %v4993 = vrsqrt.pop %v4943
  %v4994 = vmul.f32 %v4943, %v4993
  %vm4995 = vcmp.eq.f32.partialorder %v4943, inf
  %v4996 = vsel %vm4995, %v4943, %v4994
  %vm4997 = vcmp.eq.f32.partialorder %v4943, 0.0
  %v4998 = vand.u32 %v4943, 2147483648
  %v4999 = vsel %vm4997, %v4998, %v4996
  %v5000 = vmul.f32 %v4950, %v3907
  %v5001 = vmul.f32 %v4957, %v3907
  %v5002 = vmul.f32 %v4964, %v3907
  %v5003 = vmul.f32 %v4971, %v3907
  %v5004 = vmul.f32 %v4978, %v3907
  %v5005 = vmul.f32 %v4985, %v3907
  %v5006 = vmul.f32 %v4992, %v3907
  %v5007 = vmul.f32 %v4999, %v3907
  %v5008 = vadd.f32 %v5000, %v3913
  %v5009 = vadd.f32 %v5001, %v3913
  %v5010 = vadd.f32 %v5002, %v3913
  %v5011 = vadd.f32 %v5003, %v3913
  %v5012 = vadd.f32 %v5004, %v3913
  %v5013 = vadd.f32 %v5005, %v3913
  %v5014 = vadd.f32 %v5006, %v3913
  %v5015 = vadd.f32 %v5007, %v3913
  %v5016 = vxor.u32 %v5008, 2147483648
  %v5017 = vxor.u32 %v5009, 2147483648
  %v5018 = vxor.u32 %v5010, 2147483648
  %v5019 = vxor.u32 %v5011, 2147483648
  %v5020 = vxor.u32 %v5012, 2147483648
  %v5021 = vxor.u32 %v5013, 2147483648
  %v5022 = vxor.u32 %v5014, 2147483648
  %v5023 = vxor.u32 %v5015, 2147483648
  %v5024 = vmul.f32 %v5016, 1.442695
  %v5025 = vpow.pop %v5024
  %v5026 = vmul.f32 %v5017, 1.442695
  %v5027 = vpow.pop %v5026
  %v5028 = vmul.f32 %v5018, 1.442695
  %v5029 = vpow.pop %v5028
  %v5030 = vmul.f32 %v5019, 1.442695
  %v5031 = vpow.pop %v5030
  %v5032 = vmul.f32 %v5020, 1.442695
  %v5033 = vpow.pop %v5032
  %v5034 = vmul.f32 %v5021, 1.442695
  %v5035 = vpow.pop %v5034
  %v5036 = vmul.f32 %v5022, 1.442695
  %v5037 = vpow.pop %v5036
  %v5038 = vmul.f32 %v5023, 1.442695
  %v5039 = vpow.pop %v5038
  %v5040 = vadd.f32 %v5025, 1.0
  %v5041 = vadd.f32 %v5027, 1.0
  %v5042 = vadd.f32 %v5029, 1.0
  %v5043 = vadd.f32 %v5031, 1.0
  %v5044 = vadd.f32 %v5033, 1.0
  %v5045 = vadd.f32 %v5035, 1.0
  %v5046 = vadd.f32 %v5037, 1.0
  %v5047 = vadd.f32 %v5039, 1.0
  %v5048 = vrcp.pop %v5040
  %v5049 = vmul.f32 1.0, %v5048
  %v5050 = vrcp.pop %v5041
  %v5051 = vmul.f32 1.0, %v5050
  %v5052 = vrcp.pop %v5042
  %v5053 = vmul.f32 1.0, %v5052
  %v5054 = vrcp.pop %v5043
  %v5055 = vmul.f32 1.0, %v5054
  %v5056 = vrcp.pop %v5044
  %v5057 = vmul.f32 1.0, %v5056
  %v5058 = vrcp.pop %v5045
  %v5059 = vmul.f32 1.0, %v5058
  %v5060 = vrcp.pop %v5046
  %v5061 = vmul.f32 1.0, %v5060
  %v5062 = vrcp.pop %v5047
  %v5063 = vmul.f32 1.0, %v5062
  %v5064 = vmul.f32 %v5008, %v5049
  %v5065 = vmul.f32 %v5009, %v5051
  %v5066 = vmul.f32 %v5010, %v5053
  %v5067 = vmul.f32 %v5011, %v5055
  %v5068 = vmul.f32 %v5012, %v5057
  %v5069 = vmul.f32 %v5013, %v5059
  %v5070 = vmul.f32 %v5014, %v5061
  %v5071 = vmul.f32 %v5015, %v5063
  %v5072 = vxor.u32 %v4607, 2147483648
  %v5073 = vxor.u32 %v4609, 2147483648
  %v5074 = vxor.u32 %v4696, 2147483648
  %v5075 = vxor.u32 %v4698, 2147483648
  %v5076 = vxor.u32 %v4785, 2147483648
  %v5077 = vxor.u32 %v4787, 2147483648
  %v5078 = vxor.u32 %v4874, 2147483648
  %v5079 = vxor.u32 %v4876, 2147483648
  %v5080 = vmul.f32 %v5072, 1.442695
  %v5081 = vpow.pop %v5080
  %v5082 = vmul.f32 %v5073, 1.442695
  %v5083 = vpow.pop %v5082
  %v5084 = vmul.f32 %v5074, 1.442695
  %v5085 = vpow.pop %v5084
  %v5086 = vmul.f32 %v5075, 1.442695
  %v5087 = vpow.pop %v5086
  %v5088 = vmul.f32 %v5076, 1.442695
  %v5089 = vpow.pop %v5088
  %v5090 = vmul.f32 %v5077, 1.442695
  %v5091 = vpow.pop %v5090
  %v5092 = vmul.f32 %v5078, 1.442695
  %v5093 = vpow.pop %v5092
  %v5094 = vmul.f32 %v5079, 1.442695
  %v5095 = vpow.pop %v5094
  %v5096 = vadd.f32 %v5081, 1.0
  %v5097 = vadd.f32 %v5083, 1.0
  %v5098 = vadd.f32 %v5085, 1.0
  %v5099 = vadd.f32 %v5087, 1.0
  %v5100 = vadd.f32 %v5089, 1.0
  %v5101 = vadd.f32 %v5091, 1.0
  %v5102 = vadd.f32 %v5093, 1.0
  %v5103 = vadd.f32 %v5095, 1.0
  %v5104 = vrcp.pop %v5096
  %v5105 = vmul.f32 1.0, %v5104
  %v5106 = vrcp.pop %v5097
  %v5107 = vmul.f32 1.0, %v5106
  %v5108 = vrcp.pop %v5098
  %v5109 = vmul.f32 1.0, %v5108
  %v5110 = vrcp.pop %v5099
  %v5111 = vmul.f32 1.0, %v5110
  %v5112 = vrcp.pop %v5100
  %v5113 = vmul.f32 1.0, %v5112
  %v5114 = vrcp.pop %v5101
  %v5115 = vmul.f32 1.0, %v5114
  %v5116 = vrcp.pop %v5102
  %v5117 = vmul.f32 1.0, %v5116
  %v5118 = vrcp.pop %v5103
  %v5119 = vmul.f32 1.0, %v5118
  %v5120 = vmul.f32 %v4607, %v5105
  %v5121 = vmul.f32 %v4609, %v5107
  %v5122 = vmul.f32 %v4696, %v5109
  %v5123 = vmul.f32 %v4698, %v5111
  %v5124 = vmul.f32 %v4785, %v5113
  %v5125 = vmul.f32 %v4787, %v5115
  %v5126 = vmul.f32 %v4874, %v5117
  %v5127 = vmul.f32 %v4876, %v5119
  %v5128 = vmul.f32 %v4613, %v5064
  %v5129 = vmul.f32 %v4615, %v5065
  %v5130 = vmul.f32 %v4702, %v5066
  %v5131 = vmul.f32 %v4704, %v5067
  %v5132 = vmul.f32 %v4791, %v5068
  %v5133 = vmul.f32 %v4793, %v5069
  %v5134 = vmul.f32 %v4880, %v5070
  %v5135 = vmul.f32 %v4882, %v5071
  %v5136 = vmul.f32 %v4619, %v5064
  %v5137 = vmul.f32 %v4621, %v5065
  %v5138 = vmul.f32 %v4708, %v5066
  %v5139 = vmul.f32 %v4710, %v5067
  %v5140 = vmul.f32 %v4797, %v5068
  %v5141 = vmul.f32 %v4799, %v5069
  %v5142 = vmul.f32 %v4886, %v5070
  %v5143 = vmul.f32 %v4888, %v5071
  %v5144 = vmul.f32 %v4625, %v5064
  %v5145 = vmul.f32 %v4627, %v5065
  %v5146 = vmul.f32 %v4714, %v5066
  %v5147 = vmul.f32 %v4716, %v5067
  %v5148 = vmul.f32 %v4803, %v5068
  %v5149 = vmul.f32 %v4805, %v5069
  %v5150 = vmul.f32 %v4892, %v5070
  %v5151 = vmul.f32 %v4894, %v5071
  %v5152 = vmul.f32 %v4508, %v5120
  %v5153 = vmul.f32 %v4509, %v5121
  %v5154 = vmul.f32 %v4510, %v5122
  %v5155 = vmul.f32 %v4511, %v5123
  %v5156 = vmul.f32 %v4512, %v5124
  %v5157 = vmul.f32 %v4513, %v5125
  %v5158 = vmul.f32 %v4514, %v5126
  %v5159 = vmul.f32 %v4515, %v5127
  %v5160 = vmul.f32 %v5152, %v3843
  %v5161 = vmul.f32 %v5153, %v3844
  %v5162 = vmul.f32 %v5154, %v3845
  %v5163 = vmul.f32 %v5155, %v3846
  %v5164 = vmul.f32 %v5156, %v3847
  %v5165 = vmul.f32 %v5157, %v3848
  %v5166 = vmul.f32 %v5158, %v3849
  %v5167 = vmul.f32 %v5159, %v3850
  %v5168 = vmul.f32 %v4516, %v5128
  %v5169 = vmul.f32 %v4517, %v5129
  %v5170 = vmul.f32 %v4518, %v5130
  %v5171 = vmul.f32 %v4519, %v5131
  %v5172 = vmul.f32 %v4520, %v5132
  %v5173 = vmul.f32 %v4521, %v5133
  %v5174 = vmul.f32 %v4522, %v5134
  %v5175 = vmul.f32 %v4523, %v5135
  %v5176 = vmul.f32 %v4524, %v5136
  %v5177 = vmul.f32 %v4525, %v5137
  %v5178 = vmul.f32 %v4526, %v5138
  %v5179 = vmul.f32 %v4527, %v5139
  %v5180 = vmul.f32 %v4528, %v5140
  %v5181 = vmul.f32 %v4529, %v5141
  %v5182 = vmul.f32 %v4530, %v5142
  %v5183 = vmul.f32 %v4531, %v5143
  %v5184 = vadd.f32 %v5168, %v5176
  %v5185 = vadd.f32 %v5169, %v5177
  %v5186 = vadd.f32 %v5170, %v5178
  %v5187 = vadd.f32 %v5171, %v5179
  %v5188 = vadd.f32 %v5172, %v5180
  %v5189 = vadd.f32 %v5173, %v5181
  %v5190 = vadd.f32 %v5174, %v5182
  %v5191 = vadd.f32 %v5175, %v5183
  %v5192 = vmul.f32 %v4532, %v5144
  %v5193 = vmul.f32 %v4533, %v5145
  %v5194 = vmul.f32 %v4534, %v5146
  %v5195 = vmul.f32 %v4535, %v5147
  %v5196 = vmul.f32 %v4536, %v5148
  %v5197 = vmul.f32 %v4537, %v5149
  %v5198 = vmul.f32 %v4538, %v5150
  %v5199 = vmul.f32 %v4539, %v5151
  %v5200 = vadd.f32 %v5184, %v5192
  %v5201 = vadd.f32 %v5185, %v5193
  %v5202 = vadd.f32 %v5186, %v5194
  %v5203 = vadd.f32 %v5187, %v5195
  %v5204 = vadd.f32 %v5188, %v5196
  %v5205 = vadd.f32 %v5189, %v5197
  %v5206 = vadd.f32 %v5190, %v5198
  %v5207 = vadd.f32 %v5191, %v5199
  %v5208 = vmul.f32 %v5200, 0.57735026
  %v5209 = vmul.f32 %v5201, 0.57735026
  %v5210 = vmul.f32 %v5202, 0.57735026
  %v5211 = vmul.f32 %v5203, 0.57735026
  %v5212 = vmul.f32 %v5204, 0.57735026
  %v5213 = vmul.f32 %v5205, 0.57735026
  %v5214 = vmul.f32 %v5206, 0.57735026
  %v5215 = vmul.f32 %v5207, 0.57735026
  %v5216 = vmul.f32 %v5208, %v3867
  %v5217 = vmul.f32 %v5209, %v3868
  %v5218 = vmul.f32 %v5210, %v3869
  %v5219 = vmul.f32 %v5211, %v3870
  %v5220 = vmul.f32 %v5212, %v3871
  %v5221 = vmul.f32 %v5213, %v3872
  %v5222 = vmul.f32 %v5214, %v3873
  %v5223 = vmul.f32 %v5215, %v3874
  %v5224 = vmul.f32 %v4508, %v5128
  %v5225 = vmul.f32 %v4509, %v5129
  %v5226 = vmul.f32 %v4510, %v5130
  %v5227 = vmul.f32 %v4511, %v5131
  %v5228 = vmul.f32 %v4512, %v5132
  %v5229 = vmul.f32 %v4513, %v5133
  %v5230 = vmul.f32 %v4514, %v5134
  %v5231 = vmul.f32 %v4515, %v5135
  %v5232 = vmul.f32 %v5224, %v3851
  %v5233 = vmul.f32 %v5225, %v3852
  %v5234 = vmul.f32 %v5226, %v3853
  %v5235 = vmul.f32 %v5227, %v3854
  %v5236 = vmul.f32 %v5228, %v3855
  %v5237 = vmul.f32 %v5229, %v3856
  %v5238 = vmul.f32 %v5230, %v3857
  %v5239 = vmul.f32 %v5231, %v3858
  %v5240 = vmul.f32 %v4516, %v5120
  %v5241 = vmul.f32 %v4517, %v5121
  %v5242 = vmul.f32 %v4518, %v5122
  %v5243 = vmul.f32 %v4519, %v5123
  %v5244 = vmul.f32 %v4520, %v5124
  %v5245 = vmul.f32 %v4521, %v5125
  %v5246 = vmul.f32 %v4522, %v5126
  %v5247 = vmul.f32 %v4523, %v5127
  %v5248 = vmul.f32 %v5240, %v3859
  %v5249 = vmul.f32 %v5241, %v3860
  %v5250 = vmul.f32 %v5242, %v3861
  %v5251 = vmul.f32 %v5243, %v3862
  %v5252 = vmul.f32 %v5244, %v3863
  %v5253 = vmul.f32 %v5245, %v3864
  %v5254 = vmul.f32 %v5246, %v3865
  %v5255 = vmul.f32 %v5247, %v3866
  %v5256 = vmul.f32 %v4508, %v5136
  %v5257 = vmul.f32 %v4509, %v5137
  %v5258 = vmul.f32 %v4510, %v5138
  %v5259 = vmul.f32 %v4511, %v5139
  %v5260 = vmul.f32 %v4512, %v5140
  %v5261 = vmul.f32 %v4513, %v5141
  %v5262 = vmul.f32 %v4514, %v5142
  %v5263 = vmul.f32 %v4515, %v5143
  %v5264 = vmul.f32 %v5256, %v3851
  %v5265 = vmul.f32 %v5257, %v3852
  %v5266 = vmul.f32 %v5258, %v3853
  %v5267 = vmul.f32 %v5259, %v3854
  %v5268 = vmul.f32 %v5260, %v3855
  %v5269 = vmul.f32 %v5261, %v3856
  %v5270 = vmul.f32 %v5262, %v3857
  %v5271 = vmul.f32 %v5263, %v3858
  %v5272 = vmul.f32 %v4524, %v5120
  %v5273 = vmul.f32 %v4525, %v5121
  %v5274 = vmul.f32 %v4526, %v5122
  %v5275 = vmul.f32 %v4527, %v5123
  %v5276 = vmul.f32 %v4528, %v5124
  %v5277 = vmul.f32 %v4529, %v5125
  %v5278 = vmul.f32 %v4530, %v5126
  %v5279 = vmul.f32 %v4531, %v5127
  %v5280 = vmul.f32 %v5272, %v3859
  %v5281 = vmul.f32 %v5273, %v3860
  %v5282 = vmul.f32 %v5274, %v3861
  %v5283 = vmul.f32 %v5275, %v3862
  %v5284 = vmul.f32 %v5276, %v3863
  %v5285 = vmul.f32 %v5277, %v3864
  %v5286 = vmul.f32 %v5278, %v3865
  %v5287 = vmul.f32 %v5279, %v3866
  %v5288 = vmul.f32 %v4508, %v5144
  %v5289 = vmul.f32 %v4509, %v5145
  %v5290 = vmul.f32 %v4510, %v5146
  %v5291 = vmul.f32 %v4511, %v5147
  %v5292 = vmul.f32 %v4512, %v5148
  %v5293 = vmul.f32 %v4513, %v5149
  %v5294 = vmul.f32 %v4514, %v5150
  %v5295 = vmul.f32 %v4515, %v5151
  %v5296 = vmul.f32 %v5288, %v3851
  %v5297 = vmul.f32 %v5289, %v3852
  %v5298 = vmul.f32 %v5290, %v3853
  %v5299 = vmul.f32 %v5291, %v3854
  %v5300 = vmul.f32 %v5292, %v3855
  %v5301 = vmul.f32 %v5293, %v3856
  %v5302 = vmul.f32 %v5294, %v3857
  %v5303 = vmul.f32 %v5295, %v3858
  %v5304 = vmul.f32 %v4532, %v5120
  %v5305 = vmul.f32 %v4533, %v5121
  %v5306 = vmul.f32 %v4534, %v5122
  %v5307 = vmul.f32 %v4535, %v5123
  %v5308 = vmul.f32 %v4536, %v5124
  %v5309 = vmul.f32 %v4537, %v5125
  %v5310 = vmul.f32 %v4538, %v5126
  %v5311 = vmul.f32 %v4539, %v5127
  %v5312 = vmul.f32 %v5304, %v3859
  %v5313 = vmul.f32 %v5305, %v3860
  %v5314 = vmul.f32 %v5306, %v3861
  %v5315 = vmul.f32 %v5307, %v3862
  %v5316 = vmul.f32 %v5308, %v3863
  %v5317 = vmul.f32 %v5309, %v3864
  %v5318 = vmul.f32 %v5310, %v3865
  %v5319 = vmul.f32 %v5311, %v3866
  %v5320 = vmul.f32 %v5232, %v5232
  %v5321 = vmul.f32 %v5233, %v5233
  %v5322 = vmul.f32 %v5234, %v5234
  %v5323 = vmul.f32 %v5235, %v5235
  %v5324 = vmul.f32 %v5236, %v5236
  %v5325 = vmul.f32 %v5237, %v5237
  %v5326 = vmul.f32 %v5238, %v5238
  %v5327 = vmul.f32 %v5239, %v5239
  %v5328 = vmul.f32 %v5248, %v5248
  %v5329 = vmul.f32 %v5249, %v5249
  %v5330 = vmul.f32 %v5250, %v5250
  %v5331 = vmul.f32 %v5251, %v5251
  %v5332 = vmul.f32 %v5252, %v5252
  %v5333 = vmul.f32 %v5253, %v5253
  %v5334 = vmul.f32 %v5254, %v5254
  %v5335 = vmul.f32 %v5255, %v5255
  %v5336 = vmul.f32 %v5264, %v5264
  %v5337 = vmul.f32 %v5265, %v5265
  %v5338 = vmul.f32 %v5266, %v5266
  %v5339 = vmul.f32 %v5267, %v5267
  %v5340 = vmul.f32 %v5268, %v5268
  %v5341 = vmul.f32 %v5269, %v5269
  %v5342 = vmul.f32 %v5270, %v5270
  %v5343 = vmul.f32 %v5271, %v5271
  %v5344 = vmul.f32 %v5280, %v5280
  %v5345 = vmul.f32 %v5281, %v5281
  %v5346 = vmul.f32 %v5282, %v5282
  %v5347 = vmul.f32 %v5283, %v5283
  %v5348 = vmul.f32 %v5284, %v5284
  %v5349 = vmul.f32 %v5285, %v5285
  %v5350 = vmul.f32 %v5286, %v5286
  %v5351 = vmul.f32 %v5287, %v5287
  %v5352 = vadd.f32 %v5320, %v5336
  %v5353 = vadd.f32 %v5321, %v5337
  %v5354 = vadd.f32 %v5322, %v5338
  %v5355 = vadd.f32 %v5323, %v5339
  %v5356 = vadd.f32 %v5324, %v5340
  %v5357 = vadd.f32 %v5325, %v5341
  %v5358 = vadd.f32 %v5326, %v5342
  %v5359 = vadd.f32 %v5327, %v5343
  %v5360 = vadd.f32 %v5328, %v5344
  %v5361 = vadd.f32 %v5329, %v5345
  %v5362 = vadd.f32 %v5330, %v5346
  %v5363 = vadd.f32 %v5331, %v5347
  %v5364 = vadd.f32 %v5332, %v5348
  %v5365 = vadd.f32 %v5333, %v5349
  %v5366 = vadd.f32 %v5334, %v5350
  %v5367 = vadd.f32 %v5335, %v5351
  %v5368 = vmul.f32 %v5296, %v5296
  %v5369 = vmul.f32 %v5297, %v5297
  %v5370 = vmul.f32 %v5298, %v5298
  %v5371 = vmul.f32 %v5299, %v5299
  %v5372 = vmul.f32 %v5300, %v5300
  %v5373 = vmul.f32 %v5301, %v5301
  %v5374 = vmul.f32 %v5302, %v5302
  %v5375 = vmul.f32 %v5303, %v5303
  %v5376 = vmul.f32 %v5312, %v5312
  %v5377 = vmul.f32 %v5313, %v5313
  %v5378 = vmul.f32 %v5314, %v5314
  %v5379 = vmul.f32 %v5315, %v5315
  %v5380 = vmul.f32 %v5316, %v5316
  %v5381 = vmul.f32 %v5317, %v5317
  %v5382 = vmul.f32 %v5318, %v5318
  %v5383 = vmul.f32 %v5319, %v5319
  %v5384 = vadd.f32 %v5352, %v5368
  %v5385 = vadd.f32 %v5353, %v5369
  %v5386 = vadd.f32 %v5354, %v5370
  %v5387 = vadd.f32 %v5355, %v5371
  %v5388 = vadd.f32 %v5356, %v5372
  %v5389 = vadd.f32 %v5357, %v5373
  %v5390 = vadd.f32 %v5358, %v5374
  %v5391 = vadd.f32 %v5359, %v5375
  %v5392 = vadd.f32 %v5360, %v5376
  %v5393 = vadd.f32 %v5361, %v5377
  %v5394 = vadd.f32 %v5362, %v5378
  %v5395 = vadd.f32 %v5363, %v5379
  %v5396 = vadd.f32 %v5364, %v5380
  %v5397 = vadd.f32 %v5365, %v5381
  %v5398 = vadd.f32 %v5366, %v5382
  %v5399 = vadd.f32 %v5367, %v5383
  %v5400 = vadd.f32 %v5384, 1e-06
  %v5401 = vadd.f32 %v5385, 1e-06
  %v5402 = vadd.f32 %v5386, 1e-06
  %v5403 = vadd.f32 %v5387, 1e-06
  %v5404 = vadd.f32 %v5388, 1e-06
  %v5405 = vadd.f32 %v5389, 1e-06
  %v5406 = vadd.f32 %v5390, 1e-06
  %v5407 = vadd.f32 %v5391, 1e-06
  %v5408 = vadd.f32 %v5392, 1e-06
  %v5409 = vadd.f32 %v5393, 1e-06
  %v5410 = vadd.f32 %v5394, 1e-06
  %v5411 = vadd.f32 %v5395, 1e-06
  %v5412 = vadd.f32 %v5396, 1e-06
  %v5413 = vadd.f32 %v5397, 1e-06
  %v5414 = vadd.f32 %v5398, 1e-06
  %v5415 = vadd.f32 %v5399, 1e-06
  %v5416 = vrsqrt.pop %v5400
  %v5417 = vmul.f32 %v5400, %v5416
  %vm5418 = vcmp.eq.f32.partialorder %v5400, inf
  %v5419 = vsel %vm5418, %v5400, %v5417
  %vm5420 = vcmp.eq.f32.partialorder %v5400, 0.0
  %v5421 = vand.u32 %v5400, 2147483648
  %v5422 = vsel %vm5420, %v5421, %v5419
  %v5423 = vrsqrt.pop %v5401
  %v5424 = vmul.f32 %v5401, %v5423
  %vm5425 = vcmp.eq.f32.partialorder %v5401, inf
  %v5426 = vsel %vm5425, %v5401, %v5424
  %vm5427 = vcmp.eq.f32.partialorder %v5401, 0.0
  %v5428 = vand.u32 %v5401, 2147483648
  %v5429 = vsel %vm5427, %v5428, %v5426
  %v5430 = vrsqrt.pop %v5402
  %v5431 = vmul.f32 %v5402, %v5430
  %vm5432 = vcmp.eq.f32.partialorder %v5402, inf
  %v5433 = vsel %vm5432, %v5402, %v5431
  %vm5434 = vcmp.eq.f32.partialorder %v5402, 0.0
  %v5435 = vand.u32 %v5402, 2147483648
  %v5436 = vsel %vm5434, %v5435, %v5433
  %v5437 = vrsqrt.pop %v5403
  %v5438 = vmul.f32 %v5403, %v5437
  %vm5439 = vcmp.eq.f32.partialorder %v5403, inf
  %v5440 = vsel %vm5439, %v5403, %v5438
  %vm5441 = vcmp.eq.f32.partialorder %v5403, 0.0
  %v5442 = vand.u32 %v5403, 2147483648
  %v5443 = vsel %vm5441, %v5442, %v5440
  %v5444 = vrsqrt.pop %v5404
  %v5445 = vmul.f32 %v5404, %v5444
  %vm5446 = vcmp.eq.f32.partialorder %v5404, inf
  %v5447 = vsel %vm5446, %v5404, %v5445
  %vm5448 = vcmp.eq.f32.partialorder %v5404, 0.0
  %v5449 = vand.u32 %v5404, 2147483648
  %v5450 = vsel %vm5448, %v5449, %v5447
  %v5451 = vrsqrt.pop %v5405
  %v5452 = vmul.f32 %v5405, %v5451
  %vm5453 = vcmp.eq.f32.partialorder %v5405, inf
  %v5454 = vsel %vm5453, %v5405, %v5452
  %vm5455 = vcmp.eq.f32.partialorder %v5405, 0.0
  %v5456 = vand.u32 %v5405, 2147483648
  %v5457 = vsel %vm5455, %v5456, %v5454
  %v5458 = vrsqrt.pop %v5406
  %v5459 = vmul.f32 %v5406, %v5458
  %vm5460 = vcmp.eq.f32.partialorder %v5406, inf
  %v5461 = vsel %vm5460, %v5406, %v5459
  %vm5462 = vcmp.eq.f32.partialorder %v5406, 0.0
  %v5463 = vand.u32 %v5406, 2147483648
  %v5464 = vsel %vm5462, %v5463, %v5461
  %v5465 = vrsqrt.pop %v5407
  %v5466 = vmul.f32 %v5407, %v5465
  %vm5467 = vcmp.eq.f32.partialorder %v5407, inf
  %v5468 = vsel %vm5467, %v5407, %v5466
  %vm5469 = vcmp.eq.f32.partialorder %v5407, 0.0
  %v5470 = vand.u32 %v5407, 2147483648
  %v5471 = vsel %vm5469, %v5470, %v5468
  %v5472 = vrsqrt.pop %v5408
  %v5473 = vmul.f32 %v5408, %v5472
  %vm5474 = vcmp.eq.f32.partialorder %v5408, inf
  %v5475 = vsel %vm5474, %v5408, %v5473
  %vm5476 = vcmp.eq.f32.partialorder %v5408, 0.0
  %v5477 = vand.u32 %v5408, 2147483648
  %v5478 = vsel %vm5476, %v5477, %v5475
  %v5479 = vrsqrt.pop %v5409
  %v5480 = vmul.f32 %v5409, %v5479
  %vm5481 = vcmp.eq.f32.partialorder %v5409, inf
  %v5482 = vsel %vm5481, %v5409, %v5480
  %vm5483 = vcmp.eq.f32.partialorder %v5409, 0.0
  %v5484 = vand.u32 %v5409, 2147483648
  %v5485 = vsel %vm5483, %v5484, %v5482
  %v5486 = vrsqrt.pop %v5410
  %v5487 = vmul.f32 %v5410, %v5486
  %vm5488 = vcmp.eq.f32.partialorder %v5410, inf
  %v5489 = vsel %vm5488, %v5410, %v5487
  %vm5490 = vcmp.eq.f32.partialorder %v5410, 0.0
  %v5491 = vand.u32 %v5410, 2147483648
  %v5492 = vsel %vm5490, %v5491, %v5489
  %v5493 = vrsqrt.pop %v5411
  %v5494 = vmul.f32 %v5411, %v5493
  %vm5495 = vcmp.eq.f32.partialorder %v5411, inf
  %v5496 = vsel %vm5495, %v5411, %v5494
  %vm5497 = vcmp.eq.f32.partialorder %v5411, 0.0
  %v5498 = vand.u32 %v5411, 2147483648
  %v5499 = vsel %vm5497, %v5498, %v5496
  %v5500 = vrsqrt.pop %v5412
  %v5501 = vmul.f32 %v5412, %v5500
  %vm5502 = vcmp.eq.f32.partialorder %v5412, inf
  %v5503 = vsel %vm5502, %v5412, %v5501
  %vm5504 = vcmp.eq.f32.partialorder %v5412, 0.0
  %v5505 = vand.u32 %v5412, 2147483648
  %v5506 = vsel %vm5504, %v5505, %v5503
  %v5507 = vrsqrt.pop %v5413
  %v5508 = vmul.f32 %v5413, %v5507
  %vm5509 = vcmp.eq.f32.partialorder %v5413, inf
  %v5510 = vsel %vm5509, %v5413, %v5508
  %vm5511 = vcmp.eq.f32.partialorder %v5413, 0.0
  %v5512 = vand.u32 %v5413, 2147483648
  %v5513 = vsel %vm5511, %v5512, %v5510
  %v5514 = vrsqrt.pop %v5414
  %v5515 = vmul.f32 %v5414, %v5514
  %vm5516 = vcmp.eq.f32.partialorder %v5414, inf
  %v5517 = vsel %vm5516, %v5414, %v5515
  %vm5518 = vcmp.eq.f32.partialorder %v5414, 0.0
  %v5519 = vand.u32 %v5414, 2147483648
  %v5520 = vsel %vm5518, %v5519, %v5517
  %v5521 = vrsqrt.pop %v5415
  %v5522 = vmul.f32 %v5415, %v5521
  %vm5523 = vcmp.eq.f32.partialorder %v5415, inf
  %v5524 = vsel %vm5523, %v5415, %v5522
  %vm5525 = vcmp.eq.f32.partialorder %v5415, 0.0
  %v5526 = vand.u32 %v5415, 2147483648
  %v5527 = vsel %vm5525, %v5526, %v5524
  %v5528 = vld [vmem:[%s12] sm:$0xff]
  %v5529 = vld [vmem:[%s12 + $0x8] sm:$0xff]
  %5531 = vset.pattern.permute.xlu0 0
  %5532 = vperm.xlu0 %5531, %v5528
  %v5533 = vpop.permute.xlu0 %5532
  %5536 = vset.pattern.permute.xlu0 0
  %5537 = vperm.xlu0 %5536, %v5529
  %v5538 = vpop.permute.xlu0 %5537
  %v5540 = vmul.f32 %v5422, %v5533
  %v5541 = vmul.f32 %v5429, %v5533
  %v5542 = vmul.f32 %v5436, %v5533
  %v5543 = vmul.f32 %v5443, %v5533
  %v5544 = vmul.f32 %v5450, %v5533
  %v5545 = vmul.f32 %v5457, %v5533
  %v5546 = vmul.f32 %v5464, %v5533
  %v5547 = vmul.f32 %v5471, %v5533
  %v5548 = vmul.f32 %v5478, %v5538
  %v5549 = vmul.f32 %v5485, %v5538
  %v5550 = vmul.f32 %v5492, %v5538
  %v5551 = vmul.f32 %v5499, %v5538
  %v5552 = vmul.f32 %v5506, %v5538
  %v5553 = vmul.f32 %v5513, %v5538
  %v5554 = vmul.f32 %v5520, %v5538
  %v5555 = vmul.f32 %v5527, %v5538
  %v5556 = vld [vmem:[%s13] sm:$0xff]
  %v5557 = vld [vmem:[%s13 + $0x8] sm:$0xff]
  %5559 = vset.pattern.permute.xlu0 0
  %5560 = vperm.xlu0 %5559, %v5556
  %v5561 = vpop.permute.xlu0 %5560
  %5564 = vset.pattern.permute.xlu0 0
  %5565 = vperm.xlu0 %5564, %v5557
  %v5566 = vpop.permute.xlu0 %5565
  %v5568 = vadd.f32 %v5540, %v5561
  %v5569 = vadd.f32 %v5541, %v5561
  %v5570 = vadd.f32 %v5542, %v5561
  %v5571 = vadd.f32 %v5543, %v5561
  %v5572 = vadd.f32 %v5544, %v5561
  %v5573 = vadd.f32 %v5545, %v5561
  %v5574 = vadd.f32 %v5546, %v5561
  %v5575 = vadd.f32 %v5547, %v5561
  %v5576 = vadd.f32 %v5548, %v5566
  %v5577 = vadd.f32 %v5549, %v5566
  %v5578 = vadd.f32 %v5550, %v5566
  %v5579 = vadd.f32 %v5551, %v5566
  %v5580 = vadd.f32 %v5552, %v5566
  %v5581 = vadd.f32 %v5553, %v5566
  %v5582 = vadd.f32 %v5554, %v5566
  %v5583 = vadd.f32 %v5555, %v5566
  %v5584 = vxor.u32 %v5568, 2147483648
  %v5585 = vxor.u32 %v5569, 2147483648
  %v5586 = vxor.u32 %v5570, 2147483648
  %v5587 = vxor.u32 %v5571, 2147483648
  %v5588 = vxor.u32 %v5572, 2147483648
  %v5589 = vxor.u32 %v5573, 2147483648
  %v5590 = vxor.u32 %v5574, 2147483648
  %v5591 = vxor.u32 %v5575, 2147483648
  %v5592 = vxor.u32 %v5576, 2147483648
  %v5593 = vxor.u32 %v5577, 2147483648
  %v5594 = vxor.u32 %v5578, 2147483648
  %v5595 = vxor.u32 %v5579, 2147483648
  %v5596 = vxor.u32 %v5580, 2147483648
  %v5597 = vxor.u32 %v5581, 2147483648
  %v5598 = vxor.u32 %v5582, 2147483648
  %v5599 = vxor.u32 %v5583, 2147483648
  %v5600 = vmul.f32 %v5584, 1.442695
  %v5601 = vpow.pop %v5600
  %v5602 = vmul.f32 %v5585, 1.442695
  %v5603 = vpow.pop %v5602
  %v5604 = vmul.f32 %v5586, 1.442695
  %v5605 = vpow.pop %v5604
  %v5606 = vmul.f32 %v5587, 1.442695
  %v5607 = vpow.pop %v5606
  %v5608 = vmul.f32 %v5588, 1.442695
  %v5609 = vpow.pop %v5608
  %v5610 = vmul.f32 %v5589, 1.442695
  %v5611 = vpow.pop %v5610
  %v5612 = vmul.f32 %v5590, 1.442695
  %v5613 = vpow.pop %v5612
  %v5614 = vmul.f32 %v5591, 1.442695
  %v5615 = vpow.pop %v5614
  %v5616 = vmul.f32 %v5592, 1.442695
  %v5617 = vpow.pop %v5616
  %v5618 = vmul.f32 %v5593, 1.442695
  %v5619 = vpow.pop %v5618
  %v5620 = vmul.f32 %v5594, 1.442695
  %v5621 = vpow.pop %v5620
  %v5622 = vmul.f32 %v5595, 1.442695
  %v5623 = vpow.pop %v5622
  %v5624 = vmul.f32 %v5596, 1.442695
  %v5625 = vpow.pop %v5624
  %v5626 = vmul.f32 %v5597, 1.442695
  %v5627 = vpow.pop %v5626
  %v5628 = vmul.f32 %v5598, 1.442695
  %v5629 = vpow.pop %v5628
  %v5630 = vmul.f32 %v5599, 1.442695
  %v5631 = vpow.pop %v5630
  %v5632 = vadd.f32 %v5601, 1.0
  %v5633 = vadd.f32 %v5603, 1.0
  %v5634 = vadd.f32 %v5605, 1.0
  %v5635 = vadd.f32 %v5607, 1.0
  %v5636 = vadd.f32 %v5609, 1.0
  %v5637 = vadd.f32 %v5611, 1.0
  %v5638 = vadd.f32 %v5613, 1.0
  %v5639 = vadd.f32 %v5615, 1.0
  %v5640 = vadd.f32 %v5617, 1.0
  %v5641 = vadd.f32 %v5619, 1.0
  %v5642 = vadd.f32 %v5621, 1.0
  %v5643 = vadd.f32 %v5623, 1.0
  %v5644 = vadd.f32 %v5625, 1.0
  %v5645 = vadd.f32 %v5627, 1.0
  %v5646 = vadd.f32 %v5629, 1.0
  %v5647 = vadd.f32 %v5631, 1.0
  %v5648 = vrcp.pop %v5632
  %v5649 = vmul.f32 1.0, %v5648
  %v5650 = vrcp.pop %v5633
  %v5651 = vmul.f32 1.0, %v5650
  %v5652 = vrcp.pop %v5634
  %v5653 = vmul.f32 1.0, %v5652
  %v5654 = vrcp.pop %v5635
  %v5655 = vmul.f32 1.0, %v5654
  %v5656 = vrcp.pop %v5636
  %v5657 = vmul.f32 1.0, %v5656
  %v5658 = vrcp.pop %v5637
  %v5659 = vmul.f32 1.0, %v5658
  %v5660 = vrcp.pop %v5638
  %v5661 = vmul.f32 1.0, %v5660
  %v5662 = vrcp.pop %v5639
  %v5663 = vmul.f32 1.0, %v5662
  %v5664 = vrcp.pop %v5640
  %v5665 = vmul.f32 1.0, %v5664
  %v5666 = vrcp.pop %v5641
  %v5667 = vmul.f32 1.0, %v5666
  %v5668 = vrcp.pop %v5642
  %v5669 = vmul.f32 1.0, %v5668
  %v5670 = vrcp.pop %v5643
  %v5671 = vmul.f32 1.0, %v5670
  %v5672 = vrcp.pop %v5644
  %v5673 = vmul.f32 1.0, %v5672
  %v5674 = vrcp.pop %v5645
  %v5675 = vmul.f32 1.0, %v5674
  %v5676 = vrcp.pop %v5646
  %v5677 = vmul.f32 1.0, %v5676
  %v5678 = vrcp.pop %v5647
  %v5679 = vmul.f32 1.0, %v5678
  %v5680 = vmul.f32 %v5568, %v5649
  %v5681 = vmul.f32 %v5569, %v5651
  %v5682 = vmul.f32 %v5570, %v5653
  %v5683 = vmul.f32 %v5571, %v5655
  %v5684 = vmul.f32 %v5572, %v5657
  %v5685 = vmul.f32 %v5573, %v5659
  %v5686 = vmul.f32 %v5574, %v5661
  %v5687 = vmul.f32 %v5575, %v5663
  %v5688 = vmul.f32 %v5576, %v5665
  %v5689 = vmul.f32 %v5577, %v5667
  %v5690 = vmul.f32 %v5578, %v5669
  %v5691 = vmul.f32 %v5579, %v5671
  %v5692 = vmul.f32 %v5580, %v5673
  %v5693 = vmul.f32 %v5581, %v5675
  %v5694 = vmul.f32 %v5582, %v5677
  %v5695 = vmul.f32 %v5583, %v5679
  %v5696 = vxor.u32 %v5160, 2147483648
  %v5697 = vxor.u32 %v5161, 2147483648
  %v5698 = vxor.u32 %v5162, 2147483648
  %v5699 = vxor.u32 %v5163, 2147483648
  %v5700 = vxor.u32 %v5164, 2147483648
  %v5701 = vxor.u32 %v5165, 2147483648
  %v5702 = vxor.u32 %v5166, 2147483648
  %v5703 = vxor.u32 %v5167, 2147483648
  %v5704 = vxor.u32 %v5216, 2147483648
  %v5705 = vxor.u32 %v5217, 2147483648
  %v5706 = vxor.u32 %v5218, 2147483648
  %v5707 = vxor.u32 %v5219, 2147483648
  %v5708 = vxor.u32 %v5220, 2147483648
  %v5709 = vxor.u32 %v5221, 2147483648
  %v5710 = vxor.u32 %v5222, 2147483648
  %v5711 = vxor.u32 %v5223, 2147483648
  %v5712 = vmul.f32 %v5696, 1.442695
  %v5713 = vpow.pop %v5712
  %v5714 = vmul.f32 %v5697, 1.442695
  %v5715 = vpow.pop %v5714
  %v5716 = vmul.f32 %v5698, 1.442695
  %v5717 = vpow.pop %v5716
  %v5718 = vmul.f32 %v5699, 1.442695
  %v5719 = vpow.pop %v5718
  %v5720 = vmul.f32 %v5700, 1.442695
  %v5721 = vpow.pop %v5720
  %v5722 = vmul.f32 %v5701, 1.442695
  %v5723 = vpow.pop %v5722
  %v5724 = vmul.f32 %v5702, 1.442695
  %v5725 = vpow.pop %v5724
  %v5726 = vmul.f32 %v5703, 1.442695
  %v5727 = vpow.pop %v5726
  %v5728 = vmul.f32 %v5704, 1.442695
  %v5729 = vpow.pop %v5728
  %v5730 = vmul.f32 %v5705, 1.442695
  %v5731 = vpow.pop %v5730
  %v5732 = vmul.f32 %v5706, 1.442695
  %v5733 = vpow.pop %v5732
  %v5734 = vmul.f32 %v5707, 1.442695
  %v5735 = vpow.pop %v5734
  %v5736 = vmul.f32 %v5708, 1.442695
  %v5737 = vpow.pop %v5736
  %v5738 = vmul.f32 %v5709, 1.442695
  %v5739 = vpow.pop %v5738
  %v5740 = vmul.f32 %v5710, 1.442695
  %v5741 = vpow.pop %v5740
  %v5742 = vmul.f32 %v5711, 1.442695
  %v5743 = vpow.pop %v5742
  %v5744 = vadd.f32 %v5713, 1.0
  %v5745 = vadd.f32 %v5715, 1.0
  %v5746 = vadd.f32 %v5717, 1.0
  %v5747 = vadd.f32 %v5719, 1.0
  %v5748 = vadd.f32 %v5721, 1.0
  %v5749 = vadd.f32 %v5723, 1.0
  %v5750 = vadd.f32 %v5725, 1.0
  %v5751 = vadd.f32 %v5727, 1.0
  %v5752 = vadd.f32 %v5729, 1.0
  %v5753 = vadd.f32 %v5731, 1.0
  %v5754 = vadd.f32 %v5733, 1.0
  %v5755 = vadd.f32 %v5735, 1.0
  %v5756 = vadd.f32 %v5737, 1.0
  %v5757 = vadd.f32 %v5739, 1.0
  %v5758 = vadd.f32 %v5741, 1.0
  %v5759 = vadd.f32 %v5743, 1.0
  %v5760 = vrcp.pop %v5744
  %v5761 = vmul.f32 1.0, %v5760
  %v5762 = vrcp.pop %v5745
  %v5763 = vmul.f32 1.0, %v5762
  %v5764 = vrcp.pop %v5746
  %v5765 = vmul.f32 1.0, %v5764
  %v5766 = vrcp.pop %v5747
  %v5767 = vmul.f32 1.0, %v5766
  %v5768 = vrcp.pop %v5748
  %v5769 = vmul.f32 1.0, %v5768
  %v5770 = vrcp.pop %v5749
  %v5771 = vmul.f32 1.0, %v5770
  %v5772 = vrcp.pop %v5750
  %v5773 = vmul.f32 1.0, %v5772
  %v5774 = vrcp.pop %v5751
  %v5775 = vmul.f32 1.0, %v5774
  %v5776 = vrcp.pop %v5752
  %v5777 = vmul.f32 1.0, %v5776
  %v5778 = vrcp.pop %v5753
  %v5779 = vmul.f32 1.0, %v5778
  %v5780 = vrcp.pop %v5754
  %v5781 = vmul.f32 1.0, %v5780
  %v5782 = vrcp.pop %v5755
  %v5783 = vmul.f32 1.0, %v5782
  %v5784 = vrcp.pop %v5756
  %v5785 = vmul.f32 1.0, %v5784
  %v5786 = vrcp.pop %v5757
  %v5787 = vmul.f32 1.0, %v5786
  %v5788 = vrcp.pop %v5758
  %v5789 = vmul.f32 1.0, %v5788
  %v5790 = vrcp.pop %v5759
  %v5791 = vmul.f32 1.0, %v5790
  %v5792 = vmul.f32 %v5160, %v5761
  %v5793 = vmul.f32 %v5161, %v5763
  %v5794 = vmul.f32 %v5162, %v5765
  %v5795 = vmul.f32 %v5163, %v5767
  %v5796 = vmul.f32 %v5164, %v5769
  %v5797 = vmul.f32 %v5165, %v5771
  %v5798 = vmul.f32 %v5166, %v5773
  %v5799 = vmul.f32 %v5167, %v5775
  %v5800 = vmul.f32 %v5216, %v5777
  %v5801 = vmul.f32 %v5217, %v5779
  %v5802 = vmul.f32 %v5218, %v5781
  %v5803 = vmul.f32 %v5219, %v5783
  %v5804 = vmul.f32 %v5220, %v5785
  %v5805 = vmul.f32 %v5221, %v5787
  %v5806 = vmul.f32 %v5222, %v5789
  %v5807 = vmul.f32 %v5223, %v5791
  %v5808 = vmul.f32 %v5232, %v5680
  %v5809 = vmul.f32 %v5233, %v5681
  %v5810 = vmul.f32 %v5234, %v5682
  %v5811 = vmul.f32 %v5235, %v5683
  %v5812 = vmul.f32 %v5236, %v5684
  %v5813 = vmul.f32 %v5237, %v5685
  %v5814 = vmul.f32 %v5238, %v5686
  %v5815 = vmul.f32 %v5239, %v5687
  %v5816 = vmul.f32 %v5248, %v5688
  %v5817 = vmul.f32 %v5249, %v5689
  %v5818 = vmul.f32 %v5250, %v5690
  %v5819 = vmul.f32 %v5251, %v5691
  %v5820 = vmul.f32 %v5252, %v5692
  %v5821 = vmul.f32 %v5253, %v5693
  %v5822 = vmul.f32 %v5254, %v5694
  %v5823 = vmul.f32 %v5255, %v5695
  %v5824 = vmul.f32 %v5264, %v5680
  %v5825 = vmul.f32 %v5265, %v5681
  %v5826 = vmul.f32 %v5266, %v5682
  %v5827 = vmul.f32 %v5267, %v5683
  %v5828 = vmul.f32 %v5268, %v5684
  %v5829 = vmul.f32 %v5269, %v5685
  %v5830 = vmul.f32 %v5270, %v5686
  %v5831 = vmul.f32 %v5271, %v5687
  %v5832 = vmul.f32 %v5280, %v5688
  %v5833 = vmul.f32 %v5281, %v5689
  %v5834 = vmul.f32 %v5282, %v5690
  %v5835 = vmul.f32 %v5283, %v5691
  %v5836 = vmul.f32 %v5284, %v5692
  %v5837 = vmul.f32 %v5285, %v5693
  %v5838 = vmul.f32 %v5286, %v5694
  %v5839 = vmul.f32 %v5287, %v5695
  %v5840 = vmul.f32 %v5296, %v5680
  %v5841 = vmul.f32 %v5297, %v5681
  %v5842 = vmul.f32 %v5298, %v5682
  %v5843 = vmul.f32 %v5299, %v5683
  %v5844 = vmul.f32 %v5300, %v5684
  %v5845 = vmul.f32 %v5301, %v5685
  %v5846 = vmul.f32 %v5302, %v5686
  %v5847 = vmul.f32 %v5303, %v5687
  %v5848 = vmul.f32 %v5312, %v5688
  %v5849 = vmul.f32 %v5313, %v5689
  %v5850 = vmul.f32 %v5314, %v5690
  %v5851 = vmul.f32 %v5315, %v5691
  %v5852 = vmul.f32 %v5316, %v5692
  %v5853 = vmul.f32 %v5317, %v5693
  %v5854 = vmul.f32 %v5318, %v5694
  %v5855 = vmul.f32 %v5319, %v5695
  %v5856 = vld [vmem:[%s14] sm:$0xff]
  %v5857 = vld [vmem:[%s14 + $0x8] sm:$0xff]
  %v5858 = vld [vmem:[%s14 + $0x10] sm:$0xff]
  %v5859 = vld [vmem:[%s14 + $0x18] sm:$0xff]
  %v5860 = vld [vmem:[%s3] sm:$0xff]
  %v5861 = vld [vmem:[%s3 + $0x8] sm:$0xff]
  %v5862 = vld [vmem:[%s3 + $0x10] sm:$0xff]
  %v5863 = vld [vmem:[%s3 + $0x18] sm:$0xff]
  %v5864 = vld [vmem:[%s3 + $0x20] sm:$0xff]
  %v5865 = vld [vmem:[%s3 + $0x28] sm:$0xff]
  %v5866 = vld [vmem:[%s3 + $0x30] sm:$0xff]
  %v5867 = vld [vmem:[%s3 + $0x38] sm:$0xff]
  %v5868 = vld [vmem:[%s3 + $0x40] sm:$0xff]
  %v5869 = vld [vmem:[%s3 + $0x48] sm:$0xff]
  %v5870 = vld [vmem:[%s3 + $0x50] sm:$0xff]
  %v5871 = vld [vmem:[%s3 + $0x58] sm:$0xff]
  %v5872 = vld [vmem:[%s3 + $0x60] sm:$0xff]
  %v5873 = vld [vmem:[%s3 + $0x68] sm:$0xff]
  %v5874 = vld [vmem:[%s3 + $0x70] sm:$0xff]
  %v5875 = vld [vmem:[%s3 + $0x78] sm:$0xff]
  %v5876 = vld [vmem:[%s3 + $0x80] sm:$0xff]
  %v5877 = vld [vmem:[%s3 + $0x88] sm:$0xff]
  %v5878 = vld [vmem:[%s3 + $0x90] sm:$0xff]
  %v5879 = vld [vmem:[%s3 + $0x98] sm:$0xff]
  %v5880 = vld [vmem:[%s3 + $0xa0] sm:$0xff]
  %v5881 = vld [vmem:[%s3 + $0xa8] sm:$0xff]
  %v5882 = vld [vmem:[%s3 + $0xb0] sm:$0xff]
  %v5883 = vld [vmem:[%s3 + $0xb8] sm:$0xff]
  %v5884 = vld [vmem:[%s3 + $0xc0] sm:$0xff]
  %v5885 = vld [vmem:[%s3 + $0xc8] sm:$0xff]
  %v5886 = vld [vmem:[%s3 + $0xd0] sm:$0xff]
  %v5887 = vld [vmem:[%s3 + $0xd8] sm:$0xff]
  %v5888 = vld [vmem:[%s3 + $0xe0] sm:$0xff]
  %v5889 = vld [vmem:[%s3 + $0xe8] sm:$0xff]
  %v5890 = vld [vmem:[%s3 + $0xf0] sm:$0xff]
  %v5891 = vld [vmem:[%s3 + $0xf8] sm:$0xff]
  %vm5892 = vcmask 523264
  %v5894 = vsel %vm5892, %v5856, 0
  %v5897 = vsel %vm5892, %v5857, 0
  %v5900 = vsel %vm5892, %v5858, 0
  %v5903 = vsel %vm5892, %v5859, 0
  %5905 = vmatprep.subr.mxu0 0.0
  %5906 = vmatpush1.msra.mxu0 0.0
  %5907 = vmatprep.subr.mxu0 0.0
  %5908 = vmatpush1.msra.mxu0 0.0
  %5909 = vmatprep.subr.mxu0 0.0
  %5910 = vmatpush1.msra.mxu0 0.0
  %5911 = vmatprep.subr.mxu0 0.0
  %5912 = vmatpush1.msra.mxu0 0.0
  %5913 = vmatprep.subr.mxu0 0.0
  %5914 = vmatpush1.msra.mxu0 0.0
  %5915 = vmatprep.subr.mxu0 0.0
  %5916 = vmatpush1.msra.mxu0 0.0
  %5917 = vmatprep.subr.mxu0 0.0
  %5918 = vmatpush1.msra.mxu0 0.0
  %5919 = vmatprep.subr.mxu0 0.0
  %5920 = vmatpush1.msra.mxu0 0.0
  %5921 = vmatprep.subr.mxu0 %v5849
  %5922 = vmatpush1.msra.mxu0 %v5848
  %5923 = vmatprep.subr.mxu0 %v5841
  %5924 = vmatpush1.msra.mxu0 %v5840
  %5925 = vmatprep.subr.mxu0 %v5833
  %5926 = vmatpush1.msra.mxu0 %v5832
  %5927 = vmatprep.subr.mxu0 %v5825
  %5928 = vmatpush1.msra.mxu0 %v5824
  %5929 = vmatprep.subr.mxu0 %v5817
  %5930 = vmatpush1.msra.mxu0 %v5816
  %5931 = vmatprep.subr.mxu0 %v5809
  %5932 = vmatpush1.msra.mxu0 %v5808
  %5933 = vmatprep.subr.mxu0 %v5801
  %5934 = vmatpush1.msra.mxu0 %v5800
  %5935 = vmatprep.subr.mxu0 %v5793
  %5936 = vmatpush1.msra.mxu0 %v5792
  %5937 = vmatprep.subr.mxu0 0.0
  %5938 = vmatpush2.msra.mxu0 0.0
  %5939 = vmatprep.subr.mxu0 0.0
  %5940 = vmatpush2.msra.mxu0 0.0
  %5941 = vmatprep.subr.mxu0 0.0
  %5942 = vmatpush2.msra.mxu0 0.0
  %5943 = vmatprep.subr.mxu0 0.0
  %5944 = vmatpush2.msra.mxu0 0.0
  %5945 = vmatprep.subr.mxu0 0.0
  %5946 = vmatpush2.msra.mxu0 0.0
  %5947 = vmatprep.subr.mxu0 0.0
  %5948 = vmatpush2.msra.mxu0 0.0
  %5949 = vmatprep.subr.mxu0 0.0
  %5950 = vmatpush2.msra.mxu0 0.0
  %5951 = vmatprep.subr.mxu0 0.0
  %5952 = vmatpush2.msra.mxu0 0.0
  %5953 = vmatprep.subr.mxu0 0.0
  %5954 = vmatpush2.msra.mxu0 0.0
  %5955 = vmatprep.subr.mxu0 0.0
  %5956 = vmatpush2.msra.mxu0 0.0
  %5957 = vmatprep.subr.mxu0 0.0
  %5958 = vmatpush2.msra.mxu0 0.0
  %5959 = vmatprep.subr.mxu0 0.0
  %5960 = vmatpush2.msra.mxu0 0.0
  %5961 = vmatprep.subr.mxu0 0.0
  %5962 = vmatpush2.msra.mxu0 0.0
  %5963 = vmatprep.subr.mxu0 0.0
  %5964 = vmatpush2.msra.mxu0 0.0
  %5965 = vmatprep.subr.mxu0 0.0
  %5966 = vmatpush2.msra.mxu0 0.0
  %5967 = vmatprep.subr.mxu0 0.0
  %5968 = vmatpush2.msra.mxu0 0.0
  %5969 = vmatprep.mubr.f32.mxu0 0.0
  %5970 = vmatmul.mubr.f32.gmra.mxu0 %v5894
  %v5971 = vpop.f32.mrf.mxu0
  %v5972 = vadd.f32 %v5860, %v5971
  %v5973 = vpop.f32.mrf.mxu0
  %v5974 = vadd.f32 %v5861, %v5973
  %5975 = vmatprep.mubr.f32.mxu0 0.0
  %5976 = vmatmul.mubr.f32.gmra.mxu0 %v5897
  %v5977 = vpop.f32.mrf.mxu0
  %v5978 = vadd.f32 %v5868, %v5977
  %v5979 = vpop.f32.mrf.mxu0
  %v5980 = vadd.f32 %v5869, %v5979
  %5981 = vmatprep.mubr.f32.mxu0 0.0
  %5982 = vmatmul.mubr.f32.gmra.mxu0 %v5900
  %v5983 = vpop.f32.mrf.mxu0
  %v5984 = vadd.f32 %v5876, %v5983
  %v5985 = vpop.f32.mrf.mxu0
  %v5986 = vadd.f32 %v5877, %v5985
  %5987 = vmatprep.mubr.f32.mxu0 0.0
  %5988 = vmatmul.mubr.f32.gmra.mxu0 %v5903
  %v5989 = vpop.f32.mrf.mxu0
  %v5990 = vadd.f32 %v5884, %v5989
  %v5991 = vpop.f32.mrf.mxu0
  %v5992 = vadd.f32 %v5885, %v5991
  %5993 = vdwg.mxu0
  %5994 = vmatprep.subr.mxu0 0.0
  %5995 = vmatpush1.msra.mxu0 0.0
  %5996 = vmatprep.subr.mxu0 0.0
  %5997 = vmatpush1.msra.mxu0 0.0
  %5998 = vmatprep.subr.mxu0 0.0
  %5999 = vmatpush1.msra.mxu0 0.0
  %6000 = vmatprep.subr.mxu0 0.0
  %6001 = vmatpush1.msra.mxu0 0.0
  %6002 = vmatprep.subr.mxu0 0.0
  %6003 = vmatpush1.msra.mxu0 0.0
  %6004 = vmatprep.subr.mxu0 0.0
  %6005 = vmatpush1.msra.mxu0 0.0
  %6006 = vmatprep.subr.mxu0 0.0
  %6007 = vmatpush1.msra.mxu0 0.0
  %6008 = vmatprep.subr.mxu0 0.0
  %6009 = vmatpush1.msra.mxu0 0.0
  %6010 = vmatprep.subr.mxu0 %v5851
  %6011 = vmatpush1.msra.mxu0 %v5850
  %6012 = vmatprep.subr.mxu0 %v5843
  %6013 = vmatpush1.msra.mxu0 %v5842
  %6014 = vmatprep.subr.mxu0 %v5835
  %6015 = vmatpush1.msra.mxu0 %v5834
  %6016 = vmatprep.subr.mxu0 %v5827
  %6017 = vmatpush1.msra.mxu0 %v5826
  %6018 = vmatprep.subr.mxu0 %v5819
  %6019 = vmatpush1.msra.mxu0 %v5818
  %6020 = vmatprep.subr.mxu0 %v5811
  %6021 = vmatpush1.msra.mxu0 %v5810
  %6022 = vmatprep.subr.mxu0 %v5803
  %6023 = vmatpush1.msra.mxu0 %v5802
  %6024 = vmatprep.subr.mxu0 %v5795
  %6025 = vmatpush1.msra.mxu0 %v5794
  %6026 = vmatprep.subr.mxu0 0.0
  %6027 = vmatpush2.msra.mxu0 0.0
  %6028 = vmatprep.subr.mxu0 0.0
  %6029 = vmatpush2.msra.mxu0 0.0
  %6030 = vmatprep.subr.mxu0 0.0
  %6031 = vmatpush2.msra.mxu0 0.0
  %6032 = vmatprep.subr.mxu0 0.0
  %6033 = vmatpush2.msra.mxu0 0.0
  %6034 = vmatprep.subr.mxu0 0.0
  %6035 = vmatpush2.msra.mxu0 0.0
  %6036 = vmatprep.subr.mxu0 0.0
  %6037 = vmatpush2.msra.mxu0 0.0
  %6038 = vmatprep.subr.mxu0 0.0
  %6039 = vmatpush2.msra.mxu0 0.0
  %6040 = vmatprep.subr.mxu0 0.0
  %6041 = vmatpush2.msra.mxu0 0.0
  %6042 = vmatprep.subr.mxu0 0.0
  %6043 = vmatpush2.msra.mxu0 0.0
  %6044 = vmatprep.subr.mxu0 0.0
  %6045 = vmatpush2.msra.mxu0 0.0
  %6046 = vmatprep.subr.mxu0 0.0
  %6047 = vmatpush2.msra.mxu0 0.0
  %6048 = vmatprep.subr.mxu0 0.0
  %6049 = vmatpush2.msra.mxu0 0.0
  %6050 = vmatprep.subr.mxu0 0.0
  %6051 = vmatpush2.msra.mxu0 0.0
  %6052 = vmatprep.subr.mxu0 0.0
  %6053 = vmatpush2.msra.mxu0 0.0
  %6054 = vmatprep.subr.mxu0 0.0
  %6055 = vmatpush2.msra.mxu0 0.0
  %6056 = vmatprep.subr.mxu0 0.0
  %6057 = vmatpush2.msra.mxu0 0.0
  %6058 = vmatprep.mubr.f32.mxu0 0.0
  %6059 = vmatmul.mubr.f32.gmra.mxu0 %v5894
  %v6060 = vpop.f32.mrf.mxu0
  %v6061 = vadd.f32 %v5862, %v6060
  %v6062 = vpop.f32.mrf.mxu0
  %v6063 = vadd.f32 %v5863, %v6062
  %6064 = vmatprep.mubr.f32.mxu0 0.0
  %6065 = vmatmul.mubr.f32.gmra.mxu0 %v5897
  %v6066 = vpop.f32.mrf.mxu0
  %v6067 = vadd.f32 %v5870, %v6066
  %v6068 = vpop.f32.mrf.mxu0
  %v6069 = vadd.f32 %v5871, %v6068
  %6070 = vmatprep.mubr.f32.mxu0 0.0
  %6071 = vmatmul.mubr.f32.gmra.mxu0 %v5900
  %v6072 = vpop.f32.mrf.mxu0
  %v6073 = vadd.f32 %v5878, %v6072
  %v6074 = vpop.f32.mrf.mxu0
  %v6075 = vadd.f32 %v5879, %v6074
  %6076 = vmatprep.mubr.f32.mxu0 0.0
  %6077 = vmatmul.mubr.f32.gmra.mxu0 %v5903
  %v6078 = vpop.f32.mrf.mxu0
  %v6079 = vadd.f32 %v5886, %v6078
  %v6080 = vpop.f32.mrf.mxu0
  %v6081 = vadd.f32 %v5887, %v6080
  %6082 = vdwg.mxu0
  %6083 = vmatprep.subr.mxu0 0.0
  %6084 = vmatpush1.msra.mxu0 0.0
  %6085 = vmatprep.subr.mxu0 0.0
  %6086 = vmatpush1.msra.mxu0 0.0
  %6087 = vmatprep.subr.mxu0 0.0
  %6088 = vmatpush1.msra.mxu0 0.0
  %6089 = vmatprep.subr.mxu0 0.0
  %6090 = vmatpush1.msra.mxu0 0.0
  %6091 = vmatprep.subr.mxu0 0.0
  %6092 = vmatpush1.msra.mxu0 0.0
  %6093 = vmatprep.subr.mxu0 0.0
  %6094 = vmatpush1.msra.mxu0 0.0
  %6095 = vmatprep.subr.mxu0 0.0
  %6096 = vmatpush1.msra.mxu0 0.0
  %6097 = vmatprep.subr.mxu0 0.0
  %6098 = vmatpush1.msra.mxu0 0.0
  %6099 = vmatprep.subr.mxu0 %v5853
  %6100 = vmatpush1.msra.mxu0 %v5852
  %6101 = vmatprep.subr.mxu0 %v5845
  %6102 = vmatpush1.msra.mxu0 %v5844
  %6103 = vmatprep.subr.mxu0 %v5837
  %6104 = vmatpush1.msra.mxu0 %v5836
  %6105 = vmatprep.subr.mxu0 %v5829
  %6106 = vmatpush1.msra.mxu0 %v5828
  %6107 = vmatprep.subr.mxu0 %v5821
  %6108 = vmatpush1.msra.mxu0 %v5820
  %6109 = vmatprep.subr.mxu0 %v5813
  %6110 = vmatpush1.msra.mxu0 %v5812
  %6111 = vmatprep.subr.mxu0 %v5805
  %6112 = vmatpush1.msra.mxu0 %v5804
  %6113 = vmatprep.subr.mxu0 %v5797
  %6114 = vmatpush1.msra.mxu0 %v5796
  %6115 = vmatprep.subr.mxu0 0.0
  %6116 = vmatpush2.msra.mxu0 0.0
  %6117 = vmatprep.subr.mxu0 0.0
  %6118 = vmatpush2.msra.mxu0 0.0
  %6119 = vmatprep.subr.mxu0 0.0
  %6120 = vmatpush2.msra.mxu0 0.0
  %6121 = vmatprep.subr.mxu0 0.0
  %6122 = vmatpush2.msra.mxu0 0.0
  %6123 = vmatprep.subr.mxu0 0.0
  %6124 = vmatpush2.msra.mxu0 0.0
  %6125 = vmatprep.subr.mxu0 0.0
  %6126 = vmatpush2.msra.mxu0 0.0
  %6127 = vmatprep.subr.mxu0 0.0
  %6128 = vmatpush2.msra.mxu0 0.0
  %6129 = vmatprep.subr.mxu0 0.0
  %6130 = vmatpush2.msra.mxu0 0.0
  %6131 = vmatprep.subr.mxu0 0.0
  %6132 = vmatpush2.msra.mxu0 0.0
  %6133 = vmatprep.subr.mxu0 0.0
  %6134 = vmatpush2.msra.mxu0 0.0
  %6135 = vmatprep.subr.mxu0 0.0
  %6136 = vmatpush2.msra.mxu0 0.0
  %6137 = vmatprep.subr.mxu0 0.0
  %6138 = vmatpush2.msra.mxu0 0.0
  %6139 = vmatprep.subr.mxu0 0.0
  %6140 = vmatpush2.msra.mxu0 0.0
  %6141 = vmatprep.subr.mxu0 0.0
  %6142 = vmatpush2.msra.mxu0 0.0
  %6143 = vmatprep.subr.mxu0 0.0
  %6144 = vmatpush2.msra.mxu0 0.0
  %6145 = vmatprep.subr.mxu0 0.0
  %6146 = vmatpush2.msra.mxu0 0.0
  %6147 = vmatprep.mubr.f32.mxu0 0.0
  %6148 = vmatmul.mubr.f32.gmra.mxu0 %v5894
  %v6149 = vpop.f32.mrf.mxu0
  %v6150 = vadd.f32 %v5864, %v6149
  %v6151 = vpop.f32.mrf.mxu0
  %v6152 = vadd.f32 %v5865, %v6151
  %6153 = vmatprep.mubr.f32.mxu0 0.0
  %6154 = vmatmul.mubr.f32.gmra.mxu0 %v5897
  %v6155 = vpop.f32.mrf.mxu0
  %v6156 = vadd.f32 %v5872, %v6155
  %v6157 = vpop.f32.mrf.mxu0
  %v6158 = vadd.f32 %v5873, %v6157
  %6159 = vmatprep.mubr.f32.mxu0 0.0
  %6160 = vmatmul.mubr.f32.gmra.mxu0 %v5900
  %v6161 = vpop.f32.mrf.mxu0
  %v6162 = vadd.f32 %v5880, %v6161
  %v6163 = vpop.f32.mrf.mxu0
  %v6164 = vadd.f32 %v5881, %v6163
  %6165 = vmatprep.mubr.f32.mxu0 0.0
  %6166 = vmatmul.mubr.f32.gmra.mxu0 %v5903
  %v6167 = vpop.f32.mrf.mxu0
  %v6168 = vadd.f32 %v5888, %v6167
  %v6169 = vpop.f32.mrf.mxu0
  %v6170 = vadd.f32 %v5889, %v6169
  %6171 = vdwg.mxu0
  %6172 = vmatprep.subr.mxu0 0.0
  %6173 = vmatpush1.msra.mxu0 0.0
  %6174 = vmatprep.subr.mxu0 0.0
  %6175 = vmatpush1.msra.mxu0 0.0
  %6176 = vmatprep.subr.mxu0 0.0
  %6177 = vmatpush1.msra.mxu0 0.0
  %6178 = vmatprep.subr.mxu0 0.0
  %6179 = vmatpush1.msra.mxu0 0.0
  %6180 = vmatprep.subr.mxu0 0.0
  %6181 = vmatpush1.msra.mxu0 0.0
  %6182 = vmatprep.subr.mxu0 0.0
  %6183 = vmatpush1.msra.mxu0 0.0
  %6184 = vmatprep.subr.mxu0 0.0
  %6185 = vmatpush1.msra.mxu0 0.0
  %6186 = vmatprep.subr.mxu0 0.0
  %6187 = vmatpush1.msra.mxu0 0.0
  %6188 = vmatprep.subr.mxu0 %v5855
  %6189 = vmatpush1.msra.mxu0 %v5854
  %6190 = vmatprep.subr.mxu0 %v5847
  %6191 = vmatpush1.msra.mxu0 %v5846
  %6192 = vmatprep.subr.mxu0 %v5839
  %6193 = vmatpush1.msra.mxu0 %v5838
  %6194 = vmatprep.subr.mxu0 %v5831
  %6195 = vmatpush1.msra.mxu0 %v5830
  %6196 = vmatprep.subr.mxu0 %v5823
  %6197 = vmatpush1.msra.mxu0 %v5822
  %6198 = vmatprep.subr.mxu0 %v5815
  %6199 = vmatpush1.msra.mxu0 %v5814
  %6200 = vmatprep.subr.mxu0 %v5807
  %6201 = vmatpush1.msra.mxu0 %v5806
  %6202 = vmatprep.subr.mxu0 %v5799
  %6203 = vmatpush1.msra.mxu0 %v5798
  %6204 = vmatprep.subr.mxu0 0.0
  %6205 = vmatpush2.msra.mxu0 0.0
  %6206 = vmatprep.subr.mxu0 0.0
  %6207 = vmatpush2.msra.mxu0 0.0
  %6208 = vmatprep.subr.mxu0 0.0
  %6209 = vmatpush2.msra.mxu0 0.0
  %6210 = vmatprep.subr.mxu0 0.0
  %6211 = vmatpush2.msra.mxu0 0.0
  %6212 = vmatprep.subr.mxu0 0.0
  %6213 = vmatpush2.msra.mxu0 0.0
  %6214 = vmatprep.subr.mxu0 0.0
  %6215 = vmatpush2.msra.mxu0 0.0
  %6216 = vmatprep.subr.mxu0 0.0
  %6217 = vmatpush2.msra.mxu0 0.0
  %6218 = vmatprep.subr.mxu0 0.0
  %6219 = vmatpush2.msra.mxu0 0.0
  %6220 = vmatprep.subr.mxu0 0.0
  %6221 = vmatpush2.msra.mxu0 0.0
  %6222 = vmatprep.subr.mxu0 0.0
  %6223 = vmatpush2.msra.mxu0 0.0
  %6224 = vmatprep.subr.mxu0 0.0
  %6225 = vmatpush2.msra.mxu0 0.0
  %6226 = vmatprep.subr.mxu0 0.0
  %6227 = vmatpush2.msra.mxu0 0.0
  %6228 = vmatprep.subr.mxu0 0.0
  %6229 = vmatpush2.msra.mxu0 0.0
  %6230 = vmatprep.subr.mxu0 0.0
  %6231 = vmatpush2.msra.mxu0 0.0
  %6232 = vmatprep.subr.mxu0 0.0
  %6233 = vmatpush2.msra.mxu0 0.0
  %6234 = vmatprep.subr.mxu0 0.0
  %6235 = vmatpush2.msra.mxu0 0.0
  %6236 = vmatprep.mubr.f32.mxu0 0.0
  %6237 = vmatmul.mubr.f32.gmra.mxu0 %v5894
  %v6238 = vpop.f32.mrf.mxu0
  %v6239 = vadd.f32 %v5866, %v6238
  %v6240 = vpop.f32.mrf.mxu0
  %v6241 = vadd.f32 %v5867, %v6240
  %6242 = vmatprep.mubr.f32.mxu0 0.0
  %6243 = vmatmul.mubr.f32.gmra.mxu0 %v5897
  %v6244 = vpop.f32.mrf.mxu0
  %v6245 = vadd.f32 %v5874, %v6244
  %v6246 = vpop.f32.mrf.mxu0
  %v6247 = vadd.f32 %v5875, %v6246
  %6248 = vmatprep.mubr.f32.mxu0 0.0
  %6249 = vmatmul.mubr.f32.gmra.mxu0 %v5900
  %v6250 = vpop.f32.mrf.mxu0
  %v6251 = vadd.f32 %v5882, %v6250
  %v6252 = vpop.f32.mrf.mxu0
  %v6253 = vadd.f32 %v5883, %v6252
  %6254 = vmatprep.mubr.f32.mxu0 0.0
  %6255 = vmatmul.mubr.f32.gmra.mxu0 %v5903
  %v6256 = vpop.f32.mrf.mxu0
  %v6257 = vadd.f32 %v5890, %v6256
  %v6258 = vpop.f32.mrf.mxu0
  %v6259 = vadd.f32 %v5891, %v6258
  %6260 = vdwg.mxu0
  %6261 = vst [vmem:[%s15] sm:$0xff] %v5972
  %6262 = vst [vmem:[%s15 + $0x8] sm:$0xff] %v5974
  %6263 = vst [vmem:[%s15 + $0x10] sm:$0xff] %v6061
  %6264 = vst [vmem:[%s15 + $0x18] sm:$0xff] %v6063
  %6265 = vst [vmem:[%s15 + $0x20] sm:$0xff] %v6150
  %6266 = vst [vmem:[%s15 + $0x28] sm:$0xff] %v6152
  %6267 = vst [vmem:[%s15 + $0x30] sm:$0xff] %v6239
  %6268 = vst [vmem:[%s15 + $0x38] sm:$0xff] %v6241
  %6269 = vst [vmem:[%s15 + $0x40] sm:$0xff] %v5978
  %6270 = vst [vmem:[%s15 + $0x48] sm:$0xff] %v5980
  %6271 = vst [vmem:[%s15 + $0x50] sm:$0xff] %v6067
  %6272 = vst [vmem:[%s15 + $0x58] sm:$0xff] %v6069
  %6273 = vst [vmem:[%s15 + $0x60] sm:$0xff] %v6156
  %6274 = vst [vmem:[%s15 + $0x68] sm:$0xff] %v6158
  %6275 = vst [vmem:[%s15 + $0x70] sm:$0xff] %v6245
  %6276 = vst [vmem:[%s15 + $0x78] sm:$0xff] %v6247
  %6277 = vst [vmem:[%s15 + $0x80] sm:$0xff] %v5984
  %6278 = vst [vmem:[%s15 + $0x88] sm:$0xff] %v5986
  %6279 = vst [vmem:[%s15 + $0x90] sm:$0xff] %v6073
  %6280 = vst [vmem:[%s15 + $0x98] sm:$0xff] %v6075
  %6281 = vst [vmem:[%s15 + $0xa0] sm:$0xff] %v6162
  %6282 = vst [vmem:[%s15 + $0xa8] sm:$0xff] %v6164
  %6283 = vst [vmem:[%s15 + $0xb0] sm:$0xff] %v6251
  %6284 = vst [vmem:[%s15 + $0xb8] sm:$0xff] %v6253
  %6285 = vst [vmem:[%s15 + $0xc0] sm:$0xff] %v5990
  %6286 = vst [vmem:[%s15 + $0xc8] sm:$0xff] %v5992
  %6287 = vst [vmem:[%s15 + $0xd0] sm:$0xff] %v6079
  %6288 = vst [vmem:[%s15 + $0xd8] sm:$0xff] %v6081
  %6289 = vst [vmem:[%s15 + $0xe0] sm:$0xff] %v6168
  %6290 = vst [vmem:[%s15 + $0xe8] sm:$0xff] %v6170
  %6291 = vst [vmem:[%s15 + $0xf0] sm:$0xff] %v6257
  %6292 = vst [vmem:[%s15 + $0xf8] sm:$0xff] %v6259
  // Predicated region
  $region62: #{pair_layer_forward.1} parent=0 // pred_check
    _
  $region63: #{pair_layer_forward.1} parent=0 // pred_check_branch
    %6294 = sbr.rel (0) target = $region65
  $region64: #{pair_layer_forward.1} parent=0 // pred_region
    _
  $region65: #{pair_layer_forward.1} parent=0 // pred_fallthru
    _
  // Predicated region
  $region66: #{pair_layer_forward.1} parent=0 // pred_check
    _
  $region67: #{pair_layer_forward.1} parent=0 // pred_check_branch
    %6296 = sbr.rel (0) target = $region69
  $region68: #{pair_layer_forward.1} parent=0 // pred_region
    _
  $region69: #{pair_layer_forward.1} parent=0 // pred_fallthru
    _

</llo_original>
